<compile_context>
chip_gen: v6e
topology: v6e:2x2x1
jax: 0.10.0
libtpu: 0.0.40
codegen_flags: <defaults>
</compile_context>

<pallas_src>
import functools

import numpy as np
import jax
import jax.numpy as jnp
from jax.experimental import pallas as pl
from jax.experimental.pallas import tpu as pltpu

EPS = 1e-5  # BatchNorm eps


def _round_up(x, m):
    return ((x + m - 1) // m) * m


# ----------------------------------------------------------------------------
# Kernel 1: 3x3 conv (pad=1) + BatchNorm(eval) + ReLU, grid over batch.
#
# The padded image is widened to Wp = round_up(W+2, 8) columns so that the
# per-row-band flatten (H, Wp, Cin) -> (H*Wp, Cin) lines up with the (8,128)
# tiling.  For kernel column dx the contribution of tap (dy,dx) to output row
# r = h*Wp + w is z[r+dx]; that shift is a cheap sublane rotation
# (pltpu.roll).  Roll wrap-around and the extra zero pad columns only pollute
# flat rows with w >= W, which are sliced away before the store, so valid
# outputs are exact.
# ----------------------------------------------------------------------------
def _conv3x3_bn_relu_kernel(x_ref, w_ref, s_ref, b_ref, o_ref, acc_ref, *,
                            H, W, Wp):
    x = x_ref[0]                                    # (H+2, Wp, Cin) bf16
    P = H * Wp
    for dy in range(3):
        band = x[dy:dy + H].reshape(P, -1)          # (P, Cin)
        zsum = jnp.dot(band, w_ref[3 * dy],
                       preferred_element_type=jnp.float32)         # dx == 0
        for dx in (1, 2):
            z = jnp.dot(band, w_ref[3 * dy + dx],
                        preferred_element_type=jnp.float32)
            # want zsh[r] = z[r + dx]; pltpu.roll follows jnp.roll semantics
            # (out[i] = in[(i - shift) mod n])  =>  shift = P - dx.
            zsum = zsum + pltpu.roll(z, shift=P - dx, axis=0)
        if dy == 0:
            acc_ref[...] = zsum
        else:
            acc_ref[...] += zsum
    y = jnp.maximum(acc_ref[...] * s_ref[...] + b_ref[...], 0.0)
    o_ref[0] = y.reshape(H, Wp, -1)[:, :W, :].astype(o_ref.dtype)


def conv3x3_bn_relu(x_nhwc, w_oihw, scale, shift, out_dtype=jnp.bfloat16):
    """3x3 conv (padding=1) + folded BN + ReLU.  Input/weights go bf16 to MXU."""
    B, H, W, Cin = x_nhwc.shape
    Cout = w_oihw.shape[0]
    Wp = _round_up(W + 2, 8)
    # TODO(synk): express the 1-pixel halo via row-tiled manual DMA instead of
    # a wrapper-side jnp.pad (saves one HBM pass), and row-tile H for v7x VMEM
    # at production sizes; raise vmem_limit_bytes accordingly.
    xp = jnp.pad(x_nhwc.astype(jnp.bfloat16),
                 ((0, 0), (1, 1), (1, Wp - W - 1), (0, 0)))
    w9 = jnp.transpose(w_oihw, (2, 3, 1, 0)).reshape(9, Cin, Cout)
    w9 = w9.astype(jnp.bfloat16)
    scale = scale.reshape(1, Cout).astype(jnp.float32)
    shift = shift.reshape(1, Cout).astype(jnp.float32)

    kernel = functools.partial(_conv3x3_bn_relu_kernel, H=H, W=W, Wp=Wp)
    return pl.pallas_call(
        kernel,
        out_shape=jax.ShapeDtypeStruct((B, H, W, Cout), out_dtype),
        grid=(B,),
        in_specs=[
            pl.BlockSpec((1, H + 2, Wp, Cin), lambda b: (b, 0, 0, 0)),
            pl.BlockSpec((9, Cin, Cout), lambda b: (0, 0, 0)),
            pl.BlockSpec((1, Cout), lambda b: (0, 0)),
            pl.BlockSpec((1, Cout), lambda b: (0, 0)),
        ],
        out_specs=pl.BlockSpec((1, H, W, Cout), lambda b: (b, 0, 0, 0)),
        scratch_shapes=[pltpu.VMEM((H * Wp, Cout), jnp.float32)],
        compiler_params=pltpu.CompilerParams(dimension_semantics=("parallel",)),
    )(xp, w9, scale, shift)


# ----------------------------------------------------------------------------
# Kernel 2: fused "heads" — RM0.conv1, RM1.conv1 and cls_conv as one M-tiled
# matmul.  The three (Ki, C) 1x1-conv weights are concatenated and the output
# dimension zero-padded to a multiple of 128 so stores are lane-dense; the
# wrapper slices fc0 / fc1 / logits back out.
# ----------------------------------------------------------------------------
def _fused_heads_kernel(x_ref, w_ref, b_ref, o_ref):
    y = jnp.dot(x_ref[...].astype(jnp.bfloat16), w_ref[...],
                preferred_element_type=jnp.float32)
    o_ref[...] = y + b_ref[...]


def fused_heads_apply(x_mat, w_list, b_list, tm=256):
    """x_mat: (M, C) bf16/f32; w_list[i]: (Ki, C); b_list[i]: (Ki,)."""
    M, C = x_mat.shape
    wcat = jnp.concatenate([w.astype(jnp.float32) for w in w_list], axis=0)
    bcat = jnp.concatenate([b.astype(jnp.float32) for b in b_list], axis=0)
    ktot = wcat.shape[0]
    npad = _round_up(max(ktot, 1), 128)
    wpad = jnp.zeros((C, npad), jnp.bfloat16)
    wpad = wpad.at[:, :ktot].set(wcat.T.astype(jnp.bfloat16))
    bpad = jnp.zeros((1, npad), jnp.float32).at[:, :ktot].set(bcat)

    tm = min(tm, M)
    out = pl.pallas_call(
        _fused_heads_kernel,
        out_shape=jax.ShapeDtypeStruct((M, npad), jnp.float32),
        grid=(pl.cdiv(M, tm),),
        in_specs=[
            pl.BlockSpec((tm, C), lambda i: (i, 0)),
            pl.BlockSpec((C, npad), lambda i: (0, 0)),
            pl.BlockSpec((1, npad), lambda i: (0, 0)),
        ],
        out_specs=pl.BlockSpec((tm, npad), lambda i: (i, 0)),
        compiler_params=pltpu.CompilerParams(dimension_semantics=("parallel",)),
    )(x_mat, wpad, bpad)
    return out  # (M, npad) f32; caller slices columns


# ----------------------------------------------------------------------------
# Kernel 3: bilinear x4 upsample (align_corners=True), NHWC, channels on lanes.
#   t   = Ly @ X            X: (H, W*C)   -> (Ho, W*C)      (cached in VMEM)
#   out = t @ kron(Lx^T, I) -> (Ho, Wo*C) (column-tiled, lane-dense)
# ----------------------------------------------------------------------------
def _upsample_kernel(x_ref, ly_ref, bmat_ref, o_ref, t_ref):
    @pl.when(pl.program_id(1) == 0)
    def _():
        t = jnp.dot(ly_ref[...], x_ref[0], preferred_element_type=jnp.float32)
        t_ref[...] = t.astype(t_ref.dtype)

    o_ref[0] = jnp.dot(t_ref[...], bmat_ref[...],
                       preferred_element_type=jnp.float32)


def _bilinear_matrix(n_in, n_out):
    # UpsamplingBilinear2d == bilinear with align_corners=True
    m = np.zeros((n_out, n_in), np.float32)
    scale = (n_in - 1) / (n_out - 1)
    for i in range(n_out):
        src = i * scale
        i0 = int(np.floor(src))
        i1 = min(i0 + 1, n_in - 1)
        f = src - i0
        m[i, i0] += 1.0 - f
        m[i, i1] += f
    return m


def upsample_bilinear4(logits_nhwc, tn=512):
    B, H, W, NC = logits_nhwc.shape
    Ho, Wo = 4 * H, 4 * W
    ly = jnp.asarray(_bilinear_matrix(H, Ho), jnp.bfloat16)            # (Ho, H)
    lx = _bilinear_matrix(W, Wo)                                       # (Wo, W)
    # Block-diagonal (in channels) column-upsample operator: lane-dense matmul
    # at the cost of a factor-NC FLOP redundancy (negligible for this stage).
    bmat = jnp.asarray(np.kron(lx.T, np.eye(NC, dtype=np.float32)),
                       jnp.bfloat16)                                   # (W*NC, Wo*NC)
    WN, PN = W * NC, Wo * NC
    x = logits_nhwc.reshape(B, H, WN).astype(jnp.bfloat16)

    tn = min(tn, PN)
    out = pl.pallas_call(
        _upsample_kernel,
        out_shape=jax.ShapeDtypeStruct((B, Ho, PN), jnp.float32),
        grid=(B, pl.cdiv(PN, tn)),
        in_specs=[
            pl.BlockSpec((1, H, WN), lambda b, j: (b, 0, 0)),
            pl.BlockSpec((Ho, H), lambda b, j: (0, 0)),
            pl.BlockSpec((WN, tn), lambda b, j: (0, j)),
        ],
        out_specs=pl.BlockSpec((1, Ho, tn), lambda b, j: (b, 0, j)),
        scratch_shapes=[pltpu.VMEM((Ho, WN), jnp.bfloat16)],
        compiler_params=pltpu.CompilerParams(
            dimension_semantics=("parallel", "arbitrary")),
    )(x, ly, bmat)
    # (B, Ho, Wo, NC) -> NCHW to match the PyTorch return contract.
    return out.reshape(B, Ho, Wo, NC).transpose(0, 3, 1, 2)


# ----------------------------------------------------------------------------
# Deterministic parameter init (mirrors the module's __init__ init scheme)
# ----------------------------------------------------------------------------
def _kaiming(key, out_c, in_c, kh, kw):
    fan_out = out_c * kh * kw
    std = float(np.sqrt(2.0 / fan_out))
    return jax.random.normal(key, (out_c, in_c, kh, kw), jnp.float32) * std


def _conv_bias(key, out_c, in_c, kh, kw):
    fan_in = in_c * kh * kw
    bound = float(1.0 / np.sqrt(fan_in))
    return jax.random.uniform(key, (out_c,), jnp.float32, -bound, bound)


def init_params(key, c_aspp, c_cat, k0, k1, n_classes):
    ks = jax.random.split(key, 12)
    return {
        # cat_conv: [Conv3x3+BN+ReLU+Drop] x 2
        "cat_w1": _kaiming(ks[0], c_aspp, c_cat, 3, 3),
        "cat_b1": _conv_bias(ks[1], c_aspp, c_cat, 3, 3),
        "cat_w2": _kaiming(ks[2], c_aspp, c_aspp, 3, 3),
        "cat_b2": _conv_bias(ks[3], c_aspp, c_aspp, 3, 3),
        # RM0 / RM1 refine blocks (only conv1 contributes to the outputs)
        "rm0_w1": _kaiming(ks[4], k0, c_aspp, 1, 1),
        "rm0_b1": _conv_bias(ks[5], k0, c_aspp, 1, 1),
        "rm1_w1": _kaiming(ks[7], k1, c_aspp, 1, 1),
        "rm1_b1": _conv_bias(ks[8], k1, c_aspp, 1, 1),
        # cls_conv
        "cls_w": _kaiming(ks[10], n_classes, c_aspp, 1, 1),
        "cls_b": _conv_bias(ks[11], n_classes, c_aspp, 1, 1),
    }


# ----------------------------------------------------------------------------
# Forward (phase != 'orig': feature_cat is given, NCHW)
# ----------------------------------------------------------------------------
def deeplab_forward(params, feature_cat):
    B, _, H, W = feature_cat.shape
    C = params["cat_w1"].shape[0]                 # MODEL_ASPP_OUTDIM
    K0 = params["rm0_w1"].shape[0]
    K1 = params["rm1_w1"].shape[0]
    NC = params["cls_w"].shape[0]
    bn_scale = jnp.full((C,), 1.0 / np.sqrt(1.0 + EPS), jnp.float32)

    x_nhwc = jnp.transpose(feature_cat, (0, 2, 3, 1)).astype(jnp.bfloat16)

    # ---- cat_conv: [Conv3x3+BN+ReLU+Drop] x 2 (dropout = identity in eval) --
    h1 = conv3x3_bn_relu(x_nhwc, params["cat_w1"], bn_scale,
                         params["cat_b1"] * bn_scale)
    feat = conv3x3_bn_relu(h1, params["cat_w2"], bn_scale,
                           params["cat_b2"] * bn_scale)          # (B,H,W,C) bf16

    feat_mat = feat.reshape(B * H * W, C)

    # ---- fused RM0.conv1 + RM1.conv1 + cls_conv (single pass over feat) -----
    # NOTE: refine_block's softmax/bmm/conv2 residual only produces `feature1`,
    # which the PyTorch forward never returns, so it is intentionally omitted.
    heads = fused_heads_apply(
        feat_mat,
        [params["rm0_w1"].reshape(K0, C),
         params["rm1_w1"].reshape(K1, C),
         params["cls_w"].reshape(NC, C)],
        [params["rm0_b1"], params["rm1_b1"], params["cls_b"]],
    )                                                            # (M, 128) f32
    fc0 = heads[:, :K0]
    fc1 = heads[:, K0:K0 + K1]
    logits = heads[:, K0 + K1:K0 + K1 + NC]

    # ---- x4 bilinear upsample of the classifier logits ---------------------
    result = upsample_bilinear4(logits.reshape(B, H, W, NC))     # (B,NC,4H,4W)

    cluster0 = fc0.reshape(B, H, W, K0).transpose(0, 3, 1, 2)
    cluster1 = fc1.reshape(B, H, W, K1).transpose(0, 3, 1, 2)
    return feature_cat, [cluster0, cluster1], result


if __name__ == "__main__":
    # Small synthetic config:
    #   MODEL_ASPP_OUTDIM=32, MODEL_SHORTCUT_DIM=16 (-> feature_cat has 48 ch),
    #   Cluster0=8, Cluster1=16, MODEL_NUM_CLASSES=8, B=2, H=W=16.
    B, H, W = 2, 16, 16
    C_ASPP, C_SHORT = 32, 16
    K0, K1, NCLS = 8, 16, 8
    C_CAT = C_ASPP + C_SHORT

    root = jax.random.PRNGKey(0)
    pkey, xkey = jax.random.split(root)
    params = init_params(pkey, C_ASPP, C_CAT, K0, K1, NCLS)
    feature_cat = jax.random.normal(xkey, (B, C_CAT, H, W), jnp.float32)

    fwd = jax.jit(deeplab_forward)
    feat_cat_out, clusters, result = fwd(params, feature_cat)
    jax.block_until_ready((feat_cat_out, clusters, result))

    assert feat_cat_out.shape == (B, C_CAT, H, W)
    assert clusters[0].shape == (B, K0, H, W)
    assert clusters[1].shape == (B, K1, H, W)
    assert result.shape == (B, NCLS, 4 * H, 4 * W)
    assert all(bool(jnp.isfinite(a.astype(jnp.float32)).all()) for a in
               (feat_cat_out, clusters[0], clusters[1], result))
    print("KERNEL_OK")
</pallas_src>

<mosaic_0001>
module attributes {stable_mosaic.version = 11 : i64} {
  func.func @_conv3x3_bn_relu_kernel(%arg0: i32, %arg1: memref<1x18x24x48xbf16, #tpu.memory_space<vmem>>, %arg2: memref<9x48x32xbf16, #tpu.memory_space<vmem>>, %arg3: memref<1x32xf32, #tpu.memory_space<vmem>>, %arg4: memref<1x32xf32, #tpu.memory_space<vmem>>, %arg5: memref<1x16x16x32xbf16, #tpu.memory_space<vmem>>, %arg6: memref<384x32xf32, #tpu.memory_space<vmem>>) attributes {dimension_semantics = [#tpu.dimension_semantics<parallel>], iteration_bounds = array<i64: 2>, scalar_prefetch = 0 : i64, scratch_operands = 1 : i64, tpu.core_type = #tpu.core_type<tc>, window_params = [{transform_indices = @transform_0, window_bounds = array<i64: 1, 18, 24, 48>}, {pipeline_mode = #tpu.pipeline_mode<synchronous>, transform_indices = @transform_1, window_bounds = array<i64: 9, 48, 32>}, {pipeline_mode = #tpu.pipeline_mode<synchronous>, transform_indices = @transform_2, window_bounds = array<i64: 1, 32>}, {pipeline_mode = #tpu.pipeline_mode<synchronous>, transform_indices = @transform_3, window_bounds = array<i64: 1, 32>}, {transform_indices = @transform_4, window_bounds = array<i64: 1, 16, 16, 32>}]} {
    %c0 = arith.constant 0 : index
    %c0_0 = arith.constant 0 : index
    %c0_1 = arith.constant 0 : index
    %c0_2 = arith.constant 0 : index
    %0 = vector.load %arg1[%c0, %c0_0, %c0_1, %c0_2] : memref<1x18x24x48xbf16, #tpu.memory_space<vmem>>, vector<1x18x24x48xbf16>
    %1 = vector.shape_cast %0 : vector<1x18x24x48xbf16> to vector<18x24x48xbf16>
    %2 = vector.extract_strided_slice %1 {offsets = [0, 0, 0], sizes = [16, 24, 48], strides = [1, 1, 1]} : vector<18x24x48xbf16> to vector<16x24x48xbf16>
    %3 = vector.shape_cast %2 : vector<16x24x48xbf16> to vector<384x48xbf16>
    %c0_3 = arith.constant 0 : index
    %c0_4 = arith.constant 0 : index
    %c0_5 = arith.constant 0 : index
    %4 = vector.load %arg2[%c0_3, %c0_4, %c0_5] : memref<9x48x32xbf16, #tpu.memory_space<vmem>>, vector<1x48x32xbf16>
    %5 = vector.shape_cast %4 : vector<1x48x32xbf16> to vector<48x32xbf16>
    %cst = arith.constant dense<0.000000e+00> : vector<384x32xf32>
    %6 = tpu.matmul %3, %5, %cst {dimension_numbers = #tpu.dot_dimension_numbers<[1], [0], [0], [1], [0, 0, 1, 1], [], []>} : vector<384x48xbf16>, vector<48x32xbf16>, vector<384x32xf32> -> vector<384x32xf32>
    %c1 = arith.constant 1 : index
    %c0_6 = arith.constant 0 : index
    %c0_7 = arith.constant 0 : index
    %7 = vector.load %arg2[%c1, %c0_6, %c0_7] : memref<9x48x32xbf16, #tpu.memory_space<vmem>>, vector<1x48x32xbf16>
    %8 = vector.shape_cast %7 : vector<1x48x32xbf16> to vector<48x32xbf16>
    %cst_8 = arith.constant dense<0.000000e+00> : vector<384x32xf32>
    %9 = tpu.matmul %3, %8, %cst_8 {dimension_numbers = #tpu.dot_dimension_numbers<[1], [0], [0], [1], [0, 0, 1, 1], [], []>} : vector<384x48xbf16>, vector<48x32xbf16>, vector<384x32xf32> -> vector<384x32xf32>
    %c383_i32 = arith.constant 383 : i32
    %10 = tpu.dynamic_rotate %9 by %c383_i32 dim 0 : vector<384x32xf32>, i32 -> vector<384x32xf32>
    %11 = arith.addf %6, %10 : vector<384x32xf32>
    %c2 = arith.constant 2 : index
    %c0_9 = arith.constant 0 : index
    %c0_10 = arith.constant 0 : index
    %12 = vector.load %arg2[%c2, %c0_9, %c0_10] : memref<9x48x32xbf16, #tpu.memory_space<vmem>>, vector<1x48x32xbf16>
    %13 = vector.shape_cast %12 : vector<1x48x32xbf16> to vector<48x32xbf16>
    %cst_11 = arith.constant dense<0.000000e+00> : vector<384x32xf32>
    %14 = tpu.matmul %3, %13, %cst_11 {dimension_numbers = #tpu.dot_dimension_numbers<[1], [0], [0], [1], [0, 0, 1, 1], [], []>} : vector<384x48xbf16>, vector<48x32xbf16>, vector<384x32xf32> -> vector<384x32xf32>
    %c382_i32 = arith.constant 382 : i32
    %15 = tpu.dynamic_rotate %14 by %c382_i32 dim 0 : vector<384x32xf32>, i32 -> vector<384x32xf32>
    %16 = arith.addf %11, %15 : vector<384x32xf32>
    %c0_12 = arith.constant 0 : index
    %c0_13 = arith.constant 0 : index
    %17 = vector.load %arg6[%c0_12, %c0_13] : memref<384x32xf32, #tpu.memory_space<vmem>>, vector<384x32xf32>
    tpu.vector_store %arg6[%c0_12, %c0_13], %16 {strides = array<i32>} : memref<384x32xf32, #tpu.memory_space<vmem>>, vector<384x32xf32>,
    %18 = vector.extract_strided_slice %1 {offsets = [1, 0, 0], sizes = [16, 24, 48], strides = [1, 1, 1]} : vector<18x24x48xbf16> to vector<16x24x48xbf16>
    %19 = vector.shape_cast %18 : vector<16x24x48xbf16> to vector<384x48xbf16>
    %c3 = arith.constant 3 : index
    %c0_14 = arith.constant 0 : index
    %c0_15 = arith.constant 0 : index
    %20 = vector.load %arg2[%c3, %c0_14, %c0_15] : memref<9x48x32xbf16, #tpu.memory_space<vmem>>, vector<1x48x32xbf16>
    %21 = vector.shape_cast %20 : vector<1x48x32xbf16> to vector<48x32xbf16>
    %cst_16 = arith.constant dense<0.000000e+00> : vector<384x32xf32>
    %22 = tpu.matmul %19, %21, %cst_16 {dimension_numbers = #tpu.dot_dimension_numbers<[1], [0], [0], [1], [0, 0, 1, 1], [], []>} : vector<384x48xbf16>, vector<48x32xbf16>, vector<384x32xf32> -> vector<384x32xf32>
    %c4 = arith.constant 4 : index
    %c0_17 = arith.constant 0 : index
    %c0_18 = arith.constant 0 : index
    %23 = vector.load %arg2[%c4, %c0_17, %c0_18] : memref<9x48x32xbf16, #tpu.memory_space<vmem>>, vector<1x48x32xbf16>
    %24 = vector.shape_cast %23 : vector<1x48x32xbf16> to vector<48x32xbf16>
    %cst_19 = arith.constant dense<0.000000e+00> : vector<384x32xf32>
    %25 = tpu.matmul %19, %24, %cst_19 {dimension_numbers = #tpu.dot_dimension_numbers<[1], [0], [0], [1], [0, 0, 1, 1], [], []>} : vector<384x48xbf16>, vector<48x32xbf16>, vector<384x32xf32> -> vector<384x32xf32>
    %c383_i32_20 = arith.constant 383 : i32
    %26 = tpu.dynamic_rotate %25 by %c383_i32_20 dim 0 : vector<384x32xf32>, i32 -> vector<384x32xf32>
    %27 = arith.addf %22, %26 : vector<384x32xf32>
    %c5 = arith.constant 5 : index
    %c0_21 = arith.constant 0 : index
    %c0_22 = arith.constant 0 : index
    %28 = vector.load %arg2[%c5, %c0_21, %c0_22] : memref<9x48x32xbf16, #tpu.memory_space<vmem>>, vector<1x48x32xbf16>
    %29 = vector.shape_cast %28 : vector<1x48x32xbf16> to vector<48x32xbf16>
    %cst_23 = arith.constant dense<0.000000e+00> : vector<384x32xf32>
    %30 = tpu.matmul %19, %29, %cst_23 {dimension_numbers = #tpu.dot_dimension_numbers<[1], [0], [0], [1], [0, 0, 1, 1], [], []>} : vector<384x48xbf16>, vector<48x32xbf16>, vector<384x32xf32> -> vector<384x32xf32>
    %c382_i32_24 = arith.constant 382 : i32
    %31 = tpu.dynamic_rotate %30 by %c382_i32_24 dim 0 : vector<384x32xf32>, i32 -> vector<384x32xf32>
    %32 = arith.addf %27, %31 : vector<384x32xf32>
    %c0_25 = arith.constant 0 : index
    %c0_26 = arith.constant 0 : index
    %33 = vector.load %arg6[%c0_25, %c0_26] : memref<384x32xf32, #tpu.memory_space<vmem>>, vector<384x32xf32>
    %34 = arith.addf %33, %32 : vector<384x32xf32>
    %c0_27 = arith.constant 0 : index
    %c0_28 = arith.constant 0 : index
    %35 = vector.load %arg6[%c0_27, %c0_28] : memref<384x32xf32, #tpu.memory_space<vmem>>, vector<384x32xf32>
    tpu.vector_store %arg6[%c0_27, %c0_28], %34 {strides = array<i32>} : memref<384x32xf32, #tpu.memory_space<vmem>>, vector<384x32xf32>,
    %36 = vector.extract_strided_slice %1 {offsets = [2, 0, 0], sizes = [16, 24, 48], strides = [1, 1, 1]} : vector<18x24x48xbf16> to vector<16x24x48xbf16>
    %37 = vector.shape_cast %36 : vector<16x24x48xbf16> to vector<384x48xbf16>
    %c6 = arith.constant 6 : index
    %c0_29 = arith.constant 0 : index
    %c0_30 = arith.constant 0 : index
    %38 = vector.load %arg2[%c6, %c0_29, %c0_30] : memref<9x48x32xbf16, #tpu.memory_space<vmem>>, vector<1x48x32xbf16>
    %39 = vector.shape_cast %38 : vector<1x48x32xbf16> to vector<48x32xbf16>
    %cst_31 = arith.constant dense<0.000000e+00> : vector<384x32xf32>
    %40 = tpu.matmul %37, %39, %cst_31 {dimension_numbers = #tpu.dot_dimension_numbers<[1], [0], [0], [1], [0, 0, 1, 1], [], []>} : vector<384x48xbf16>, vector<48x32xbf16>, vector<384x32xf32> -> vector<384x32xf32>
    %c7 = arith.constant 7 : index
    %c0_32 = arith.constant 0 : index
    %c0_33 = arith.constant 0 : index
    %41 = vector.load %arg2[%c7, %c0_32, %c0_33] : memref<9x48x32xbf16, #tpu.memory_space<vmem>>, vector<1x48x32xbf16>
    %42 = vector.shape_cast %41 : vector<1x48x32xbf16> to vector<48x32xbf16>
    %cst_34 = arith.constant dense<0.000000e+00> : vector<384x32xf32>
    %43 = tpu.matmul %37, %42, %cst_34 {dimension_numbers = #tpu.dot_dimension_numbers<[1], [0], [0], [1], [0, 0, 1, 1], [], []>} : vector<384x48xbf16>, vector<48x32xbf16>, vector<384x32xf32> -> vector<384x32xf32>
    %c383_i32_35 = arith.constant 383 : i32
    %44 = tpu.dynamic_rotate %43 by %c383_i32_35 dim 0 : vector<384x32xf32>, i32 -> vector<384x32xf32>
    %45 = arith.addf %40, %44 : vector<384x32xf32>
    %c8 = arith.constant 8 : index
    %c0_36 = arith.constant 0 : index
    %c0_37 = arith.constant 0 : index
    %46 = vector.load %arg2[%c8, %c0_36, %c0_37] : memref<9x48x32xbf16, #tpu.memory_space<vmem>>, vector<1x48x32xbf16>
    %47 = vector.shape_cast %46 : vector<1x48x32xbf16> to vector<48x32xbf16>
    %cst_38 = arith.constant dense<0.000000e+00> : vector<384x32xf32>
    %48 = tpu.matmul %37, %47, %cst_38 {dimension_numbers = #tpu.dot_dimension_numbers<[1], [0], [0], [1], [0, 0, 1, 1], [], []>} : vector<384x48xbf16>, vector<48x32xbf16>, vector<384x32xf32> -> vector<384x32xf32>
    %c382_i32_39 = arith.constant 382 : i32
    %49 = tpu.dynamic_rotate %48 by %c382_i32_39 dim 0 : vector<384x32xf32>, i32 -> vector<384x32xf32>
    %50 = arith.addf %45, %49 : vector<384x32xf32>
    %c0_40 = arith.constant 0 : index
    %c0_41 = arith.constant 0 : index
    %51 = vector.load %arg6[%c0_40, %c0_41] : memref<384x32xf32, #tpu.memory_space<vmem>>, vector<384x32xf32>
    %52 = arith.addf %51, %50 : vector<384x32xf32>
    %c0_42 = arith.constant 0 : index
    %c0_43 = arith.constant 0 : index
    %53 = vector.load %arg6[%c0_42, %c0_43] : memref<384x32xf32, #tpu.memory_space<vmem>>, vector<384x32xf32>
    tpu.vector_store %arg6[%c0_42, %c0_43], %52 {strides = array<i32>} : memref<384x32xf32, #tpu.memory_space<vmem>>, vector<384x32xf32>,
    %c0_44 = arith.constant 0 : index
    %c0_45 = arith.constant 0 : index
    %54 = vector.load %arg6[%c0_44, %c0_45] : memref<384x32xf32, #tpu.memory_space<vmem>>, vector<384x32xf32>
    %c0_46 = arith.constant 0 : index
    %c0_47 = arith.constant 0 : index
    %55 = vector.load %arg3[%c0_46, %c0_47] : memref<1x32xf32, #tpu.memory_space<vmem>>, vector<1x32xf32>
    %56 = vector.broadcast %55 : vector<1x32xf32> to vector<384x32xf32>
    %57 = arith.mulf %54, %56 : vector<384x32xf32>
    %c0_48 = arith.constant 0 : index
    %c0_49 = arith.constant 0 : index
    %58 = vector.load %arg4[%c0_48, %c0_49] : memref<1x32xf32, #tpu.memory_space<vmem>>, vector<1x32xf32>
    %59 = vector.broadcast %58 : vector<1x32xf32> to vector<384x32xf32>
    %60 = arith.addf %57, %59 : vector<384x32xf32>
    %cst_50 = arith.constant 0.000000e+00 : f32
    %61 = vector.broadcast %cst_50 : f32 to vector<384x32xf32>
    %62 = arith.maximumf %60, %61 : vector<384x32xf32>
    %63 = vector.shape_cast %62 : vector<384x32xf32> to vector<16x24x32xf32>
    %64 = vector.extract_strided_slice %63 {offsets = [0, 0, 0], sizes = [16, 16, 32], strides = [1, 1, 1]} : vector<16x24x32xf32> to vector<16x16x32xf32>
    %65 = arith.truncf %64 : vector<16x16x32xf32> to vector<16x16x32xbf16>
    %c0_51 = arith.constant 0 : index
    %c0_52 = arith.constant 0 : index
    %c0_53 = arith.constant 0 : index
    %c0_54 = arith.constant 0 : index
    %66 = vector.load %arg5[%c0_51, %c0_52, %c0_53, %c0_54] : memref<1x16x16x32xbf16, #tpu.memory_space<vmem>>, vector<1x16x16x32xbf16>
    %67 = vector.shape_cast %66 : vector<1x16x16x32xbf16> to vector<16x16x32xbf16>
    %68 = vector.shape_cast %65 : vector<16x16x32xbf16> to vector<1x16x16x32xbf16>
    tpu.vector_store %arg5[%c0_51, %c0_52, %c0_53, %c0_54], %68 {strides = array<i32>} : memref<1x16x16x32xbf16, #tpu.memory_space<vmem>>, vector<1x16x16x32xbf16>,
    return
  }
  func.func @transform_0(%arg0: i32) -> (i32, i32, i32, i32) {
    %c0_i32 = arith.constant 0 : i32
    %c0_i32_0 = arith.constant 0 : i32
    %c0_i32_1 = arith.constant 0 : i32
    %c0_i32_2 = arith.constant 0 : i32
    return %arg0, %c0_i32, %c0_i32_0, %c0_i32_1 : i32, i32, i32, i32
  }
  func.func @transform_1(%arg0: i32) -> (i32, i32, i32) {
    %c0_i32 = arith.constant 0 : i32
    %c0_i32_0 = arith.constant 0 : i32
    %c0_i32_1 = arith.constant 0 : i32
    %c0_i32_2 = arith.constant 0 : i32
    return %c0_i32, %c0_i32_0, %c0_i32_1 : i32, i32, i32
  }
  func.func @transform_2(%arg0: i32) -> (i32, i32) {
    %c0_i32 = arith.constant 0 : i32
    %c0_i32_0 = arith.constant 0 : i32
    %c0_i32_1 = arith.constant 0 : i32
    return %c0_i32, %c0_i32_0 : i32, i32
  }
  func.func @transform_3(%arg0: i32) -> (i32, i32) {
    %c0_i32 = arith.constant 0 : i32
    %c0_i32_0 = arith.constant 0 : i32
    %c0_i32_1 = arith.constant 0 : i32
    return %c0_i32, %c0_i32_0 : i32, i32
  }
  func.func @transform_4(%arg0: i32) -> (i32, i32, i32, i32) {
    %c0_i32 = arith.constant 0 : i32
    %c0_i32_0 = arith.constant 0 : i32
    %c0_i32_1 = arith.constant 0 : i32
    %c0_i32_2 = arith.constant 0 : i32
    return %arg0, %c0_i32, %c0_i32_0, %c0_i32_1 : i32, i32, i32, i32
  }
}

module attributes {stable_mosaic.version = 11 : i64} {
  func.func @_conv3x3_bn_relu_kernel(%arg0: i32, %arg1: memref<1x18x24x32xbf16, #tpu.memory_space<vmem>>, %arg2: memref<9x32x32xbf16, #tpu.memory_space<vmem>>, %arg3: memref<1x32xf32, #tpu.memory_space<vmem>>, %arg4: memref<1x32xf32, #tpu.memory_space<vmem>>, %arg5: memref<1x16x16x32xbf16, #tpu.memory_space<vmem>>, %arg6: memref<384x32xf32, #tpu.memory_space<vmem>>) attributes {dimension_semantics = [#tpu.dimension_semantics<parallel>], iteration_bounds = array<i64: 2>, scalar_prefetch = 0 : i64, scratch_operands = 1 : i64, tpu.core_type = #tpu.core_type<tc>, window_params = [{transform_indices = @transform_0, window_bounds = array<i64: 1, 18, 24, 32>}, {pipeline_mode = #tpu.pipeline_mode<synchronous>, transform_indices = @transform_1, window_bounds = array<i64: 9, 32, 32>}, {pipeline_mode = #tpu.pipeline_mode<synchronous>, transform_indices = @transform_2, window_bounds = array<i64: 1, 32>}, {pipeline_mode = #tpu.pipeline_mode<synchronous>, transform_indices = @transform_3, window_bounds = array<i64: 1, 32>}, {transform_indices = @transform_4, window_bounds = array<i64: 1, 16, 16, 32>}]} {
    %c0 = arith.constant 0 : index
    %c0_0 = arith.constant 0 : index
    %c0_1 = arith.constant 0 : index
    %c0_2 = arith.constant 0 : index
    %0 = vector.load %arg1[%c0, %c0_0, %c0_1, %c0_2] : memref<1x18x24x32xbf16, #tpu.memory_space<vmem>>, vector<1x18x24x32xbf16>
    %1 = vector.shape_cast %0 : vector<1x18x24x32xbf16> to vector<18x24x32xbf16>
    %2 = vector.extract_strided_slice %1 {offsets = [0, 0, 0], sizes = [16, 24, 32], strides = [1, 1, 1]} : vector<18x24x32xbf16> to vector<16x24x32xbf16>
    %3 = vector.shape_cast %2 : vector<16x24x32xbf16> to vector<384x32xbf16>
    %c0_3 = arith.constant 0 : index
    %c0_4 = arith.constant 0 : index
    %c0_5 = arith.constant 0 : index
    %4 = vector.load %arg2[%c0_3, %c0_4, %c0_5] : memref<9x32x32xbf16, #tpu.memory_space<vmem>>, vector<1x32x32xbf16>
    %5 = vector.shape_cast %4 : vector<1x32x32xbf16> to vector<32x32xbf16>
    %cst = arith.constant dense<0.000000e+00> : vector<384x32xf32>
    %6 = tpu.matmul %3, %5, %cst {dimension_numbers = #tpu.dot_dimension_numbers<[1], [0], [0], [1], [0, 0, 1, 1], [], []>} : vector<384x32xbf16>, vector<32x32xbf16>, vector<384x32xf32> -> vector<384x32xf32>
    %c1 = arith.constant 1 : index
    %c0_6 = arith.constant 0 : index
    %c0_7 = arith.constant 0 : index
    %7 = vector.load %arg2[%c1, %c0_6, %c0_7] : memref<9x32x32xbf16, #tpu.memory_space<vmem>>, vector<1x32x32xbf16>
    %8 = vector.shape_cast %7 : vector<1x32x32xbf16> to vector<32x32xbf16>
    %cst_8 = arith.constant dense<0.000000e+00> : vector<384x32xf32>
    %9 = tpu.matmul %3, %8, %cst_8 {dimension_numbers = #tpu.dot_dimension_numbers<[1], [0], [0], [1], [0, 0, 1, 1], [], []>} : vector<384x32xbf16>, vector<32x32xbf16>, vector<384x32xf32> -> vector<384x32xf32>
    %c383_i32 = arith.constant 383 : i32
    %10 = tpu.dynamic_rotate %9 by %c383_i32 dim 0 : vector<384x32xf32>, i32 -> vector<384x32xf32>
    %11 = arith.addf %6, %10 : vector<384x32xf32>
    %c2 = arith.constant 2 : index
    %c0_9 = arith.constant 0 : index
    %c0_10 = arith.constant 0 : index
    %12 = vector.load %arg2[%c2, %c0_9, %c0_10] : memref<9x32x32xbf16, #tpu.memory_space<vmem>>, vector<1x32x32xbf16>
    %13 = vector.shape_cast %12 : vector<1x32x32xbf16> to vector<32x32xbf16>
    %cst_11 = arith.constant dense<0.000000e+00> : vector<384x32xf32>
    %14 = tpu.matmul %3, %13, %cst_11 {dimension_numbers = #tpu.dot_dimension_numbers<[1], [0], [0], [1], [0, 0, 1, 1], [], []>} : vector<384x32xbf16>, vector<32x32xbf16>, vector<384x32xf32> -> vector<384x32xf32>
    %c382_i32 = arith.constant 382 : i32
    %15 = tpu.dynamic_rotate %14 by %c382_i32 dim 0 : vector<384x32xf32>, i32 -> vector<384x32xf32>
    %16 = arith.addf %11, %15 : vector<384x32xf32>
    %c0_12 = arith.constant 0 : index
    %c0_13 = arith.constant 0 : index
    %17 = vector.load %arg6[%c0_12, %c0_13] : memref<384x32xf32, #tpu.memory_space<vmem>>, vector<384x32xf32>
    tpu.vector_store %arg6[%c0_12, %c0_13], %16 {strides = array<i32>} : memref<384x32xf32, #tpu.memory_space<vmem>>, vector<384x32xf32>,
    %18 = vector.extract_strided_slice %1 {offsets = [1, 0, 0], sizes = [16, 24, 32], strides = [1, 1, 1]} : vector<18x24x32xbf16> to vector<16x24x32xbf16>
    %19 = vector.shape_cast %18 : vector<16x24x32xbf16> to vector<384x32xbf16>
    %c3 = arith.constant 3 : index
    %c0_14 = arith.constant 0 : index
    %c0_15 = arith.constant 0 : index
    %20 = vector.load %arg2[%c3, %c0_14, %c0_15] : memref<9x32x32xbf16, #tpu.memory_space<vmem>>, vector<1x32x32xbf16>
    %21 = vector.shape_cast %20 : vector<1x32x32xbf16> to vector<32x32xbf16>
    %cst_16 = arith.constant dense<0.000000e+00> : vector<384x32xf32>
    %22 = tpu.matmul %19, %21, %cst_16 {dimension_numbers = #tpu.dot_dimension_numbers<[1], [0], [0], [1], [0, 0, 1, 1], [], []>} : vector<384x32xbf16>, vector<32x32xbf16>, vector<384x32xf32> -> vector<384x32xf32>
    %c4 = arith.constant 4 : index
    %c0_17 = arith.constant 0 : index
    %c0_18 = arith.constant 0 : index
    %23 = vector.load %arg2[%c4, %c0_17, %c0_18] : memref<9x32x32xbf16, #tpu.memory_space<vmem>>, vector<1x32x32xbf16>
    %24 = vector.shape_cast %23 : vector<1x32x32xbf16> to vector<32x32xbf16>
    %cst_19 = arith.constant dense<0.000000e+00> : vector<384x32xf32>
    %25 = tpu.matmul %19, %24, %cst_19 {dimension_numbers = #tpu.dot_dimension_numbers<[1], [0], [0], [1], [0, 0, 1, 1], [], []>} : vector<384x32xbf16>, vector<32x32xbf16>, vector<384x32xf32> -> vector<384x32xf32>
    %c383_i32_20 = arith.constant 383 : i32
    %26 = tpu.dynamic_rotate %25 by %c383_i32_20 dim 0 : vector<384x32xf32>, i32 -> vector<384x32xf32>
    %27 = arith.addf %22, %26 : vector<384x32xf32>
    %c5 = arith.constant 5 : index
    %c0_21 = arith.constant 0 : index
    %c0_22 = arith.constant 0 : index
    %28 = vector.load %arg2[%c5, %c0_21, %c0_22] : memref<9x32x32xbf16, #tpu.memory_space<vmem>>, vector<1x32x32xbf16>
    %29 = vector.shape_cast %28 : vector<1x32x32xbf16> to vector<32x32xbf16>
    %cst_23 = arith.constant dense<0.000000e+00> : vector<384x32xf32>
    %30 = tpu.matmul %19, %29, %cst_23 {dimension_numbers = #tpu.dot_dimension_numbers<[1], [0], [0], [1], [0, 0, 1, 1], [], []>} : vector<384x32xbf16>, vector<32x32xbf16>, vector<384x32xf32> -> vector<384x32xf32>
    %c382_i32_24 = arith.constant 382 : i32
    %31 = tpu.dynamic_rotate %30 by %c382_i32_24 dim 0 : vector<384x32xf32>, i32 -> vector<384x32xf32>
    %32 = arith.addf %27, %31 : vector<384x32xf32>
    %c0_25 = arith.constant 0 : index
    %c0_26 = arith.constant 0 : index
    %33 = vector.load %arg6[%c0_25, %c0_26] : memref<384x32xf32, #tpu.memory_space<vmem>>, vector<384x32xf32>
    %34 = arith.addf %33, %32 : vector<384x32xf32>
    %c0_27 = arith.constant 0 : index
    %c0_28 = arith.constant 0 : index
    %35 = vector.load %arg6[%c0_27, %c0_28] : memref<384x32xf32, #tpu.memory_space<vmem>>, vector<384x32xf32>
    tpu.vector_store %arg6[%c0_27, %c0_28], %34 {strides = array<i32>} : memref<384x32xf32, #tpu.memory_space<vmem>>, vector<384x32xf32>,
    %36 = vector.extract_strided_slice %1 {offsets = [2, 0, 0], sizes = [16, 24, 32], strides = [1, 1, 1]} : vector<18x24x32xbf16> to vector<16x24x32xbf16>
    %37 = vector.shape_cast %36 : vector<16x24x32xbf16> to vector<384x32xbf16>
    %c6 = arith.constant 6 : index
    %c0_29 = arith.constant 0 : index
    %c0_30 = arith.constant 0 : index
    %38 = vector.load %arg2[%c6, %c0_29, %c0_30] : memref<9x32x32xbf16, #tpu.memory_space<vmem>>, vector<1x32x32xbf16>
    %39 = vector.shape_cast %38 : vector<1x32x32xbf16> to vector<32x32xbf16>
    %cst_31 = arith.constant dense<0.000000e+00> : vector<384x32xf32>
    %40 = tpu.matmul %37, %39, %cst_31 {dimension_numbers = #tpu.dot_dimension_numbers<[1], [0], [0], [1], [0, 0, 1, 1], [], []>} : vector<384x32xbf16>, vector<32x32xbf16>, vector<384x32xf32> -> vector<384x32xf32>
    %c7 = arith.constant 7 : index
    %c0_32 = arith.constant 0 : index
    %c0_33 = arith.constant 0 : index
    %41 = vector.load %arg2[%c7, %c0_32, %c0_33] : memref<9x32x32xbf16, #tpu.memory_space<vmem>>, vector<1x32x32xbf16>
    %42 = vector.shape_cast %41 : vector<1x32x32xbf16> to vector<32x32xbf16>
    %cst_34 = arith.constant dense<0.000000e+00> : vector<384x32xf32>
    %43 = tpu.matmul %37, %42, %cst_34 {dimension_numbers = #tpu.dot_dimension_numbers<[1], [0], [0], [1], [0, 0, 1, 1], [], []>} : vector<384x32xbf16>, vector<32x32xbf16>, vector<384x32xf32> -> vector<384x32xf32>
    %c383_i32_35 = arith.constant 383 : i32
    %44 = tpu.dynamic_rotate %43 by %c383_i32_35 dim 0 : vector<384x32xf32>, i32 -> vector<384x32xf32>
    %45 = arith.addf %40, %44 : vector<384x32xf32>
    %c8 = arith.constant 8 : index
    %c0_36 = arith.constant 0 : index
    %c0_37 = arith.constant 0 : index
    %46 = vector.load %arg2[%c8, %c0_36, %c0_37] : memref<9x32x32xbf16, #tpu.memory_space<vmem>>, vector<1x32x32xbf16>
    %47 = vector.shape_cast %46 : vector<1x32x32xbf16> to vector<32x32xbf16>
    %cst_38 = arith.constant dense<0.000000e+00> : vector<384x32xf32>
    %48 = tpu.matmul %37, %47, %cst_38 {dimension_numbers = #tpu.dot_dimension_numbers<[1], [0], [0], [1], [0, 0, 1, 1], [], []>} : vector<384x32xbf16>, vector<32x32xbf16>, vector<384x32xf32> -> vector<384x32xf32>
    %c382_i32_39 = arith.constant 382 : i32
    %49 = tpu.dynamic_rotate %48 by %c382_i32_39 dim 0 : vector<384x32xf32>, i32 -> vector<384x32xf32>
    %50 = arith.addf %45, %49 : vector<384x32xf32>
    %c0_40 = arith.constant 0 : index
    %c0_41 = arith.constant 0 : index
    %51 = vector.load %arg6[%c0_40, %c0_41] : memref<384x32xf32, #tpu.memory_space<vmem>>, vector<384x32xf32>
    %52 = arith.addf %51, %50 : vector<384x32xf32>
    %c0_42 = arith.constant 0 : index
    %c0_43 = arith.constant 0 : index
    %53 = vector.load %arg6[%c0_42, %c0_43] : memref<384x32xf32, #tpu.memory_space<vmem>>, vector<384x32xf32>
    tpu.vector_store %arg6[%c0_42, %c0_43], %52 {strides = array<i32>} : memref<384x32xf32, #tpu.memory_space<vmem>>, vector<384x32xf32>,
    %c0_44 = arith.constant 0 : index
    %c0_45 = arith.constant 0 : index
    %54 = vector.load %arg6[%c0_44, %c0_45] : memref<384x32xf32, #tpu.memory_space<vmem>>, vector<384x32xf32>
    %c0_46 = arith.constant 0 : index
    %c0_47 = arith.constant 0 : index
    %55 = vector.load %arg3[%c0_46, %c0_47] : memref<1x32xf32, #tpu.memory_space<vmem>>, vector<1x32xf32>
    %56 = vector.broadcast %55 : vector<1x32xf32> to vector<384x32xf32>
    %57 = arith.mulf %54, %56 : vector<384x32xf32>
    %c0_48 = arith.constant 0 : index
    %c0_49 = arith.constant 0 : index
    %58 = vector.load %arg4[%c0_48, %c0_49] : memref<1x32xf32, #tpu.memory_space<vmem>>, vector<1x32xf32>
    %59 = vector.broadcast %58 : vector<1x32xf32> to vector<384x32xf32>
    %60 = arith.addf %57, %59 : vector<384x32xf32>
    %cst_50 = arith.constant 0.000000e+00 : f32
    %61 = vector.broadcast %cst_50 : f32 to vector<384x32xf32>
    %62 = arith.maximumf %60, %61 : vector<384x32xf32>
    %63 = vector.shape_cast %62 : vector<384x32xf32> to vector<16x24x32xf32>
    %64 = vector.extract_strided_slice %63 {offsets = [0, 0, 0], sizes = [16, 16, 32], strides = [1, 1, 1]} : vector<16x24x32xf32> to vector<16x16x32xf32>
    %65 = arith.truncf %64 : vector<16x16x32xf32> to vector<16x16x32xbf16>
    %c0_51 = arith.constant 0 : index
    %c0_52 = arith.constant 0 : index
    %c0_53 = arith.constant 0 : index
    %c0_54 = arith.constant 0 : index
    %66 = vector.load %arg5[%c0_51, %c0_52, %c0_53, %c0_54] : memref<1x16x16x32xbf16, #tpu.memory_space<vmem>>, vector<1x16x16x32xbf16>
    %67 = vector.shape_cast %66 : vector<1x16x16x32xbf16> to vector<16x16x32xbf16>
    %68 = vector.shape_cast %65 : vector<16x16x32xbf16> to vector<1x16x16x32xbf16>
    tpu.vector_store %arg5[%c0_51, %c0_52, %c0_53, %c0_54], %68 {strides = array<i32>} : memref<1x16x16x32xbf16, #tpu.memory_space<vmem>>, vector<1x16x16x32xbf16>,
    return
  }
  func.func @transform_0(%arg0: i32) -> (i32, i32, i32, i32) {
    %c0_i32 = arith.constant 0 : i32
    %c0_i32_0 = arith.constant 0 : i32
    %c0_i32_1 = arith.constant 0 : i32
    %c0_i32_2 = arith.constant 0 : i32
    return %arg0, %c0_i32, %c0_i32_0, %c0_i32_1 : i32, i32, i32, i32
  }
  func.func @transform_1(%arg0: i32) -> (i32, i32, i32) {
    %c0_i32 = arith.constant 0 : i32
    %c0_i32_0 = arith.constant 0 : i32
    %c0_i32_1 = arith.constant 0 : i32
    %c0_i32_2 = arith.constant 0 : i32
    return %c0_i32, %c0_i32_0, %c0_i32_1 : i32, i32, i32
  }
  func.func @transform_2(%arg0: i32) -> (i32, i32) {
    %c0_i32 = arith.constant 0 : i32
    %c0_i32_0 = arith.constant 0 : i32
    %c0_i32_1 = arith.constant 0 : i32
    return %c0_i32, %c0_i32_0 : i32, i32
  }
  func.func @transform_3(%arg0: i32) -> (i32, i32) {
    %c0_i32 = arith.constant 0 : i32
    %c0_i32_0 = arith.constant 0 : i32
    %c0_i32_1 = arith.constant 0 : i32
    return %c0_i32, %c0_i32_0 : i32, i32
  }
  func.func @transform_4(%arg0: i32) -> (i32, i32, i32, i32) {
    %c0_i32 = arith.constant 0 : i32
    %c0_i32_0 = arith.constant 0 : i32
    %c0_i32_1 = arith.constant 0 : i32
    %c0_i32_2 = arith.constant 0 : i32
    return %arg0, %c0_i32, %c0_i32_0, %c0_i32_1 : i32, i32, i32, i32
  }
}

module attributes {stable_mosaic.version = 11 : i64} {
  func.func @_fused_heads_kernel(%arg0: i32, %arg1: memref<256x32xbf16, #tpu.memory_space<vmem>>, %arg2: memref<32x128xbf16, #tpu.memory_space<vmem>>, %arg3: memref<1x128xf32, #tpu.memory_space<vmem>>, %arg4: memref<256x128xf32, #tpu.memory_space<vmem>>) attributes {dimension_semantics = [#tpu.dimension_semantics<parallel>], iteration_bounds = array<i64: 2>, scalar_prefetch = 0 : i64, scratch_operands = 0 : i64, tpu.core_type = #tpu.core_type<tc>, window_params = [{transform_indices = @transform_0, window_bounds = array<i64: 256, 32>}, {pipeline_mode = #tpu.pipeline_mode<synchronous>, transform_indices = @transform_1, window_bounds = array<i64: 32, 128>}, {pipeline_mode = #tpu.pipeline_mode<synchronous>, transform_indices = @transform_2, window_bounds = array<i64: 1, 128>}, {transform_indices = @transform_3, window_bounds = array<i64: 256, 128>}]} {
    %c0 = arith.constant 0 : index
    %c0_0 = arith.constant 0 : index
    %0 = vector.load %arg1[%c0, %c0_0] : memref<256x32xbf16, #tpu.memory_space<vmem>>, vector<256x32xbf16>
    %c0_1 = arith.constant 0 : index
    %c0_2 = arith.constant 0 : index
    %1 = vector.load %arg2[%c0_1, %c0_2] : memref<32x128xbf16, #tpu.memory_space<vmem>>, vector<32x128xbf16>
    %cst = arith.constant dense<0.000000e+00> : vector<256x128xf32>
    %2 = tpu.matmul %0, %1, %cst {dimension_numbers = #tpu.dot_dimension_numbers<[1], [0], [0], [1], [0, 0, 1, 1], [], []>} : vector<256x32xbf16>, vector<32x128xbf16>, vector<256x128xf32> -> vector<256x128xf32>
    %c0_3 = arith.constant 0 : index
    %c0_4 = arith.constant 0 : index
    %3 = vector.load %arg3[%c0_3, %c0_4] : memref<1x128xf32, #tpu.memory_space<vmem>>, vector<1x128xf32>
    %4 = vector.broadcast %3 : vector<1x128xf32> to vector<256x128xf32>
    %5 = arith.addf %2, %4 : vector<256x128xf32>
    %c0_5 = arith.constant 0 : index
    %c0_6 = arith.constant 0 : index
    %6 = vector.load %arg4[%c0_5, %c0_6] : memref<256x128xf32, #tpu.memory_space<vmem>>, vector<256x128xf32>
    tpu.vector_store %arg4[%c0_5, %c0_6], %5 {strides = array<i32>} : memref<256x128xf32, #tpu.memory_space<vmem>>, vector<256x128xf32>,
    return
  }
  func.func @transform_0(%arg0: i32) -> (i32, i32) {
    %c0_i32 = arith.constant 0 : i32
    %c0_i32_0 = arith.constant 0 : i32
    return %arg0, %c0_i32 : i32, i32
  }
  func.func @transform_1(%arg0: i32) -> (i32, i32) {
    %c0_i32 = arith.constant 0 : i32
    %c0_i32_0 = arith.constant 0 : i32
    %c0_i32_1 = arith.constant 0 : i32
    return %c0_i32, %c0_i32_0 : i32, i32
  }
  func.func @transform_2(%arg0: i32) -> (i32, i32) {
    %c0_i32 = arith.constant 0 : i32
    %c0_i32_0 = arith.constant 0 : i32
    %c0_i32_1 = arith.constant 0 : i32
    return %c0_i32, %c0_i32_0 : i32, i32
  }
  func.func @transform_3(%arg0: i32) -> (i32, i32) {
    %c0_i32 = arith.constant 0 : i32
    %c0_i32_0 = arith.constant 0 : i32
    return %arg0, %c0_i32 : i32, i32
  }
}

module attributes {stable_mosaic.version = 11 : i64} {
  func.func @_upsample_kernel(%arg0: i32, %arg1: i32, %arg2: memref<1x16x128xbf16, #tpu.memory_space<vmem>>, %arg3: memref<64x16xbf16, #tpu.memory_space<vmem>>, %arg4: memref<128x512xbf16, #tpu.memory_space<vmem>>, %arg5: memref<1x64x512xf32, #tpu.memory_space<vmem>>, %arg6: memref<64x128xbf16, #tpu.memory_space<vmem>>) attributes {dimension_semantics = [#tpu.dimension_semantics<parallel>, #tpu.dimension_semantics<arbitrary>], iteration_bounds = array<i64: 2, 1>, scalar_prefetch = 0 : i64, scratch_operands = 1 : i64, tpu.core_type = #tpu.core_type<tc>, window_params = [{transform_indices = @transform_0, window_bounds = array<i64: 1, 16, 128>}, {pipeline_mode = #tpu.pipeline_mode<synchronous>, transform_indices = @transform_1, window_bounds = array<i64: 64, 16>}, {transform_indices = @transform_2, window_bounds = array<i64: 128, 512>}, {transform_indices = @transform_3, window_bounds = array<i64: 1, 64, 512>}]} {
    %c0_i32 = arith.constant 0 : i32
    %0 = arith.cmpi eq, %arg1, %c0_i32 : i32
    %1 = arith.extui %0 : i1 to i32
    %c0_i32_0 = arith.constant 0 : i32
    %2 = arith.cmpi ne, %1, %c0_i32_0 : i32
    scf.if %2 {
      %c0_7 = arith.constant 0 : index
      %c0_8 = arith.constant 0 : index
      %9 = vector.load %arg3[%c0_7, %c0_8] : memref<64x16xbf16, #tpu.memory_space<vmem>>, vector<64x16xbf16>
      %c0_9 = arith.constant 0 : index
      %c0_10 = arith.constant 0 : index
      %c0_11 = arith.constant 0 : index
      %10 = vector.load %arg2[%c0_9, %c0_10, %c0_11] : memref<1x16x128xbf16, #tpu.memory_space<vmem>>, vector<1x16x128xbf16>
      %11 = vector.shape_cast %10 : vector<1x16x128xbf16> to vector<16x128xbf16>
      %cst_12 = arith.constant dense<0.000000e+00> : vector<64x128xf32>
      %12 = tpu.matmul %9, %11, %cst_12 {dimension_numbers = #tpu.dot_dimension_numbers<[1], [0], [0], [1], [0, 0, 1, 1], [], []>} : vector<64x16xbf16>, vector<16x128xbf16>, vector<64x128xf32> -> vector<64x128xf32>
      %13 = arith.truncf %12 : vector<64x128xf32> to vector<64x128xbf16>
      %c0_13 = arith.constant 0 : index
      %c0_14 = arith.constant 0 : index
      %14 = vector.load %arg6[%c0_13, %c0_14] : memref<64x128xbf16, #tpu.memory_space<vmem>>, vector<64x128xbf16>
      tpu.vector_store %arg6[%c0_13, %c0_14], %13 {strides = array<i32>} : memref<64x128xbf16, #tpu.memory_space<vmem>>, vector<64x128xbf16>,
    } else {
    }
    %c0 = arith.constant 0 : index
    %c0_1 = arith.constant 0 : index
    %3 = vector.load %arg6[%c0, %c0_1] : memref<64x128xbf16, #tpu.memory_space<vmem>>, vector<64x128xbf16>
    %c0_2 = arith.constant 0 : index
    %c0_3 = arith.constant 0 : index
    %4 = vector.load %arg4[%c0_2, %c0_3] : memref<128x512xbf16, #tpu.memory_space<vmem>>, vector<128x512xbf16>
    %cst = arith.constant dense<0.000000e+00> : vector<64x512xf32>
    %5 = tpu.matmul %3, %4, %cst {dimension_numbers = #tpu.dot_dimension_numbers<[1], [0], [0], [1], [0, 0, 1, 1], [], []>} : vector<64x128xbf16>, vector<128x512xbf16>, vector<64x512xf32> -> vector<64x512xf32>
    %c0_4 = arith.constant 0 : index
    %c0_5 = arith.constant 0 : index
    %c0_6 = arith.constant 0 : index
    %6 = vector.load %arg5[%c0_4, %c0_5, %c0_6] : memref<1x64x512xf32, #tpu.memory_space<vmem>>, vector<1x64x512xf32>
    %7 = vector.shape_cast %6 : vector<1x64x512xf32> to vector<64x512xf32>
    %8 = vector.shape_cast %5 : vector<64x512xf32> to vector<1x64x512xf32>
    tpu.vector_store %arg5[%c0_4, %c0_5, %c0_6], %8 {strides = array<i32>} : memref<1x64x512xf32, #tpu.memory_space<vmem>>, vector<1x64x512xf32>,
    return
  }
  func.func @transform_0(%arg0: i32, %arg1: i32) -> (i32, i32, i32) {
    %c0_i32 = arith.constant 0 : i32
    %c0_i32_0 = arith.constant 0 : i32
    %c0_i32_1 = arith.constant 0 : i32
    return %arg0, %c0_i32, %c0_i32_0 : i32, i32, i32
  }
  func.func @transform_1(%arg0: i32, %arg1: i32) -> (i32, i32) {
    %c0_i32 = arith.constant 0 : i32
    %c0_i32_0 = arith.constant 0 : i32
    %c0_i32_1 = arith.constant 0 : i32
    return %c0_i32, %c0_i32_0 : i32, i32
  }
  func.func @transform_2(%arg0: i32, %arg1: i32) -> (i32, i32) {
    %c0_i32 = arith.constant 0 : i32
    %c0_i32_0 = arith.constant 0 : i32
    return %c0_i32, %arg1 : i32, i32
  }
  func.func @transform_3(%arg0: i32, %arg1: i32) -> (i32, i32, i32) {
    %c0_i32 = arith.constant 0 : i32
    %c0_i32_0 = arith.constant 0 : i32
    return %arg0, %c0_i32, %arg1 : i32, i32, i32
  }
}

</mosaic_0001>

<llo_original>
// kernel: deeplab_forward.6
$region0: #{deeplab_forward.6}
  #allocation0 [shape = 'u32[]', space=smem, size = 0x4, offset = 0x4, fixed_abs, tag = 'smem constant byte address 0x4 - core index']
  #allocation1 [shape = 'u32[144,128]{1,0:T(1,128)}', space=vmem, size = 0x12000, scoped, tag = 'internal scratch']
  %s0 = inlined_call_operand.vmem [shape: bf16[512,32], index: 0, kind: input, shape index: {}]
  %s1 = inlined_call_operand.vmem [shape: bf16[32,128], index: 1, kind: input, shape index: {}]
  %s2 = inlined_call_operand.vmem [shape: f32[1,128], index: 2, kind: input, shape index: {}]
  %s3 = inlined_call_operand.vmem [shape: f32[512,128], index: 3, kind: output, shape index: {}]
  %s4 = sld [smem:[#allocation0]]
  $region45: #{deeplab_forward.6} parent=0
    _
  %s6 = ssub.s32 1, %s4
  %s7 = scalar_select 0, %s6, %s4
  loop: start=0, step=1, limit=4
  $region2: #{deeplab_forward.6} parent=0 // loop_pre_header
    _
  $region3: #{deeplab_forward.6} parent=0 // loop_header
    %s9 = sphi 0, %s13
    %p10 = scmp.ge.s32.totalorder %s9, 4
    %s19 = sphi 0, %s21
    %s22 = sphi 0, %s19
    %s23 = sphi 0, %s22
    %s39 = sphi 0, %s23
    %s43 = sphi 0, %s43
    %s45 = sphi 0, %s43
    %s46 = sphi 0, %s45
    %s60 = sphi 0, %s46
    %s64 = sphi 0, %s64
    %s66 = sphi 0, %s64
    %s67 = sphi 0, %s66
    %s81 = sphi 0, %s67
    %s87 = sphi 0, %s89
    %s90 = sphi 0, %s87
    %s91 = sphi 0, %s90
    %s107 = sphi 0, %s91
  $region4: #{deeplab_forward.6} parent=0 // loop_header_branch
    %12 = sbr.rel (%p10) target = $region8
  $region5: #{deeplab_forward.6} parent=0 // loop_body
    %s14 = ssub.s32 %s9, 1
    %s15 = ssub.s32 %s9, 2
    %s16 = sadd.s32 %s9, 1
    %s17 = ssub.s32 %s9, %s16
    %p18 = scmp.eq.s32.totalorder %s17, 0
    %s20 = sadd.s32 %s19, 1
    %s21 = scalar_select %p18, %s19, %s20
    %p24 = pneg %p18
    %p25 = scmp.eq.s32.totalorder %s9, 1
    %p26 = por %p24, %p25
    %p27 = scmp.ne.s32.totalorder %s19, %s22
    %p28 = scmp.eq.s32.totalorder %s9, 0
    %p29 = por %p27, %p28
    %p30 = scmp.ne.s32.totalorder %s19, %s22
    %p31 = scmp.eq.s32.totalorder %s14, 1
    %p32 = por %p30, %p31
    %p33 = scmp.ne.s32.totalorder %s22, %s23
    %p34 = scmp.eq.s32.totalorder %s14, 0
    %p35 = por %p33, %p34
    %p36 = scmp.ne.s32.totalorder %s22, %s23
    %p37 = scmp.eq.s32.totalorder %s15, 1
    %p38 = por %p36, %p37
    %p40 = scmp.ne.s32.totalorder %s23, %s39
    %p41 = scmp.eq.s32.totalorder %s15, 0
    %p42 = por %p40, %p41
    %s44 = sadd.s32 %s43, 1
    %p47 = scmp.eq.s32.totalorder %s9, 1
    %p48 = scmp.ne.s32.totalorder %s43, %s45
    %p49 = scmp.eq.s32.totalorder %s9, 0
    %p50 = por %p48, %p49
    %p51 = scmp.ne.s32.totalorder %s43, %s45
    %p52 = scmp.eq.s32.totalorder %s14, 1
    %p53 = por %p51, %p52
    %p54 = scmp.ne.s32.totalorder %s45, %s46
    %p55 = scmp.eq.s32.totalorder %s14, 0
    %p56 = por %p54, %p55
    %p57 = scmp.ne.s32.totalorder %s45, %s46
    %p58 = scmp.eq.s32.totalorder %s15, 1
    %p59 = por %p57, %p58
    %p61 = scmp.ne.s32.totalorder %s46, %s60
    %p62 = scmp.eq.s32.totalorder %s15, 0
    %p63 = por %p61, %p62
    %s65 = sadd.s32 %s64, 1
    %p68 = scmp.eq.s32.totalorder %s9, 1
    %p69 = scmp.ne.s32.totalorder %s64, %s66
    %p70 = scmp.eq.s32.totalorder %s9, 0
    %p71 = por %p69, %p70
    %p72 = scmp.ne.s32.totalorder %s64, %s66
    %p73 = scmp.eq.s32.totalorder %s14, 1
    %p74 = por %p72, %p73
    %p75 = scmp.ne.s32.totalorder %s66, %s67
    %p76 = scmp.eq.s32.totalorder %s14, 0
    %p77 = por %p75, %p76
    %p78 = scmp.ne.s32.totalorder %s66, %s67
    %p79 = scmp.eq.s32.totalorder %s15, 1
    %p80 = por %p78, %p79
    %p82 = scmp.ne.s32.totalorder %s67, %s81
    %p83 = scmp.eq.s32.totalorder %s15, 0
    %p84 = por %p82, %p83
    %s85 = ssub.s32 %s9, %s16
    %p86 = scmp.eq.s32.totalorder %s85, 0
    %s88 = sadd.s32 %s87, 1
    %s89 = scalar_select %p86, %s87, %s88
    %p92 = pneg %p86
    %p93 = scmp.eq.s32.totalorder %s9, 1
    %p94 = por %p92, %p93
    %p95 = scmp.ne.s32.totalorder %s87, %s90
    %p96 = scmp.eq.s32.totalorder %s9, 0
    %p97 = por %p95, %p96
    %p98 = scmp.ne.s32.totalorder %s87, %s90
    %p99 = scmp.eq.s32.totalorder %s14, 1
    %p100 = por %p98, %p99
    %p101 = scmp.ne.s32.totalorder %s90, %s91
    %p102 = scmp.eq.s32.totalorder %s14, 0
    %p103 = por %p101, %p102
    %p104 = scmp.ne.s32.totalorder %s90, %s91
    %p105 = scmp.eq.s32.totalorder %s15, 1
    %p106 = por %p104, %p105
    %p108 = scmp.ne.s32.totalorder %s91, %s107
    %p109 = scmp.eq.s32.totalorder %s15, 0
    %p110 = por %p108, %p109
    %p111 = scmp.le.s32.totalorder 1, %s9
    %p112 = scmp.lt.s32.totalorder %s9, 3
    %p113 = pnand %p111, %p112
    %p114 = pneg %p113
    // Predicated region
    $region9: #{deeplab_forward.6} parent=5 // pred_check
      _
    $region10: #{deeplab_forward.6} parent=5 // pred_check_branch
      %116 = sbr.rel (%p113) target = $region12
    $region11: #{deeplab_forward.6} parent=5 // pred_region
      %s117 = ssub.s32 %s9, 1
      // Predicated region
      $region13: #{deeplab_forward.6} parent=11 // pred_check
        %p118 = pneg %p56
      $region14: #{deeplab_forward.6} parent=11 // pred_check_branch
        %120 = sbr.rel (%p118) target = $region16
      $region15: #{deeplab_forward.6} parent=11 // pred_region
        _
      $region16: #{deeplab_forward.6} parent=11 // pred_fallthru
        _
      // Predicated region
      $region17: #{deeplab_forward.6} parent=11 // pred_check
        %p121 = pneg %p77
      $region18: #{deeplab_forward.6} parent=11 // pred_check_branch
        %123 = sbr.rel (%p121) target = $region20
      $region19: #{deeplab_forward.6} parent=11 // pred_region
        _
      $region20: #{deeplab_forward.6} parent=11 // pred_fallthru
        _
    $region12: #{deeplab_forward.6} parent=5 // pred_fallthru
      _
    %p124 = scmp.lt.s32.totalorder %s9, 2
    // Predicated region
    $region21: #{deeplab_forward.6} parent=5 // pred_check
      %p125 = pneg %p124
    $region22: #{deeplab_forward.6} parent=5 // pred_check_branch
      %127 = sbr.rel (%p125) target = $region24
    $region23: #{deeplab_forward.6} parent=5 // pred_region
      // Predicated region
      $region25: #{deeplab_forward.6} parent=23 // pred_check
        %p128 = pneg %p29
      $region26: #{deeplab_forward.6} parent=23 // pred_check_branch
        %130 = sbr.rel (%p128) target = $region28
      $region27: #{deeplab_forward.6} parent=23 // pred_region
        %s131 = smul.u32 32, %s9
        %p132 = scmp.lt.s32.totalorder %s131, 63
        %s133 = scalar_select %p132, %s131, 63
        %s134 = smul.addr %s133, 4
        %s135 = scalar_lea.vmem %s0, %s134
        %s136 = smul.u32 32, %s9
      $region28: #{deeplab_forward.6} parent=23 // pred_fallthru
        _
    $region24: #{deeplab_forward.6} parent=5 // pred_fallthru
      _
    %p137 = scmp.le.s32.totalorder 1, %s9
    %p138 = scmp.lt.s32.totalorder %s9, 3
    %p139 = pnand %p137, %p138
    %p140 = pneg %p139
    // Predicated region
    $region29: #{deeplab_forward.6} parent=5 // pred_check
      _
    $region30: #{deeplab_forward.6} parent=5 // pred_check_branch
      %142 = sbr.rel (%p139) target = $region32
    $region31: #{deeplab_forward.6} parent=5 // pred_region
      %s143 = ssub.s32 %s9, 1
      %s144 = smul.u32 32, %s14
      %p145 = scmp.lt.s32.totalorder %s144, 63
      %s146 = scalar_select %p145, %s144, 63
      %s147 = smul.addr %s146, 4
      %s148 = scalar_lea.vmem %s0, %s147
      %p149 = pneg %p35
      %p150 = pneg %p32
      %p151 = pneg %p56
      %p152 = pneg %p53
      %p153 = pneg %p77
      %p154 = pneg %p74
      %p155 = pneg %p103
      %p156 = pneg %p100
      %s157 = smul.u32 32, %s14
      %p158 = scmp.lt.s32.totalorder %s157, 63
      %s159 = scalar_select %p158, %s157, 63
      %s160 = smul.addr %s159, 8
      %s161 = scalar_lea.vmem %s3, %s160
      %s162 = smul.u32 32, %s14
      %p163 = scmp.lt.s32.totalorder %s162, 63
      %s164 = scalar_select %p163, %s162, 63
      %s165 = smul.addr %s164, 4
      %s166 = scalar_lea.vmem %s0, %s165
      %s167 = smul.u32 32, %s14
      %s168 = smul.u32 32, %s14
      %p169 = scmp.lt.s32.totalorder %s168, 63
      %s170 = scalar_select %p169, %s168, 63
      %s171 = smul.addr %s170, 8
      %s172 = scalar_lea.vmem %s3, %s171
      %s173 = smul.u32 32, %s14
      %v175 = vld [vmem:[%s166] sm:$0xf]
      %v176 = vld [vmem:[%s166 + $0x4] sm:$0xf]
      %v177 = vld [vmem:[%s166 + $0x8] sm:$0xf]
      %v178 = vld [vmem:[%s166 + $0xc] sm:$0xf]
      %v179 = vld [vmem:[%s166 + $0x10] sm:$0xf]
      %v180 = vld [vmem:[%s166 + $0x14] sm:$0xf]
      %v181 = vld [vmem:[%s166 + $0x18] sm:$0xf]
      %v182 = vld [vmem:[%s166 + $0x1c] sm:$0xf]
      %v183 = vld [vmem:[%s166 + $0x20] sm:$0xf]
      %v184 = vld [vmem:[%s166 + $0x24] sm:$0xf]
      %v185 = vld [vmem:[%s166 + $0x28] sm:$0xf]
      %v186 = vld [vmem:[%s166 + $0x2c] sm:$0xf]
      %v187 = vld [vmem:[%s166 + $0x30] sm:$0xf]
      %v188 = vld [vmem:[%s166 + $0x34] sm:$0xf]
      %v189 = vld [vmem:[%s166 + $0x38] sm:$0xf]
      %v190 = vld [vmem:[%s166 + $0x3c] sm:$0xf]
      %v191 = vld [vmem:[%s166 + $0x40] sm:$0xf]
      %v192 = vld [vmem:[%s166 + $0x44] sm:$0xf]
      %v193 = vld [vmem:[%s166 + $0x48] sm:$0xf]
      %v194 = vld [vmem:[%s166 + $0x4c] sm:$0xf]
      %v195 = vld [vmem:[%s166 + $0x50] sm:$0xf]
      %v196 = vld [vmem:[%s166 + $0x54] sm:$0xf]
      %v197 = vld [vmem:[%s166 + $0x58] sm:$0xf]
      %v198 = vld [vmem:[%s166 + $0x5c] sm:$0xf]
      %v199 = vld [vmem:[%s166 + $0x60] sm:$0xf]
      %v200 = vld [vmem:[%s166 + $0x64] sm:$0xf]
      %v201 = vld [vmem:[%s166 + $0x68] sm:$0xf]
      %v202 = vld [vmem:[%s166 + $0x6c] sm:$0xf]
      %v203 = vld [vmem:[%s166 + $0x70] sm:$0xf]
      %v204 = vld [vmem:[%s166 + $0x74] sm:$0xf]
      %v205 = vld [vmem:[%s166 + $0x78] sm:$0xf]
      %v206 = vld [vmem:[%s166 + $0x7c] sm:$0xf]
      %v207 = vld [vmem:[%s1] sm:$0xf]
      %v208 = vld [vmem:[%s1 + $0x4] sm:$0xf]
      %v209 = vld [vmem:[%s1 + $0x8] sm:$0xf]
      %v210 = vld [vmem:[%s1 + $0xc] sm:$0xf]
      %v211 = vld [vmem:[%s2] sm:$0x1]
      %v213 = vlaneseq
      %v214 = vshrl.u32 %v213, 7
      %v215 = vsub.s32 0, %v214
      %v216 = vrot.slane %v211, %v215
      %v250 = vunpack.c.l.b16 %v175
      %v251 = vunpack.c.l.b16 %v176
      %v252 = vunpack.c.l.b16 %v177
      %v253 = vunpack.c.l.b16 %v178
      %v254 = vunpack.c.l.b16 %v179
      %v255 = vunpack.c.l.b16 %v180
      %v256 = vunpack.c.l.b16 %v181
      %v257 = vunpack.c.l.b16 %v182
      %v258 = vunpack.c.l.b16 %v183
      %v259 = vunpack.c.l.b16 %v184
      %v260 = vunpack.c.l.b16 %v185
      %v261 = vunpack.c.l.b16 %v186
      %v262 = vunpack.c.l.b16 %v187
      %v263 = vunpack.c.l.b16 %v188
      %v264 = vunpack.c.l.b16 %v189
      %v265 = vunpack.c.l.b16 %v190
      %v266 = vunpack.c.l.b16 %v191
      %v267 = vunpack.c.l.b16 %v192
      %v268 = vunpack.c.l.b16 %v193
      %v269 = vunpack.c.l.b16 %v194
      %v270 = vunpack.c.l.b16 %v195
      %v271 = vunpack.c.l.b16 %v196
      %v272 = vunpack.c.l.b16 %v197
      %v273 = vunpack.c.l.b16 %v198
      %v274 = vunpack.c.l.b16 %v199
      %v275 = vunpack.c.l.b16 %v200
      %v276 = vunpack.c.l.b16 %v201
      %v277 = vunpack.c.l.b16 %v202
      %v278 = vunpack.c.l.b16 %v203
      %v279 = vunpack.c.l.b16 %v204
      %v280 = vunpack.c.l.b16 %v205
      %v281 = vunpack.c.l.b16 %v206
      %v282 = vpack.c.b16 %v251, %v250
      %v283 = vpack.c.b16 %v253, %v252
      %v284 = vpack.c.b16 %v255, %v254
      %v285 = vpack.c.b16 %v257, %v256
      %v286 = vpack.c.b16 %v259, %v258
      %v287 = vpack.c.b16 %v261, %v260
      %v288 = vpack.c.b16 %v263, %v262
      %v289 = vpack.c.b16 %v265, %v264
      %v290 = vpack.c.b16 %v267, %v266
      %v291 = vpack.c.b16 %v269, %v268
      %v292 = vpack.c.b16 %v271, %v270
      %v293 = vpack.c.b16 %v273, %v272
      %v294 = vpack.c.b16 %v275, %v274
      %v295 = vpack.c.b16 %v277, %v276
      %v296 = vpack.c.b16 %v279, %v278
      %v297 = vpack.c.b16 %v281, %v280
      %v302 = vunpack.c.l.b16 %v207
      %v303 = vunpack.c.l.b16 %v208
      %v304 = vunpack.c.l.b16 %v209
      %v305 = vunpack.c.l.b16 %v210
      %v306 = vpack.c.b16 %v303, %v302
      %v307 = vpack.c.b16 %v305, %v304
      %vm310 = vcmask 261120
      %v312 = vsel %vm310, %v282, 0
      %v315 = vsel %vm310, %v283, 0
      %v318 = vsel %vm310, %v284, 0
      %v321 = vsel %vm310, %v285, 0
      %v324 = vsel %vm310, %v286, 0
      %v327 = vsel %vm310, %v287, 0
      %v330 = vsel %vm310, %v288, 0
      %v333 = vsel %vm310, %v289, 0
      %v336 = vsel %vm310, %v290, 0
      %v339 = vsel %vm310, %v291, 0
      %v342 = vsel %vm310, %v292, 0
      %v345 = vsel %vm310, %v293, 0
      %v348 = vsel %vm310, %v294, 0
      %v351 = vsel %vm310, %v295, 0
      %v354 = vsel %vm310, %v296, 0
      %v357 = vsel %vm310, %v297, 0
      %359 = vmatprep.subr.bf16.mxu0 0
      %360 = vmatpush1.bf16.msra.mxu0 0
      %361 = vmatprep.subr.bf16.mxu0 0
      %362 = vmatpush1.bf16.msra.mxu0 0
      %363 = vmatprep.subr.bf16.mxu0 0
      %364 = vmatpush1.bf16.msra.mxu0 0
      %365 = vmatprep.subr.bf16.mxu0 0
      %366 = vmatpush1.bf16.msra.mxu0 0
      %367 = vmatprep.subr.bf16.mxu0 0
      %368 = vmatpush1.bf16.msra.mxu0 0
      %369 = vmatprep.subr.bf16.mxu0 0
      %370 = vmatpush1.bf16.msra.mxu0 0
      %371 = vmatprep.subr.bf16.mxu0 0
      %372 = vmatpush1.bf16.msra.mxu0 %v307
      %373 = vmatprep.subr.bf16.mxu0 0
      %374 = vmatpush1.bf16.msra.mxu0 %v306
      %375 = vmatprep.subr.bf16.mxu0 0
      %376 = vmatpush2.bf16.msra.mxu0 0
      %377 = vmatprep.subr.bf16.mxu0 0
      %378 = vmatpush2.bf16.msra.mxu0 0
      %379 = vmatprep.subr.bf16.mxu0 0
      %380 = vmatpush2.bf16.msra.mxu0 0
      %381 = vmatprep.subr.bf16.mxu0 0
      %382 = vmatpush2.bf16.msra.mxu0 0
      %383 = vmatprep.subr.bf16.mxu0 0
      %384 = vmatpush2.bf16.msra.mxu0 0
      %385 = vmatprep.subr.bf16.mxu0 0
      %386 = vmatpush2.bf16.msra.mxu0 0
      %387 = vmatprep.subr.bf16.mxu0 0
      %388 = vmatpush2.bf16.msra.mxu0 0
      %389 = vmatprep.subr.bf16.mxu0 0
      %390 = vmatpush2.bf16.msra.mxu0 0
      %391 = vmatprep.mubr.bf16.mxu0 0
      %392 = vmatmul.mubr.bf16.gmra.mxu0 %v312
      %v393 = vpop.f32.mrf.mxu0
      %v394 = vadd.f32 %v216, %v393
      %v395 = vpop.f32.mrf.mxu0
      %v396 = vpop.f32.mrf.mxu0
      %v397 = vadd.f32 %v216, %v396
      %v398 = vpop.f32.mrf.mxu0
      %399 = vmatprep.mubr.bf16.mxu0 0
      %400 = vmatmul.mubr.bf16.gmra.mxu0 %v315
      %v401 = vpop.f32.mrf.mxu0
      %v402 = vadd.f32 %v216, %v401
      %v403 = vpop.f32.mrf.mxu0
      %v404 = vpop.f32.mrf.mxu0
      %v405 = vadd.f32 %v216, %v404
      %v406 = vpop.f32.mrf.mxu0
      %407 = vmatprep.mubr.bf16.mxu0 0
      %408 = vmatmul.mubr.bf16.gmra.mxu0 %v318
      %v409 = vpop.f32.mrf.mxu0
      %v410 = vadd.f32 %v216, %v409
      %v411 = vpop.f32.mrf.mxu0
      %v412 = vpop.f32.mrf.mxu0
      %v413 = vadd.f32 %v216, %v412
      %v414 = vpop.f32.mrf.mxu0
      %415 = vmatprep.mubr.bf16.mxu0 0
      %416 = vmatmul.mubr.bf16.gmra.mxu0 %v321
      %v417 = vpop.f32.mrf.mxu0
      %v418 = vadd.f32 %v216, %v417
      %v419 = vpop.f32.mrf.mxu0
      %v420 = vpop.f32.mrf.mxu0
      %v421 = vadd.f32 %v216, %v420
      %v422 = vpop.f32.mrf.mxu0
      %423 = vmatprep.mubr.bf16.mxu0 0
      %424 = vmatmul.mubr.bf16.gmra.mxu0 %v324
      %v425 = vpop.f32.mrf.mxu0
      %v426 = vadd.f32 %v216, %v425
      %v427 = vpop.f32.mrf.mxu0
      %v428 = vpop.f32.mrf.mxu0
      %v429 = vadd.f32 %v216, %v428
      %v430 = vpop.f32.mrf.mxu0
      %431 = vmatprep.mubr.bf16.mxu0 0
      %432 = vmatmul.mubr.bf16.gmra.mxu0 %v327
      %v433 = vpop.f32.mrf.mxu0
      %v434 = vadd.f32 %v216, %v433
      %v435 = vpop.f32.mrf.mxu0
      %v436 = vpop.f32.mrf.mxu0
      %v437 = vadd.f32 %v216, %v436
      %v438 = vpop.f32.mrf.mxu0
      %439 = vmatprep.mubr.bf16.mxu0 0
      %440 = vmatmul.mubr.bf16.gmra.mxu0 %v330
      %v441 = vpop.f32.mrf.mxu0
      %v442 = vadd.f32 %v216, %v441
      %v443 = vpop.f32.mrf.mxu0
      %v444 = vpop.f32.mrf.mxu0
      %v445 = vadd.f32 %v216, %v444
      %v446 = vpop.f32.mrf.mxu0
      %447 = vmatprep.mubr.bf16.mxu0 0
      %448 = vmatmul.mubr.bf16.gmra.mxu0 %v333
      %v449 = vpop.f32.mrf.mxu0
      %v450 = vadd.f32 %v216, %v449
      %v451 = vpop.f32.mrf.mxu0
      %v452 = vpop.f32.mrf.mxu0
      %v453 = vadd.f32 %v216, %v452
      %v454 = vpop.f32.mrf.mxu0
      %455 = vmatprep.mubr.bf16.mxu0 0
      %456 = vmatmul.mubr.bf16.gmra.mxu0 %v336
      %v457 = vpop.f32.mrf.mxu0
      %v458 = vadd.f32 %v216, %v457
      %v459 = vpop.f32.mrf.mxu0
      %v460 = vpop.f32.mrf.mxu0
      %v461 = vadd.f32 %v216, %v460
      %v462 = vpop.f32.mrf.mxu0
      %463 = vmatprep.mubr.bf16.mxu0 0
      %464 = vmatmul.mubr.bf16.gmra.mxu0 %v339
      %v465 = vpop.f32.mrf.mxu0
      %v466 = vadd.f32 %v216, %v465
      %v467 = vpop.f32.mrf.mxu0
      %v468 = vpop.f32.mrf.mxu0
      %v469 = vadd.f32 %v216, %v468
      %v470 = vpop.f32.mrf.mxu0
      %471 = vmatprep.mubr.bf16.mxu0 0
      %472 = vmatmul.mubr.bf16.gmra.mxu0 %v342
      %v473 = vpop.f32.mrf.mxu0
      %v474 = vadd.f32 %v216, %v473
      %v475 = vpop.f32.mrf.mxu0
      %v476 = vpop.f32.mrf.mxu0
      %v477 = vadd.f32 %v216, %v476
      %v478 = vpop.f32.mrf.mxu0
      %479 = vmatprep.mubr.bf16.mxu0 0
      %480 = vmatmul.mubr.bf16.gmra.mxu0 %v345
      %v481 = vpop.f32.mrf.mxu0
      %v482 = vadd.f32 %v216, %v481
      %v483 = vpop.f32.mrf.mxu0
      %v484 = vpop.f32.mrf.mxu0
      %v485 = vadd.f32 %v216, %v484
      %v486 = vpop.f32.mrf.mxu0
      %487 = vmatprep.mubr.bf16.mxu0 0
      %488 = vmatmul.mubr.bf16.gmra.mxu0 %v348
      %v489 = vpop.f32.mrf.mxu0
      %v490 = vadd.f32 %v216, %v489
      %v491 = vpop.f32.mrf.mxu0
      %v492 = vpop.f32.mrf.mxu0
      %v493 = vadd.f32 %v216, %v492
      %v494 = vpop.f32.mrf.mxu0
      %495 = vmatprep.mubr.bf16.mxu0 0
      %496 = vmatmul.mubr.bf16.gmra.mxu0 %v351
      %v497 = vpop.f32.mrf.mxu0
      %v498 = vadd.f32 %v216, %v497
      %v499 = vpop.f32.mrf.mxu0
      %v500 = vpop.f32.mrf.mxu0
      %v501 = vadd.f32 %v216, %v500
      %v502 = vpop.f32.mrf.mxu0
      %503 = vmatprep.mubr.bf16.mxu0 0
      %504 = vmatmul.mubr.bf16.gmra.mxu0 %v354
      %v505 = vpop.f32.mrf.mxu0
      %v506 = vadd.f32 %v216, %v505
      %v507 = vpop.f32.mrf.mxu0
      %v508 = vpop.f32.mrf.mxu0
      %v509 = vadd.f32 %v216, %v508
      %v510 = vpop.f32.mrf.mxu0
      %511 = vmatprep.mubr.bf16.mxu0 0
      %512 = vmatmul.mubr.bf16.gmra.mxu0 %v357
      %v513 = vpop.f32.mrf.mxu0
      %v514 = vadd.f32 %v216, %v513
      %v515 = vpop.f32.mrf.mxu0
      %v516 = vpop.f32.mrf.mxu0
      %v517 = vadd.f32 %v216, %v516
      %v518 = vpop.f32.mrf.mxu0
      %519 = vdwg.mxu0
      %520 = vst [vmem:[%s172] sm:$0xff] %v394
      %521 = vst [vmem:[%s172 + $0x8] sm:$0xff] %v397
      %522 = vst [vmem:[%s172 + $0x10] sm:$0xff] %v402
      %523 = vst [vmem:[%s172 + $0x18] sm:$0xff] %v405
      %524 = vst [vmem:[%s172 + $0x20] sm:$0xff] %v410
      %525 = vst [vmem:[%s172 + $0x28] sm:$0xff] %v413
      %526 = vst [vmem:[%s172 + $0x30] sm:$0xff] %v418
      %527 = vst [vmem:[%s172 + $0x38] sm:$0xff] %v421
      %528 = vst [vmem:[%s172 + $0x40] sm:$0xff] %v426
      %529 = vst [vmem:[%s172 + $0x48] sm:$0xff] %v429
      %530 = vst [vmem:[%s172 + $0x50] sm:$0xff] %v434
      %531 = vst [vmem:[%s172 + $0x58] sm:$0xff] %v437
      %532 = vst [vmem:[%s172 + $0x60] sm:$0xff] %v442
      %533 = vst [vmem:[%s172 + $0x68] sm:$0xff] %v445
      %534 = vst [vmem:[%s172 + $0x70] sm:$0xff] %v450
      %535 = vst [vmem:[%s172 + $0x78] sm:$0xff] %v453
      %536 = vst [vmem:[%s172 + $0x80] sm:$0xff] %v458
      %537 = vst [vmem:[%s172 + $0x88] sm:$0xff] %v461
      %538 = vst [vmem:[%s172 + $0x90] sm:$0xff] %v466
      %539 = vst [vmem:[%s172 + $0x98] sm:$0xff] %v469
      %540 = vst [vmem:[%s172 + $0xa0] sm:$0xff] %v474
      %541 = vst [vmem:[%s172 + $0xa8] sm:$0xff] %v477
      %542 = vst [vmem:[%s172 + $0xb0] sm:$0xff] %v482
      %543 = vst [vmem:[%s172 + $0xb8] sm:$0xff] %v485
      %544 = vst [vmem:[%s172 + $0xc0] sm:$0xff] %v490
      %545 = vst [vmem:[%s172 + $0xc8] sm:$0xff] %v493
      %546 = vst [vmem:[%s172 + $0xd0] sm:$0xff] %v498
      %547 = vst [vmem:[%s172 + $0xd8] sm:$0xff] %v501
      %548 = vst [vmem:[%s172 + $0xe0] sm:$0xff] %v506
      %549 = vst [vmem:[%s172 + $0xe8] sm:$0xff] %v509
      %550 = vst [vmem:[%s172 + $0xf0] sm:$0xff] %v514
      %551 = vst [vmem:[%s172 + $0xf8] sm:$0xff] %v517
      %s552 = smul.u32 32, %s14
      %p553 = scmp.lt.s32.totalorder %s552, 63
      %s554 = scalar_select %p553, %s552, 63
      %s555 = smul.addr %s554, 8
      %s556 = scalar_lea.vmem %s3, %s555
      // Predicated region
      $region33: #{deeplab_forward.6} parent=31 // pred_check
        %p557 = pneg %p100
      $region34: #{deeplab_forward.6} parent=31 // pred_check_branch
        %559 = sbr.rel (%p557) target = $region36
      $region35: #{deeplab_forward.6} parent=31 // pred_region
        %s560 = smul.u32 32, %s14
      $region36: #{deeplab_forward.6} parent=31 // pred_fallthru
        _
    $region32: #{deeplab_forward.6} parent=5 // pred_fallthru
      _
    %p561 = scmp.le.s32.totalorder 2, %s9
    // Predicated region
    $region37: #{deeplab_forward.6} parent=5 // pred_check
      %p562 = pneg %p561
    $region38: #{deeplab_forward.6} parent=5 // pred_check_branch
      %564 = sbr.rel (%p562) target = $region40
    $region39: #{deeplab_forward.6} parent=5 // pred_region
      %s565 = ssub.s32 %s9, 2
      // Predicated region
      $region41: #{deeplab_forward.6} parent=39 // pred_check
        %p566 = pneg %p106
      $region42: #{deeplab_forward.6} parent=39 // pred_check_branch
        %568 = sbr.rel (%p566) target = $region44
      $region43: #{deeplab_forward.6} parent=39 // pred_region
        %s569 = smul.u32 32, %s15
        %p570 = scmp.lt.s32.totalorder %s569, 63
        %s571 = scalar_select %p570, %s569, 63
        %s572 = smul.addr %s571, 8
        %s573 = scalar_lea.vmem %s3, %s572
      $region44: #{deeplab_forward.6} parent=39 // pred_fallthru
        _
    $region40: #{deeplab_forward.6} parent=5 // pred_fallthru
      _
  $region6: #{deeplab_forward.6} parent=0 // loop_footer
    %s13 = sadd.s32 1, %s9
  $region7: #{deeplab_forward.6} parent=0 // loop_footer_branch
    %8 = sbr.rel target = $region3
  $region8: #{deeplab_forward.6} parent=0 // loop_exit
    _

// kernel: deeplab_forward.7
$region0: #{deeplab_forward.7}
  #allocation0 [shape = 'u32[]', space=smem, size = 0x4, offset = 0x4, fixed_abs, tag = 'smem constant byte address 0x4 - core index']
  #allocation1 [shape = 'u32[144,128]{1,0:T(1,128)}', space=vmem, size = 0x12000, scoped, tag = 'internal scratch']
  #allocation2 [shape = 'bf16[64,128]{1,0:T(8,128)(2,1)}', space=vmem, size = 0x4000, scoped, tag = 'scratch operand']
  %s0 = inlined_call_operand.vmem [shape: bf16[2,16,128], index: 0, kind: input, shape index: {}]
  %s1 = inlined_call_operand.vmem [shape: bf16[64,16], index: 1, kind: input, shape index: {}]
  %s2 = inlined_call_operand.vmem [shape: bf16[128,512], index: 2, kind: input, shape index: {}]
  %s3 = inlined_call_operand.vmem [shape: f32[2,64,512], index: 3, kind: output, shape index: {}]
  %s4 = sld [smem:[#allocation0]]
  $region49: #{deeplab_forward.7} parent=0
    _
  %s6 = ssub.s32 1, %s4
  %s7 = scalar_select 0, %s6, %s4
  loop: start=0, step=1, limit=4
  $region2: #{deeplab_forward.7} parent=0 // loop_pre_header
    _
  $region3: #{deeplab_forward.7} parent=0 // loop_header
    %s9 = sphi 0, %s13
    %p10 = scmp.ge.s32.totalorder %s9, 4
    %s16 = sphi 0, %s28
    %s17 = sphi 0, %s24
    %s18 = sphi 0, %s16
    %s19 = sphi 0, %s17
    %s20 = sphi 0, %s18
    %s21 = sphi 0, %s19
    %s31 = sphi 0, %s33
    %s34 = sphi 0, %s31
    %s35 = sphi 0, %s34
    %s51 = sphi 0, %s35
    %s55 = sphi 0, %s55
    %s57 = sphi 0, %s55
    %s58 = sphi 0, %s57
    %s72 = sphi 0, %s58
    %s78 = sphi 0, %s80
    %s81 = sphi 0, %s78
    %s82 = sphi 0, %s81
    %s98 = sphi 0, %s82
    %s106 = sphi 0, %s108
    %s109 = sphi 0, %s106
    %s110 = sphi 0, %s109
    %s126 = sphi 0, %s110
  $region4: #{deeplab_forward.7} parent=0 // loop_header_branch
    %12 = sbr.rel (%p10) target = $region8
  $region5: #{deeplab_forward.7} parent=0 // loop_body
    %s14 = ssub.s32 %s9, 1
    %s15 = ssub.s32 %s9, 2
    %s22 = sadd.s32 1, %s17
    %p23 = scmp.ge.s32.totalorder %s22, 1
    %s24 = scalar_select %p23, 0, %s22
    %s25 = sadd.s32 1, %s16
    %s26 = scalar_select %p23, %s25, %s16
    %p27 = scmp.ge.s32.totalorder %s26, 2
    %s28 = scalar_select %p27, 0, %s26
    %s29 = ssub.s32 %s16, %s28
    %p30 = scmp.eq.s32.totalorder %s29, 0
    %s32 = sadd.s32 %s31, 1
    %s33 = scalar_select %p30, %s31, %s32
    %p36 = pneg %p30
    %p37 = scmp.eq.s32.totalorder %s9, 1
    %p38 = por %p36, %p37
    %p39 = scmp.ne.s32.totalorder %s31, %s34
    %p40 = scmp.eq.s32.totalorder %s9, 0
    %p41 = por %p39, %p40
    %p42 = scmp.ne.s32.totalorder %s31, %s34
    %p43 = scmp.eq.s32.totalorder %s14, 1
    %p44 = por %p42, %p43
    %p45 = scmp.ne.s32.totalorder %s34, %s35
    %p46 = scmp.eq.s32.totalorder %s14, 0
    %p47 = por %p45, %p46
    %p48 = scmp.ne.s32.totalorder %s34, %s35
    %p49 = scmp.eq.s32.totalorder %s15, 1
    %p50 = por %p48, %p49
    %p52 = scmp.ne.s32.totalorder %s35, %s51
    %p53 = scmp.eq.s32.totalorder %s15, 0
    %p54 = por %p52, %p53
    %s56 = sadd.s32 %s55, 1
    %p59 = scmp.eq.s32.totalorder %s9, 1
    %p60 = scmp.ne.s32.totalorder %s55, %s57
    %p61 = scmp.eq.s32.totalorder %s9, 0
    %p62 = por %p60, %p61
    %p63 = scmp.ne.s32.totalorder %s55, %s57
    %p64 = scmp.eq.s32.totalorder %s14, 1
    %p65 = por %p63, %p64
    %p66 = scmp.ne.s32.totalorder %s57, %s58
    %p67 = scmp.eq.s32.totalorder %s14, 0
    %p68 = por %p66, %p67
    %p69 = scmp.ne.s32.totalorder %s57, %s58
    %p70 = scmp.eq.s32.totalorder %s15, 1
    %p71 = por %p69, %p70
    %p73 = scmp.ne.s32.totalorder %s58, %s72
    %p74 = scmp.eq.s32.totalorder %s15, 0
    %p75 = por %p73, %p74
    %s76 = ssub.s32 %s17, %s24
    %p77 = scmp.eq.s32.totalorder %s76, 0
    %s79 = sadd.s32 %s78, 1
    %s80 = scalar_select %p77, %s78, %s79
    %p83 = pneg %p77
    %p84 = scmp.eq.s32.totalorder %s9, 1
    %p85 = por %p83, %p84
    %p86 = scmp.ne.s32.totalorder %s78, %s81
    %p87 = scmp.eq.s32.totalorder %s9, 0
    %p88 = por %p86, %p87
    %p89 = scmp.ne.s32.totalorder %s78, %s81
    %p90 = scmp.eq.s32.totalorder %s14, 1
    %p91 = por %p89, %p90
    %p92 = scmp.ne.s32.totalorder %s81, %s82
    %p93 = scmp.eq.s32.totalorder %s14, 0
    %p94 = por %p92, %p93
    %p95 = scmp.ne.s32.totalorder %s81, %s82
    %p96 = scmp.eq.s32.totalorder %s15, 1
    %p97 = por %p95, %p96
    %p99 = scmp.ne.s32.totalorder %s82, %s98
    %p100 = scmp.eq.s32.totalorder %s15, 0
    %p101 = por %p99, %p100
    %s102 = ssub.s32 %s16, %s28
    %s103 = ssub.s32 %s17, %s24
    %s104 = sor.u32 %s102, %s103
    %p105 = scmp.eq.s32.totalorder %s104, 0
    %s107 = sadd.s32 %s106, 1
    %s108 = scalar_select %p105, %s106, %s107
    %p111 = pneg %p105
    %p112 = scmp.eq.s32.totalorder %s9, 1
    %p113 = por %p111, %p112
    %p114 = scmp.ne.s32.totalorder %s106, %s109
    %p115 = scmp.eq.s32.totalorder %s9, 0
    %p116 = por %p114, %p115
    %p117 = scmp.ne.s32.totalorder %s106, %s109
    %p118 = scmp.eq.s32.totalorder %s14, 1
    %p119 = por %p117, %p118
    %p120 = scmp.ne.s32.totalorder %s109, %s110
    %p121 = scmp.eq.s32.totalorder %s14, 0
    %p122 = por %p120, %p121
    %p123 = scmp.ne.s32.totalorder %s109, %s110
    %p124 = scmp.eq.s32.totalorder %s15, 1
    %p125 = por %p123, %p124
    %p127 = scmp.ne.s32.totalorder %s110, %s126
    %p128 = scmp.eq.s32.totalorder %s15, 0
    %p129 = por %p127, %p128
    %p130 = scmp.le.s32.totalorder 1, %s9
    %p131 = scmp.lt.s32.totalorder %s9, 3
    %p132 = pnand %p130, %p131
    %p133 = pneg %p132
    // Predicated region
    $region9: #{deeplab_forward.7} parent=5 // pred_check
      _
    $region10: #{deeplab_forward.7} parent=5 // pred_check_branch
      %135 = sbr.rel (%p132) target = $region12
    $region11: #{deeplab_forward.7} parent=5 // pred_region
      %s136 = ssub.s32 %s9, 1
      // Predicated region
      $region13: #{deeplab_forward.7} parent=11 // pred_check
        %p137 = pneg %p68
      $region14: #{deeplab_forward.7} parent=11 // pred_check_branch
        %139 = sbr.rel (%p137) target = $region16
      $region15: #{deeplab_forward.7} parent=11 // pred_region
        _
      $region16: #{deeplab_forward.7} parent=11 // pred_fallthru
        _
      // Predicated region
      $region17: #{deeplab_forward.7} parent=11 // pred_check
        %p140 = pneg %p94
      $region18: #{deeplab_forward.7} parent=11 // pred_check_branch
        %142 = sbr.rel (%p140) target = $region20
      $region19: #{deeplab_forward.7} parent=11 // pred_region
        %s143 = smul.u32 4, %s19
        %p144 = scmp.lt.s32.totalorder %s143, 3
        %s145 = scalar_select %p144, %s143, 3
        %s146 = smul.addr %s145, 4
        %s147 = scalar_lea.vmem %s2, %s146
        %s148 = smul.u32 4, %s19
      $region20: #{deeplab_forward.7} parent=11 // pred_fallthru
        _
    $region12: #{deeplab_forward.7} parent=5 // pred_fallthru
      _
    %p149 = scmp.lt.s32.totalorder %s9, 2
    // Predicated region
    $region21: #{deeplab_forward.7} parent=5 // pred_check
      %p150 = pneg %p149
    $region22: #{deeplab_forward.7} parent=5 // pred_check_branch
      %152 = sbr.rel (%p150) target = $region24
    $region23: #{deeplab_forward.7} parent=5 // pred_region
      // Predicated region
      $region25: #{deeplab_forward.7} parent=23 // pred_check
        %p153 = pneg %p41
      $region26: #{deeplab_forward.7} parent=23 // pred_check_branch
        %155 = sbr.rel (%p153) target = $region28
      $region27: #{deeplab_forward.7} parent=23 // pred_region
        %p156 = scmp.lt.s32.totalorder %s16, 1
        %s157 = scalar_select %p156, %s16, 1
        %s158 = smul.addr %s157, 2
        %s159 = smul.addr %s158, 4
        %s160 = scalar_lea.vmem %s0, %s159
      $region28: #{deeplab_forward.7} parent=23 // pred_fallthru
        _
    $region24: #{deeplab_forward.7} parent=5 // pred_fallthru
      _
    %p161 = scmp.le.s32.totalorder 1, %s9
    %p162 = scmp.lt.s32.totalorder %s9, 3
    %p163 = pnand %p161, %p162
    %p164 = pneg %p163
    // Predicated region
    $region29: #{deeplab_forward.7} parent=5 // pred_check
      _
    $region30: #{deeplab_forward.7} parent=5 // pred_check_branch
      %166 = sbr.rel (%p163) target = $region32
    $region31: #{deeplab_forward.7} parent=5 // pred_region
      %s167 = ssub.s32 %s9, 1
      %p168 = scmp.lt.s32.totalorder %s18, 1
      %s169 = scalar_select %p168, %s18, 1
      %s170 = smul.addr %s169, 2
      %s171 = smul.addr %s170, 4
      %s172 = scalar_lea.vmem %s0, %s171
      %p173 = pneg %p47
      %p174 = pneg %p44
      %p175 = pneg %p68
      %p176 = pneg %p65
      %s177 = smul.u32 4, %s19
      %p178 = scmp.lt.s32.totalorder %s177, 3
      %s179 = scalar_select %p178, %s177, 3
      %s180 = smul.addr %s179, 4
      %s181 = scalar_lea.vmem %s2, %s180
      %p182 = pneg %p94
      %p183 = pneg %p91
      %p184 = pneg %p122
      %p185 = pneg %p119
      %s186 = smul.u32 4, %s19
      %p187 = scmp.lt.s32.totalorder %s18, 1
      %s188 = scalar_select %p187, %s18, 1
      %p189 = scmp.lt.s32.totalorder %s186, 3
      %s190 = scalar_select %p189, %s186, 3
      %s191 = smul.addr %s188, 32
      %s192 = sadd.s32 %s190, %s191
      %s193 = smul.addr %s192, 8
      %s194 = scalar_lea.vmem %s3, %s193
      %p195 = scmp.lt.s32.totalorder %s18, 1
      %s196 = scalar_select %p195, %s18, 1
      %s197 = smul.addr %s196, 2
      %s198 = smul.addr %s197, 4
      %s199 = scalar_lea.vmem %s0, %s198
      %s200 = smul.u32 4, %s19
      %p201 = scmp.lt.s32.totalorder %s200, 3
      %s202 = scalar_select %p201, %s200, 3
      %s203 = smul.addr %s202, 4
      %s204 = scalar_lea.vmem %s2, %s203
      %s205 = smul.u32 4, %s19
      %s206 = smul.u32 4, %s19
      %p207 = scmp.lt.s32.totalorder %s18, 1
      %s208 = scalar_select %p207, %s18, 1
      %p209 = scmp.lt.s32.totalorder %s206, 3
      %s210 = scalar_select %p209, %s206, 3
      %s211 = smul.addr %s208, 32
      %s212 = sadd.s32 %s210, %s211
      %s213 = smul.addr %s212, 8
      %s214 = scalar_lea.vmem %s3, %s213
      %s215 = smul.u32 4, %s19
      %p217 = scmp.eq.s32.totalorder %s19, 0
      // Predicated region
      $region33: #{deeplab_forward.7} parent=31 // pred_check
        %p218 = pneg %p217
      $region34: #{deeplab_forward.7} parent=31 // pred_check_branch
        %220 = sbr.rel (%p218) target = $region36
      $region35: #{deeplab_forward.7} parent=31 // pred_region
        %v221 = vld [vmem:[%s1] sm:$0xf]
        %v222 = vld [vmem:[%s1 + $0x4] sm:$0xf]
        %v223 = vld [vmem:[%s1 + $0x8] sm:$0xf]
        %v224 = vld [vmem:[%s1 + $0xc] sm:$0xf]
        %v225 = vld [vmem:[%s1 + $0x10] sm:$0xf]
        %v226 = vld [vmem:[%s1 + $0x14] sm:$0xf]
        %v227 = vld [vmem:[%s1 + $0x18] sm:$0xf]
        %v228 = vld [vmem:[%s1 + $0x1c] sm:$0xf]
        %v229 = vld [vmem:[%s199] sm:$0xf]
        %v230 = vld [vmem:[%s199 + $0x4] sm:$0xf]
        %v239 = vunpack.c.l.b16 %v221
        %v240 = vunpack.c.l.b16 %v222
        %v241 = vunpack.c.l.b16 %v223
        %v242 = vunpack.c.l.b16 %v224
        %v243 = vunpack.c.l.b16 %v225
        %v244 = vunpack.c.l.b16 %v226
        %v245 = vunpack.c.l.b16 %v227
        %v246 = vunpack.c.l.b16 %v228
        %v247 = vpack.c.b16 %v240, %v239
        %v248 = vpack.c.b16 %v242, %v241
        %v249 = vpack.c.b16 %v244, %v243
        %v250 = vpack.c.b16 %v246, %v245
        %v253 = vunpack.c.l.b16 %v229
        %v254 = vunpack.c.l.b16 %v230
        %v255 = vpack.c.b16 %v254, %v253
        %vm257 = vcmask 130048
        %v259 = vsel %vm257, %v247, 0
        %v262 = vsel %vm257, %v248, 0
        %v265 = vsel %vm257, %v249, 0
        %v268 = vsel %vm257, %v250, 0
        %270 = vmatprep.subr.bf16.mxu0 0
        %271 = vmatpush1.bf16.msra.mxu0 0
        %272 = vmatprep.subr.bf16.mxu0 0
        %273 = vmatpush1.bf16.msra.mxu0 0
        %274 = vmatprep.subr.bf16.mxu0 0
        %275 = vmatpush1.bf16.msra.mxu0 0
        %276 = vmatprep.subr.bf16.mxu0 0
        %277 = vmatpush1.bf16.msra.mxu0 0
        %278 = vmatprep.subr.bf16.mxu0 0
        %279 = vmatpush1.bf16.msra.mxu0 0
        %280 = vmatprep.subr.bf16.mxu0 0
        %281 = vmatpush1.bf16.msra.mxu0 0
        %282 = vmatprep.subr.bf16.mxu0 0
        %283 = vmatpush1.bf16.msra.mxu0 0
        %284 = vmatprep.subr.bf16.mxu0 0
        %285 = vmatpush1.bf16.msra.mxu0 %v255
        %286 = vmatprep.subr.bf16.mxu0 0
        %287 = vmatpush2.bf16.msra.mxu0 0
        %288 = vmatprep.subr.bf16.mxu0 0
        %289 = vmatpush2.bf16.msra.mxu0 0
        %290 = vmatprep.subr.bf16.mxu0 0
        %291 = vmatpush2.bf16.msra.mxu0 0
        %292 = vmatprep.subr.bf16.mxu0 0
        %293 = vmatpush2.bf16.msra.mxu0 0
        %294 = vmatprep.subr.bf16.mxu0 0
        %295 = vmatpush2.bf16.msra.mxu0 0
        %296 = vmatprep.subr.bf16.mxu0 0
        %297 = vmatpush2.bf16.msra.mxu0 0
        %298 = vmatprep.subr.bf16.mxu0 0
        %299 = vmatpush2.bf16.msra.mxu0 0
        %300 = vmatprep.subr.bf16.mxu0 0
        %301 = vmatpush2.bf16.msra.mxu0 0
        %302 = vmatprep.mubr.bf16.mxu0 0
        %303 = vmatmul.mubr.bf16.gmra.mxu0 %v259
        %v304 = vpop.f32.mrf.mxu0
        %v305 = vadd.f32 0.0, %v304
        %v306 = vpop.f32.mrf.mxu0
        %v307 = vpop.f32.mrf.mxu0
        %v308 = vadd.f32 0.0, %v307
        %v309 = vpop.f32.mrf.mxu0
        %310 = vmatprep.mubr.bf16.mxu0 0
        %311 = vmatmul.mubr.bf16.gmra.mxu0 %v262
        %v312 = vpop.f32.mrf.mxu0
        %v313 = vadd.f32 0.0, %v312
        %v314 = vpop.f32.mrf.mxu0
        %v315 = vpop.f32.mrf.mxu0
        %v316 = vadd.f32 0.0, %v315
        %v317 = vpop.f32.mrf.mxu0
        %318 = vmatprep.mubr.bf16.mxu0 0
        %319 = vmatmul.mubr.bf16.gmra.mxu0 %v265
        %v320 = vpop.f32.mrf.mxu0
        %v321 = vadd.f32 0.0, %v320
        %v322 = vpop.f32.mrf.mxu0
        %v323 = vpop.f32.mrf.mxu0
        %v324 = vadd.f32 0.0, %v323
        %v325 = vpop.f32.mrf.mxu0
        %326 = vmatprep.mubr.bf16.mxu0 0
        %327 = vmatmul.mubr.bf16.gmra.mxu0 %v268
        %v328 = vpop.f32.mrf.mxu0
        %v329 = vadd.f32 0.0, %v328
        %v330 = vpop.f32.mrf.mxu0
        %v331 = vpop.f32.mrf.mxu0
        %v332 = vadd.f32 0.0, %v331
        %v333 = vpop.f32.mrf.mxu0
        %334 = vdwg.mxu0
        %v335 = vpack.c.bf16 %v308, %v305
        %v336 = vpack.c.bf16 %v316, %v313
        %v337 = vpack.c.bf16 %v324, %v321
        %v338 = vpack.c.bf16 %v332, %v329
        %v343 = vunpack.c.l.b16 %v335
        %v344 = vunpack.c.h.b16 %v335
        %v345 = vunpack.c.l.b16 %v336
        %v346 = vunpack.c.h.b16 %v336
        %v347 = vunpack.c.l.b16 %v337
        %v348 = vunpack.c.h.b16 %v337
        %v349 = vunpack.c.l.b16 %v338
        %v350 = vunpack.c.h.b16 %v338
        %v351 = vpack.c.b16 %v343, %v343
        %v352 = vpack.c.b16 %v344, %v344
        %v353 = vpack.c.b16 %v345, %v345
        %v354 = vpack.c.b16 %v346, %v346
        %v355 = vpack.c.b16 %v347, %v347
        %v356 = vpack.c.b16 %v348, %v348
        %v357 = vpack.c.b16 %v349, %v349
        %v358 = vpack.c.b16 %v350, %v350
        %367 = vst [vmem:[#allocation2] sm:$0xf] %v351
        %368 = vst [vmem:[#allocation2 + $0x4] sm:$0xf] %v352
        %369 = vst [vmem:[#allocation2 + $0x8] sm:$0xf] %v353
        %370 = vst [vmem:[#allocation2 + $0xc] sm:$0xf] %v354
        %371 = vst [vmem:[#allocation2 + $0x10] sm:$0xf] %v355
        %372 = vst [vmem:[#allocation2 + $0x14] sm:$0xf] %v356
        %373 = vst [vmem:[#allocation2 + $0x18] sm:$0xf] %v357
        %374 = vst [vmem:[#allocation2 + $0x1c] sm:$0xf] %v358
      $region36: #{deeplab_forward.7} parent=31 // pred_fallthru
        _
      %v375 = vld [vmem:[#allocation2] sm:$0xf]
      %v376 = vld [vmem:[#allocation2 + $0x4] sm:$0xf]
      %v377 = vld [vmem:[#allocation2 + $0x8] sm:$0xf]
      %v378 = vld [vmem:[#allocation2 + $0xc] sm:$0xf]
      %v379 = vld [vmem:[#allocation2 + $0x10] sm:$0xf]
      %v380 = vld [vmem:[#allocation2 + $0x14] sm:$0xf]
      %v381 = vld [vmem:[#allocation2 + $0x18] sm:$0xf]
      %v382 = vld [vmem:[#allocation2 + $0x1c] sm:$0xf]
      %v383 = vld [vmem:[%s204] sm:$0xff]
      %v384 = vld [vmem:[%s204 + $0x8] sm:$0xff]
      %v385 = vld [vmem:[%s204 + $0x10] sm:$0xff]
      %v386 = vld [vmem:[%s204 + $0x18] sm:$0xff]
      %v387 = vld [vmem:[%s204 + $0x20] sm:$0xff]
      %v388 = vld [vmem:[%s204 + $0x28] sm:$0xff]
      %v389 = vld [vmem:[%s204 + $0x30] sm:$0xff]
      %v390 = vld [vmem:[%s204 + $0x38] sm:$0xff]
      %v391 = vld [vmem:[%s204 + $0x40] sm:$0xff]
      %v392 = vld [vmem:[%s204 + $0x48] sm:$0xff]
      %v393 = vld [vmem:[%s204 + $0x50] sm:$0xff]
      %v394 = vld [vmem:[%s204 + $0x58] sm:$0xff]
      %v395 = vld [vmem:[%s204 + $0x60] sm:$0xff]
      %v396 = vld [vmem:[%s204 + $0x68] sm:$0xff]
      %v397 = vld [vmem:[%s204 + $0x70] sm:$0xff]
      %v398 = vld [vmem:[%s204 + $0x78] sm:$0xff]
      %v399 = vld [vmem:[%s204 + $0x80] sm:$0xff]
      %v400 = vld [vmem:[%s204 + $0x88] sm:$0xff]
      %v401 = vld [vmem:[%s204 + $0x90] sm:$0xff]
      %v402 = vld [vmem:[%s204 + $0x98] sm:$0xff]
      %v403 = vld [vmem:[%s204 + $0xa0] sm:$0xff]
      %v404 = vld [vmem:[%s204 + $0xa8] sm:$0xff]
      %v405 = vld [vmem:[%s204 + $0xb0] sm:$0xff]
      %v406 = vld [vmem:[%s204 + $0xb8] sm:$0xff]
      %v407 = vld [vmem:[%s204 + $0xc0] sm:$0xff]
      %v408 = vld [vmem:[%s204 + $0xc8] sm:$0xff]
      %v409 = vld [vmem:[%s204 + $0xd0] sm:$0xff]
      %v410 = vld [vmem:[%s204 + $0xd8] sm:$0xff]
      %v411 = vld [vmem:[%s204 + $0xe0] sm:$0xff]
      %v412 = vld [vmem:[%s204 + $0xe8] sm:$0xff]
      %v413 = vld [vmem:[%s204 + $0xf0] sm:$0xff]
      %v414 = vld [vmem:[%s204 + $0xf8] sm:$0xff]
      %v423 = vunpack.c.l.b16 %v375
      %v424 = vunpack.c.l.b16 %v376
      %v425 = vunpack.c.l.b16 %v377
      %v426 = vunpack.c.l.b16 %v378
      %v427 = vunpack.c.l.b16 %v379
      %v428 = vunpack.c.l.b16 %v380
      %v429 = vunpack.c.l.b16 %v381
      %v430 = vunpack.c.l.b16 %v382
      %v431 = vpack.c.b16 %v424, %v423
      %v432 = vpack.c.b16 %v426, %v425
      %v433 = vpack.c.b16 %v428, %v427
      %v434 = vpack.c.b16 %v430, %v429
      %v471 = vunpack.c.l.b16 %v383
      %v472 = vunpack.c.h.b16 %v383
      %v473 = vunpack.c.l.b16 %v384
      %v474 = vunpack.c.h.b16 %v384
      %v475 = vunpack.c.l.b16 %v385
      %v476 = vunpack.c.h.b16 %v385
      %v477 = vunpack.c.l.b16 %v386
      %v478 = vunpack.c.h.b16 %v386
      %v479 = vunpack.c.l.b16 %v387
      %v480 = vunpack.c.h.b16 %v387
      %v481 = vunpack.c.l.b16 %v388
      %v482 = vunpack.c.h.b16 %v388
      %v483 = vunpack.c.l.b16 %v389
      %v484 = vunpack.c.h.b16 %v389
      %v485 = vunpack.c.l.b16 %v390
      %v486 = vunpack.c.h.b16 %v390
      %v487 = vunpack.c.l.b16 %v391
      %v488 = vunpack.c.h.b16 %v391
      %v489 = vunpack.c.l.b16 %v392
      %v490 = vunpack.c.h.b16 %v392
      %v491 = vunpack.c.l.b16 %v393
      %v492 = vunpack.c.h.b16 %v393
      %v493 = vunpack.c.l.b16 %v394
      %v494 = vunpack.c.h.b16 %v394
      %v495 = vunpack.c.l.b16 %v395
      %v496 = vunpack.c.h.b16 %v395
      %v497 = vunpack.c.l.b16 %v396
      %v498 = vunpack.c.h.b16 %v396
      %v499 = vunpack.c.l.b16 %v397
      %v500 = vunpack.c.h.b16 %v397
      %v501 = vunpack.c.l.b16 %v398
      %v502 = vunpack.c.h.b16 %v398
      %v503 = vunpack.c.l.b16 %v399
      %v504 = vunpack.c.h.b16 %v399
      %v505 = vunpack.c.l.b16 %v400
      %v506 = vunpack.c.h.b16 %v400
      %v507 = vunpack.c.l.b16 %v401
      %v508 = vunpack.c.h.b16 %v401
      %v509 = vunpack.c.l.b16 %v402
      %v510 = vunpack.c.h.b16 %v402
      %v511 = vunpack.c.l.b16 %v403
      %v512 = vunpack.c.h.b16 %v403
      %v513 = vunpack.c.l.b16 %v404
      %v514 = vunpack.c.h.b16 %v404
      %v515 = vunpack.c.l.b16 %v405
      %v516 = vunpack.c.h.b16 %v405
      %v517 = vunpack.c.l.b16 %v406
      %v518 = vunpack.c.h.b16 %v406
      %v519 = vunpack.c.l.b16 %v407
      %v520 = vunpack.c.h.b16 %v407
      %v521 = vunpack.c.l.b16 %v408
      %v522 = vunpack.c.h.b16 %v408
      %v523 = vunpack.c.l.b16 %v409
      %v524 = vunpack.c.h.b16 %v409
      %v525 = vunpack.c.l.b16 %v410
      %v526 = vunpack.c.h.b16 %v410
      %v527 = vunpack.c.l.b16 %v411
      %v528 = vunpack.c.h.b16 %v411
      %v529 = vunpack.c.l.b16 %v412
      %v530 = vunpack.c.h.b16 %v412
      %v531 = vunpack.c.l.b16 %v413
      %v532 = vunpack.c.h.b16 %v413
      %v533 = vunpack.c.l.b16 %v414
      %v534 = vunpack.c.h.b16 %v414
      %v535 = vpack.c.b16 %v475, %v471
      %v536 = vpack.c.b16 %v476, %v472
      %v537 = vpack.c.b16 %v477, %v473
      %v538 = vpack.c.b16 %v478, %v474
      %v539 = vpack.c.b16 %v483, %v479
      %v540 = vpack.c.b16 %v484, %v480
      %v541 = vpack.c.b16 %v485, %v481
      %v542 = vpack.c.b16 %v486, %v482
      %v543 = vpack.c.b16 %v491, %v487
      %v544 = vpack.c.b16 %v492, %v488
      %v545 = vpack.c.b16 %v493, %v489
      %v546 = vpack.c.b16 %v494, %v490
      %v547 = vpack.c.b16 %v499, %v495
      %v548 = vpack.c.b16 %v500, %v496
      %v549 = vpack.c.b16 %v501, %v497
      %v550 = vpack.c.b16 %v502, %v498
      %v551 = vpack.c.b16 %v507, %v503
      %v552 = vpack.c.b16 %v508, %v504
      %v553 = vpack.c.b16 %v509, %v505
      %v554 = vpack.c.b16 %v510, %v506
      %v555 = vpack.c.b16 %v515, %v511
      %v556 = vpack.c.b16 %v516, %v512
      %v557 = vpack.c.b16 %v517, %v513
      %v558 = vpack.c.b16 %v518, %v514
      %v559 = vpack.c.b16 %v523, %v519
      %v560 = vpack.c.b16 %v524, %v520
      %v561 = vpack.c.b16 %v525, %v521
      %v562 = vpack.c.b16 %v526, %v522
      %v563 = vpack.c.b16 %v531, %v527
      %v564 = vpack.c.b16 %v532, %v528
      %v565 = vpack.c.b16 %v533, %v529
      %v566 = vpack.c.b16 %v534, %v530
      %599 = vmatprep.subr.bf16.mxu0 %v564
      %600 = vmatpush1.bf16.msra.mxu0 %v563
      %601 = vmatprep.subr.bf16.mxu0 %v560
      %602 = vmatpush1.bf16.msra.mxu0 %v559
      %603 = vmatprep.subr.bf16.mxu0 %v556
      %604 = vmatpush1.bf16.msra.mxu0 %v555
      %605 = vmatprep.subr.bf16.mxu0 %v552
      %606 = vmatpush1.bf16.msra.mxu0 %v551
      %607 = vmatprep.subr.bf16.mxu0 %v548
      %608 = vmatpush1.bf16.msra.mxu0 %v547
      %609 = vmatprep.subr.bf16.mxu0 %v544
      %610 = vmatpush1.bf16.msra.mxu0 %v543
      %611 = vmatprep.subr.bf16.mxu0 %v540
      %612 = vmatpush1.bf16.msra.mxu0 %v539
      %613 = vmatprep.subr.bf16.mxu0 %v536
      %614 = vmatpush1.bf16.msra.mxu0 %v535
      %615 = vmatprep.subr.bf16.mxu0 0
      %616 = vmatpush2.bf16.msra.mxu0 0
      %617 = vmatprep.subr.bf16.mxu0 0
      %618 = vmatpush2.bf16.msra.mxu0 0
      %619 = vmatprep.subr.bf16.mxu0 0
      %620 = vmatpush2.bf16.msra.mxu0 0
      %621 = vmatprep.subr.bf16.mxu0 0
      %622 = vmatpush2.bf16.msra.mxu0 0
      %623 = vmatprep.subr.bf16.mxu0 0
      %624 = vmatpush2.bf16.msra.mxu0 0
      %625 = vmatprep.subr.bf16.mxu0 0
      %626 = vmatpush2.bf16.msra.mxu0 0
      %627 = vmatprep.subr.bf16.mxu0 0
      %628 = vmatpush2.bf16.msra.mxu0 0
      %629 = vmatprep.subr.bf16.mxu0 0
      %630 = vmatpush2.bf16.msra.mxu0 0
      %631 = vmatprep.mubr.bf16.mxu0 0
      %632 = vmatmul.mubr.bf16.gmra.mxu0 %v431
      %v633 = vpop.f32.mrf.mxu0
      %v634 = vadd.f32 0.0, %v633
      %v635 = vpop.f32.mrf.mxu0
      %v636 = vadd.f32 0.0, %v635
      %v637 = vpop.f32.mrf.mxu0
      %v638 = vadd.f32 0.0, %v637
      %v639 = vpop.f32.mrf.mxu0
      %v640 = vadd.f32 0.0, %v639
      %641 = vmatprep.mubr.bf16.mxu0 0
      %642 = vmatmul.mubr.bf16.gmra.mxu0 %v432
      %v643 = vpop.f32.mrf.mxu0
      %v644 = vadd.f32 0.0, %v643
      %v645 = vpop.f32.mrf.mxu0
      %v646 = vadd.f32 0.0, %v645
      %v647 = vpop.f32.mrf.mxu0
      %v648 = vadd.f32 0.0, %v647
      %v649 = vpop.f32.mrf.mxu0
      %v650 = vadd.f32 0.0, %v649
      %651 = vmatprep.mubr.bf16.mxu0 0
      %652 = vmatmul.mubr.bf16.gmra.mxu0 %v433
      %v653 = vpop.f32.mrf.mxu0
      %v654 = vadd.f32 0.0, %v653
      %v655 = vpop.f32.mrf.mxu0
      %v656 = vadd.f32 0.0, %v655
      %v657 = vpop.f32.mrf.mxu0
      %v658 = vadd.f32 0.0, %v657
      %v659 = vpop.f32.mrf.mxu0
      %v660 = vadd.f32 0.0, %v659
      %661 = vmatprep.mubr.bf16.mxu0 0
      %662 = vmatmul.mubr.bf16.gmra.mxu0 %v434
      %v663 = vpop.f32.mrf.mxu0
      %v664 = vadd.f32 0.0, %v663
      %v665 = vpop.f32.mrf.mxu0
      %v666 = vadd.f32 0.0, %v665
      %v667 = vpop.f32.mrf.mxu0
      %v668 = vadd.f32 0.0, %v667
      %v669 = vpop.f32.mrf.mxu0
      %v670 = vadd.f32 0.0, %v669
      %671 = vdwg.mxu0
      %672 = vmatprep.subr.bf16.mxu0 %v566
      %673 = vmatpush1.bf16.msra.mxu0 %v565
      %674 = vmatprep.subr.bf16.mxu0 %v562
      %675 = vmatpush1.bf16.msra.mxu0 %v561
      %676 = vmatprep.subr.bf16.mxu0 %v558
      %677 = vmatpush1.bf16.msra.mxu0 %v557
      %678 = vmatprep.subr.bf16.mxu0 %v554
      %679 = vmatpush1.bf16.msra.mxu0 %v553
      %680 = vmatprep.subr.bf16.mxu0 %v550
      %681 = vmatpush1.bf16.msra.mxu0 %v549
      %682 = vmatprep.subr.bf16.mxu0 %v546
      %683 = vmatpush1.bf16.msra.mxu0 %v545
      %684 = vmatprep.subr.bf16.mxu0 %v542
      %685 = vmatpush1.bf16.msra.mxu0 %v541
      %686 = vmatprep.subr.bf16.mxu0 %v538
      %687 = vmatpush1.bf16.msra.mxu0 %v537
      %688 = vmatprep.subr.bf16.mxu0 0
      %689 = vmatpush2.bf16.msra.mxu0 0
      %690 = vmatprep.subr.bf16.mxu0 0
      %691 = vmatpush2.bf16.msra.mxu0 0
      %692 = vmatprep.subr.bf16.mxu0 0
      %693 = vmatpush2.bf16.msra.mxu0 0
      %694 = vmatprep.subr.bf16.mxu0 0
      %695 = vmatpush2.bf16.msra.mxu0 0
      %696 = vmatprep.subr.bf16.mxu0 0
      %697 = vmatpush2.bf16.msra.mxu0 0
      %698 = vmatprep.subr.bf16.mxu0 0
      %699 = vmatpush2.bf16.msra.mxu0 0
      %700 = vmatprep.subr.bf16.mxu0 0
      %701 = vmatpush2.bf16.msra.mxu0 0
      %702 = vmatprep.subr.bf16.mxu0 0
      %703 = vmatpush2.bf16.msra.mxu0 0
      %704 = vmatprep.mubr.bf16.mxu0 0
      %705 = vmatmul.mubr.bf16.gmra.mxu0 %v431
      %v706 = vpop.f32.mrf.mxu0
      %v707 = vadd.f32 0.0, %v706
      %v708 = vpop.f32.mrf.mxu0
      %v709 = vadd.f32 0.0, %v708
      %v710 = vpop.f32.mrf.mxu0
      %v711 = vadd.f32 0.0, %v710
      %v712 = vpop.f32.mrf.mxu0
      %v713 = vadd.f32 0.0, %v712
      %714 = vmatprep.mubr.bf16.mxu0 0
      %715 = vmatmul.mubr.bf16.gmra.mxu0 %v432
      %v716 = vpop.f32.mrf.mxu0
      %v717 = vadd.f32 0.0, %v716
      %v718 = vpop.f32.mrf.mxu0
      %v719 = vadd.f32 0.0, %v718
      %v720 = vpop.f32.mrf.mxu0
      %v721 = vadd.f32 0.0, %v720
      %v722 = vpop.f32.mrf.mxu0
      %v723 = vadd.f32 0.0, %v722
      %724 = vmatprep.mubr.bf16.mxu0 0
      %725 = vmatmul.mubr.bf16.gmra.mxu0 %v433
      %v726 = vpop.f32.mrf.mxu0
      %v727 = vadd.f32 0.0, %v726
      %v728 = vpop.f32.mrf.mxu0
      %v729 = vadd.f32 0.0, %v728
      %v730 = vpop.f32.mrf.mxu0
      %v731 = vadd.f32 0.0, %v730
      %v732 = vpop.f32.mrf.mxu0
      %v733 = vadd.f32 0.0, %v732
      %734 = vmatprep.mubr.bf16.mxu0 0
      %735 = vmatmul.mubr.bf16.gmra.mxu0 %v434
      %v736 = vpop.f32.mrf.mxu0
      %v737 = vadd.f32 0.0, %v736
      %v738 = vpop.f32.mrf.mxu0
      %v739 = vadd.f32 0.0, %v738
      %v740 = vpop.f32.mrf.mxu0
      %v741 = vadd.f32 0.0, %v740
      %v742 = vpop.f32.mrf.mxu0
      %v743 = vadd.f32 0.0, %v742
      %744 = vdwg.mxu0
      %745 = vst [vmem:[%s214] sm:$0xff] %v634
      %746 = vst [vmem:[%s214 + $0x8] sm:$0xff] %v636
      %747 = vst [vmem:[%s214 + $0x10] sm:$0xff] %v707
      %748 = vst [vmem:[%s214 + $0x18] sm:$0xff] %v709
      %749 = vst [vmem:[%s214 + $0x20] sm:$0xff] %v638
      %750 = vst [vmem:[%s214 + $0x28] sm:$0xff] %v640
      %751 = vst [vmem:[%s214 + $0x30] sm:$0xff] %v711
      %752 = vst [vmem:[%s214 + $0x38] sm:$0xff] %v713
      %753 = vst [vmem:[%s214 + $0x40] sm:$0xff] %v644
      %754 = vst [vmem:[%s214 + $0x48] sm:$0xff] %v646
      %755 = vst [vmem:[%s214 + $0x50] sm:$0xff] %v717
      %756 = vst [vmem:[%s214 + $0x58] sm:$0xff] %v719
      %757 = vst [vmem:[%s214 + $0x60] sm:$0xff] %v648
      %758 = vst [vmem:[%s214 + $0x68] sm:$0xff] %v650
      %759 = vst [vmem:[%s214 + $0x70] sm:$0xff] %v721
      %760 = vst [vmem:[%s214 + $0x78] sm:$0xff] %v723
      %761 = vst [vmem:[%s214 + $0x80] sm:$0xff] %v654
      %762 = vst [vmem:[%s214 + $0x88] sm:$0xff] %v656
      %763 = vst [vmem:[%s214 + $0x90] sm:$0xff] %v727
      %764 = vst [vmem:[%s214 + $0x98] sm:$0xff] %v729
      %765 = vst [vmem:[%s214 + $0xa0] sm:$0xff] %v658
      %766 = vst [vmem:[%s214 + $0xa8] sm:$0xff] %v660
      %767 = vst [vmem:[%s214 + $0xb0] sm:$0xff] %v731
      %768 = vst [vmem:[%s214 + $0xb8] sm:$0xff] %v733
      %769 = vst [vmem:[%s214 + $0xc0] sm:$0xff] %v664
      %770 = vst [vmem:[%s214 + $0xc8] sm:$0xff] %v666
      %771 = vst [vmem:[%s214 + $0xd0] sm:$0xff] %v737
      %772 = vst [vmem:[%s214 + $0xd8] sm:$0xff] %v739
      %773 = vst [vmem:[%s214 + $0xe0] sm:$0xff] %v668
      %774 = vst [vmem:[%s214 + $0xe8] sm:$0xff] %v670
      %775 = vst [vmem:[%s214 + $0xf0] sm:$0xff] %v741
      %776 = vst [vmem:[%s214 + $0xf8] sm:$0xff] %v743
      %s777 = smul.u32 4, %s19
      %p778 = scmp.lt.s32.totalorder %s18, 1
      %s779 = scalar_select %p778, %s18, 1
      %p780 = scmp.lt.s32.totalorder %s777, 3
      %s781 = scalar_select %p780, %s777, 3
      %s782 = smul.addr %s779, 32
      %s783 = sadd.s32 %s781, %s782
      %s784 = smul.addr %s783, 8
      %s785 = scalar_lea.vmem %s3, %s784
      // Predicated region
      $region37: #{deeplab_forward.7} parent=31 // pred_check
        %p786 = pneg %p119
      $region38: #{deeplab_forward.7} parent=31 // pred_check_branch
        %788 = sbr.rel (%p786) target = $region40
      $region39: #{deeplab_forward.7} parent=31 // pred_region
        %s789 = smul.u32 4, %s19
      $region40: #{deeplab_forward.7} parent=31 // pred_fallthru
        _
    $region32: #{deeplab_forward.7} parent=5 // pred_fallthru
      _
    %p790 = scmp.le.s32.totalorder 2, %s9
    // Predicated region
    $region41: #{deeplab_forward.7} parent=5 // pred_check
      %p791 = pneg %p790
    $region42: #{deeplab_forward.7} parent=5 // pred_check_branch
      %793 = sbr.rel (%p791) target = $region44
    $region43: #{deeplab_forward.7} parent=5 // pred_region
      %s794 = ssub.s32 %s9, 2
      // Predicated region
      $region45: #{deeplab_forward.7} parent=43 // pred_check
        %p795 = pneg %p125
      $region46: #{deeplab_forward.7} parent=43 // pred_check_branch
        %797 = sbr.rel (%p795) target = $region48
      $region47: #{deeplab_forward.7} parent=43 // pred_region
        %s798 = smul.u32 4, %s21
        %p799 = scmp.lt.s32.totalorder %s20, 1
        %s800 = scalar_select %p799, %s20, 1
        %p801 = scmp.lt.s32.totalorder %s798, 3
        %s802 = scalar_select %p801, %s798, 3
        %s803 = smul.addr %s800, 32
        %s804 = sadd.s32 %s802, %s803
        %s805 = smul.addr %s804, 8
        %s806 = scalar_lea.vmem %s3, %s805
      $region48: #{deeplab_forward.7} parent=43 // pred_fallthru
        _
    $region44: #{deeplab_forward.7} parent=5 // pred_fallthru
      _
  $region6: #{deeplab_forward.7} parent=0 // loop_footer
    %s13 = sadd.s32 1, %s9
  $region7: #{deeplab_forward.7} parent=0 // loop_footer_branch
    %8 = sbr.rel target = $region3
  $region8: #{deeplab_forward.7} parent=0 // loop_exit
    _

// kernel: deeplab_forward.4
$region0: #{deeplab_forward.4}
  #allocation0 [shape = 'u32[]', space=smem, size = 0x4, offset = 0x4, fixed_abs, tag = 'smem constant byte address 0x4 - core index']
  #allocation1 [shape = 'u32[144,128]{1,0:T(1,128)}', space=vmem, size = 0x12000, scoped, tag = 'internal scratch']
  #allocation2 [shape = 'f32[384,32]{1,0:T(8,128)}', space=vmem, size = 0x30000, scoped, tag = 'scratch operand']
  %s0 = inlined_call_operand.vmem [shape: bf16[2,18,24,48], index: 0, kind: input, shape index: {}]
  %s1 = inlined_call_operand.vmem [shape: bf16[9,48,32], index: 1, kind: input, shape index: {}]
  %s2 = inlined_call_operand.vmem [shape: f32[1,32], index: 2, kind: input, shape index: {}]
  %s3 = inlined_call_operand.vmem [shape: f32[1,32], index: 3, kind: input, shape index: {}]
  %s4 = inlined_call_operand.vmem [shape: bf16[2,16,16,32], index: 4, kind: output, shape index: {}]
  %s5 = sld [smem:[#allocation0]]
  $region49: #{deeplab_forward.4} parent=0
    _
  %s7 = ssub.s32 1, %s5
  %s8 = scalar_select 0, %s7, %s5
  loop: start=0, step=1, limit=4
  $region2: #{deeplab_forward.4} parent=0 // loop_pre_header
    _
  $region3: #{deeplab_forward.4} parent=0 // loop_header
    %s10 = sphi 0, %s14
    %p11 = scmp.ge.s32.totalorder %s10, 4
    %s20 = sphi 0, %s22
    %s23 = sphi 0, %s20
    %s24 = sphi 0, %s23
    %s40 = sphi 0, %s24
    %s44 = sphi 0, %s44
    %s46 = sphi 0, %s44
    %s47 = sphi 0, %s46
    %s61 = sphi 0, %s47
    %s65 = sphi 0, %s65
    %s67 = sphi 0, %s65
    %s68 = sphi 0, %s67
    %s82 = sphi 0, %s68
    %s86 = sphi 0, %s86
    %s88 = sphi 0, %s86
    %s89 = sphi 0, %s88
    %s103 = sphi 0, %s89
    %s109 = sphi 0, %s111
    %s112 = sphi 0, %s109
    %s113 = sphi 0, %s112
    %s129 = sphi 0, %s113
  $region4: #{deeplab_forward.4} parent=0 // loop_header_branch
    %13 = sbr.rel (%p11) target = $region8
  $region5: #{deeplab_forward.4} parent=0 // loop_body
    %s15 = ssub.s32 %s10, 1
    %s16 = ssub.s32 %s10, 2
    %s17 = sadd.s32 %s10, 1
    %s18 = ssub.s32 %s10, %s17
    %p19 = scmp.eq.s32.totalorder %s18, 0
    %s21 = sadd.s32 %s20, 1
    %s22 = scalar_select %p19, %s20, %s21
    %p25 = pneg %p19
    %p26 = scmp.eq.s32.totalorder %s10, 1
    %p27 = por %p25, %p26
    %p28 = scmp.ne.s32.totalorder %s20, %s23
    %p29 = scmp.eq.s32.totalorder %s10, 0
    %p30 = por %p28, %p29
    %p31 = scmp.ne.s32.totalorder %s20, %s23
    %p32 = scmp.eq.s32.totalorder %s15, 1
    %p33 = por %p31, %p32
    %p34 = scmp.ne.s32.totalorder %s23, %s24
    %p35 = scmp.eq.s32.totalorder %s15, 0
    %p36 = por %p34, %p35
    %p37 = scmp.ne.s32.totalorder %s23, %s24
    %p38 = scmp.eq.s32.totalorder %s16, 1
    %p39 = por %p37, %p38
    %p41 = scmp.ne.s32.totalorder %s24, %s40
    %p42 = scmp.eq.s32.totalorder %s16, 0
    %p43 = por %p41, %p42
    %s45 = sadd.s32 %s44, 1
    %p48 = scmp.eq.s32.totalorder %s10, 1
    %p49 = scmp.ne.s32.totalorder %s44, %s46
    %p50 = scmp.eq.s32.totalorder %s10, 0
    %p51 = por %p49, %p50
    %p52 = scmp.ne.s32.totalorder %s44, %s46
    %p53 = scmp.eq.s32.totalorder %s15, 1
    %p54 = por %p52, %p53
    %p55 = scmp.ne.s32.totalorder %s46, %s47
    %p56 = scmp.eq.s32.totalorder %s15, 0
    %p57 = por %p55, %p56
    %p58 = scmp.ne.s32.totalorder %s46, %s47
    %p59 = scmp.eq.s32.totalorder %s16, 1
    %p60 = por %p58, %p59
    %p62 = scmp.ne.s32.totalorder %s47, %s61
    %p63 = scmp.eq.s32.totalorder %s16, 0
    %p64 = por %p62, %p63
    %s66 = sadd.s32 %s65, 1
    %p69 = scmp.eq.s32.totalorder %s10, 1
    %p70 = scmp.ne.s32.totalorder %s65, %s67
    %p71 = scmp.eq.s32.totalorder %s10, 0
    %p72 = por %p70, %p71
    %p73 = scmp.ne.s32.totalorder %s65, %s67
    %p74 = scmp.eq.s32.totalorder %s15, 1
    %p75 = por %p73, %p74
    %p76 = scmp.ne.s32.totalorder %s67, %s68
    %p77 = scmp.eq.s32.totalorder %s15, 0
    %p78 = por %p76, %p77
    %p79 = scmp.ne.s32.totalorder %s67, %s68
    %p80 = scmp.eq.s32.totalorder %s16, 1
    %p81 = por %p79, %p80
    %p83 = scmp.ne.s32.totalorder %s68, %s82
    %p84 = scmp.eq.s32.totalorder %s16, 0
    %p85 = por %p83, %p84
    %s87 = sadd.s32 %s86, 1
    %p90 = scmp.eq.s32.totalorder %s10, 1
    %p91 = scmp.ne.s32.totalorder %s86, %s88
    %p92 = scmp.eq.s32.totalorder %s10, 0
    %p93 = por %p91, %p92
    %p94 = scmp.ne.s32.totalorder %s86, %s88
    %p95 = scmp.eq.s32.totalorder %s15, 1
    %p96 = por %p94, %p95
    %p97 = scmp.ne.s32.totalorder %s88, %s89
    %p98 = scmp.eq.s32.totalorder %s15, 0
    %p99 = por %p97, %p98
    %p100 = scmp.ne.s32.totalorder %s88, %s89
    %p101 = scmp.eq.s32.totalorder %s16, 1
    %p102 = por %p100, %p101
    %p104 = scmp.ne.s32.totalorder %s89, %s103
    %p105 = scmp.eq.s32.totalorder %s16, 0
    %p106 = por %p104, %p105
    %s107 = ssub.s32 %s10, %s17
    %p108 = scmp.eq.s32.totalorder %s107, 0
    %s110 = sadd.s32 %s109, 1
    %s111 = scalar_select %p108, %s109, %s110
    %p114 = pneg %p108
    %p115 = scmp.eq.s32.totalorder %s10, 1
    %p116 = por %p114, %p115
    %p117 = scmp.ne.s32.totalorder %s109, %s112
    %p118 = scmp.eq.s32.totalorder %s10, 0
    %p119 = por %p117, %p118
    %p120 = scmp.ne.s32.totalorder %s109, %s112
    %p121 = scmp.eq.s32.totalorder %s15, 1
    %p122 = por %p120, %p121
    %p123 = scmp.ne.s32.totalorder %s112, %s113
    %p124 = scmp.eq.s32.totalorder %s15, 0
    %p125 = por %p123, %p124
    %p126 = scmp.ne.s32.totalorder %s112, %s113
    %p127 = scmp.eq.s32.totalorder %s16, 1
    %p128 = por %p126, %p127
    %p130 = scmp.ne.s32.totalorder %s113, %s129
    %p131 = scmp.eq.s32.totalorder %s16, 0
    %p132 = por %p130, %p131
    %p133 = scmp.le.s32.totalorder 1, %s10
    %p134 = scmp.lt.s32.totalorder %s10, 3
    %p135 = pnand %p133, %p134
    %p136 = pneg %p135
    // Predicated region
    $region9: #{deeplab_forward.4} parent=5 // pred_check
      _
    $region10: #{deeplab_forward.4} parent=5 // pred_check_branch
      %138 = sbr.rel (%p135) target = $region12
    $region11: #{deeplab_forward.4} parent=5 // pred_region
      %s139 = ssub.s32 %s10, 1
      // Predicated region
      $region13: #{deeplab_forward.4} parent=11 // pred_check
        %p140 = pneg %p57
      $region14: #{deeplab_forward.4} parent=11 // pred_check_branch
        %142 = sbr.rel (%p140) target = $region16
      $region15: #{deeplab_forward.4} parent=11 // pred_region
        _
      $region16: #{deeplab_forward.4} parent=11 // pred_fallthru
        _
      // Predicated region
      $region17: #{deeplab_forward.4} parent=11 // pred_check
        %p143 = pneg %p78
      $region18: #{deeplab_forward.4} parent=11 // pred_check_branch
        %145 = sbr.rel (%p143) target = $region20
      $region19: #{deeplab_forward.4} parent=11 // pred_region
        _
      $region20: #{deeplab_forward.4} parent=11 // pred_fallthru
        _
      // Predicated region
      $region21: #{deeplab_forward.4} parent=11 // pred_check
        %p146 = pneg %p99
      $region22: #{deeplab_forward.4} parent=11 // pred_check_branch
        %148 = sbr.rel (%p146) target = $region24
      $region23: #{deeplab_forward.4} parent=11 // pred_region
        _
      $region24: #{deeplab_forward.4} parent=11 // pred_fallthru
        _
    $region12: #{deeplab_forward.4} parent=5 // pred_fallthru
      _
    %p149 = scmp.lt.s32.totalorder %s10, 2
    // Predicated region
    $region25: #{deeplab_forward.4} parent=5 // pred_check
      %p150 = pneg %p149
    $region26: #{deeplab_forward.4} parent=5 // pred_check_branch
      %152 = sbr.rel (%p150) target = $region28
    $region27: #{deeplab_forward.4} parent=5 // pred_region
      // Predicated region
      $region29: #{deeplab_forward.4} parent=27 // pred_check
        %p153 = pneg %p30
      $region30: #{deeplab_forward.4} parent=27 // pred_check_branch
        %155 = sbr.rel (%p153) target = $region32
      $region31: #{deeplab_forward.4} parent=27 // pred_region
        %p156 = scmp.lt.s32.totalorder %s10, 1
        %s157 = scalar_select %p156, %s10, 1
        %s158 = smul.addr %s157, 54
        %s159 = smul.addr %s158, 4
        %s160 = scalar_lea.vmem %s0, %s159
      $region32: #{deeplab_forward.4} parent=27 // pred_fallthru
        _
    $region28: #{deeplab_forward.4} parent=5 // pred_fallthru
      _
    %p161 = scmp.le.s32.totalorder 1, %s10
    %p162 = scmp.lt.s32.totalorder %s10, 3
    %p163 = pnand %p161, %p162
    %p164 = pneg %p163
    // Predicated region
    $region33: #{deeplab_forward.4} parent=5 // pred_check
      _
    $region34: #{deeplab_forward.4} parent=5 // pred_check_branch
      %166 = sbr.rel (%p163) target = $region36
    $region35: #{deeplab_forward.4} parent=5 // pred_region
      %s167 = ssub.s32 %s10, 1
      %p168 = scmp.lt.s32.totalorder %s15, 1
      %s169 = scalar_select %p168, %s15, 1
      %s170 = smul.addr %s169, 54
      %s171 = smul.addr %s170, 4
      %s172 = scalar_lea.vmem %s0, %s171
      %p173 = pneg %p36
      %p174 = pneg %p33
      %p175 = pneg %p57
      %p176 = pneg %p54
      %p177 = pneg %p78
      %p178 = pneg %p75
      %p179 = pneg %p99
      %p180 = pneg %p96
      %p181 = pneg %p125
      %p182 = pneg %p122
      %p183 = scmp.lt.s32.totalorder %s15, 1
      %s184 = scalar_select %p183, %s15, 1
      %s185 = smul.addr %s184, 32
      %s186 = smul.addr %s185, 4
      %s187 = scalar_lea.vmem %s4, %s186
      %p188 = scmp.lt.s32.totalorder %s15, 1
      %s189 = scalar_select %p188, %s15, 1
      %s190 = smul.addr %s189, 54
      %s191 = smul.addr %s190, 4
      %s192 = scalar_lea.vmem %s0, %s191
      %p193 = scmp.lt.s32.totalorder %s15, 1
      %s194 = scalar_select %p193, %s15, 1
      %s195 = smul.addr %s194, 32
      %s196 = smul.addr %s195, 4
      %s197 = scalar_lea.vmem %s4, %s196
      %v199 = vld [vmem:[%s192] sm:$0xf]
      %v200 = vld [vmem:[%s192 + $0x4] sm:$0xf]
      %v201 = vld [vmem:[%s192 + $0x8] sm:$0xf]
      %v202 = vld [vmem:[%s192 + $0xc] sm:$0xf]
      %v203 = vld [vmem:[%s192 + $0x10] sm:$0xf]
      %v204 = vld [vmem:[%s192 + $0x14] sm:$0xf]
      %v205 = vld [vmem:[%s192 + $0x18] sm:$0xf]
      %v206 = vld [vmem:[%s192 + $0x1c] sm:$0xf]
      %v207 = vld [vmem:[%s192 + $0x20] sm:$0xf]
      %v208 = vld [vmem:[%s192 + $0x24] sm:$0xf]
      %v209 = vld [vmem:[%s192 + $0x28] sm:$0xf]
      %v210 = vld [vmem:[%s192 + $0x2c] sm:$0xf]
      %v211 = vld [vmem:[%s192 + $0x30] sm:$0xf]
      %v212 = vld [vmem:[%s192 + $0x34] sm:$0xf]
      %v213 = vld [vmem:[%s192 + $0x38] sm:$0xf]
      %v214 = vld [vmem:[%s192 + $0x3c] sm:$0xf]
      %v215 = vld [vmem:[%s192 + $0x40] sm:$0xf]
      %v216 = vld [vmem:[%s192 + $0x44] sm:$0xf]
      %v217 = vld [vmem:[%s192 + $0x48] sm:$0xf]
      %v218 = vld [vmem:[%s192 + $0x4c] sm:$0xf]
      %v219 = vld [vmem:[%s192 + $0x50] sm:$0xf]
      %v220 = vld [vmem:[%s192 + $0x54] sm:$0xf]
      %v221 = vld [vmem:[%s192 + $0x58] sm:$0xf]
      %v222 = vld [vmem:[%s192 + $0x5c] sm:$0xf]
      %v223 = vld [vmem:[%s192 + $0x60] sm:$0xf]
      %v224 = vld [vmem:[%s192 + $0x64] sm:$0xf]
      %v225 = vld [vmem:[%s192 + $0x68] sm:$0xf]
      %v226 = vld [vmem:[%s192 + $0x6c] sm:$0xf]
      %v227 = vld [vmem:[%s192 + $0x70] sm:$0xf]
      %v228 = vld [vmem:[%s192 + $0x74] sm:$0xf]
      %v229 = vld [vmem:[%s192 + $0x78] sm:$0xf]
      %v230 = vld [vmem:[%s192 + $0x7c] sm:$0xf]
      %v231 = vld [vmem:[%s192 + $0x80] sm:$0xf]
      %v232 = vld [vmem:[%s192 + $0x84] sm:$0xf]
      %v233 = vld [vmem:[%s192 + $0x88] sm:$0xf]
      %v234 = vld [vmem:[%s192 + $0x8c] sm:$0xf]
      %v235 = vld [vmem:[%s192 + $0x90] sm:$0xf]
      %v236 = vld [vmem:[%s192 + $0x94] sm:$0xf]
      %v237 = vld [vmem:[%s192 + $0x98] sm:$0xf]
      %v238 = vld [vmem:[%s192 + $0x9c] sm:$0xf]
      %v239 = vld [vmem:[%s192 + $0xa0] sm:$0xf]
      %v240 = vld [vmem:[%s192 + $0xa4] sm:$0xf]
      %v241 = vld [vmem:[%s192 + $0xa8] sm:$0xf]
      %v242 = vld [vmem:[%s192 + $0xac] sm:$0xf]
      %v243 = vld [vmem:[%s192 + $0xb0] sm:$0xf]
      %v244 = vld [vmem:[%s192 + $0xb4] sm:$0xf]
      %v245 = vld [vmem:[%s192 + $0xb8] sm:$0xf]
      %v246 = vld [vmem:[%s192 + $0xbc] sm:$0xf]
      %v247 = vld [vmem:[%s192 + $0xc0] sm:$0xf]
      %v248 = vld [vmem:[%s192 + $0xc4] sm:$0xf]
      %v249 = vld [vmem:[%s192 + $0xc8] sm:$0xf]
      %v250 = vld [vmem:[%s192 + $0xcc] sm:$0xf]
      %v251 = vld [vmem:[%s192 + $0xd0] sm:$0xf]
      %v252 = vld [vmem:[%s192 + $0xd4] sm:$0xf]
      %v253 = vld [vmem:[%s1] sm:$0xf]
      %v254 = vld [vmem:[%s1 + $0x4] sm:$0xf]
      %v255 = vld [vmem:[%s1 + $0x8] sm:$0xf]
      %v256 = vld [vmem:[%s1 + $0xc] sm:$0xf]
      %v257 = vld [vmem:[%s1 + $0x10] sm:$0xf]
      %v258 = vld [vmem:[%s1 + $0x14] sm:$0xf]
      %s259 = scalar_lea.vmem %s1, 24
      %v260 = vld [vmem:[%s259] sm:$0xf]
      %v261 = vld [vmem:[%s259 + $0x4] sm:$0xf]
      %v262 = vld [vmem:[%s259 + $0x8] sm:$0xf]
      %v263 = vld [vmem:[%s259 + $0xc] sm:$0xf]
      %v264 = vld [vmem:[%s259 + $0x10] sm:$0xf]
      %v265 = vld [vmem:[%s259 + $0x14] sm:$0xf]
      %v314 = vunpack.c.l.b16 %v199
      %v315 = vunpack.c.l.b16 %v200
      %v316 = vunpack.c.l.b16 %v201
      %v317 = vunpack.c.l.b16 %v202
      %v318 = vunpack.c.l.b16 %v203
      %v319 = vunpack.c.l.b16 %v204
      %v320 = vunpack.c.l.b16 %v205
      %v321 = vunpack.c.l.b16 %v206
      %v322 = vunpack.c.l.b16 %v207
      %v323 = vunpack.c.l.b16 %v208
      %v324 = vunpack.c.l.b16 %v209
      %v325 = vunpack.c.l.b16 %v210
      %v326 = vunpack.c.l.b16 %v211
      %v327 = vunpack.c.l.b16 %v212
      %v328 = vunpack.c.l.b16 %v213
      %v329 = vunpack.c.l.b16 %v214
      %v330 = vunpack.c.l.b16 %v215
      %v331 = vunpack.c.l.b16 %v216
      %v332 = vunpack.c.l.b16 %v217
      %v333 = vunpack.c.l.b16 %v218
      %v334 = vunpack.c.l.b16 %v219
      %v335 = vunpack.c.l.b16 %v220
      %v336 = vunpack.c.l.b16 %v221
      %v337 = vunpack.c.l.b16 %v222
      %v338 = vunpack.c.l.b16 %v223
      %v339 = vunpack.c.l.b16 %v224
      %v340 = vunpack.c.l.b16 %v225
      %v341 = vunpack.c.l.b16 %v226
      %v342 = vunpack.c.l.b16 %v227
      %v343 = vunpack.c.l.b16 %v228
      %v344 = vunpack.c.l.b16 %v229
      %v345 = vunpack.c.l.b16 %v230
      %v346 = vunpack.c.l.b16 %v231
      %v347 = vunpack.c.l.b16 %v232
      %v348 = vunpack.c.l.b16 %v233
      %v349 = vunpack.c.l.b16 %v234
      %v350 = vunpack.c.l.b16 %v235
      %v351 = vunpack.c.l.b16 %v236
      %v352 = vunpack.c.l.b16 %v237
      %v353 = vunpack.c.l.b16 %v238
      %v354 = vunpack.c.l.b16 %v239
      %v355 = vunpack.c.l.b16 %v240
      %v356 = vunpack.c.l.b16 %v241
      %v357 = vunpack.c.l.b16 %v242
      %v358 = vunpack.c.l.b16 %v243
      %v359 = vunpack.c.l.b16 %v244
      %v360 = vunpack.c.l.b16 %v245
      %v361 = vunpack.c.l.b16 %v246
      %v362 = vpack.c.b16 %v315, %v314
      %v363 = vpack.c.b16 %v317, %v316
      %v364 = vpack.c.b16 %v319, %v318
      %v365 = vpack.c.b16 %v321, %v320
      %v366 = vpack.c.b16 %v323, %v322
      %v367 = vpack.c.b16 %v325, %v324
      %v368 = vpack.c.b16 %v327, %v326
      %v369 = vpack.c.b16 %v329, %v328
      %v370 = vpack.c.b16 %v331, %v330
      %v371 = vpack.c.b16 %v333, %v332
      %v372 = vpack.c.b16 %v335, %v334
      %v373 = vpack.c.b16 %v337, %v336
      %v374 = vpack.c.b16 %v339, %v338
      %v375 = vpack.c.b16 %v341, %v340
      %v376 = vpack.c.b16 %v343, %v342
      %v377 = vpack.c.b16 %v345, %v344
      %v378 = vpack.c.b16 %v347, %v346
      %v379 = vpack.c.b16 %v349, %v348
      %v380 = vpack.c.b16 %v351, %v350
      %v381 = vpack.c.b16 %v353, %v352
      %v382 = vpack.c.b16 %v355, %v354
      %v383 = vpack.c.b16 %v357, %v356
      %v384 = vpack.c.b16 %v359, %v358
      %v385 = vpack.c.b16 %v361, %v360
      %v392 = vunpack.c.l.b16 %v260
      %v393 = vunpack.c.l.b16 %v261
      %v394 = vunpack.c.l.b16 %v262
      %v395 = vunpack.c.l.b16 %v263
      %v396 = vunpack.c.l.b16 %v264
      %v397 = vunpack.c.l.b16 %v265
      %v398 = vpack.c.b16 %v393, %v392
      %v399 = vpack.c.b16 %v395, %v394
      %v400 = vpack.c.b16 %v397, %v396
      %vm404 = vcmask 392192
      %v406 = vsel %vm404, %v362, 0
      %v409 = vsel %vm404, %v363, 0
      %v412 = vsel %vm404, %v364, 0
      %v415 = vsel %vm404, %v365, 0
      %v418 = vsel %vm404, %v366, 0
      %v421 = vsel %vm404, %v367, 0
      %v424 = vsel %vm404, %v368, 0
      %v427 = vsel %vm404, %v369, 0
      %v430 = vsel %vm404, %v370, 0
      %v433 = vsel %vm404, %v371, 0
      %v436 = vsel %vm404, %v372, 0
      %v439 = vsel %vm404, %v373, 0
      %v442 = vsel %vm404, %v374, 0
      %v445 = vsel %vm404, %v375, 0
      %v448 = vsel %vm404, %v376, 0
      %v451 = vsel %vm404, %v377, 0
      %v454 = vsel %vm404, %v378, 0
      %v457 = vsel %vm404, %v379, 0
      %v460 = vsel %vm404, %v380, 0
      %v463 = vsel %vm404, %v381, 0
      %v466 = vsel %vm404, %v382, 0
      %v469 = vsel %vm404, %v383, 0
      %v472 = vsel %vm404, %v384, 0
      %v475 = vsel %vm404, %v385, 0
      %477 = vmatprep.subr.bf16.mxu0 0
      %478 = vmatpush1.bf16.msra.mxu0 0
      %479 = vmatprep.subr.bf16.mxu0 0
      %480 = vmatpush1.bf16.msra.mxu0 0
      %481 = vmatprep.subr.bf16.mxu0 0
      %482 = vmatpush1.bf16.msra.mxu0 0
      %483 = vmatprep.subr.bf16.mxu0 0
      %484 = vmatpush1.bf16.msra.mxu0 0
      %485 = vmatprep.subr.bf16.mxu0 0
      %486 = vmatpush1.bf16.msra.mxu0 0
      %487 = vmatprep.subr.bf16.mxu0 0
      %488 = vmatpush1.bf16.msra.mxu0 %v400
      %489 = vmatprep.subr.bf16.mxu0 0
      %490 = vmatpush1.bf16.msra.mxu0 %v399
      %491 = vmatprep.subr.bf16.mxu0 0
      %492 = vmatpush1.bf16.msra.mxu0 %v398
      %493 = vmatprep.subr.bf16.mxu0 0
      %494 = vmatpush2.bf16.msra.mxu0 0
      %495 = vmatprep.subr.bf16.mxu0 0
      %496 = vmatpush2.bf16.msra.mxu0 0
      %497 = vmatprep.subr.bf16.mxu0 0
      %498 = vmatpush2.bf16.msra.mxu0 0
      %499 = vmatprep.subr.bf16.mxu0 0
      %500 = vmatpush2.bf16.msra.mxu0 0
      %501 = vmatprep.subr.bf16.mxu0 0
      %502 = vmatpush2.bf16.msra.mxu0 0
      %503 = vmatprep.subr.bf16.mxu0 0
      %504 = vmatpush2.bf16.msra.mxu0 0
      %505 = vmatprep.subr.bf16.mxu0 0
      %506 = vmatpush2.bf16.msra.mxu0 0
      %507 = vmatprep.subr.bf16.mxu0 0
      %508 = vmatpush2.bf16.msra.mxu0 0
      %509 = vmatprep.mubr.bf16.mxu0 0
      %510 = vmatmul.mubr.bf16.gmra.mxu0 %v406
      %v511 = vpop.f32.mrf.mxu0
      %v512 = vadd.f32 0.0, %v511
      %v513 = vpop.f32.mrf.mxu0
      %v514 = vpop.f32.mrf.mxu0
      %v515 = vadd.f32 0.0, %v514
      %v516 = vpop.f32.mrf.mxu0
      %517 = vmatprep.mubr.bf16.mxu0 0
      %518 = vmatmul.mubr.bf16.gmra.mxu0 %v409
      %v519 = vpop.f32.mrf.mxu0
      %v520 = vadd.f32 0.0, %v519
      %v521 = vpop.f32.mrf.mxu0
      %v522 = vpop.f32.mrf.mxu0
      %v523 = vadd.f32 0.0, %v522
      %v524 = vpop.f32.mrf.mxu0
      %525 = vmatprep.mubr.bf16.mxu0 0
      %526 = vmatmul.mubr.bf16.gmra.mxu0 %v412
      %v527 = vpop.f32.mrf.mxu0
      %v528 = vadd.f32 0.0, %v527
      %v529 = vpop.f32.mrf.mxu0
      %v530 = vpop.f32.mrf.mxu0
      %v531 = vadd.f32 0.0, %v530
      %v532 = vpop.f32.mrf.mxu0
      %533 = vmatprep.mubr.bf16.mxu0 0
      %534 = vmatmul.mubr.bf16.gmra.mxu0 %v415
      %v535 = vpop.f32.mrf.mxu0
      %v536 = vadd.f32 0.0, %v535
      %v537 = vpop.f32.mrf.mxu0
      %v538 = vpop.f32.mrf.mxu0
      %v539 = vadd.f32 0.0, %v538
      %v540 = vpop.f32.mrf.mxu0
      %541 = vmatprep.mubr.bf16.mxu0 0
      %542 = vmatmul.mubr.bf16.gmra.mxu0 %v418
      %v543 = vpop.f32.mrf.mxu0
      %v544 = vadd.f32 0.0, %v543
      %v545 = vpop.f32.mrf.mxu0
      %v546 = vpop.f32.mrf.mxu0
      %v547 = vadd.f32 0.0, %v546
      %v548 = vpop.f32.mrf.mxu0
      %549 = vmatprep.mubr.bf16.mxu0 0
      %550 = vmatmul.mubr.bf16.gmra.mxu0 %v421
      %v551 = vpop.f32.mrf.mxu0
      %v552 = vadd.f32 0.0, %v551
      %v553 = vpop.f32.mrf.mxu0
      %v554 = vpop.f32.mrf.mxu0
      %v555 = vadd.f32 0.0, %v554
      %v556 = vpop.f32.mrf.mxu0
      %557 = vmatprep.mubr.bf16.mxu0 0
      %558 = vmatmul.mubr.bf16.gmra.mxu0 %v424
      %v559 = vpop.f32.mrf.mxu0
      %v560 = vadd.f32 0.0, %v559
      %v561 = vpop.f32.mrf.mxu0
      %v562 = vpop.f32.mrf.mxu0
      %v563 = vadd.f32 0.0, %v562
      %v564 = vpop.f32.mrf.mxu0
      %565 = vmatprep.mubr.bf16.mxu0 0
      %566 = vmatmul.mubr.bf16.gmra.mxu0 %v427
      %v567 = vpop.f32.mrf.mxu0
      %v568 = vadd.f32 0.0, %v567
      %v569 = vpop.f32.mrf.mxu0
      %v570 = vpop.f32.mrf.mxu0
      %v571 = vadd.f32 0.0, %v570
      %v572 = vpop.f32.mrf.mxu0
      %573 = vmatprep.mubr.bf16.mxu0 0
      %574 = vmatmul.mubr.bf16.gmra.mxu0 %v430
      %v575 = vpop.f32.mrf.mxu0
      %v576 = vadd.f32 0.0, %v575
      %v577 = vpop.f32.mrf.mxu0
      %v578 = vpop.f32.mrf.mxu0
      %v579 = vadd.f32 0.0, %v578
      %v580 = vpop.f32.mrf.mxu0
      %581 = vmatprep.mubr.bf16.mxu0 0
      %582 = vmatmul.mubr.bf16.gmra.mxu0 %v433
      %v583 = vpop.f32.mrf.mxu0
      %v584 = vadd.f32 0.0, %v583
      %v585 = vpop.f32.mrf.mxu0
      %v586 = vpop.f32.mrf.mxu0
      %v587 = vadd.f32 0.0, %v586
      %v588 = vpop.f32.mrf.mxu0
      %589 = vmatprep.mubr.bf16.mxu0 0
      %590 = vmatmul.mubr.bf16.gmra.mxu0 %v436
      %v591 = vpop.f32.mrf.mxu0
      %v592 = vadd.f32 0.0, %v591
      %v593 = vpop.f32.mrf.mxu0
      %v594 = vpop.f32.mrf.mxu0
      %v595 = vadd.f32 0.0, %v594
      %v596 = vpop.f32.mrf.mxu0
      %597 = vmatprep.mubr.bf16.mxu0 0
      %598 = vmatmul.mubr.bf16.gmra.mxu0 %v439
      %v599 = vpop.f32.mrf.mxu0
      %v600 = vadd.f32 0.0, %v599
      %v601 = vpop.f32.mrf.mxu0
      %v602 = vpop.f32.mrf.mxu0
      %v603 = vadd.f32 0.0, %v602
      %v604 = vpop.f32.mrf.mxu0
      %605 = vmatprep.mubr.bf16.mxu0 0
      %606 = vmatmul.mubr.bf16.gmra.mxu0 %v442
      %v607 = vpop.f32.mrf.mxu0
      %v608 = vadd.f32 0.0, %v607
      %v609 = vpop.f32.mrf.mxu0
      %v610 = vpop.f32.mrf.mxu0
      %v611 = vadd.f32 0.0, %v610
      %v612 = vpop.f32.mrf.mxu0
      %613 = vmatprep.mubr.bf16.mxu0 0
      %614 = vmatmul.mubr.bf16.gmra.mxu0 %v445
      %v615 = vpop.f32.mrf.mxu0
      %v616 = vadd.f32 0.0, %v615
      %v617 = vpop.f32.mrf.mxu0
      %v618 = vpop.f32.mrf.mxu0
      %v619 = vadd.f32 0.0, %v618
      %v620 = vpop.f32.mrf.mxu0
      %621 = vmatprep.mubr.bf16.mxu0 0
      %622 = vmatmul.mubr.bf16.gmra.mxu0 %v448
      %v623 = vpop.f32.mrf.mxu0
      %v624 = vadd.f32 0.0, %v623
      %v625 = vpop.f32.mrf.mxu0
      %v626 = vpop.f32.mrf.mxu0
      %v627 = vadd.f32 0.0, %v626
      %v628 = vpop.f32.mrf.mxu0
      %629 = vmatprep.mubr.bf16.mxu0 0
      %630 = vmatmul.mubr.bf16.gmra.mxu0 %v451
      %v631 = vpop.f32.mrf.mxu0
      %v632 = vadd.f32 0.0, %v631
      %v633 = vpop.f32.mrf.mxu0
      %v634 = vpop.f32.mrf.mxu0
      %v635 = vadd.f32 0.0, %v634
      %v636 = vpop.f32.mrf.mxu0
      %637 = vmatprep.mubr.bf16.mxu0 0
      %638 = vmatmul.mubr.bf16.gmra.mxu0 %v454
      %v639 = vpop.f32.mrf.mxu0
      %v640 = vadd.f32 0.0, %v639
      %v641 = vpop.f32.mrf.mxu0
      %v642 = vpop.f32.mrf.mxu0
      %v643 = vadd.f32 0.0, %v642
      %v644 = vpop.f32.mrf.mxu0
      %645 = vmatprep.mubr.bf16.mxu0 0
      %646 = vmatmul.mubr.bf16.gmra.mxu0 %v457
      %v647 = vpop.f32.mrf.mxu0
      %v648 = vadd.f32 0.0, %v647
      %v649 = vpop.f32.mrf.mxu0
      %v650 = vpop.f32.mrf.mxu0
      %v651 = vadd.f32 0.0, %v650
      %v652 = vpop.f32.mrf.mxu0
      %653 = vmatprep.mubr.bf16.mxu0 0
      %654 = vmatmul.mubr.bf16.gmra.mxu0 %v460
      %v655 = vpop.f32.mrf.mxu0
      %v656 = vadd.f32 0.0, %v655
      %v657 = vpop.f32.mrf.mxu0
      %v658 = vpop.f32.mrf.mxu0
      %v659 = vadd.f32 0.0, %v658
      %v660 = vpop.f32.mrf.mxu0
      %661 = vmatprep.mubr.bf16.mxu0 0
      %662 = vmatmul.mubr.bf16.gmra.mxu0 %v463
      %v663 = vpop.f32.mrf.mxu0
      %v664 = vadd.f32 0.0, %v663
      %v665 = vpop.f32.mrf.mxu0
      %v666 = vpop.f32.mrf.mxu0
      %v667 = vadd.f32 0.0, %v666
      %v668 = vpop.f32.mrf.mxu0
      %669 = vmatprep.mubr.bf16.mxu0 0
      %670 = vmatmul.mubr.bf16.gmra.mxu0 %v466
      %v671 = vpop.f32.mrf.mxu0
      %v672 = vadd.f32 0.0, %v671
      %v673 = vpop.f32.mrf.mxu0
      %v674 = vpop.f32.mrf.mxu0
      %v675 = vadd.f32 0.0, %v674
      %v676 = vpop.f32.mrf.mxu0
      %677 = vmatprep.mubr.bf16.mxu0 0
      %678 = vmatmul.mubr.bf16.gmra.mxu0 %v469
      %v679 = vpop.f32.mrf.mxu0
      %v680 = vadd.f32 0.0, %v679
      %v681 = vpop.f32.mrf.mxu0
      %v682 = vpop.f32.mrf.mxu0
      %v683 = vadd.f32 0.0, %v682
      %v684 = vpop.f32.mrf.mxu0
      %685 = vmatprep.mubr.bf16.mxu0 0
      %686 = vmatmul.mubr.bf16.gmra.mxu0 %v472
      %v687 = vpop.f32.mrf.mxu0
      %v688 = vadd.f32 0.0, %v687
      %v689 = vpop.f32.mrf.mxu0
      %v690 = vpop.f32.mrf.mxu0
      %v691 = vadd.f32 0.0, %v690
      %v692 = vpop.f32.mrf.mxu0
      %693 = vmatprep.mubr.bf16.mxu0 0
      %694 = vmatmul.mubr.bf16.gmra.mxu0 %v475
      %v695 = vpop.f32.mrf.mxu0
      %v696 = vadd.f32 0.0, %v695
      %v697 = vpop.f32.mrf.mxu0
      %v698 = vpop.f32.mrf.mxu0
      %v699 = vadd.f32 0.0, %v698
      %v700 = vpop.f32.mrf.mxu0
      %701 = vdwg.mxu0
      %v702 = vrot.slane %v512, 1
      %v703 = vrot.slane %v515, 1
      %v704 = vrot.slane %v520, 1
      %v705 = vrot.slane %v523, 1
      %v706 = vrot.slane %v528, 1
      %v707 = vrot.slane %v531, 1
      %v708 = vrot.slane %v536, 1
      %v709 = vrot.slane %v539, 1
      %v710 = vrot.slane %v544, 1
      %v711 = vrot.slane %v547, 1
      %v712 = vrot.slane %v552, 1
      %v713 = vrot.slane %v555, 1
      %v714 = vrot.slane %v560, 1
      %v715 = vrot.slane %v563, 1
      %v716 = vrot.slane %v568, 1
      %v717 = vrot.slane %v571, 1
      %v718 = vrot.slane %v576, 1
      %v719 = vrot.slane %v579, 1
      %v720 = vrot.slane %v584, 1
      %v721 = vrot.slane %v587, 1
      %v722 = vrot.slane %v592, 1
      %v723 = vrot.slane %v595, 1
      %v724 = vrot.slane %v600, 1
      %v725 = vrot.slane %v603, 1
      %v726 = vrot.slane %v608, 1
      %v727 = vrot.slane %v611, 1
      %v728 = vrot.slane %v616, 1
      %v729 = vrot.slane %v619, 1
      %v730 = vrot.slane %v624, 1
      %v731 = vrot.slane %v627, 1
      %v732 = vrot.slane %v632, 1
      %v733 = vrot.slane %v635, 1
      %v734 = vrot.slane %v640, 1
      %v735 = vrot.slane %v643, 1
      %v736 = vrot.slane %v648, 1
      %v737 = vrot.slane %v651, 1
      %v738 = vrot.slane %v656, 1
      %v739 = vrot.slane %v659, 1
      %v740 = vrot.slane %v664, 1
      %v741 = vrot.slane %v667, 1
      %v742 = vrot.slane %v672, 1
      %v743 = vrot.slane %v675, 1
      %v744 = vrot.slane %v680, 1
      %v745 = vrot.slane %v683, 1
      %v746 = vrot.slane %v688, 1
      %v747 = vrot.slane %v691, 1
      %v748 = vrot.slane %v696, 1
      %v749 = vrot.slane %v699, 1
      %v750 = vlaneseq
      %v751 = vshrl.u32 %v750, 7
      %vm752 = vcmp.lt.s32.totalorder %v751, 7
      %v753 = vsel %vm752, %v748, %v749
      %v754 = vsel %vm752, %v747, %v748
      %v755 = vsel %vm752, %v746, %v747
      %v756 = vsel %vm752, %v745, %v746
      %v757 = vsel %vm752, %v744, %v745
      %v758 = vsel %vm752, %v743, %v744
      %v759 = vsel %vm752, %v742, %v743
      %v760 = vsel %vm752, %v741, %v742
      %v761 = vsel %vm752, %v740, %v741
      %v762 = vsel %vm752, %v739, %v740
      %v763 = vsel %vm752, %v738, %v739
      %v764 = vsel %vm752, %v737, %v738
      %v765 = vsel %vm752, %v736, %v737
      %v766 = vsel %vm752, %v735, %v736
      %v767 = vsel %vm752, %v734, %v735
      %v768 = vsel %vm752, %v733, %v734
      %v769 = vsel %vm752, %v732, %v733
      %v770 = vsel %vm752, %v731, %v732
      %v771 = vsel %vm752, %v730, %v731
      %v772 = vsel %vm752, %v729, %v730
      %v773 = vsel %vm752, %v728, %v729
      %v774 = vsel %vm752, %v727, %v728
      %v775 = vsel %vm752, %v726, %v727
      %v776 = vsel %vm752, %v725, %v726
      %v777 = vsel %vm752, %v724, %v725
      %v778 = vsel %vm752, %v723, %v724
      %v779 = vsel %vm752, %v722, %v723
      %v780 = vsel %vm752, %v721, %v722
      %v781 = vsel %vm752, %v720, %v721
      %v782 = vsel %vm752, %v719, %v720
      %v783 = vsel %vm752, %v718, %v719
      %v784 = vsel %vm752, %v717, %v718
      %v785 = vsel %vm752, %v716, %v717
      %v786 = vsel %vm752, %v715, %v716
      %v787 = vsel %vm752, %v714, %v715
      %v788 = vsel %vm752, %v713, %v714
      %v789 = vsel %vm752, %v712, %v713
      %v790 = vsel %vm752, %v711, %v712
      %v791 = vsel %vm752, %v710, %v711
      %v792 = vsel %vm752, %v709, %v710
      %v793 = vsel %vm752, %v708, %v709
      %v794 = vsel %vm752, %v707, %v708
      %v795 = vsel %vm752, %v706, %v707
      %v796 = vsel %vm752, %v705, %v706
      %v797 = vsel %vm752, %v704, %v705
      %v798 = vsel %vm752, %v703, %v704
      %v799 = vsel %vm752, %v702, %v703
      %v800 = vsel %vm752, %v749, %v702
      %v807 = vunpack.c.l.b16 %v253
      %v808 = vunpack.c.l.b16 %v254
      %v809 = vunpack.c.l.b16 %v255
      %v810 = vunpack.c.l.b16 %v256
      %v811 = vunpack.c.l.b16 %v257
      %v812 = vunpack.c.l.b16 %v258
      %v813 = vpack.c.b16 %v808, %v807
      %v814 = vpack.c.b16 %v810, %v809
      %v815 = vpack.c.b16 %v812, %v811
      %819 = vmatprep.subr.bf16.mxu0 0
      %820 = vmatpush1.bf16.msra.mxu0 0
      %821 = vmatprep.subr.bf16.mxu0 0
      %822 = vmatpush1.bf16.msra.mxu0 0
      %823 = vmatprep.subr.bf16.mxu0 0
      %824 = vmatpush1.bf16.msra.mxu0 0
      %825 = vmatprep.subr.bf16.mxu0 0
      %826 = vmatpush1.bf16.msra.mxu0 0
      %827 = vmatprep.subr.bf16.mxu0 0
      %828 = vmatpush1.bf16.msra.mxu0 0
      %829 = vmatprep.subr.bf16.mxu0 0
      %830 = vmatpush1.bf16.msra.mxu0 %v815
      %831 = vmatprep.subr.bf16.mxu0 0
      %832 = vmatpush1.bf16.msra.mxu0 %v814
      %833 = vmatprep.subr.bf16.mxu0 0
      %834 = vmatpush1.bf16.msra.mxu0 %v813
      %835 = vmatprep.subr.bf16.mxu0 0
      %836 = vmatpush2.bf16.msra.mxu0 0
      %837 = vmatprep.subr.bf16.mxu0 0
      %838 = vmatpush2.bf16.msra.mxu0 0
      %839 = vmatprep.subr.bf16.mxu0 0
      %840 = vmatpush2.bf16.msra.mxu0 0
      %841 = vmatprep.subr.bf16.mxu0 0
      %842 = vmatpush2.bf16.msra.mxu0 0
      %843 = vmatprep.subr.bf16.mxu0 0
      %844 = vmatpush2.bf16.msra.mxu0 0
      %845 = vmatprep.subr.bf16.mxu0 0
      %846 = vmatpush2.bf16.msra.mxu0 0
      %847 = vmatprep.subr.bf16.mxu0 0
      %848 = vmatpush2.bf16.msra.mxu0 0
      %849 = vmatprep.subr.bf16.mxu0 0
      %850 = vmatpush2.bf16.msra.mxu0 0
      %851 = vmatprep.mubr.bf16.mxu0 0
      %852 = vmatmul.mubr.bf16.gmra.mxu0 %v406
      %v853 = vpop.f32.mrf.mxu0
      %v854 = vadd.f32 %v799, %v853
      %v855 = vpop.f32.mrf.mxu0
      %v856 = vpop.f32.mrf.mxu0
      %v857 = vadd.f32 %v798, %v856
      %v858 = vpop.f32.mrf.mxu0
      %859 = vmatprep.mubr.bf16.mxu0 0
      %860 = vmatmul.mubr.bf16.gmra.mxu0 %v409
      %v861 = vpop.f32.mrf.mxu0
      %v862 = vadd.f32 %v797, %v861
      %v863 = vpop.f32.mrf.mxu0
      %v864 = vpop.f32.mrf.mxu0
      %v865 = vadd.f32 %v796, %v864
      %v866 = vpop.f32.mrf.mxu0
      %867 = vmatprep.mubr.bf16.mxu0 0
      %868 = vmatmul.mubr.bf16.gmra.mxu0 %v412
      %v869 = vpop.f32.mrf.mxu0
      %v870 = vadd.f32 %v795, %v869
      %v871 = vpop.f32.mrf.mxu0
      %v872 = vpop.f32.mrf.mxu0
      %v873 = vadd.f32 %v794, %v872
      %v874 = vpop.f32.mrf.mxu0
      %875 = vmatprep.mubr.bf16.mxu0 0
      %876 = vmatmul.mubr.bf16.gmra.mxu0 %v415
      %v877 = vpop.f32.mrf.mxu0
      %v878 = vadd.f32 %v793, %v877
      %v879 = vpop.f32.mrf.mxu0
      %v880 = vpop.f32.mrf.mxu0
      %v881 = vadd.f32 %v792, %v880
      %v882 = vpop.f32.mrf.mxu0
      %883 = vmatprep.mubr.bf16.mxu0 0
      %884 = vmatmul.mubr.bf16.gmra.mxu0 %v418
      %v885 = vpop.f32.mrf.mxu0
      %v886 = vadd.f32 %v791, %v885
      %v887 = vpop.f32.mrf.mxu0
      %v888 = vpop.f32.mrf.mxu0
      %v889 = vadd.f32 %v790, %v888
      %v890 = vpop.f32.mrf.mxu0
      %891 = vmatprep.mubr.bf16.mxu0 0
      %892 = vmatmul.mubr.bf16.gmra.mxu0 %v421
      %v893 = vpop.f32.mrf.mxu0
      %v894 = vadd.f32 %v789, %v893
      %v895 = vpop.f32.mrf.mxu0
      %v896 = vpop.f32.mrf.mxu0
      %v897 = vadd.f32 %v788, %v896
      %v898 = vpop.f32.mrf.mxu0
      %899 = vmatprep.mubr.bf16.mxu0 0
      %900 = vmatmul.mubr.bf16.gmra.mxu0 %v424
      %v901 = vpop.f32.mrf.mxu0
      %v902 = vadd.f32 %v787, %v901
      %v903 = vpop.f32.mrf.mxu0
      %v904 = vpop.f32.mrf.mxu0
      %v905 = vadd.f32 %v786, %v904
      %v906 = vpop.f32.mrf.mxu0
      %907 = vmatprep.mubr.bf16.mxu0 0
      %908 = vmatmul.mubr.bf16.gmra.mxu0 %v427
      %v909 = vpop.f32.mrf.mxu0
      %v910 = vadd.f32 %v785, %v909
      %v911 = vpop.f32.mrf.mxu0
      %v912 = vpop.f32.mrf.mxu0
      %v913 = vadd.f32 %v784, %v912
      %v914 = vpop.f32.mrf.mxu0
      %915 = vmatprep.mubr.bf16.mxu0 0
      %916 = vmatmul.mubr.bf16.gmra.mxu0 %v430
      %v917 = vpop.f32.mrf.mxu0
      %v918 = vadd.f32 %v783, %v917
      %v919 = vpop.f32.mrf.mxu0
      %v920 = vpop.f32.mrf.mxu0
      %v921 = vadd.f32 %v782, %v920
      %v922 = vpop.f32.mrf.mxu0
      %923 = vmatprep.mubr.bf16.mxu0 0
      %924 = vmatmul.mubr.bf16.gmra.mxu0 %v433
      %v925 = vpop.f32.mrf.mxu0
      %v926 = vadd.f32 %v781, %v925
      %v927 = vpop.f32.mrf.mxu0
      %v928 = vpop.f32.mrf.mxu0
      %v929 = vadd.f32 %v780, %v928
      %v930 = vpop.f32.mrf.mxu0
      %931 = vmatprep.mubr.bf16.mxu0 0
      %932 = vmatmul.mubr.bf16.gmra.mxu0 %v436
      %v933 = vpop.f32.mrf.mxu0
      %v934 = vadd.f32 %v779, %v933
      %v935 = vpop.f32.mrf.mxu0
      %v936 = vpop.f32.mrf.mxu0
      %v937 = vadd.f32 %v778, %v936
      %v938 = vpop.f32.mrf.mxu0
      %939 = vmatprep.mubr.bf16.mxu0 0
      %940 = vmatmul.mubr.bf16.gmra.mxu0 %v439
      %v941 = vpop.f32.mrf.mxu0
      %v942 = vadd.f32 %v777, %v941
      %v943 = vpop.f32.mrf.mxu0
      %v944 = vpop.f32.mrf.mxu0
      %v945 = vadd.f32 %v776, %v944
      %v946 = vpop.f32.mrf.mxu0
      %947 = vmatprep.mubr.bf16.mxu0 0
      %948 = vmatmul.mubr.bf16.gmra.mxu0 %v442
      %v949 = vpop.f32.mrf.mxu0
      %v950 = vadd.f32 %v775, %v949
      %v951 = vpop.f32.mrf.mxu0
      %v952 = vpop.f32.mrf.mxu0
      %v953 = vadd.f32 %v774, %v952
      %v954 = vpop.f32.mrf.mxu0
      %955 = vmatprep.mubr.bf16.mxu0 0
      %956 = vmatmul.mubr.bf16.gmra.mxu0 %v445
      %v957 = vpop.f32.mrf.mxu0
      %v958 = vadd.f32 %v773, %v957
      %v959 = vpop.f32.mrf.mxu0
      %v960 = vpop.f32.mrf.mxu0
      %v961 = vadd.f32 %v772, %v960
      %v962 = vpop.f32.mrf.mxu0
      %963 = vmatprep.mubr.bf16.mxu0 0
      %964 = vmatmul.mubr.bf16.gmra.mxu0 %v448
      %v965 = vpop.f32.mrf.mxu0
      %v966 = vadd.f32 %v771, %v965
      %v967 = vpop.f32.mrf.mxu0
      %v968 = vpop.f32.mrf.mxu0
      %v969 = vadd.f32 %v770, %v968
      %v970 = vpop.f32.mrf.mxu0
      %971 = vmatprep.mubr.bf16.mxu0 0
      %972 = vmatmul.mubr.bf16.gmra.mxu0 %v451
      %v973 = vpop.f32.mrf.mxu0
      %v974 = vadd.f32 %v769, %v973
      %v975 = vpop.f32.mrf.mxu0
      %v976 = vpop.f32.mrf.mxu0
      %v977 = vadd.f32 %v768, %v976
      %v978 = vpop.f32.mrf.mxu0
      %979 = vmatprep.mubr.bf16.mxu0 0
      %980 = vmatmul.mubr.bf16.gmra.mxu0 %v454
      %v981 = vpop.f32.mrf.mxu0
      %v982 = vadd.f32 %v767, %v981
      %v983 = vpop.f32.mrf.mxu0
      %v984 = vpop.f32.mrf.mxu0
      %v985 = vadd.f32 %v766, %v984
      %v986 = vpop.f32.mrf.mxu0
      %987 = vmatprep.mubr.bf16.mxu0 0
      %988 = vmatmul.mubr.bf16.gmra.mxu0 %v457
      %v989 = vpop.f32.mrf.mxu0
      %v990 = vadd.f32 %v765, %v989
      %v991 = vpop.f32.mrf.mxu0
      %v992 = vpop.f32.mrf.mxu0
      %v993 = vadd.f32 %v764, %v992
      %v994 = vpop.f32.mrf.mxu0
      %995 = vmatprep.mubr.bf16.mxu0 0
      %996 = vmatmul.mubr.bf16.gmra.mxu0 %v460
      %v997 = vpop.f32.mrf.mxu0
      %v998 = vadd.f32 %v763, %v997
      %v999 = vpop.f32.mrf.mxu0
      %v1000 = vpop.f32.mrf.mxu0
      %v1001 = vadd.f32 %v762, %v1000
      %v1002 = vpop.f32.mrf.mxu0
      %1003 = vmatprep.mubr.bf16.mxu0 0
      %1004 = vmatmul.mubr.bf16.gmra.mxu0 %v463
      %v1005 = vpop.f32.mrf.mxu0
      %v1006 = vadd.f32 %v761, %v1005
      %v1007 = vpop.f32.mrf.mxu0
      %v1008 = vpop.f32.mrf.mxu0
      %v1009 = vadd.f32 %v760, %v1008
      %v1010 = vpop.f32.mrf.mxu0
      %1011 = vmatprep.mubr.bf16.mxu0 0
      %1012 = vmatmul.mubr.bf16.gmra.mxu0 %v466
      %v1013 = vpop.f32.mrf.mxu0
      %v1014 = vadd.f32 %v759, %v1013
      %v1015 = vpop.f32.mrf.mxu0
      %v1016 = vpop.f32.mrf.mxu0
      %v1017 = vadd.f32 %v758, %v1016
      %v1018 = vpop.f32.mrf.mxu0
      %1019 = vmatprep.mubr.bf16.mxu0 0
      %1020 = vmatmul.mubr.bf16.gmra.mxu0 %v469
      %v1021 = vpop.f32.mrf.mxu0
      %v1022 = vadd.f32 %v757, %v1021
      %v1023 = vpop.f32.mrf.mxu0
      %v1024 = vpop.f32.mrf.mxu0
      %v1025 = vadd.f32 %v756, %v1024
      %v1026 = vpop.f32.mrf.mxu0
      %1027 = vmatprep.mubr.bf16.mxu0 0
      %1028 = vmatmul.mubr.bf16.gmra.mxu0 %v472
      %v1029 = vpop.f32.mrf.mxu0
      %v1030 = vadd.f32 %v755, %v1029
      %v1031 = vpop.f32.mrf.mxu0
      %v1032 = vpop.f32.mrf.mxu0
      %v1033 = vadd.f32 %v754, %v1032
      %v1034 = vpop.f32.mrf.mxu0
      %1035 = vmatprep.mubr.bf16.mxu0 0
      %1036 = vmatmul.mubr.bf16.gmra.mxu0 %v475
      %v1037 = vpop.f32.mrf.mxu0
      %v1038 = vadd.f32 %v753, %v1037
      %v1039 = vpop.f32.mrf.mxu0
      %v1040 = vpop.f32.mrf.mxu0
      %v1041 = vadd.f32 %v800, %v1040
      %v1042 = vpop.f32.mrf.mxu0
      %1043 = vdwg.mxu0
      %s1044 = scalar_lea.vmem %s1, 48
      %v1045 = vld [vmem:[%s1044] sm:$0xf]
      %v1046 = vld [vmem:[%s1044 + $0x4] sm:$0xf]
      %v1047 = vld [vmem:[%s1044 + $0x8] sm:$0xf]
      %v1048 = vld [vmem:[%s1044 + $0xc] sm:$0xf]
      %v1049 = vld [vmem:[%s1044 + $0x10] sm:$0xf]
      %v1050 = vld [vmem:[%s1044 + $0x14] sm:$0xf]
      %v1057 = vunpack.c.l.b16 %v1045
      %v1058 = vunpack.c.l.b16 %v1046
      %v1059 = vunpack.c.l.b16 %v1047
      %v1060 = vunpack.c.l.b16 %v1048
      %v1061 = vunpack.c.l.b16 %v1049
      %v1062 = vunpack.c.l.b16 %v1050
      %v1063 = vpack.c.b16 %v1058, %v1057
      %v1064 = vpack.c.b16 %v1060, %v1059
      %v1065 = vpack.c.b16 %v1062, %v1061
      %1069 = vmatprep.subr.bf16.mxu0 0
      %1070 = vmatpush1.bf16.msra.mxu0 0
      %1071 = vmatprep.subr.bf16.mxu0 0
      %1072 = vmatpush1.bf16.msra.mxu0 0
      %1073 = vmatprep.subr.bf16.mxu0 0
      %1074 = vmatpush1.bf16.msra.mxu0 0
      %1075 = vmatprep.subr.bf16.mxu0 0
      %1076 = vmatpush1.bf16.msra.mxu0 0
      %1077 = vmatprep.subr.bf16.mxu0 0
      %1078 = vmatpush1.bf16.msra.mxu0 0
      %1079 = vmatprep.subr.bf16.mxu0 0
      %1080 = vmatpush1.bf16.msra.mxu0 %v1065
      %1081 = vmatprep.subr.bf16.mxu0 0
      %1082 = vmatpush1.bf16.msra.mxu0 %v1064
      %1083 = vmatprep.subr.bf16.mxu0 0
      %1084 = vmatpush1.bf16.msra.mxu0 %v1063
      %1085 = vmatprep.subr.bf16.mxu0 0
      %1086 = vmatpush2.bf16.msra.mxu0 0
      %1087 = vmatprep.subr.bf16.mxu0 0
      %1088 = vmatpush2.bf16.msra.mxu0 0
      %1089 = vmatprep.subr.bf16.mxu0 0
      %1090 = vmatpush2.bf16.msra.mxu0 0
      %1091 = vmatprep.subr.bf16.mxu0 0
      %1092 = vmatpush2.bf16.msra.mxu0 0
      %1093 = vmatprep.subr.bf16.mxu0 0
      %1094 = vmatpush2.bf16.msra.mxu0 0
      %1095 = vmatprep.subr.bf16.mxu0 0
      %1096 = vmatpush2.bf16.msra.mxu0 0
      %1097 = vmatprep.subr.bf16.mxu0 0
      %1098 = vmatpush2.bf16.msra.mxu0 0
      %1099 = vmatprep.subr.bf16.mxu0 0
      %1100 = vmatpush2.bf16.msra.mxu0 0
      %1101 = vmatprep.mubr.bf16.mxu0 0
      %1102 = vmatmul.mubr.bf16.gmra.mxu0 %v406
      %v1103 = vpop.f32.mrf.mxu0
      %v1104 = vadd.f32 0.0, %v1103
      %v1105 = vpop.f32.mrf.mxu0
      %v1106 = vpop.f32.mrf.mxu0
      %v1107 = vadd.f32 0.0, %v1106
      %v1108 = vpop.f32.mrf.mxu0
      %1109 = vmatprep.mubr.bf16.mxu0 0
      %1110 = vmatmul.mubr.bf16.gmra.mxu0 %v409
      %v1111 = vpop.f32.mrf.mxu0
      %v1112 = vadd.f32 0.0, %v1111
      %v1113 = vpop.f32.mrf.mxu0
      %v1114 = vpop.f32.mrf.mxu0
      %v1115 = vadd.f32 0.0, %v1114
      %v1116 = vpop.f32.mrf.mxu0
      %1117 = vmatprep.mubr.bf16.mxu0 0
      %1118 = vmatmul.mubr.bf16.gmra.mxu0 %v412
      %v1119 = vpop.f32.mrf.mxu0
      %v1120 = vadd.f32 0.0, %v1119
      %v1121 = vpop.f32.mrf.mxu0
      %v1122 = vpop.f32.mrf.mxu0
      %v1123 = vadd.f32 0.0, %v1122
      %v1124 = vpop.f32.mrf.mxu0
      %1125 = vmatprep.mubr.bf16.mxu0 0
      %1126 = vmatmul.mubr.bf16.gmra.mxu0 %v415
      %v1127 = vpop.f32.mrf.mxu0
      %v1128 = vadd.f32 0.0, %v1127
      %v1129 = vpop.f32.mrf.mxu0
      %v1130 = vpop.f32.mrf.mxu0
      %v1131 = vadd.f32 0.0, %v1130
      %v1132 = vpop.f32.mrf.mxu0
      %1133 = vmatprep.mubr.bf16.mxu0 0
      %1134 = vmatmul.mubr.bf16.gmra.mxu0 %v418
      %v1135 = vpop.f32.mrf.mxu0
      %v1136 = vadd.f32 0.0, %v1135
      %v1137 = vpop.f32.mrf.mxu0
      %v1138 = vpop.f32.mrf.mxu0
      %v1139 = vadd.f32 0.0, %v1138
      %v1140 = vpop.f32.mrf.mxu0
      %1141 = vmatprep.mubr.bf16.mxu0 0
      %1142 = vmatmul.mubr.bf16.gmra.mxu0 %v421
      %v1143 = vpop.f32.mrf.mxu0
      %v1144 = vadd.f32 0.0, %v1143
      %v1145 = vpop.f32.mrf.mxu0
      %v1146 = vpop.f32.mrf.mxu0
      %v1147 = vadd.f32 0.0, %v1146
      %v1148 = vpop.f32.mrf.mxu0
      %1149 = vmatprep.mubr.bf16.mxu0 0
      %1150 = vmatmul.mubr.bf16.gmra.mxu0 %v424
      %v1151 = vpop.f32.mrf.mxu0
      %v1152 = vadd.f32 0.0, %v1151
      %v1153 = vpop.f32.mrf.mxu0
      %v1154 = vpop.f32.mrf.mxu0
      %v1155 = vadd.f32 0.0, %v1154
      %v1156 = vpop.f32.mrf.mxu0
      %1157 = vmatprep.mubr.bf16.mxu0 0
      %1158 = vmatmul.mubr.bf16.gmra.mxu0 %v427
      %v1159 = vpop.f32.mrf.mxu0
      %v1160 = vadd.f32 0.0, %v1159
      %v1161 = vpop.f32.mrf.mxu0
      %v1162 = vpop.f32.mrf.mxu0
      %v1163 = vadd.f32 0.0, %v1162
      %v1164 = vpop.f32.mrf.mxu0
      %1165 = vmatprep.mubr.bf16.mxu0 0
      %1166 = vmatmul.mubr.bf16.gmra.mxu0 %v430
      %v1167 = vpop.f32.mrf.mxu0
      %v1168 = vadd.f32 0.0, %v1167
      %v1169 = vpop.f32.mrf.mxu0
      %v1170 = vpop.f32.mrf.mxu0
      %v1171 = vadd.f32 0.0, %v1170
      %v1172 = vpop.f32.mrf.mxu0
      %1173 = vmatprep.mubr.bf16.mxu0 0
      %1174 = vmatmul.mubr.bf16.gmra.mxu0 %v433
      %v1175 = vpop.f32.mrf.mxu0
      %v1176 = vadd.f32 0.0, %v1175
      %v1177 = vpop.f32.mrf.mxu0
      %v1178 = vpop.f32.mrf.mxu0
      %v1179 = vadd.f32 0.0, %v1178
      %v1180 = vpop.f32.mrf.mxu0
      %1181 = vmatprep.mubr.bf16.mxu0 0
      %1182 = vmatmul.mubr.bf16.gmra.mxu0 %v436
      %v1183 = vpop.f32.mrf.mxu0
      %v1184 = vadd.f32 0.0, %v1183
      %v1185 = vpop.f32.mrf.mxu0
      %v1186 = vpop.f32.mrf.mxu0
      %v1187 = vadd.f32 0.0, %v1186
      %v1188 = vpop.f32.mrf.mxu0
      %1189 = vmatprep.mubr.bf16.mxu0 0
      %1190 = vmatmul.mubr.bf16.gmra.mxu0 %v439
      %v1191 = vpop.f32.mrf.mxu0
      %v1192 = vadd.f32 0.0, %v1191
      %v1193 = vpop.f32.mrf.mxu0
      %v1194 = vpop.f32.mrf.mxu0
      %v1195 = vadd.f32 0.0, %v1194
      %v1196 = vpop.f32.mrf.mxu0
      %1197 = vmatprep.mubr.bf16.mxu0 0
      %1198 = vmatmul.mubr.bf16.gmra.mxu0 %v442
      %v1199 = vpop.f32.mrf.mxu0
      %v1200 = vadd.f32 0.0, %v1199
      %v1201 = vpop.f32.mrf.mxu0
      %v1202 = vpop.f32.mrf.mxu0
      %v1203 = vadd.f32 0.0, %v1202
      %v1204 = vpop.f32.mrf.mxu0
      %1205 = vmatprep.mubr.bf16.mxu0 0
      %1206 = vmatmul.mubr.bf16.gmra.mxu0 %v445
      %v1207 = vpop.f32.mrf.mxu0
      %v1208 = vadd.f32 0.0, %v1207
      %v1209 = vpop.f32.mrf.mxu0
      %v1210 = vpop.f32.mrf.mxu0
      %v1211 = vadd.f32 0.0, %v1210
      %v1212 = vpop.f32.mrf.mxu0
      %1213 = vmatprep.mubr.bf16.mxu0 0
      %1214 = vmatmul.mubr.bf16.gmra.mxu0 %v448
      %v1215 = vpop.f32.mrf.mxu0
      %v1216 = vadd.f32 0.0, %v1215
      %v1217 = vpop.f32.mrf.mxu0
      %v1218 = vpop.f32.mrf.mxu0
      %v1219 = vadd.f32 0.0, %v1218
      %v1220 = vpop.f32.mrf.mxu0
      %1221 = vmatprep.mubr.bf16.mxu0 0
      %1222 = vmatmul.mubr.bf16.gmra.mxu0 %v451
      %v1223 = vpop.f32.mrf.mxu0
      %v1224 = vadd.f32 0.0, %v1223
      %v1225 = vpop.f32.mrf.mxu0
      %v1226 = vpop.f32.mrf.mxu0
      %v1227 = vadd.f32 0.0, %v1226
      %v1228 = vpop.f32.mrf.mxu0
      %1229 = vmatprep.mubr.bf16.mxu0 0
      %1230 = vmatmul.mubr.bf16.gmra.mxu0 %v454
      %v1231 = vpop.f32.mrf.mxu0
      %v1232 = vadd.f32 0.0, %v1231
      %v1233 = vpop.f32.mrf.mxu0
      %v1234 = vpop.f32.mrf.mxu0
      %v1235 = vadd.f32 0.0, %v1234
      %v1236 = vpop.f32.mrf.mxu0
      %1237 = vmatprep.mubr.bf16.mxu0 0
      %1238 = vmatmul.mubr.bf16.gmra.mxu0 %v457
      %v1239 = vpop.f32.mrf.mxu0
      %v1240 = vadd.f32 0.0, %v1239
      %v1241 = vpop.f32.mrf.mxu0
      %v1242 = vpop.f32.mrf.mxu0
      %v1243 = vadd.f32 0.0, %v1242
      %v1244 = vpop.f32.mrf.mxu0
      %1245 = vmatprep.mubr.bf16.mxu0 0
      %1246 = vmatmul.mubr.bf16.gmra.mxu0 %v460
      %v1247 = vpop.f32.mrf.mxu0
      %v1248 = vadd.f32 0.0, %v1247
      %v1249 = vpop.f32.mrf.mxu0
      %v1250 = vpop.f32.mrf.mxu0
      %v1251 = vadd.f32 0.0, %v1250
      %v1252 = vpop.f32.mrf.mxu0
      %1253 = vmatprep.mubr.bf16.mxu0 0
      %1254 = vmatmul.mubr.bf16.gmra.mxu0 %v463
      %v1255 = vpop.f32.mrf.mxu0
      %v1256 = vadd.f32 0.0, %v1255
      %v1257 = vpop.f32.mrf.mxu0
      %v1258 = vpop.f32.mrf.mxu0
      %v1259 = vadd.f32 0.0, %v1258
      %v1260 = vpop.f32.mrf.mxu0
      %1261 = vmatprep.mubr.bf16.mxu0 0
      %1262 = vmatmul.mubr.bf16.gmra.mxu0 %v466
      %v1263 = vpop.f32.mrf.mxu0
      %v1264 = vadd.f32 0.0, %v1263
      %v1265 = vpop.f32.mrf.mxu0
      %v1266 = vpop.f32.mrf.mxu0
      %v1267 = vadd.f32 0.0, %v1266
      %v1268 = vpop.f32.mrf.mxu0
      %1269 = vmatprep.mubr.bf16.mxu0 0
      %1270 = vmatmul.mubr.bf16.gmra.mxu0 %v469
      %v1271 = vpop.f32.mrf.mxu0
      %v1272 = vadd.f32 0.0, %v1271
      %v1273 = vpop.f32.mrf.mxu0
      %v1274 = vpop.f32.mrf.mxu0
      %v1275 = vadd.f32 0.0, %v1274
      %v1276 = vpop.f32.mrf.mxu0
      %1277 = vmatprep.mubr.bf16.mxu0 0
      %1278 = vmatmul.mubr.bf16.gmra.mxu0 %v472
      %v1279 = vpop.f32.mrf.mxu0
      %v1280 = vadd.f32 0.0, %v1279
      %v1281 = vpop.f32.mrf.mxu0
      %v1282 = vpop.f32.mrf.mxu0
      %v1283 = vadd.f32 0.0, %v1282
      %v1284 = vpop.f32.mrf.mxu0
      %1285 = vmatprep.mubr.bf16.mxu0 0
      %1286 = vmatmul.mubr.bf16.gmra.mxu0 %v475
      %v1287 = vpop.f32.mrf.mxu0
      %v1288 = vadd.f32 0.0, %v1287
      %v1289 = vpop.f32.mrf.mxu0
      %v1290 = vpop.f32.mrf.mxu0
      %v1291 = vadd.f32 0.0, %v1290
      %v1292 = vpop.f32.mrf.mxu0
      %1293 = vdwg.mxu0
      %v1294 = vrot.slane %v1104, 2
      %v1295 = vrot.slane %v1107, 2
      %v1296 = vrot.slane %v1112, 2
      %v1297 = vrot.slane %v1115, 2
      %v1298 = vrot.slane %v1120, 2
      %v1299 = vrot.slane %v1123, 2
      %v1300 = vrot.slane %v1128, 2
      %v1301 = vrot.slane %v1131, 2
      %v1302 = vrot.slane %v1136, 2
      %v1303 = vrot.slane %v1139, 2
      %v1304 = vrot.slane %v1144, 2
      %v1305 = vrot.slane %v1147, 2
      %v1306 = vrot.slane %v1152, 2
      %v1307 = vrot.slane %v1155, 2
      %v1308 = vrot.slane %v1160, 2
      %v1309 = vrot.slane %v1163, 2
      %v1310 = vrot.slane %v1168, 2
      %v1311 = vrot.slane %v1171, 2
      %v1312 = vrot.slane %v1176, 2
      %v1313 = vrot.slane %v1179, 2
      %v1314 = vrot.slane %v1184, 2
      %v1315 = vrot.slane %v1187, 2
      %v1316 = vrot.slane %v1192, 2
      %v1317 = vrot.slane %v1195, 2
      %v1318 = vrot.slane %v1200, 2
      %v1319 = vrot.slane %v1203, 2
      %v1320 = vrot.slane %v1208, 2
      %v1321 = vrot.slane %v1211, 2
      %v1322 = vrot.slane %v1216, 2
      %v1323 = vrot.slane %v1219, 2
      %v1324 = vrot.slane %v1224, 2
      %v1325 = vrot.slane %v1227, 2
      %v1326 = vrot.slane %v1232, 2
      %v1327 = vrot.slane %v1235, 2
      %v1328 = vrot.slane %v1240, 2
      %v1329 = vrot.slane %v1243, 2
      %v1330 = vrot.slane %v1248, 2
      %v1331 = vrot.slane %v1251, 2
      %v1332 = vrot.slane %v1256, 2
      %v1333 = vrot.slane %v1259, 2
      %v1334 = vrot.slane %v1264, 2
      %v1335 = vrot.slane %v1267, 2
      %v1336 = vrot.slane %v1272, 2
      %v1337 = vrot.slane %v1275, 2
      %v1338 = vrot.slane %v1280, 2
      %v1339 = vrot.slane %v1283, 2
      %v1340 = vrot.slane %v1288, 2
      %v1341 = vrot.slane %v1291, 2
      %vm1342 = vcmp.lt.s32.totalorder %v751, 6
      %v1343 = vsel %vm1342, %v1340, %v1341
      %v1344 = vsel %vm1342, %v1339, %v1340
      %v1345 = vsel %vm1342, %v1338, %v1339
      %v1346 = vsel %vm1342, %v1337, %v1338
      %v1347 = vsel %vm1342, %v1336, %v1337
      %v1348 = vsel %vm1342, %v1335, %v1336
      %v1349 = vsel %vm1342, %v1334, %v1335
      %v1350 = vsel %vm1342, %v1333, %v1334
      %v1351 = vsel %vm1342, %v1332, %v1333
      %v1352 = vsel %vm1342, %v1331, %v1332
      %v1353 = vsel %vm1342, %v1330, %v1331
      %v1354 = vsel %vm1342, %v1329, %v1330
      %v1355 = vsel %vm1342, %v1328, %v1329
      %v1356 = vsel %vm1342, %v1327, %v1328
      %v1357 = vsel %vm1342, %v1326, %v1327
      %v1358 = vsel %vm1342, %v1325, %v1326
      %v1359 = vsel %vm1342, %v1324, %v1325
      %v1360 = vsel %vm1342, %v1323, %v1324
      %v1361 = vsel %vm1342, %v1322, %v1323
      %v1362 = vsel %vm1342, %v1321, %v1322
      %v1363 = vsel %vm1342, %v1320, %v1321
      %v1364 = vsel %vm1342, %v1319, %v1320
      %v1365 = vsel %vm1342, %v1318, %v1319
      %v1366 = vsel %vm1342, %v1317, %v1318
      %v1367 = vsel %vm1342, %v1316, %v1317
      %v1368 = vsel %vm1342, %v1315, %v1316
      %v1369 = vsel %vm1342, %v1314, %v1315
      %v1370 = vsel %vm1342, %v1313, %v1314
      %v1371 = vsel %vm1342, %v1312, %v1313
      %v1372 = vsel %vm1342, %v1311, %v1312
      %v1373 = vsel %vm1342, %v1310, %v1311
      %v1374 = vsel %vm1342, %v1309, %v1310
      %v1375 = vsel %vm1342, %v1308, %v1309
      %v1376 = vsel %vm1342, %v1307, %v1308
      %v1377 = vsel %vm1342, %v1306, %v1307
      %v1378 = vsel %vm1342, %v1305, %v1306
      %v1379 = vsel %vm1342, %v1304, %v1305
      %v1380 = vsel %vm1342, %v1303, %v1304
      %v1381 = vsel %vm1342, %v1302, %v1303
      %v1382 = vsel %vm1342, %v1301, %v1302
      %v1383 = vsel %vm1342, %v1300, %v1301
      %v1384 = vsel %vm1342, %v1299, %v1300
      %v1385 = vsel %vm1342, %v1298, %v1299
      %v1386 = vsel %vm1342, %v1297, %v1298
      %v1387 = vsel %vm1342, %v1296, %v1297
      %v1388 = vsel %vm1342, %v1295, %v1296
      %v1389 = vsel %vm1342, %v1294, %v1295
      %v1390 = vsel %vm1342, %v1341, %v1294
      %v1391 = vadd.f32 %v854, %v1389
      %v1392 = vadd.f32 %v857, %v1388
      %v1393 = vadd.f32 %v862, %v1387
      %v1394 = vadd.f32 %v865, %v1386
      %v1395 = vadd.f32 %v870, %v1385
      %v1396 = vadd.f32 %v873, %v1384
      %v1397 = vadd.f32 %v878, %v1383
      %v1398 = vadd.f32 %v881, %v1382
      %v1399 = vadd.f32 %v886, %v1381
      %v1400 = vadd.f32 %v889, %v1380
      %v1401 = vadd.f32 %v894, %v1379
      %v1402 = vadd.f32 %v897, %v1378
      %v1403 = vadd.f32 %v902, %v1377
      %v1404 = vadd.f32 %v905, %v1376
      %v1405 = vadd.f32 %v910, %v1375
      %v1406 = vadd.f32 %v913, %v1374
      %v1407 = vadd.f32 %v918, %v1373
      %v1408 = vadd.f32 %v921, %v1372
      %v1409 = vadd.f32 %v926, %v1371
      %v1410 = vadd.f32 %v929, %v1370
      %v1411 = vadd.f32 %v934, %v1369
      %v1412 = vadd.f32 %v937, %v1368
      %v1413 = vadd.f32 %v942, %v1367
      %v1414 = vadd.f32 %v945, %v1366
      %v1415 = vadd.f32 %v950, %v1365
      %v1416 = vadd.f32 %v953, %v1364
      %v1417 = vadd.f32 %v958, %v1363
      %v1418 = vadd.f32 %v961, %v1362
      %v1419 = vadd.f32 %v966, %v1361
      %v1420 = vadd.f32 %v969, %v1360
      %v1421 = vadd.f32 %v974, %v1359
      %v1422 = vadd.f32 %v977, %v1358
      %v1423 = vadd.f32 %v982, %v1357
      %v1424 = vadd.f32 %v985, %v1356
      %v1425 = vadd.f32 %v990, %v1355
      %v1426 = vadd.f32 %v993, %v1354
      %v1427 = vadd.f32 %v998, %v1353
      %v1428 = vadd.f32 %v1001, %v1352
      %v1429 = vadd.f32 %v1006, %v1351
      %v1430 = vadd.f32 %v1009, %v1350
      %v1431 = vadd.f32 %v1014, %v1349
      %v1432 = vadd.f32 %v1017, %v1348
      %v1433 = vadd.f32 %v1022, %v1347
      %v1434 = vadd.f32 %v1025, %v1346
      %v1435 = vadd.f32 %v1030, %v1345
      %v1436 = vadd.f32 %v1033, %v1344
      %v1437 = vadd.f32 %v1038, %v1343
      %v1438 = vadd.f32 %v1041, %v1390
      %vm1439 = vcmask 261120
      %1440 = vst.msk [vmem:[#allocation2] sm:$0xff] %vm1439, %v1391
      %1441 = vst.msk [vmem:[#allocation2 + $0x8] sm:$0xff] %vm1439, %v1392
      %1442 = vst.msk [vmem:[#allocation2 + $0x10] sm:$0xff] %vm1439, %v1393
      %1443 = vst.msk [vmem:[#allocation2 + $0x18] sm:$0xff] %vm1439, %v1394
      %1444 = vst.msk [vmem:[#allocation2 + $0x20] sm:$0xff] %vm1439, %v1395
      %1445 = vst.msk [vmem:[#allocation2 + $0x28] sm:$0xff] %vm1439, %v1396
      %1446 = vst.msk [vmem:[#allocation2 + $0x30] sm:$0xff] %vm1439, %v1397
      %1447 = vst.msk [vmem:[#allocation2 + $0x38] sm:$0xff] %vm1439, %v1398
      %1448 = vst.msk [vmem:[#allocation2 + $0x40] sm:$0xff] %vm1439, %v1399
      %1449 = vst.msk [vmem:[#allocation2 + $0x48] sm:$0xff] %vm1439, %v1400
      %1450 = vst.msk [vmem:[#allocation2 + $0x50] sm:$0xff] %vm1439, %v1401
      %1451 = vst.msk [vmem:[#allocation2 + $0x58] sm:$0xff] %vm1439, %v1402
      %1452 = vst.msk [vmem:[#allocation2 + $0x60] sm:$0xff] %vm1439, %v1403
      %1453 = vst.msk [vmem:[#allocation2 + $0x68] sm:$0xff] %vm1439, %v1404
      %1454 = vst.msk [vmem:[#allocation2 + $0x70] sm:$0xff] %vm1439, %v1405
      %1455 = vst.msk [vmem:[#allocation2 + $0x78] sm:$0xff] %vm1439, %v1406
      %1456 = vst.msk [vmem:[#allocation2 + $0x80] sm:$0xff] %vm1439, %v1407
      %1457 = vst.msk [vmem:[#allocation2 + $0x88] sm:$0xff] %vm1439, %v1408
      %1458 = vst.msk [vmem:[#allocation2 + $0x90] sm:$0xff] %vm1439, %v1409
      %1459 = vst.msk [vmem:[#allocation2 + $0x98] sm:$0xff] %vm1439, %v1410
      %1460 = vst.msk [vmem:[#allocation2 + $0xa0] sm:$0xff] %vm1439, %v1411
      %1461 = vst.msk [vmem:[#allocation2 + $0xa8] sm:$0xff] %vm1439, %v1412
      %1462 = vst.msk [vmem:[#allocation2 + $0xb0] sm:$0xff] %vm1439, %v1413
      %1463 = vst.msk [vmem:[#allocation2 + $0xb8] sm:$0xff] %vm1439, %v1414
      %1464 = vst.msk [vmem:[#allocation2 + $0xc0] sm:$0xff] %vm1439, %v1415
      %1465 = vst.msk [vmem:[#allocation2 + $0xc8] sm:$0xff] %vm1439, %v1416
      %1466 = vst.msk [vmem:[#allocation2 + $0xd0] sm:$0xff] %vm1439, %v1417
      %1467 = vst.msk [vmem:[#allocation2 + $0xd8] sm:$0xff] %vm1439, %v1418
      %1468 = vst.msk [vmem:[#allocation2 + $0xe0] sm:$0xff] %vm1439, %v1419
      %1469 = vst.msk [vmem:[#allocation2 + $0xe8] sm:$0xff] %vm1439, %v1420
      %1470 = vst.msk [vmem:[#allocation2 + $0xf0] sm:$0xff] %vm1439, %v1421
      %1471 = vst.msk [vmem:[#allocation2 + $0xf8] sm:$0xff] %vm1439, %v1422
      %1472 = vst.msk [vmem:[#allocation2 + $0x100] sm:$0xff] %vm1439, %v1423
      %1473 = vst.msk [vmem:[#allocation2 + $0x108] sm:$0xff] %vm1439, %v1424
      %1474 = vst.msk [vmem:[#allocation2 + $0x110] sm:$0xff] %vm1439, %v1425
      %1475 = vst.msk [vmem:[#allocation2 + $0x118] sm:$0xff] %vm1439, %v1426
      %1476 = vst.msk [vmem:[#allocation2 + $0x120] sm:$0xff] %vm1439, %v1427
      %1477 = vst.msk [vmem:[#allocation2 + $0x128] sm:$0xff] %vm1439, %v1428
      %1478 = vst.msk [vmem:[#allocation2 + $0x130] sm:$0xff] %vm1439, %v1429
      %1479 = vst.msk [vmem:[#allocation2 + $0x138] sm:$0xff] %vm1439, %v1430
      %1480 = vst.msk [vmem:[#allocation2 + $0x140] sm:$0xff] %vm1439, %v1431
      %1481 = vst.msk [vmem:[#allocation2 + $0x148] sm:$0xff] %vm1439, %v1432
      %1482 = vst.msk [vmem:[#allocation2 + $0x150] sm:$0xff] %vm1439, %v1433
      %1483 = vst.msk [vmem:[#allocation2 + $0x158] sm:$0xff] %vm1439, %v1434
      %1484 = vst.msk [vmem:[#allocation2 + $0x160] sm:$0xff] %vm1439, %v1435
      %1485 = vst.msk [vmem:[#allocation2 + $0x168] sm:$0xff] %vm1439, %v1436
      %1486 = vst.msk [vmem:[#allocation2 + $0x170] sm:$0xff] %vm1439, %v1437
      %1487 = vst.msk [vmem:[#allocation2 + $0x178] sm:$0xff] %vm1439, %v1438
      %s1488 = scalar_lea.vmem %s1, 72
      %v1489 = vld [vmem:[%s1488] sm:$0xf]
      %v1490 = vld [vmem:[%s1488 + $0x4] sm:$0xf]
      %v1491 = vld [vmem:[%s1488 + $0x8] sm:$0xf]
      %v1492 = vld [vmem:[%s1488 + $0xc] sm:$0xf]
      %v1493 = vld [vmem:[%s1488 + $0x10] sm:$0xf]
      %v1494 = vld [vmem:[%s1488 + $0x14] sm:$0xf]
      %s1495 = scalar_lea.vmem %s1, 96
      %v1496 = vld [vmem:[%s1495] sm:$0xf]
      %v1497 = vld [vmem:[%s1495 + $0x4] sm:$0xf]
      %v1498 = vld [vmem:[%s1495 + $0x8] sm:$0xf]
      %v1499 = vld [vmem:[%s1495 + $0xc] sm:$0xf]
      %v1500 = vld [vmem:[%s1495 + $0x10] sm:$0xf]
      %v1501 = vld [vmem:[%s1495 + $0x14] sm:$0xf]
      %v1505 = vunpack.c.l.b16 %v247
      %v1506 = vunpack.c.l.b16 %v248
      %v1507 = vunpack.c.l.b16 %v249
      %v1508 = vpack.c.b16 %v318, %v317
      %v1509 = vpack.c.b16 %v320, %v319
      %v1510 = vpack.c.b16 %v322, %v321
      %v1511 = vpack.c.b16 %v324, %v323
      %v1512 = vpack.c.b16 %v326, %v325
      %v1513 = vpack.c.b16 %v328, %v327
      %v1514 = vpack.c.b16 %v330, %v329
      %v1515 = vpack.c.b16 %v332, %v331
      %v1516 = vpack.c.b16 %v334, %v333
      %v1517 = vpack.c.b16 %v336, %v335
      %v1518 = vpack.c.b16 %v338, %v337
      %v1519 = vpack.c.b16 %v340, %v339
      %v1520 = vpack.c.b16 %v342, %v341
      %v1521 = vpack.c.b16 %v344, %v343
      %v1522 = vpack.c.b16 %v346, %v345
      %v1523 = vpack.c.b16 %v348, %v347
      %v1524 = vpack.c.b16 %v350, %v349
      %v1525 = vpack.c.b16 %v352, %v351
      %v1526 = vpack.c.b16 %v354, %v353
      %v1527 = vpack.c.b16 %v356, %v355
      %v1528 = vpack.c.b16 %v358, %v357
      %v1529 = vpack.c.b16 %v360, %v359
      %v1530 = vpack.c.b16 %v1505, %v361
      %v1531 = vpack.c.b16 %v1507, %v1506
      %v1538 = vunpack.c.l.b16 %v1496
      %v1539 = vunpack.c.l.b16 %v1497
      %v1540 = vunpack.c.l.b16 %v1498
      %v1541 = vunpack.c.l.b16 %v1499
      %v1542 = vunpack.c.l.b16 %v1500
      %v1543 = vunpack.c.l.b16 %v1501
      %v1544 = vpack.c.b16 %v1539, %v1538
      %v1545 = vpack.c.b16 %v1541, %v1540
      %v1546 = vpack.c.b16 %v1543, %v1542
      %v1551 = vsel %vm404, %v1508, 0
      %v1554 = vsel %vm404, %v1509, 0
      %v1557 = vsel %vm404, %v1510, 0
      %v1560 = vsel %vm404, %v1511, 0
      %v1563 = vsel %vm404, %v1512, 0
      %v1566 = vsel %vm404, %v1513, 0
      %v1569 = vsel %vm404, %v1514, 0
      %v1572 = vsel %vm404, %v1515, 0
      %v1575 = vsel %vm404, %v1516, 0
      %v1578 = vsel %vm404, %v1517, 0
      %v1581 = vsel %vm404, %v1518, 0
      %v1584 = vsel %vm404, %v1519, 0
      %v1587 = vsel %vm404, %v1520, 0
      %v1590 = vsel %vm404, %v1521, 0
      %v1593 = vsel %vm404, %v1522, 0
      %v1596 = vsel %vm404, %v1523, 0
      %v1599 = vsel %vm404, %v1524, 0
      %v1602 = vsel %vm404, %v1525, 0
      %v1605 = vsel %vm404, %v1526, 0
      %v1608 = vsel %vm404, %v1527, 0
      %v1611 = vsel %vm404, %v1528, 0
      %v1614 = vsel %vm404, %v1529, 0
      %v1617 = vsel %vm404, %v1530, 0
      %v1620 = vsel %vm404, %v1531, 0
      %1622 = vmatprep.subr.bf16.mxu0 0
      %1623 = vmatpush1.bf16.msra.mxu0 0
      %1624 = vmatprep.subr.bf16.mxu0 0
      %1625 = vmatpush1.bf16.msra.mxu0 0
      %1626 = vmatprep.subr.bf16.mxu0 0
      %1627 = vmatpush1.bf16.msra.mxu0 0
      %1628 = vmatprep.subr.bf16.mxu0 0
      %1629 = vmatpush1.bf16.msra.mxu0 0
      %1630 = vmatprep.subr.bf16.mxu0 0
      %1631 = vmatpush1.bf16.msra.mxu0 0
      %1632 = vmatprep.subr.bf16.mxu0 0
      %1633 = vmatpush1.bf16.msra.mxu0 %v1546
      %1634 = vmatprep.subr.bf16.mxu0 0
      %1635 = vmatpush1.bf16.msra.mxu0 %v1545
      %1636 = vmatprep.subr.bf16.mxu0 0
      %1637 = vmatpush1.bf16.msra.mxu0 %v1544
      %1638 = vmatprep.subr.bf16.mxu0 0
      %1639 = vmatpush2.bf16.msra.mxu0 0
      %1640 = vmatprep.subr.bf16.mxu0 0
      %1641 = vmatpush2.bf16.msra.mxu0 0
      %1642 = vmatprep.subr.bf16.mxu0 0
      %1643 = vmatpush2.bf16.msra.mxu0 0
      %1644 = vmatprep.subr.bf16.mxu0 0
      %1645 = vmatpush2.bf16.msra.mxu0 0
      %1646 = vmatprep.subr.bf16.mxu0 0
      %1647 = vmatpush2.bf16.msra.mxu0 0
      %1648 = vmatprep.subr.bf16.mxu0 0
      %1649 = vmatpush2.bf16.msra.mxu0 0
      %1650 = vmatprep.subr.bf16.mxu0 0
      %1651 = vmatpush2.bf16.msra.mxu0 0
      %1652 = vmatprep.subr.bf16.mxu0 0
      %1653 = vmatpush2.bf16.msra.mxu0 0
      %1654 = vmatprep.mubr.bf16.mxu0 0
      %1655 = vmatmul.mubr.bf16.gmra.mxu0 %v1551
      %v1656 = vpop.f32.mrf.mxu0
      %v1657 = vadd.f32 0.0, %v1656
      %v1658 = vpop.f32.mrf.mxu0
      %v1659 = vpop.f32.mrf.mxu0
      %v1660 = vadd.f32 0.0, %v1659
      %v1661 = vpop.f32.mrf.mxu0
      %1662 = vmatprep.mubr.bf16.mxu0 0
      %1663 = vmatmul.mubr.bf16.gmra.mxu0 %v1554
      %v1664 = vpop.f32.mrf.mxu0
      %v1665 = vadd.f32 0.0, %v1664
      %v1666 = vpop.f32.mrf.mxu0
      %v1667 = vpop.f32.mrf.mxu0
      %v1668 = vadd.f32 0.0, %v1667
      %v1669 = vpop.f32.mrf.mxu0
      %1670 = vmatprep.mubr.bf16.mxu0 0
      %1671 = vmatmul.mubr.bf16.gmra.mxu0 %v1557
      %v1672 = vpop.f32.mrf.mxu0
      %v1673 = vadd.f32 0.0, %v1672
      %v1674 = vpop.f32.mrf.mxu0
      %v1675 = vpop.f32.mrf.mxu0
      %v1676 = vadd.f32 0.0, %v1675
      %v1677 = vpop.f32.mrf.mxu0
      %1678 = vmatprep.mubr.bf16.mxu0 0
      %1679 = vmatmul.mubr.bf16.gmra.mxu0 %v1560
      %v1680 = vpop.f32.mrf.mxu0
      %v1681 = vadd.f32 0.0, %v1680
      %v1682 = vpop.f32.mrf.mxu0
      %v1683 = vpop.f32.mrf.mxu0
      %v1684 = vadd.f32 0.0, %v1683
      %v1685 = vpop.f32.mrf.mxu0
      %1686 = vmatprep.mubr.bf16.mxu0 0
      %1687 = vmatmul.mubr.bf16.gmra.mxu0 %v1563
      %v1688 = vpop.f32.mrf.mxu0
      %v1689 = vadd.f32 0.0, %v1688
      %v1690 = vpop.f32.mrf.mxu0
      %v1691 = vpop.f32.mrf.mxu0
      %v1692 = vadd.f32 0.0, %v1691
      %v1693 = vpop.f32.mrf.mxu0
      %1694 = vmatprep.mubr.bf16.mxu0 0
      %1695 = vmatmul.mubr.bf16.gmra.mxu0 %v1566
      %v1696 = vpop.f32.mrf.mxu0
      %v1697 = vadd.f32 0.0, %v1696
      %v1698 = vpop.f32.mrf.mxu0
      %v1699 = vpop.f32.mrf.mxu0
      %v1700 = vadd.f32 0.0, %v1699
      %v1701 = vpop.f32.mrf.mxu0
      %1702 = vmatprep.mubr.bf16.mxu0 0
      %1703 = vmatmul.mubr.bf16.gmra.mxu0 %v1569
      %v1704 = vpop.f32.mrf.mxu0
      %v1705 = vadd.f32 0.0, %v1704
      %v1706 = vpop.f32.mrf.mxu0
      %v1707 = vpop.f32.mrf.mxu0
      %v1708 = vadd.f32 0.0, %v1707
      %v1709 = vpop.f32.mrf.mxu0
      %1710 = vmatprep.mubr.bf16.mxu0 0
      %1711 = vmatmul.mubr.bf16.gmra.mxu0 %v1572
      %v1712 = vpop.f32.mrf.mxu0
      %v1713 = vadd.f32 0.0, %v1712
      %v1714 = vpop.f32.mrf.mxu0
      %v1715 = vpop.f32.mrf.mxu0
      %v1716 = vadd.f32 0.0, %v1715
      %v1717 = vpop.f32.mrf.mxu0
      %1718 = vmatprep.mubr.bf16.mxu0 0
      %1719 = vmatmul.mubr.bf16.gmra.mxu0 %v1575
      %v1720 = vpop.f32.mrf.mxu0
      %v1721 = vadd.f32 0.0, %v1720
      %v1722 = vpop.f32.mrf.mxu0
      %v1723 = vpop.f32.mrf.mxu0
      %v1724 = vadd.f32 0.0, %v1723
      %v1725 = vpop.f32.mrf.mxu0
      %1726 = vmatprep.mubr.bf16.mxu0 0
      %1727 = vmatmul.mubr.bf16.gmra.mxu0 %v1578
      %v1728 = vpop.f32.mrf.mxu0
      %v1729 = vadd.f32 0.0, %v1728
      %v1730 = vpop.f32.mrf.mxu0
      %v1731 = vpop.f32.mrf.mxu0
      %v1732 = vadd.f32 0.0, %v1731
      %v1733 = vpop.f32.mrf.mxu0
      %1734 = vmatprep.mubr.bf16.mxu0 0
      %1735 = vmatmul.mubr.bf16.gmra.mxu0 %v1581
      %v1736 = vpop.f32.mrf.mxu0
      %v1737 = vadd.f32 0.0, %v1736
      %v1738 = vpop.f32.mrf.mxu0
      %v1739 = vpop.f32.mrf.mxu0
      %v1740 = vadd.f32 0.0, %v1739
      %v1741 = vpop.f32.mrf.mxu0
      %1742 = vmatprep.mubr.bf16.mxu0 0
      %1743 = vmatmul.mubr.bf16.gmra.mxu0 %v1584
      %v1744 = vpop.f32.mrf.mxu0
      %v1745 = vadd.f32 0.0, %v1744
      %v1746 = vpop.f32.mrf.mxu0
      %v1747 = vpop.f32.mrf.mxu0
      %v1748 = vadd.f32 0.0, %v1747
      %v1749 = vpop.f32.mrf.mxu0
      %1750 = vmatprep.mubr.bf16.mxu0 0
      %1751 = vmatmul.mubr.bf16.gmra.mxu0 %v1587
      %v1752 = vpop.f32.mrf.mxu0
      %v1753 = vadd.f32 0.0, %v1752
      %v1754 = vpop.f32.mrf.mxu0
      %v1755 = vpop.f32.mrf.mxu0
      %v1756 = vadd.f32 0.0, %v1755
      %v1757 = vpop.f32.mrf.mxu0
      %1758 = vmatprep.mubr.bf16.mxu0 0
      %1759 = vmatmul.mubr.bf16.gmra.mxu0 %v1590
      %v1760 = vpop.f32.mrf.mxu0
      %v1761 = vadd.f32 0.0, %v1760
      %v1762 = vpop.f32.mrf.mxu0
      %v1763 = vpop.f32.mrf.mxu0
      %v1764 = vadd.f32 0.0, %v1763
      %v1765 = vpop.f32.mrf.mxu0
      %1766 = vmatprep.mubr.bf16.mxu0 0
      %1767 = vmatmul.mubr.bf16.gmra.mxu0 %v1593
      %v1768 = vpop.f32.mrf.mxu0
      %v1769 = vadd.f32 0.0, %v1768
      %v1770 = vpop.f32.mrf.mxu0
      %v1771 = vpop.f32.mrf.mxu0
      %v1772 = vadd.f32 0.0, %v1771
      %v1773 = vpop.f32.mrf.mxu0
      %1774 = vmatprep.mubr.bf16.mxu0 0
      %1775 = vmatmul.mubr.bf16.gmra.mxu0 %v1596
      %v1776 = vpop.f32.mrf.mxu0
      %v1777 = vadd.f32 0.0, %v1776
      %v1778 = vpop.f32.mrf.mxu0
      %v1779 = vpop.f32.mrf.mxu0
      %v1780 = vadd.f32 0.0, %v1779
      %v1781 = vpop.f32.mrf.mxu0
      %1782 = vmatprep.mubr.bf16.mxu0 0
      %1783 = vmatmul.mubr.bf16.gmra.mxu0 %v1599
      %v1784 = vpop.f32.mrf.mxu0
      %v1785 = vadd.f32 0.0, %v1784
      %v1786 = vpop.f32.mrf.mxu0
      %v1787 = vpop.f32.mrf.mxu0
      %v1788 = vadd.f32 0.0, %v1787
      %v1789 = vpop.f32.mrf.mxu0
      %1790 = vmatprep.mubr.bf16.mxu0 0
      %1791 = vmatmul.mubr.bf16.gmra.mxu0 %v1602
      %v1792 = vpop.f32.mrf.mxu0
      %v1793 = vadd.f32 0.0, %v1792
      %v1794 = vpop.f32.mrf.mxu0
      %v1795 = vpop.f32.mrf.mxu0
      %v1796 = vadd.f32 0.0, %v1795
      %v1797 = vpop.f32.mrf.mxu0
      %1798 = vmatprep.mubr.bf16.mxu0 0
      %1799 = vmatmul.mubr.bf16.gmra.mxu0 %v1605
      %v1800 = vpop.f32.mrf.mxu0
      %v1801 = vadd.f32 0.0, %v1800
      %v1802 = vpop.f32.mrf.mxu0
      %v1803 = vpop.f32.mrf.mxu0
      %v1804 = vadd.f32 0.0, %v1803
      %v1805 = vpop.f32.mrf.mxu0
      %1806 = vmatprep.mubr.bf16.mxu0 0
      %1807 = vmatmul.mubr.bf16.gmra.mxu0 %v1608
      %v1808 = vpop.f32.mrf.mxu0
      %v1809 = vadd.f32 0.0, %v1808
      %v1810 = vpop.f32.mrf.mxu0
      %v1811 = vpop.f32.mrf.mxu0
      %v1812 = vadd.f32 0.0, %v1811
      %v1813 = vpop.f32.mrf.mxu0
      %1814 = vmatprep.mubr.bf16.mxu0 0
      %1815 = vmatmul.mubr.bf16.gmra.mxu0 %v1611
      %v1816 = vpop.f32.mrf.mxu0
      %v1817 = vadd.f32 0.0, %v1816
      %v1818 = vpop.f32.mrf.mxu0
      %v1819 = vpop.f32.mrf.mxu0
      %v1820 = vadd.f32 0.0, %v1819
      %v1821 = vpop.f32.mrf.mxu0
      %1822 = vmatprep.mubr.bf16.mxu0 0
      %1823 = vmatmul.mubr.bf16.gmra.mxu0 %v1614
      %v1824 = vpop.f32.mrf.mxu0
      %v1825 = vadd.f32 0.0, %v1824
      %v1826 = vpop.f32.mrf.mxu0
      %v1827 = vpop.f32.mrf.mxu0
      %v1828 = vadd.f32 0.0, %v1827
      %v1829 = vpop.f32.mrf.mxu0
      %1830 = vmatprep.mubr.bf16.mxu0 0
      %1831 = vmatmul.mubr.bf16.gmra.mxu0 %v1617
      %v1832 = vpop.f32.mrf.mxu0
      %v1833 = vadd.f32 0.0, %v1832
      %v1834 = vpop.f32.mrf.mxu0
      %v1835 = vpop.f32.mrf.mxu0
      %v1836 = vadd.f32 0.0, %v1835
      %v1837 = vpop.f32.mrf.mxu0
      %1838 = vmatprep.mubr.bf16.mxu0 0
      %1839 = vmatmul.mubr.bf16.gmra.mxu0 %v1620
      %v1840 = vpop.f32.mrf.mxu0
      %v1841 = vadd.f32 0.0, %v1840
      %v1842 = vpop.f32.mrf.mxu0
      %v1843 = vpop.f32.mrf.mxu0
      %v1844 = vadd.f32 0.0, %v1843
      %v1845 = vpop.f32.mrf.mxu0
      %1846 = vdwg.mxu0
      %v1847 = vrot.slane %v1657, 1
      %v1848 = vrot.slane %v1660, 1
      %v1849 = vrot.slane %v1665, 1
      %v1850 = vrot.slane %v1668, 1
      %v1851 = vrot.slane %v1673, 1
      %v1852 = vrot.slane %v1676, 1
      %v1853 = vrot.slane %v1681, 1
      %v1854 = vrot.slane %v1684, 1
      %v1855 = vrot.slane %v1689, 1
      %v1856 = vrot.slane %v1692, 1
      %v1857 = vrot.slane %v1697, 1
      %v1858 = vrot.slane %v1700, 1
      %v1859 = vrot.slane %v1705, 1
      %v1860 = vrot.slane %v1708, 1
      %v1861 = vrot.slane %v1713, 1
      %v1862 = vrot.slane %v1716, 1
      %v1863 = vrot.slane %v1721, 1
      %v1864 = vrot.slane %v1724, 1
      %v1865 = vrot.slane %v1729, 1
      %v1866 = vrot.slane %v1732, 1
      %v1867 = vrot.slane %v1737, 1
      %v1868 = vrot.slane %v1740, 1
      %v1869 = vrot.slane %v1745, 1
      %v1870 = vrot.slane %v1748, 1
      %v1871 = vrot.slane %v1753, 1
      %v1872 = vrot.slane %v1756, 1
      %v1873 = vrot.slane %v1761, 1
      %v1874 = vrot.slane %v1764, 1
      %v1875 = vrot.slane %v1769, 1
      %v1876 = vrot.slane %v1772, 1
      %v1877 = vrot.slane %v1777, 1
      %v1878 = vrot.slane %v1780, 1
      %v1879 = vrot.slane %v1785, 1
      %v1880 = vrot.slane %v1788, 1
      %v1881 = vrot.slane %v1793, 1
      %v1882 = vrot.slane %v1796, 1
      %v1883 = vrot.slane %v1801, 1
      %v1884 = vrot.slane %v1804, 1
      %v1885 = vrot.slane %v1809, 1
      %v1886 = vrot.slane %v1812, 1
      %v1887 = vrot.slane %v1817, 1
      %v1888 = vrot.slane %v1820, 1
      %v1889 = vrot.slane %v1825, 1
      %v1890 = vrot.slane %v1828, 1
      %v1891 = vrot.slane %v1833, 1
      %v1892 = vrot.slane %v1836, 1
      %v1893 = vrot.slane %v1841, 1
      %v1894 = vrot.slane %v1844, 1
      %v1895 = vsel %vm752, %v1893, %v1894
      %v1896 = vsel %vm752, %v1892, %v1893
      %v1897 = vsel %vm752, %v1891, %v1892
      %v1898 = vsel %vm752, %v1890, %v1891
      %v1899 = vsel %vm752, %v1889, %v1890
      %v1900 = vsel %vm752, %v1888, %v1889
      %v1901 = vsel %vm752, %v1887, %v1888
      %v1902 = vsel %vm752, %v1886, %v1887
      %v1903 = vsel %vm752, %v1885, %v1886
      %v1904 = vsel %vm752, %v1884, %v1885
      %v1905 = vsel %vm752, %v1883, %v1884
      %v1906 = vsel %vm752, %v1882, %v1883
      %v1907 = vsel %vm752, %v1881, %v1882
      %v1908 = vsel %vm752, %v1880, %v1881
      %v1909 = vsel %vm752, %v1879, %v1880
      %v1910 = vsel %vm752, %v1878, %v1879
      %v1911 = vsel %vm752, %v1877, %v1878
      %v1912 = vsel %vm752, %v1876, %v1877
      %v1913 = vsel %vm752, %v1875, %v1876
      %v1914 = vsel %vm752, %v1874, %v1875
      %v1915 = vsel %vm752, %v1873, %v1874
      %v1916 = vsel %vm752, %v1872, %v1873
      %v1917 = vsel %vm752, %v1871, %v1872
      %v1918 = vsel %vm752, %v1870, %v1871
      %v1919 = vsel %vm752, %v1869, %v1870
      %v1920 = vsel %vm752, %v1868, %v1869
      %v1921 = vsel %vm752, %v1867, %v1868
      %v1922 = vsel %vm752, %v1866, %v1867
      %v1923 = vsel %vm752, %v1865, %v1866
      %v1924 = vsel %vm752, %v1864, %v1865
      %v1925 = vsel %vm752, %v1863, %v1864
      %v1926 = vsel %vm752, %v1862, %v1863
      %v1927 = vsel %vm752, %v1861, %v1862
      %v1928 = vsel %vm752, %v1860, %v1861
      %v1929 = vsel %vm752, %v1859, %v1860
      %v1930 = vsel %vm752, %v1858, %v1859
      %v1931 = vsel %vm752, %v1857, %v1858
      %v1932 = vsel %vm752, %v1856, %v1857
      %v1933 = vsel %vm752, %v1855, %v1856
      %v1934 = vsel %vm752, %v1854, %v1855
      %v1935 = vsel %vm752, %v1853, %v1854
      %v1936 = vsel %vm752, %v1852, %v1853
      %v1937 = vsel %vm752, %v1851, %v1852
      %v1938 = vsel %vm752, %v1850, %v1851
      %v1939 = vsel %vm752, %v1849, %v1850
      %v1940 = vsel %vm752, %v1848, %v1849
      %v1941 = vsel %vm752, %v1847, %v1848
      %v1942 = vsel %vm752, %v1894, %v1847
      %v1949 = vunpack.c.l.b16 %v1489
      %v1950 = vunpack.c.l.b16 %v1490
      %v1951 = vunpack.c.l.b16 %v1491
      %v1952 = vunpack.c.l.b16 %v1492
      %v1953 = vunpack.c.l.b16 %v1493
      %v1954 = vunpack.c.l.b16 %v1494
      %v1955 = vpack.c.b16 %v1950, %v1949
      %v1956 = vpack.c.b16 %v1952, %v1951
      %v1957 = vpack.c.b16 %v1954, %v1953
      %1961 = vmatprep.subr.bf16.mxu0 0
      %1962 = vmatpush1.bf16.msra.mxu0 0
      %1963 = vmatprep.subr.bf16.mxu0 0
      %1964 = vmatpush1.bf16.msra.mxu0 0
      %1965 = vmatprep.subr.bf16.mxu0 0
      %1966 = vmatpush1.bf16.msra.mxu0 0
      %1967 = vmatprep.subr.bf16.mxu0 0
      %1968 = vmatpush1.bf16.msra.mxu0 0
      %1969 = vmatprep.subr.bf16.mxu0 0
      %1970 = vmatpush1.bf16.msra.mxu0 0
      %1971 = vmatprep.subr.bf16.mxu0 0
      %1972 = vmatpush1.bf16.msra.mxu0 %v1957
      %1973 = vmatprep.subr.bf16.mxu0 0
      %1974 = vmatpush1.bf16.msra.mxu0 %v1956
      %1975 = vmatprep.subr.bf16.mxu0 0
      %1976 = vmatpush1.bf16.msra.mxu0 %v1955
      %1977 = vmatprep.subr.bf16.mxu0 0
      %1978 = vmatpush2.bf16.msra.mxu0 0
      %1979 = vmatprep.subr.bf16.mxu0 0
      %1980 = vmatpush2.bf16.msra.mxu0 0
      %1981 = vmatprep.subr.bf16.mxu0 0
      %1982 = vmatpush2.bf16.msra.mxu0 0
      %1983 = vmatprep.subr.bf16.mxu0 0
      %1984 = vmatpush2.bf16.msra.mxu0 0
      %1985 = vmatprep.subr.bf16.mxu0 0
      %1986 = vmatpush2.bf16.msra.mxu0 0
      %1987 = vmatprep.subr.bf16.mxu0 0
      %1988 = vmatpush2.bf16.msra.mxu0 0
      %1989 = vmatprep.subr.bf16.mxu0 0
      %1990 = vmatpush2.bf16.msra.mxu0 0
      %1991 = vmatprep.subr.bf16.mxu0 0
      %1992 = vmatpush2.bf16.msra.mxu0 0
      %1993 = vmatprep.mubr.bf16.mxu0 0
      %1994 = vmatmul.mubr.bf16.gmra.mxu0 %v1551
      %v1995 = vpop.f32.mrf.mxu0
      %v1996 = vadd.f32 %v1941, %v1995
      %v1997 = vpop.f32.mrf.mxu0
      %v1998 = vpop.f32.mrf.mxu0
      %v1999 = vadd.f32 %v1940, %v1998
      %v2000 = vpop.f32.mrf.mxu0
      %2001 = vmatprep.mubr.bf16.mxu0 0
      %2002 = vmatmul.mubr.bf16.gmra.mxu0 %v1554
      %v2003 = vpop.f32.mrf.mxu0
      %v2004 = vadd.f32 %v1939, %v2003
      %v2005 = vpop.f32.mrf.mxu0
      %v2006 = vpop.f32.mrf.mxu0
      %v2007 = vadd.f32 %v1938, %v2006
      %v2008 = vpop.f32.mrf.mxu0
      %2009 = vmatprep.mubr.bf16.mxu0 0
      %2010 = vmatmul.mubr.bf16.gmra.mxu0 %v1557
      %v2011 = vpop.f32.mrf.mxu0
      %v2012 = vadd.f32 %v1937, %v2011
      %v2013 = vpop.f32.mrf.mxu0
      %v2014 = vpop.f32.mrf.mxu0
      %v2015 = vadd.f32 %v1936, %v2014
      %v2016 = vpop.f32.mrf.mxu0
      %2017 = vmatprep.mubr.bf16.mxu0 0
      %2018 = vmatmul.mubr.bf16.gmra.mxu0 %v1560
      %v2019 = vpop.f32.mrf.mxu0
      %v2020 = vadd.f32 %v1935, %v2019
      %v2021 = vpop.f32.mrf.mxu0
      %v2022 = vpop.f32.mrf.mxu0
      %v2023 = vadd.f32 %v1934, %v2022
      %v2024 = vpop.f32.mrf.mxu0
      %2025 = vmatprep.mubr.bf16.mxu0 0
      %2026 = vmatmul.mubr.bf16.gmra.mxu0 %v1563
      %v2027 = vpop.f32.mrf.mxu0
      %v2028 = vadd.f32 %v1933, %v2027
      %v2029 = vpop.f32.mrf.mxu0
      %v2030 = vpop.f32.mrf.mxu0
      %v2031 = vadd.f32 %v1932, %v2030
      %v2032 = vpop.f32.mrf.mxu0
      %2033 = vmatprep.mubr.bf16.mxu0 0
      %2034 = vmatmul.mubr.bf16.gmra.mxu0 %v1566
      %v2035 = vpop.f32.mrf.mxu0
      %v2036 = vadd.f32 %v1931, %v2035
      %v2037 = vpop.f32.mrf.mxu0
      %v2038 = vpop.f32.mrf.mxu0
      %v2039 = vadd.f32 %v1930, %v2038
      %v2040 = vpop.f32.mrf.mxu0
      %2041 = vmatprep.mubr.bf16.mxu0 0
      %2042 = vmatmul.mubr.bf16.gmra.mxu0 %v1569
      %v2043 = vpop.f32.mrf.mxu0
      %v2044 = vadd.f32 %v1929, %v2043
      %v2045 = vpop.f32.mrf.mxu0
      %v2046 = vpop.f32.mrf.mxu0
      %v2047 = vadd.f32 %v1928, %v2046
      %v2048 = vpop.f32.mrf.mxu0
      %2049 = vmatprep.mubr.bf16.mxu0 0
      %2050 = vmatmul.mubr.bf16.gmra.mxu0 %v1572
      %v2051 = vpop.f32.mrf.mxu0
      %v2052 = vadd.f32 %v1927, %v2051
      %v2053 = vpop.f32.mrf.mxu0
      %v2054 = vpop.f32.mrf.mxu0
      %v2055 = vadd.f32 %v1926, %v2054
      %v2056 = vpop.f32.mrf.mxu0
      %2057 = vmatprep.mubr.bf16.mxu0 0
      %2058 = vmatmul.mubr.bf16.gmra.mxu0 %v1575
      %v2059 = vpop.f32.mrf.mxu0
      %v2060 = vadd.f32 %v1925, %v2059
      %v2061 = vpop.f32.mrf.mxu0
      %v2062 = vpop.f32.mrf.mxu0
      %v2063 = vadd.f32 %v1924, %v2062
      %v2064 = vpop.f32.mrf.mxu0
      %2065 = vmatprep.mubr.bf16.mxu0 0
      %2066 = vmatmul.mubr.bf16.gmra.mxu0 %v1578
      %v2067 = vpop.f32.mrf.mxu0
      %v2068 = vadd.f32 %v1923, %v2067
      %v2069 = vpop.f32.mrf.mxu0
      %v2070 = vpop.f32.mrf.mxu0
      %v2071 = vadd.f32 %v1922, %v2070
      %v2072 = vpop.f32.mrf.mxu0
      %2073 = vmatprep.mubr.bf16.mxu0 0
      %2074 = vmatmul.mubr.bf16.gmra.mxu0 %v1581
      %v2075 = vpop.f32.mrf.mxu0
      %v2076 = vadd.f32 %v1921, %v2075
      %v2077 = vpop.f32.mrf.mxu0
      %v2078 = vpop.f32.mrf.mxu0
      %v2079 = vadd.f32 %v1920, %v2078
      %v2080 = vpop.f32.mrf.mxu0
      %2081 = vmatprep.mubr.bf16.mxu0 0
      %2082 = vmatmul.mubr.bf16.gmra.mxu0 %v1584
      %v2083 = vpop.f32.mrf.mxu0
      %v2084 = vadd.f32 %v1919, %v2083
      %v2085 = vpop.f32.mrf.mxu0
      %v2086 = vpop.f32.mrf.mxu0
      %v2087 = vadd.f32 %v1918, %v2086
      %v2088 = vpop.f32.mrf.mxu0
      %2089 = vmatprep.mubr.bf16.mxu0 0
      %2090 = vmatmul.mubr.bf16.gmra.mxu0 %v1587
      %v2091 = vpop.f32.mrf.mxu0
      %v2092 = vadd.f32 %v1917, %v2091
      %v2093 = vpop.f32.mrf.mxu0
      %v2094 = vpop.f32.mrf.mxu0
      %v2095 = vadd.f32 %v1916, %v2094
      %v2096 = vpop.f32.mrf.mxu0
      %2097 = vmatprep.mubr.bf16.mxu0 0
      %2098 = vmatmul.mubr.bf16.gmra.mxu0 %v1590
      %v2099 = vpop.f32.mrf.mxu0
      %v2100 = vadd.f32 %v1915, %v2099
      %v2101 = vpop.f32.mrf.mxu0
      %v2102 = vpop.f32.mrf.mxu0
      %v2103 = vadd.f32 %v1914, %v2102
      %v2104 = vpop.f32.mrf.mxu0
      %2105 = vmatprep.mubr.bf16.mxu0 0
      %2106 = vmatmul.mubr.bf16.gmra.mxu0 %v1593
      %v2107 = vpop.f32.mrf.mxu0
      %v2108 = vadd.f32 %v1913, %v2107
      %v2109 = vpop.f32.mrf.mxu0
      %v2110 = vpop.f32.mrf.mxu0
      %v2111 = vadd.f32 %v1912, %v2110
      %v2112 = vpop.f32.mrf.mxu0
      %2113 = vmatprep.mubr.bf16.mxu0 0
      %2114 = vmatmul.mubr.bf16.gmra.mxu0 %v1596
      %v2115 = vpop.f32.mrf.mxu0
      %v2116 = vadd.f32 %v1911, %v2115
      %v2117 = vpop.f32.mrf.mxu0
      %v2118 = vpop.f32.mrf.mxu0
      %v2119 = vadd.f32 %v1910, %v2118
      %v2120 = vpop.f32.mrf.mxu0
      %2121 = vmatprep.mubr.bf16.mxu0 0
      %2122 = vmatmul.mubr.bf16.gmra.mxu0 %v1599
      %v2123 = vpop.f32.mrf.mxu0
      %v2124 = vadd.f32 %v1909, %v2123
      %v2125 = vpop.f32.mrf.mxu0
      %v2126 = vpop.f32.mrf.mxu0
      %v2127 = vadd.f32 %v1908, %v2126
      %v2128 = vpop.f32.mrf.mxu0
      %2129 = vmatprep.mubr.bf16.mxu0 0
      %2130 = vmatmul.mubr.bf16.gmra.mxu0 %v1602
      %v2131 = vpop.f32.mrf.mxu0
      %v2132 = vadd.f32 %v1907, %v2131
      %v2133 = vpop.f32.mrf.mxu0
      %v2134 = vpop.f32.mrf.mxu0
      %v2135 = vadd.f32 %v1906, %v2134
      %v2136 = vpop.f32.mrf.mxu0
      %2137 = vmatprep.mubr.bf16.mxu0 0
      %2138 = vmatmul.mubr.bf16.gmra.mxu0 %v1605
      %v2139 = vpop.f32.mrf.mxu0
      %v2140 = vadd.f32 %v1905, %v2139
      %v2141 = vpop.f32.mrf.mxu0
      %v2142 = vpop.f32.mrf.mxu0
      %v2143 = vadd.f32 %v1904, %v2142
      %v2144 = vpop.f32.mrf.mxu0
      %2145 = vmatprep.mubr.bf16.mxu0 0
      %2146 = vmatmul.mubr.bf16.gmra.mxu0 %v1608
      %v2147 = vpop.f32.mrf.mxu0
      %v2148 = vadd.f32 %v1903, %v2147
      %v2149 = vpop.f32.mrf.mxu0
      %v2150 = vpop.f32.mrf.mxu0
      %v2151 = vadd.f32 %v1902, %v2150
      %v2152 = vpop.f32.mrf.mxu0
      %2153 = vmatprep.mubr.bf16.mxu0 0
      %2154 = vmatmul.mubr.bf16.gmra.mxu0 %v1611
      %v2155 = vpop.f32.mrf.mxu0
      %v2156 = vadd.f32 %v1901, %v2155
      %v2157 = vpop.f32.mrf.mxu0
      %v2158 = vpop.f32.mrf.mxu0
      %v2159 = vadd.f32 %v1900, %v2158
      %v2160 = vpop.f32.mrf.mxu0
      %2161 = vmatprep.mubr.bf16.mxu0 0
      %2162 = vmatmul.mubr.bf16.gmra.mxu0 %v1614
      %v2163 = vpop.f32.mrf.mxu0
      %v2164 = vadd.f32 %v1899, %v2163
      %v2165 = vpop.f32.mrf.mxu0
      %v2166 = vpop.f32.mrf.mxu0
      %v2167 = vadd.f32 %v1898, %v2166
      %v2168 = vpop.f32.mrf.mxu0
      %2169 = vmatprep.mubr.bf16.mxu0 0
      %2170 = vmatmul.mubr.bf16.gmra.mxu0 %v1617
      %v2171 = vpop.f32.mrf.mxu0
      %v2172 = vadd.f32 %v1897, %v2171
      %v2173 = vpop.f32.mrf.mxu0
      %v2174 = vpop.f32.mrf.mxu0
      %v2175 = vadd.f32 %v1896, %v2174
      %v2176 = vpop.f32.mrf.mxu0
      %2177 = vmatprep.mubr.bf16.mxu0 0
      %2178 = vmatmul.mubr.bf16.gmra.mxu0 %v1620
      %v2179 = vpop.f32.mrf.mxu0
      %v2180 = vadd.f32 %v1895, %v2179
      %v2181 = vpop.f32.mrf.mxu0
      %v2182 = vpop.f32.mrf.mxu0
      %v2183 = vadd.f32 %v1942, %v2182
      %v2184 = vpop.f32.mrf.mxu0
      %2185 = vdwg.mxu0
      %s2186 = scalar_lea.vmem %s1, 120
      %v2187 = vld [vmem:[%s2186] sm:$0xf]
      %v2188 = vld [vmem:[%s2186 + $0x4] sm:$0xf]
      %v2189 = vld [vmem:[%s2186 + $0x8] sm:$0xf]
      %v2190 = vld [vmem:[%s2186 + $0xc] sm:$0xf]
      %v2191 = vld [vmem:[%s2186 + $0x10] sm:$0xf]
      %v2192 = vld [vmem:[%s2186 + $0x14] sm:$0xf]
      %v2199 = vunpack.c.l.b16 %v2187
      %v2200 = vunpack.c.l.b16 %v2188
      %v2201 = vunpack.c.l.b16 %v2189
      %v2202 = vunpack.c.l.b16 %v2190
      %v2203 = vunpack.c.l.b16 %v2191
      %v2204 = vunpack.c.l.b16 %v2192
      %v2205 = vpack.c.b16 %v2200, %v2199
      %v2206 = vpack.c.b16 %v2202, %v2201
      %v2207 = vpack.c.b16 %v2204, %v2203
      %2211 = vmatprep.subr.bf16.mxu0 0
      %2212 = vmatpush1.bf16.msra.mxu0 0
      %2213 = vmatprep.subr.bf16.mxu0 0
      %2214 = vmatpush1.bf16.msra.mxu0 0
      %2215 = vmatprep.subr.bf16.mxu0 0
      %2216 = vmatpush1.bf16.msra.mxu0 0
      %2217 = vmatprep.subr.bf16.mxu0 0
      %2218 = vmatpush1.bf16.msra.mxu0 0
      %2219 = vmatprep.subr.bf16.mxu0 0
      %2220 = vmatpush1.bf16.msra.mxu0 0
      %2221 = vmatprep.subr.bf16.mxu0 0
      %2222 = vmatpush1.bf16.msra.mxu0 %v2207
      %2223 = vmatprep.subr.bf16.mxu0 0
      %2224 = vmatpush1.bf16.msra.mxu0 %v2206
      %2225 = vmatprep.subr.bf16.mxu0 0
      %2226 = vmatpush1.bf16.msra.mxu0 %v2205
      %2227 = vmatprep.subr.bf16.mxu0 0
      %2228 = vmatpush2.bf16.msra.mxu0 0
      %2229 = vmatprep.subr.bf16.mxu0 0
      %2230 = vmatpush2.bf16.msra.mxu0 0
      %2231 = vmatprep.subr.bf16.mxu0 0
      %2232 = vmatpush2.bf16.msra.mxu0 0
      %2233 = vmatprep.subr.bf16.mxu0 0
      %2234 = vmatpush2.bf16.msra.mxu0 0
      %2235 = vmatprep.subr.bf16.mxu0 0
      %2236 = vmatpush2.bf16.msra.mxu0 0
      %2237 = vmatprep.subr.bf16.mxu0 0
      %2238 = vmatpush2.bf16.msra.mxu0 0
      %2239 = vmatprep.subr.bf16.mxu0 0
      %2240 = vmatpush2.bf16.msra.mxu0 0
      %2241 = vmatprep.subr.bf16.mxu0 0
      %2242 = vmatpush2.bf16.msra.mxu0 0
      %2243 = vmatprep.mubr.bf16.mxu0 0
      %2244 = vmatmul.mubr.bf16.gmra.mxu0 %v1551
      %v2245 = vpop.f32.mrf.mxu0
      %v2246 = vadd.f32 0.0, %v2245
      %v2247 = vpop.f32.mrf.mxu0
      %v2248 = vpop.f32.mrf.mxu0
      %v2249 = vadd.f32 0.0, %v2248
      %v2250 = vpop.f32.mrf.mxu0
      %2251 = vmatprep.mubr.bf16.mxu0 0
      %2252 = vmatmul.mubr.bf16.gmra.mxu0 %v1554
      %v2253 = vpop.f32.mrf.mxu0
      %v2254 = vadd.f32 0.0, %v2253
      %v2255 = vpop.f32.mrf.mxu0
      %v2256 = vpop.f32.mrf.mxu0
      %v2257 = vadd.f32 0.0, %v2256
      %v2258 = vpop.f32.mrf.mxu0
      %2259 = vmatprep.mubr.bf16.mxu0 0
      %2260 = vmatmul.mubr.bf16.gmra.mxu0 %v1557
      %v2261 = vpop.f32.mrf.mxu0
      %v2262 = vadd.f32 0.0, %v2261
      %v2263 = vpop.f32.mrf.mxu0
      %v2264 = vpop.f32.mrf.mxu0
      %v2265 = vadd.f32 0.0, %v2264
      %v2266 = vpop.f32.mrf.mxu0
      %2267 = vmatprep.mubr.bf16.mxu0 0
      %2268 = vmatmul.mubr.bf16.gmra.mxu0 %v1560
      %v2269 = vpop.f32.mrf.mxu0
      %v2270 = vadd.f32 0.0, %v2269
      %v2271 = vpop.f32.mrf.mxu0
      %v2272 = vpop.f32.mrf.mxu0
      %v2273 = vadd.f32 0.0, %v2272
      %v2274 = vpop.f32.mrf.mxu0
      %2275 = vmatprep.mubr.bf16.mxu0 0
      %2276 = vmatmul.mubr.bf16.gmra.mxu0 %v1563
      %v2277 = vpop.f32.mrf.mxu0
      %v2278 = vadd.f32 0.0, %v2277
      %v2279 = vpop.f32.mrf.mxu0
      %v2280 = vpop.f32.mrf.mxu0
      %v2281 = vadd.f32 0.0, %v2280
      %v2282 = vpop.f32.mrf.mxu0
      %2283 = vmatprep.mubr.bf16.mxu0 0
      %2284 = vmatmul.mubr.bf16.gmra.mxu0 %v1566
      %v2285 = vpop.f32.mrf.mxu0
      %v2286 = vadd.f32 0.0, %v2285
      %v2287 = vpop.f32.mrf.mxu0
      %v2288 = vpop.f32.mrf.mxu0
      %v2289 = vadd.f32 0.0, %v2288
      %v2290 = vpop.f32.mrf.mxu0
      %2291 = vmatprep.mubr.bf16.mxu0 0
      %2292 = vmatmul.mubr.bf16.gmra.mxu0 %v1569
      %v2293 = vpop.f32.mrf.mxu0
      %v2294 = vadd.f32 0.0, %v2293
      %v2295 = vpop.f32.mrf.mxu0
      %v2296 = vpop.f32.mrf.mxu0
      %v2297 = vadd.f32 0.0, %v2296
      %v2298 = vpop.f32.mrf.mxu0
      %2299 = vmatprep.mubr.bf16.mxu0 0
      %2300 = vmatmul.mubr.bf16.gmra.mxu0 %v1572
      %v2301 = vpop.f32.mrf.mxu0
      %v2302 = vadd.f32 0.0, %v2301
      %v2303 = vpop.f32.mrf.mxu0
      %v2304 = vpop.f32.mrf.mxu0
      %v2305 = vadd.f32 0.0, %v2304
      %v2306 = vpop.f32.mrf.mxu0
      %2307 = vmatprep.mubr.bf16.mxu0 0
      %2308 = vmatmul.mubr.bf16.gmra.mxu0 %v1575
      %v2309 = vpop.f32.mrf.mxu0
      %v2310 = vadd.f32 0.0, %v2309
      %v2311 = vpop.f32.mrf.mxu0
      %v2312 = vpop.f32.mrf.mxu0
      %v2313 = vadd.f32 0.0, %v2312
      %v2314 = vpop.f32.mrf.mxu0
      %2315 = vmatprep.mubr.bf16.mxu0 0
      %2316 = vmatmul.mubr.bf16.gmra.mxu0 %v1578
      %v2317 = vpop.f32.mrf.mxu0
      %v2318 = vadd.f32 0.0, %v2317
      %v2319 = vpop.f32.mrf.mxu0
      %v2320 = vpop.f32.mrf.mxu0
      %v2321 = vadd.f32 0.0, %v2320
      %v2322 = vpop.f32.mrf.mxu0
      %2323 = vmatprep.mubr.bf16.mxu0 0
      %2324 = vmatmul.mubr.bf16.gmra.mxu0 %v1581
      %v2325 = vpop.f32.mrf.mxu0
      %v2326 = vadd.f32 0.0, %v2325
      %v2327 = vpop.f32.mrf.mxu0
      %v2328 = vpop.f32.mrf.mxu0
      %v2329 = vadd.f32 0.0, %v2328
      %v2330 = vpop.f32.mrf.mxu0
      %2331 = vmatprep.mubr.bf16.mxu0 0
      %2332 = vmatmul.mubr.bf16.gmra.mxu0 %v1584
      %v2333 = vpop.f32.mrf.mxu0
      %v2334 = vadd.f32 0.0, %v2333
      %v2335 = vpop.f32.mrf.mxu0
      %v2336 = vpop.f32.mrf.mxu0
      %v2337 = vadd.f32 0.0, %v2336
      %v2338 = vpop.f32.mrf.mxu0
      %2339 = vmatprep.mubr.bf16.mxu0 0
      %2340 = vmatmul.mubr.bf16.gmra.mxu0 %v1587
      %v2341 = vpop.f32.mrf.mxu0
      %v2342 = vadd.f32 0.0, %v2341
      %v2343 = vpop.f32.mrf.mxu0
      %v2344 = vpop.f32.mrf.mxu0
      %v2345 = vadd.f32 0.0, %v2344
      %v2346 = vpop.f32.mrf.mxu0
      %2347 = vmatprep.mubr.bf16.mxu0 0
      %2348 = vmatmul.mubr.bf16.gmra.mxu0 %v1590
      %v2349 = vpop.f32.mrf.mxu0
      %v2350 = vadd.f32 0.0, %v2349
      %v2351 = vpop.f32.mrf.mxu0
      %v2352 = vpop.f32.mrf.mxu0
      %v2353 = vadd.f32 0.0, %v2352
      %v2354 = vpop.f32.mrf.mxu0
      %2355 = vmatprep.mubr.bf16.mxu0 0
      %2356 = vmatmul.mubr.bf16.gmra.mxu0 %v1593
      %v2357 = vpop.f32.mrf.mxu0
      %v2358 = vadd.f32 0.0, %v2357
      %v2359 = vpop.f32.mrf.mxu0
      %v2360 = vpop.f32.mrf.mxu0
      %v2361 = vadd.f32 0.0, %v2360
      %v2362 = vpop.f32.mrf.mxu0
      %2363 = vmatprep.mubr.bf16.mxu0 0
      %2364 = vmatmul.mubr.bf16.gmra.mxu0 %v1596
      %v2365 = vpop.f32.mrf.mxu0
      %v2366 = vadd.f32 0.0, %v2365
      %v2367 = vpop.f32.mrf.mxu0
      %v2368 = vpop.f32.mrf.mxu0
      %v2369 = vadd.f32 0.0, %v2368
      %v2370 = vpop.f32.mrf.mxu0
      %2371 = vmatprep.mubr.bf16.mxu0 0
      %2372 = vmatmul.mubr.bf16.gmra.mxu0 %v1599
      %v2373 = vpop.f32.mrf.mxu0
      %v2374 = vadd.f32 0.0, %v2373
      %v2375 = vpop.f32.mrf.mxu0
      %v2376 = vpop.f32.mrf.mxu0
      %v2377 = vadd.f32 0.0, %v2376
      %v2378 = vpop.f32.mrf.mxu0
      %2379 = vmatprep.mubr.bf16.mxu0 0
      %2380 = vmatmul.mubr.bf16.gmra.mxu0 %v1602
      %v2381 = vpop.f32.mrf.mxu0
      %v2382 = vadd.f32 0.0, %v2381
      %v2383 = vpop.f32.mrf.mxu0
      %v2384 = vpop.f32.mrf.mxu0
      %v2385 = vadd.f32 0.0, %v2384
      %v2386 = vpop.f32.mrf.mxu0
      %2387 = vmatprep.mubr.bf16.mxu0 0
      %2388 = vmatmul.mubr.bf16.gmra.mxu0 %v1605
      %v2389 = vpop.f32.mrf.mxu0
      %v2390 = vadd.f32 0.0, %v2389
      %v2391 = vpop.f32.mrf.mxu0
      %v2392 = vpop.f32.mrf.mxu0
      %v2393 = vadd.f32 0.0, %v2392
      %v2394 = vpop.f32.mrf.mxu0
      %2395 = vmatprep.mubr.bf16.mxu0 0
      %2396 = vmatmul.mubr.bf16.gmra.mxu0 %v1608
      %v2397 = vpop.f32.mrf.mxu0
      %v2398 = vadd.f32 0.0, %v2397
      %v2399 = vpop.f32.mrf.mxu0
      %v2400 = vpop.f32.mrf.mxu0
      %v2401 = vadd.f32 0.0, %v2400
      %v2402 = vpop.f32.mrf.mxu0
      %2403 = vmatprep.mubr.bf16.mxu0 0
      %2404 = vmatmul.mubr.bf16.gmra.mxu0 %v1611
      %v2405 = vpop.f32.mrf.mxu0
      %v2406 = vadd.f32 0.0, %v2405
      %v2407 = vpop.f32.mrf.mxu0
      %v2408 = vpop.f32.mrf.mxu0
      %v2409 = vadd.f32 0.0, %v2408
      %v2410 = vpop.f32.mrf.mxu0
      %2411 = vmatprep.mubr.bf16.mxu0 0
      %2412 = vmatmul.mubr.bf16.gmra.mxu0 %v1614
      %v2413 = vpop.f32.mrf.mxu0
      %v2414 = vadd.f32 0.0, %v2413
      %v2415 = vpop.f32.mrf.mxu0
      %v2416 = vpop.f32.mrf.mxu0
      %v2417 = vadd.f32 0.0, %v2416
      %v2418 = vpop.f32.mrf.mxu0
      %2419 = vmatprep.mubr.bf16.mxu0 0
      %2420 = vmatmul.mubr.bf16.gmra.mxu0 %v1617
      %v2421 = vpop.f32.mrf.mxu0
      %v2422 = vadd.f32 0.0, %v2421
      %v2423 = vpop.f32.mrf.mxu0
      %v2424 = vpop.f32.mrf.mxu0
      %v2425 = vadd.f32 0.0, %v2424
      %v2426 = vpop.f32.mrf.mxu0
      %2427 = vmatprep.mubr.bf16.mxu0 0
      %2428 = vmatmul.mubr.bf16.gmra.mxu0 %v1620
      %v2429 = vpop.f32.mrf.mxu0
      %v2430 = vadd.f32 0.0, %v2429
      %v2431 = vpop.f32.mrf.mxu0
      %v2432 = vpop.f32.mrf.mxu0
      %v2433 = vadd.f32 0.0, %v2432
      %v2434 = vpop.f32.mrf.mxu0
      %2435 = vdwg.mxu0
      %v2436 = vrot.slane %v2246, 2
      %v2437 = vrot.slane %v2249, 2
      %v2438 = vrot.slane %v2254, 2
      %v2439 = vrot.slane %v2257, 2
      %v2440 = vrot.slane %v2262, 2
      %v2441 = vrot.slane %v2265, 2
      %v2442 = vrot.slane %v2270, 2
      %v2443 = vrot.slane %v2273, 2
      %v2444 = vrot.slane %v2278, 2
      %v2445 = vrot.slane %v2281, 2
      %v2446 = vrot.slane %v2286, 2
      %v2447 = vrot.slane %v2289, 2
      %v2448 = vrot.slane %v2294, 2
      %v2449 = vrot.slane %v2297, 2
      %v2450 = vrot.slane %v2302, 2
      %v2451 = vrot.slane %v2305, 2
      %v2452 = vrot.slane %v2310, 2
      %v2453 = vrot.slane %v2313, 2
      %v2454 = vrot.slane %v2318, 2
      %v2455 = vrot.slane %v2321, 2
      %v2456 = vrot.slane %v2326, 2
      %v2457 = vrot.slane %v2329, 2
      %v2458 = vrot.slane %v2334, 2
      %v2459 = vrot.slane %v2337, 2
      %v2460 = vrot.slane %v2342, 2
      %v2461 = vrot.slane %v2345, 2
      %v2462 = vrot.slane %v2350, 2
      %v2463 = vrot.slane %v2353, 2
      %v2464 = vrot.slane %v2358, 2
      %v2465 = vrot.slane %v2361, 2
      %v2466 = vrot.slane %v2366, 2
      %v2467 = vrot.slane %v2369, 2
      %v2468 = vrot.slane %v2374, 2
      %v2469 = vrot.slane %v2377, 2
      %v2470 = vrot.slane %v2382, 2
      %v2471 = vrot.slane %v2385, 2
      %v2472 = vrot.slane %v2390, 2
      %v2473 = vrot.slane %v2393, 2
      %v2474 = vrot.slane %v2398, 2
      %v2475 = vrot.slane %v2401, 2
      %v2476 = vrot.slane %v2406, 2
      %v2477 = vrot.slane %v2409, 2
      %v2478 = vrot.slane %v2414, 2
      %v2479 = vrot.slane %v2417, 2
      %v2480 = vrot.slane %v2422, 2
      %v2481 = vrot.slane %v2425, 2
      %v2482 = vrot.slane %v2430, 2
      %v2483 = vrot.slane %v2433, 2
      %v2484 = vsel %vm1342, %v2482, %v2483
      %v2485 = vsel %vm1342, %v2481, %v2482
      %v2486 = vsel %vm1342, %v2480, %v2481
      %v2487 = vsel %vm1342, %v2479, %v2480
      %v2488 = vsel %vm1342, %v2478, %v2479
      %v2489 = vsel %vm1342, %v2477, %v2478
      %v2490 = vsel %vm1342, %v2476, %v2477
      %v2491 = vsel %vm1342, %v2475, %v2476
      %v2492 = vsel %vm1342, %v2474, %v2475
      %v2493 = vsel %vm1342, %v2473, %v2474
      %v2494 = vsel %vm1342, %v2472, %v2473
      %v2495 = vsel %vm1342, %v2471, %v2472
      %v2496 = vsel %vm1342, %v2470, %v2471
      %v2497 = vsel %vm1342, %v2469, %v2470
      %v2498 = vsel %vm1342, %v2468, %v2469
      %v2499 = vsel %vm1342, %v2467, %v2468
      %v2500 = vsel %vm1342, %v2466, %v2467
      %v2501 = vsel %vm1342, %v2465, %v2466
      %v2502 = vsel %vm1342, %v2464, %v2465
      %v2503 = vsel %vm1342, %v2463, %v2464
      %v2504 = vsel %vm1342, %v2462, %v2463
      %v2505 = vsel %vm1342, %v2461, %v2462
      %v2506 = vsel %vm1342, %v2460, %v2461
      %v2507 = vsel %vm1342, %v2459, %v2460
      %v2508 = vsel %vm1342, %v2458, %v2459
      %v2509 = vsel %vm1342, %v2457, %v2458
      %v2510 = vsel %vm1342, %v2456, %v2457
      %v2511 = vsel %vm1342, %v2455, %v2456
      %v2512 = vsel %vm1342, %v2454, %v2455
      %v2513 = vsel %vm1342, %v2453, %v2454
      %v2514 = vsel %vm1342, %v2452, %v2453
      %v2515 = vsel %vm1342, %v2451, %v2452
      %v2516 = vsel %vm1342, %v2450, %v2451
      %v2517 = vsel %vm1342, %v2449, %v2450
      %v2518 = vsel %vm1342, %v2448, %v2449
      %v2519 = vsel %vm1342, %v2447, %v2448
      %v2520 = vsel %vm1342, %v2446, %v2447
      %v2521 = vsel %vm1342, %v2445, %v2446
      %v2522 = vsel %vm1342, %v2444, %v2445
      %v2523 = vsel %vm1342, %v2443, %v2444
      %v2524 = vsel %vm1342, %v2442, %v2443
      %v2525 = vsel %vm1342, %v2441, %v2442
      %v2526 = vsel %vm1342, %v2440, %v2441
      %v2527 = vsel %vm1342, %v2439, %v2440
      %v2528 = vsel %vm1342, %v2438, %v2439
      %v2529 = vsel %vm1342, %v2437, %v2438
      %v2530 = vsel %vm1342, %v2436, %v2437
      %v2531 = vsel %vm1342, %v2483, %v2436
      %v2532 = vadd.f32 %v1996, %v2530
      %v2533 = vadd.f32 %v1999, %v2529
      %v2534 = vadd.f32 %v2004, %v2528
      %v2535 = vadd.f32 %v2007, %v2527
      %v2536 = vadd.f32 %v2012, %v2526
      %v2537 = vadd.f32 %v2015, %v2525
      %v2538 = vadd.f32 %v2020, %v2524
      %v2539 = vadd.f32 %v2023, %v2523
      %v2540 = vadd.f32 %v2028, %v2522
      %v2541 = vadd.f32 %v2031, %v2521
      %v2542 = vadd.f32 %v2036, %v2520
      %v2543 = vadd.f32 %v2039, %v2519
      %v2544 = vadd.f32 %v2044, %v2518
      %v2545 = vadd.f32 %v2047, %v2517
      %v2546 = vadd.f32 %v2052, %v2516
      %v2547 = vadd.f32 %v2055, %v2515
      %v2548 = vadd.f32 %v2060, %v2514
      %v2549 = vadd.f32 %v2063, %v2513
      %v2550 = vadd.f32 %v2068, %v2512
      %v2551 = vadd.f32 %v2071, %v2511
      %v2552 = vadd.f32 %v2076, %v2510
      %v2553 = vadd.f32 %v2079, %v2509
      %v2554 = vadd.f32 %v2084, %v2508
      %v2555 = vadd.f32 %v2087, %v2507
      %v2556 = vadd.f32 %v2092, %v2506
      %v2557 = vadd.f32 %v2095, %v2505
      %v2558 = vadd.f32 %v2100, %v2504
      %v2559 = vadd.f32 %v2103, %v2503
      %v2560 = vadd.f32 %v2108, %v2502
      %v2561 = vadd.f32 %v2111, %v2501
      %v2562 = vadd.f32 %v2116, %v2500
      %v2563 = vadd.f32 %v2119, %v2499
      %v2564 = vadd.f32 %v2124, %v2498
      %v2565 = vadd.f32 %v2127, %v2497
      %v2566 = vadd.f32 %v2132, %v2496
      %v2567 = vadd.f32 %v2135, %v2495
      %v2568 = vadd.f32 %v2140, %v2494
      %v2569 = vadd.f32 %v2143, %v2493
      %v2570 = vadd.f32 %v2148, %v2492
      %v2571 = vadd.f32 %v2151, %v2491
      %v2572 = vadd.f32 %v2156, %v2490
      %v2573 = vadd.f32 %v2159, %v2489
      %v2574 = vadd.f32 %v2164, %v2488
      %v2575 = vadd.f32 %v2167, %v2487
      %v2576 = vadd.f32 %v2172, %v2486
      %v2577 = vadd.f32 %v2175, %v2485
      %v2578 = vadd.f32 %v2180, %v2484
      %v2579 = vadd.f32 %v2183, %v2531
      %v2580 = vld [vmem:[#allocation2] sm:$0xff]
      %v2581 = vld [vmem:[#allocation2 + $0x8] sm:$0xff]
      %v2582 = vld [vmem:[#allocation2 + $0x10] sm:$0xff]
      %v2583 = vld [vmem:[#allocation2 + $0x18] sm:$0xff]
      %v2584 = vld [vmem:[#allocation2 + $0x20] sm:$0xff]
      %v2585 = vld [vmem:[#allocation2 + $0x28] sm:$0xff]
      %v2586 = vld [vmem:[#allocation2 + $0x30] sm:$0xff]
      %v2587 = vld [vmem:[#allocation2 + $0x38] sm:$0xff]
      %v2588 = vld [vmem:[#allocation2 + $0x40] sm:$0xff]
      %v2589 = vld [vmem:[#allocation2 + $0x48] sm:$0xff]
      %v2590 = vld [vmem:[#allocation2 + $0x50] sm:$0xff]
      %v2591 = vld [vmem:[#allocation2 + $0x58] sm:$0xff]
      %v2592 = vld [vmem:[#allocation2 + $0x60] sm:$0xff]
      %v2593 = vld [vmem:[#allocation2 + $0x68] sm:$0xff]
      %v2594 = vld [vmem:[#allocation2 + $0x70] sm:$0xff]
      %v2595 = vld [vmem:[#allocation2 + $0x78] sm:$0xff]
      %v2596 = vld [vmem:[#allocation2 + $0x80] sm:$0xff]
      %v2597 = vld [vmem:[#allocation2 + $0x88] sm:$0xff]
      %v2598 = vld [vmem:[#allocation2 + $0x90] sm:$0xff]
      %v2599 = vld [vmem:[#allocation2 + $0x98] sm:$0xff]
      %v2600 = vld [vmem:[#allocation2 + $0xa0] sm:$0xff]
      %v2601 = vld [vmem:[#allocation2 + $0xa8] sm:$0xff]
      %v2602 = vld [vmem:[#allocation2 + $0xb0] sm:$0xff]
      %v2603 = vld [vmem:[#allocation2 + $0xb8] sm:$0xff]
      %v2604 = vld [vmem:[#allocation2 + $0xc0] sm:$0xff]
      %v2605 = vld [vmem:[#allocation2 + $0xc8] sm:$0xff]
      %v2606 = vld [vmem:[#allocation2 + $0xd0] sm:$0xff]
      %v2607 = vld [vmem:[#allocation2 + $0xd8] sm:$0xff]
      %v2608 = vld [vmem:[#allocation2 + $0xe0] sm:$0xff]
      %v2609 = vld [vmem:[#allocation2 + $0xe8] sm:$0xff]
      %v2610 = vld [vmem:[#allocation2 + $0xf0] sm:$0xff]
      %v2611 = vld [vmem:[#allocation2 + $0xf8] sm:$0xff]
      %v2612 = vld [vmem:[#allocation2 + $0x100] sm:$0xff]
      %v2613 = vld [vmem:[#allocation2 + $0x108] sm:$0xff]
      %v2614 = vld [vmem:[#allocation2 + $0x110] sm:$0xff]
      %v2615 = vld [vmem:[#allocation2 + $0x118] sm:$0xff]
      %v2616 = vld [vmem:[#allocation2 + $0x120] sm:$0xff]
      %v2617 = vld [vmem:[#allocation2 + $0x128] sm:$0xff]
      %v2618 = vld [vmem:[#allocation2 + $0x130] sm:$0xff]
      %v2619 = vld [vmem:[#allocation2 + $0x138] sm:$0xff]
      %v2620 = vld [vmem:[#allocation2 + $0x140] sm:$0xff]
      %v2621 = vld [vmem:[#allocation2 + $0x148] sm:$0xff]
      %v2622 = vld [vmem:[#allocation2 + $0x150] sm:$0xff]
      %v2623 = vld [vmem:[#allocation2 + $0x158] sm:$0xff]
      %v2624 = vld [vmem:[#allocation2 + $0x160] sm:$0xff]
      %v2625 = vld [vmem:[#allocation2 + $0x168] sm:$0xff]
      %v2626 = vld [vmem:[#allocation2 + $0x170] sm:$0xff]
      %v2627 = vld [vmem:[#allocation2 + $0x178] sm:$0xff]
      %v2628 = vadd.f32 %v2580, %v2532
      %v2629 = vadd.f32 %v2581, %v2533
      %v2630 = vadd.f32 %v2582, %v2534
      %v2631 = vadd.f32 %v2583, %v2535
      %v2632 = vadd.f32 %v2584, %v2536
      %v2633 = vadd.f32 %v2585, %v2537
      %v2634 = vadd.f32 %v2586, %v2538
      %v2635 = vadd.f32 %v2587, %v2539
      %v2636 = vadd.f32 %v2588, %v2540
      %v2637 = vadd.f32 %v2589, %v2541
      %v2638 = vadd.f32 %v2590, %v2542
      %v2639 = vadd.f32 %v2591, %v2543
      %v2640 = vadd.f32 %v2592, %v2544
      %v2641 = vadd.f32 %v2593, %v2545
      %v2642 = vadd.f32 %v2594, %v2546
      %v2643 = vadd.f32 %v2595, %v2547
      %v2644 = vadd.f32 %v2596, %v2548
      %v2645 = vadd.f32 %v2597, %v2549
      %v2646 = vadd.f32 %v2598, %v2550
      %v2647 = vadd.f32 %v2599, %v2551
      %v2648 = vadd.f32 %v2600, %v2552
      %v2649 = vadd.f32 %v2601, %v2553
      %v2650 = vadd.f32 %v2602, %v2554
      %v2651 = vadd.f32 %v2603, %v2555
      %v2652 = vadd.f32 %v2604, %v2556
      %v2653 = vadd.f32 %v2605, %v2557
      %v2654 = vadd.f32 %v2606, %v2558
      %v2655 = vadd.f32 %v2607, %v2559
      %v2656 = vadd.f32 %v2608, %v2560
      %v2657 = vadd.f32 %v2609, %v2561
      %v2658 = vadd.f32 %v2610, %v2562
      %v2659 = vadd.f32 %v2611, %v2563
      %v2660 = vadd.f32 %v2612, %v2564
      %v2661 = vadd.f32 %v2613, %v2565
      %v2662 = vadd.f32 %v2614, %v2566
      %v2663 = vadd.f32 %v2615, %v2567
      %v2664 = vadd.f32 %v2616, %v2568
      %v2665 = vadd.f32 %v2617, %v2569
      %v2666 = vadd.f32 %v2618, %v2570
      %v2667 = vadd.f32 %v2619, %v2571
      %v2668 = vadd.f32 %v2620, %v2572
      %v2669 = vadd.f32 %v2621, %v2573
      %v2670 = vadd.f32 %v2622, %v2574
      %v2671 = vadd.f32 %v2623, %v2575
      %v2672 = vadd.f32 %v2624, %v2576
      %v2673 = vadd.f32 %v2625, %v2577
      %v2674 = vadd.f32 %v2626, %v2578
      %v2675 = vadd.f32 %v2627, %v2579
      %2676 = vst.msk [vmem:[#allocation2] sm:$0xff] %vm1439, %v2628
      %2677 = vst.msk [vmem:[#allocation2 + $0x8] sm:$0xff] %vm1439, %v2629
      %2678 = vst.msk [vmem:[#allocation2 + $0x10] sm:$0xff] %vm1439, %v2630
      %2679 = vst.msk [vmem:[#allocation2 + $0x18] sm:$0xff] %vm1439, %v2631
      %2680 = vst.msk [vmem:[#allocation2 + $0x20] sm:$0xff] %vm1439, %v2632
      %2681 = vst.msk [vmem:[#allocation2 + $0x28] sm:$0xff] %vm1439, %v2633
      %2682 = vst.msk [vmem:[#allocation2 + $0x30] sm:$0xff] %vm1439, %v2634
      %2683 = vst.msk [vmem:[#allocation2 + $0x38] sm:$0xff] %vm1439, %v2635
      %2684 = vst.msk [vmem:[#allocation2 + $0x40] sm:$0xff] %vm1439, %v2636
      %2685 = vst.msk [vmem:[#allocation2 + $0x48] sm:$0xff] %vm1439, %v2637
      %2686 = vst.msk [vmem:[#allocation2 + $0x50] sm:$0xff] %vm1439, %v2638
      %2687 = vst.msk [vmem:[#allocation2 + $0x58] sm:$0xff] %vm1439, %v2639
      %2688 = vst.msk [vmem:[#allocation2 + $0x60] sm:$0xff] %vm1439, %v2640
      %2689 = vst.msk [vmem:[#allocation2 + $0x68] sm:$0xff] %vm1439, %v2641
      %2690 = vst.msk [vmem:[#allocation2 + $0x70] sm:$0xff] %vm1439, %v2642
      %2691 = vst.msk [vmem:[#allocation2 + $0x78] sm:$0xff] %vm1439, %v2643
      %2692 = vst.msk [vmem:[#allocation2 + $0x80] sm:$0xff] %vm1439, %v2644
      %2693 = vst.msk [vmem:[#allocation2 + $0x88] sm:$0xff] %vm1439, %v2645
      %2694 = vst.msk [vmem:[#allocation2 + $0x90] sm:$0xff] %vm1439, %v2646
      %2695 = vst.msk [vmem:[#allocation2 + $0x98] sm:$0xff] %vm1439, %v2647
      %2696 = vst.msk [vmem:[#allocation2 + $0xa0] sm:$0xff] %vm1439, %v2648
      %2697 = vst.msk [vmem:[#allocation2 + $0xa8] sm:$0xff] %vm1439, %v2649
      %2698 = vst.msk [vmem:[#allocation2 + $0xb0] sm:$0xff] %vm1439, %v2650
      %2699 = vst.msk [vmem:[#allocation2 + $0xb8] sm:$0xff] %vm1439, %v2651
      %2700 = vst.msk [vmem:[#allocation2 + $0xc0] sm:$0xff] %vm1439, %v2652
      %2701 = vst.msk [vmem:[#allocation2 + $0xc8] sm:$0xff] %vm1439, %v2653
      %2702 = vst.msk [vmem:[#allocation2 + $0xd0] sm:$0xff] %vm1439, %v2654
      %2703 = vst.msk [vmem:[#allocation2 + $0xd8] sm:$0xff] %vm1439, %v2655
      %2704 = vst.msk [vmem:[#allocation2 + $0xe0] sm:$0xff] %vm1439, %v2656
      %2705 = vst.msk [vmem:[#allocation2 + $0xe8] sm:$0xff] %vm1439, %v2657
      %2706 = vst.msk [vmem:[#allocation2 + $0xf0] sm:$0xff] %vm1439, %v2658
      %2707 = vst.msk [vmem:[#allocation2 + $0xf8] sm:$0xff] %vm1439, %v2659
      %2708 = vst.msk [vmem:[#allocation2 + $0x100] sm:$0xff] %vm1439, %v2660
      %2709 = vst.msk [vmem:[#allocation2 + $0x108] sm:$0xff] %vm1439, %v2661
      %2710 = vst.msk [vmem:[#allocation2 + $0x110] sm:$0xff] %vm1439, %v2662
      %2711 = vst.msk [vmem:[#allocation2 + $0x118] sm:$0xff] %vm1439, %v2663
      %2712 = vst.msk [vmem:[#allocation2 + $0x120] sm:$0xff] %vm1439, %v2664
      %2713 = vst.msk [vmem:[#allocation2 + $0x128] sm:$0xff] %vm1439, %v2665
      %2714 = vst.msk [vmem:[#allocation2 + $0x130] sm:$0xff] %vm1439, %v2666
      %2715 = vst.msk [vmem:[#allocation2 + $0x138] sm:$0xff] %vm1439, %v2667
      %2716 = vst.msk [vmem:[#allocation2 + $0x140] sm:$0xff] %vm1439, %v2668
      %2717 = vst.msk [vmem:[#allocation2 + $0x148] sm:$0xff] %vm1439, %v2669
      %2718 = vst.msk [vmem:[#allocation2 + $0x150] sm:$0xff] %vm1439, %v2670
      %2719 = vst.msk [vmem:[#allocation2 + $0x158] sm:$0xff] %vm1439, %v2671
      %2720 = vst.msk [vmem:[#allocation2 + $0x160] sm:$0xff] %vm1439, %v2672
      %2721 = vst.msk [vmem:[#allocation2 + $0x168] sm:$0xff] %vm1439, %v2673
      %2722 = vst.msk [vmem:[#allocation2 + $0x170] sm:$0xff] %vm1439, %v2674
      %2723 = vst.msk [vmem:[#allocation2 + $0x178] sm:$0xff] %vm1439, %v2675
      %s2724 = scalar_lea.vmem %s1, 144
      %v2725 = vld [vmem:[%s2724] sm:$0xf]
      %v2726 = vld [vmem:[%s2724 + $0x4] sm:$0xf]
      %v2727 = vld [vmem:[%s2724 + $0x8] sm:$0xf]
      %v2728 = vld [vmem:[%s2724 + $0xc] sm:$0xf]
      %v2729 = vld [vmem:[%s2724 + $0x10] sm:$0xf]
      %v2730 = vld [vmem:[%s2724 + $0x14] sm:$0xf]
      %s2731 = scalar_lea.vmem %s1, 168
      %v2732 = vld [vmem:[%s2731] sm:$0xf]
      %v2733 = vld [vmem:[%s2731 + $0x4] sm:$0xf]
      %v2734 = vld [vmem:[%s2731 + $0x8] sm:$0xf]
      %v2735 = vld [vmem:[%s2731 + $0xc] sm:$0xf]
      %v2736 = vld [vmem:[%s2731 + $0x10] sm:$0xf]
      %v2737 = vld [vmem:[%s2731 + $0x14] sm:$0xf]
      %v2741 = vunpack.c.l.b16 %v250
      %v2742 = vunpack.c.l.b16 %v251
      %v2743 = vunpack.c.l.b16 %v252
      %v2744 = vpack.c.b16 %v1506, %v1505
      %v2745 = vpack.c.b16 %v2741, %v1507
      %v2746 = vpack.c.b16 %v2743, %v2742
      %v2753 = vunpack.c.l.b16 %v2732
      %v2754 = vunpack.c.l.b16 %v2733
      %v2755 = vunpack.c.l.b16 %v2734
      %v2756 = vunpack.c.l.b16 %v2735
      %v2757 = vunpack.c.l.b16 %v2736
      %v2758 = vunpack.c.l.b16 %v2737
      %v2759 = vpack.c.b16 %v2754, %v2753
      %v2760 = vpack.c.b16 %v2756, %v2755
      %v2761 = vpack.c.b16 %v2758, %v2757
      %v2766 = vsel %vm404, %v2744, 0
      %v2769 = vsel %vm404, %v2745, 0
      %v2772 = vsel %vm404, %v2746, 0
      %2774 = vmatprep.subr.bf16.mxu0 0
      %2775 = vmatpush1.bf16.msra.mxu0 0
      %2776 = vmatprep.subr.bf16.mxu0 0
      %2777 = vmatpush1.bf16.msra.mxu0 0
      %2778 = vmatprep.subr.bf16.mxu0 0
      %2779 = vmatpush1.bf16.msra.mxu0 0
      %2780 = vmatprep.subr.bf16.mxu0 0
      %2781 = vmatpush1.bf16.msra.mxu0 0
      %2782 = vmatprep.subr.bf16.mxu0 0
      %2783 = vmatpush1.bf16.msra.mxu0 0
      %2784 = vmatprep.subr.bf16.mxu0 0
      %2785 = vmatpush1.bf16.msra.mxu0 %v2761
      %2786 = vmatprep.subr.bf16.mxu0 0
      %2787 = vmatpush1.bf16.msra.mxu0 %v2760
      %2788 = vmatprep.subr.bf16.mxu0 0
      %2789 = vmatpush1.bf16.msra.mxu0 %v2759
      %2790 = vmatprep.subr.bf16.mxu0 0
      %2791 = vmatpush2.bf16.msra.mxu0 0
      %2792 = vmatprep.subr.bf16.mxu0 0
      %2793 = vmatpush2.bf16.msra.mxu0 0
      %2794 = vmatprep.subr.bf16.mxu0 0
      %2795 = vmatpush2.bf16.msra.mxu0 0
      %2796 = vmatprep.subr.bf16.mxu0 0
      %2797 = vmatpush2.bf16.msra.mxu0 0
      %2798 = vmatprep.subr.bf16.mxu0 0
      %2799 = vmatpush2.bf16.msra.mxu0 0
      %2800 = vmatprep.subr.bf16.mxu0 0
      %2801 = vmatpush2.bf16.msra.mxu0 0
      %2802 = vmatprep.subr.bf16.mxu0 0
      %2803 = vmatpush2.bf16.msra.mxu0 0
      %2804 = vmatprep.subr.bf16.mxu0 0
      %2805 = vmatpush2.bf16.msra.mxu0 0
      %2806 = vmatprep.mubr.bf16.mxu0 0
      %2807 = vmatmul.mubr.bf16.gmra.mxu0 %v415
      %v2808 = vpop.f32.mrf.mxu0
      %v2809 = vadd.f32 0.0, %v2808
      %v2810 = vpop.f32.mrf.mxu0
      %v2811 = vpop.f32.mrf.mxu0
      %v2812 = vadd.f32 0.0, %v2811
      %v2813 = vpop.f32.mrf.mxu0
      %2814 = vmatprep.mubr.bf16.mxu0 0
      %2815 = vmatmul.mubr.bf16.gmra.mxu0 %v418
      %v2816 = vpop.f32.mrf.mxu0
      %v2817 = vadd.f32 0.0, %v2816
      %v2818 = vpop.f32.mrf.mxu0
      %v2819 = vpop.f32.mrf.mxu0
      %v2820 = vadd.f32 0.0, %v2819
      %v2821 = vpop.f32.mrf.mxu0
      %2822 = vmatprep.mubr.bf16.mxu0 0
      %2823 = vmatmul.mubr.bf16.gmra.mxu0 %v421
      %v2824 = vpop.f32.mrf.mxu0
      %v2825 = vadd.f32 0.0, %v2824
      %v2826 = vpop.f32.mrf.mxu0
      %v2827 = vpop.f32.mrf.mxu0
      %v2828 = vadd.f32 0.0, %v2827
      %v2829 = vpop.f32.mrf.mxu0
      %2830 = vmatprep.mubr.bf16.mxu0 0
      %2831 = vmatmul.mubr.bf16.gmra.mxu0 %v424
      %v2832 = vpop.f32.mrf.mxu0
      %v2833 = vadd.f32 0.0, %v2832
      %v2834 = vpop.f32.mrf.mxu0
      %v2835 = vpop.f32.mrf.mxu0
      %v2836 = vadd.f32 0.0, %v2835
      %v2837 = vpop.f32.mrf.mxu0
      %2838 = vmatprep.mubr.bf16.mxu0 0
      %2839 = vmatmul.mubr.bf16.gmra.mxu0 %v427
      %v2840 = vpop.f32.mrf.mxu0
      %v2841 = vadd.f32 0.0, %v2840
      %v2842 = vpop.f32.mrf.mxu0
      %v2843 = vpop.f32.mrf.mxu0
      %v2844 = vadd.f32 0.0, %v2843
      %v2845 = vpop.f32.mrf.mxu0
      %2846 = vmatprep.mubr.bf16.mxu0 0
      %2847 = vmatmul.mubr.bf16.gmra.mxu0 %v430
      %v2848 = vpop.f32.mrf.mxu0
      %v2849 = vadd.f32 0.0, %v2848
      %v2850 = vpop.f32.mrf.mxu0
      %v2851 = vpop.f32.mrf.mxu0
      %v2852 = vadd.f32 0.0, %v2851
      %v2853 = vpop.f32.mrf.mxu0
      %2854 = vmatprep.mubr.bf16.mxu0 0
      %2855 = vmatmul.mubr.bf16.gmra.mxu0 %v433
      %v2856 = vpop.f32.mrf.mxu0
      %v2857 = vadd.f32 0.0, %v2856
      %v2858 = vpop.f32.mrf.mxu0
      %v2859 = vpop.f32.mrf.mxu0
      %v2860 = vadd.f32 0.0, %v2859
      %v2861 = vpop.f32.mrf.mxu0
      %2862 = vmatprep.mubr.bf16.mxu0 0
      %2863 = vmatmul.mubr.bf16.gmra.mxu0 %v436
      %v2864 = vpop.f32.mrf.mxu0
      %v2865 = vadd.f32 0.0, %v2864
      %v2866 = vpop.f32.mrf.mxu0
      %v2867 = vpop.f32.mrf.mxu0
      %v2868 = vadd.f32 0.0, %v2867
      %v2869 = vpop.f32.mrf.mxu0
      %2870 = vmatprep.mubr.bf16.mxu0 0
      %2871 = vmatmul.mubr.bf16.gmra.mxu0 %v439
      %v2872 = vpop.f32.mrf.mxu0
      %v2873 = vadd.f32 0.0, %v2872
      %v2874 = vpop.f32.mrf.mxu0
      %v2875 = vpop.f32.mrf.mxu0
      %v2876 = vadd.f32 0.0, %v2875
      %v2877 = vpop.f32.mrf.mxu0
      %2878 = vmatprep.mubr.bf16.mxu0 0
      %2879 = vmatmul.mubr.bf16.gmra.mxu0 %v442
      %v2880 = vpop.f32.mrf.mxu0
      %v2881 = vadd.f32 0.0, %v2880
      %v2882 = vpop.f32.mrf.mxu0
      %v2883 = vpop.f32.mrf.mxu0
      %v2884 = vadd.f32 0.0, %v2883
      %v2885 = vpop.f32.mrf.mxu0
      %2886 = vmatprep.mubr.bf16.mxu0 0
      %2887 = vmatmul.mubr.bf16.gmra.mxu0 %v445
      %v2888 = vpop.f32.mrf.mxu0
      %v2889 = vadd.f32 0.0, %v2888
      %v2890 = vpop.f32.mrf.mxu0
      %v2891 = vpop.f32.mrf.mxu0
      %v2892 = vadd.f32 0.0, %v2891
      %v2893 = vpop.f32.mrf.mxu0
      %2894 = vmatprep.mubr.bf16.mxu0 0
      %2895 = vmatmul.mubr.bf16.gmra.mxu0 %v448
      %v2896 = vpop.f32.mrf.mxu0
      %v2897 = vadd.f32 0.0, %v2896
      %v2898 = vpop.f32.mrf.mxu0
      %v2899 = vpop.f32.mrf.mxu0
      %v2900 = vadd.f32 0.0, %v2899
      %v2901 = vpop.f32.mrf.mxu0
      %2902 = vmatprep.mubr.bf16.mxu0 0
      %2903 = vmatmul.mubr.bf16.gmra.mxu0 %v451
      %v2904 = vpop.f32.mrf.mxu0
      %v2905 = vadd.f32 0.0, %v2904
      %v2906 = vpop.f32.mrf.mxu0
      %v2907 = vpop.f32.mrf.mxu0
      %v2908 = vadd.f32 0.0, %v2907
      %v2909 = vpop.f32.mrf.mxu0
      %2910 = vmatprep.mubr.bf16.mxu0 0
      %2911 = vmatmul.mubr.bf16.gmra.mxu0 %v454
      %v2912 = vpop.f32.mrf.mxu0
      %v2913 = vadd.f32 0.0, %v2912
      %v2914 = vpop.f32.mrf.mxu0
      %v2915 = vpop.f32.mrf.mxu0
      %v2916 = vadd.f32 0.0, %v2915
      %v2917 = vpop.f32.mrf.mxu0
      %2918 = vmatprep.mubr.bf16.mxu0 0
      %2919 = vmatmul.mubr.bf16.gmra.mxu0 %v457
      %v2920 = vpop.f32.mrf.mxu0
      %v2921 = vadd.f32 0.0, %v2920
      %v2922 = vpop.f32.mrf.mxu0
      %v2923 = vpop.f32.mrf.mxu0
      %v2924 = vadd.f32 0.0, %v2923
      %v2925 = vpop.f32.mrf.mxu0
      %2926 = vmatprep.mubr.bf16.mxu0 0
      %2927 = vmatmul.mubr.bf16.gmra.mxu0 %v460
      %v2928 = vpop.f32.mrf.mxu0
      %v2929 = vadd.f32 0.0, %v2928
      %v2930 = vpop.f32.mrf.mxu0
      %v2931 = vpop.f32.mrf.mxu0
      %v2932 = vadd.f32 0.0, %v2931
      %v2933 = vpop.f32.mrf.mxu0
      %2934 = vmatprep.mubr.bf16.mxu0 0
      %2935 = vmatmul.mubr.bf16.gmra.mxu0 %v463
      %v2936 = vpop.f32.mrf.mxu0
      %v2937 = vadd.f32 0.0, %v2936
      %v2938 = vpop.f32.mrf.mxu0
      %v2939 = vpop.f32.mrf.mxu0
      %v2940 = vadd.f32 0.0, %v2939
      %v2941 = vpop.f32.mrf.mxu0
      %2942 = vmatprep.mubr.bf16.mxu0 0
      %2943 = vmatmul.mubr.bf16.gmra.mxu0 %v466
      %v2944 = vpop.f32.mrf.mxu0
      %v2945 = vadd.f32 0.0, %v2944
      %v2946 = vpop.f32.mrf.mxu0
      %v2947 = vpop.f32.mrf.mxu0
      %v2948 = vadd.f32 0.0, %v2947
      %v2949 = vpop.f32.mrf.mxu0
      %2950 = vmatprep.mubr.bf16.mxu0 0
      %2951 = vmatmul.mubr.bf16.gmra.mxu0 %v469
      %v2952 = vpop.f32.mrf.mxu0
      %v2953 = vadd.f32 0.0, %v2952
      %v2954 = vpop.f32.mrf.mxu0
      %v2955 = vpop.f32.mrf.mxu0
      %v2956 = vadd.f32 0.0, %v2955
      %v2957 = vpop.f32.mrf.mxu0
      %2958 = vmatprep.mubr.bf16.mxu0 0
      %2959 = vmatmul.mubr.bf16.gmra.mxu0 %v472
      %v2960 = vpop.f32.mrf.mxu0
      %v2961 = vadd.f32 0.0, %v2960
      %v2962 = vpop.f32.mrf.mxu0
      %v2963 = vpop.f32.mrf.mxu0
      %v2964 = vadd.f32 0.0, %v2963
      %v2965 = vpop.f32.mrf.mxu0
      %2966 = vmatprep.mubr.bf16.mxu0 0
      %2967 = vmatmul.mubr.bf16.gmra.mxu0 %v475
      %v2968 = vpop.f32.mrf.mxu0
      %v2969 = vadd.f32 0.0, %v2968
      %v2970 = vpop.f32.mrf.mxu0
      %v2971 = vpop.f32.mrf.mxu0
      %v2972 = vadd.f32 0.0, %v2971
      %v2973 = vpop.f32.mrf.mxu0
      %2974 = vmatprep.mubr.bf16.mxu0 0
      %2975 = vmatmul.mubr.bf16.gmra.mxu0 %v2766
      %v2976 = vpop.f32.mrf.mxu0
      %v2977 = vadd.f32 0.0, %v2976
      %v2978 = vpop.f32.mrf.mxu0
      %v2979 = vpop.f32.mrf.mxu0
      %v2980 = vadd.f32 0.0, %v2979
      %v2981 = vpop.f32.mrf.mxu0
      %2982 = vmatprep.mubr.bf16.mxu0 0
      %2983 = vmatmul.mubr.bf16.gmra.mxu0 %v2769
      %v2984 = vpop.f32.mrf.mxu0
      %v2985 = vadd.f32 0.0, %v2984
      %v2986 = vpop.f32.mrf.mxu0
      %v2987 = vpop.f32.mrf.mxu0
      %v2988 = vadd.f32 0.0, %v2987
      %v2989 = vpop.f32.mrf.mxu0
      %2990 = vmatprep.mubr.bf16.mxu0 0
      %2991 = vmatmul.mubr.bf16.gmra.mxu0 %v2772
      %v2992 = vpop.f32.mrf.mxu0
      %v2993 = vadd.f32 0.0, %v2992
      %v2994 = vpop.f32.mrf.mxu0
      %v2995 = vpop.f32.mrf.mxu0
      %v2996 = vadd.f32 0.0, %v2995
      %v2997 = vpop.f32.mrf.mxu0
      %2998 = vdwg.mxu0
      %v2999 = vrot.slane %v2809, 1
      %v3000 = vrot.slane %v2812, 1
      %v3001 = vrot.slane %v2817, 1
      %v3002 = vrot.slane %v2820, 1
      %v3003 = vrot.slane %v2825, 1
      %v3004 = vrot.slane %v2828, 1
      %v3005 = vrot.slane %v2833, 1
      %v3006 = vrot.slane %v2836, 1
      %v3007 = vrot.slane %v2841, 1
      %v3008 = vrot.slane %v2844, 1
      %v3009 = vrot.slane %v2849, 1
      %v3010 = vrot.slane %v2852, 1
      %v3011 = vrot.slane %v2857, 1
      %v3012 = vrot.slane %v2860, 1
      %v3013 = vrot.slane %v2865, 1
      %v3014 = vrot.slane %v2868, 1
      %v3015 = vrot.slane %v2873, 1
      %v3016 = vrot.slane %v2876, 1
      %v3017 = vrot.slane %v2881, 1
      %v3018 = vrot.slane %v2884, 1
      %v3019 = vrot.slane %v2889, 1
      %v3020 = vrot.slane %v2892, 1
      %v3021 = vrot.slane %v2897, 1
      %v3022 = vrot.slane %v2900, 1
      %v3023 = vrot.slane %v2905, 1
      %v3024 = vrot.slane %v2908, 1
      %v3025 = vrot.slane %v2913, 1
      %v3026 = vrot.slane %v2916, 1
      %v3027 = vrot.slane %v2921, 1
      %v3028 = vrot.slane %v2924, 1
      %v3029 = vrot.slane %v2929, 1
      %v3030 = vrot.slane %v2932, 1
      %v3031 = vrot.slane %v2937, 1
      %v3032 = vrot.slane %v2940, 1
      %v3033 = vrot.slane %v2945, 1
      %v3034 = vrot.slane %v2948, 1
      %v3035 = vrot.slane %v2953, 1
      %v3036 = vrot.slane %v2956, 1
      %v3037 = vrot.slane %v2961, 1
      %v3038 = vrot.slane %v2964, 1
      %v3039 = vrot.slane %v2969, 1
      %v3040 = vrot.slane %v2972, 1
      %v3041 = vrot.slane %v2977, 1
      %v3042 = vrot.slane %v2980, 1
      %v3043 = vrot.slane %v2985, 1
      %v3044 = vrot.slane %v2988, 1
      %v3045 = vrot.slane %v2993, 1
      %v3046 = vrot.slane %v2996, 1
      %v3047 = vsel %vm752, %v3045, %v3046
      %v3048 = vsel %vm752, %v3044, %v3045
      %v3049 = vsel %vm752, %v3043, %v3044
      %v3050 = vsel %vm752, %v3042, %v3043
      %v3051 = vsel %vm752, %v3041, %v3042
      %v3052 = vsel %vm752, %v3040, %v3041
      %v3053 = vsel %vm752, %v3039, %v3040
      %v3054 = vsel %vm752, %v3038, %v3039
      %v3055 = vsel %vm752, %v3037, %v3038
      %v3056 = vsel %vm752, %v3036, %v3037
      %v3057 = vsel %vm752, %v3035, %v3036
      %v3058 = vsel %vm752, %v3034, %v3035
      %v3059 = vsel %vm752, %v3033, %v3034
      %v3060 = vsel %vm752, %v3032, %v3033
      %v3061 = vsel %vm752, %v3031, %v3032
      %v3062 = vsel %vm752, %v3030, %v3031
      %v3063 = vsel %vm752, %v3029, %v3030
      %v3064 = vsel %vm752, %v3028, %v3029
      %v3065 = vsel %vm752, %v3027, %v3028
      %v3066 = vsel %vm752, %v3026, %v3027
      %v3067 = vsel %vm752, %v3025, %v3026
      %v3068 = vsel %vm752, %v3024, %v3025
      %v3069 = vsel %vm752, %v3023, %v3024
      %v3070 = vsel %vm752, %v3022, %v3023
      %v3071 = vsel %vm752, %v3021, %v3022
      %v3072 = vsel %vm752, %v3020, %v3021
      %v3073 = vsel %vm752, %v3019, %v3020
      %v3074 = vsel %vm752, %v3018, %v3019
      %v3075 = vsel %vm752, %v3017, %v3018
      %v3076 = vsel %vm752, %v3016, %v3017
      %v3077 = vsel %vm752, %v3015, %v3016
      %v3078 = vsel %vm752, %v3014, %v3015
      %v3079 = vsel %vm752, %v3013, %v3014
      %v3080 = vsel %vm752, %v3012, %v3013
      %v3081 = vsel %vm752, %v3011, %v3012
      %v3082 = vsel %vm752, %v3010, %v3011
      %v3083 = vsel %vm752, %v3009, %v3010
      %v3084 = vsel %vm752, %v3008, %v3009
      %v3085 = vsel %vm752, %v3007, %v3008
      %v3086 = vsel %vm752, %v3006, %v3007
      %v3087 = vsel %vm752, %v3005, %v3006
      %v3088 = vsel %vm752, %v3004, %v3005
      %v3089 = vsel %vm752, %v3003, %v3004
      %v3090 = vsel %vm752, %v3002, %v3003
      %v3091 = vsel %vm752, %v3001, %v3002
      %v3092 = vsel %vm752, %v3000, %v3001
      %v3093 = vsel %vm752, %v2999, %v3000
      %v3094 = vsel %vm752, %v3046, %v2999
      %v3101 = vunpack.c.l.b16 %v2725
      %v3102 = vunpack.c.l.b16 %v2726
      %v3103 = vunpack.c.l.b16 %v2727
      %v3104 = vunpack.c.l.b16 %v2728
      %v3105 = vunpack.c.l.b16 %v2729
      %v3106 = vunpack.c.l.b16 %v2730
      %v3107 = vpack.c.b16 %v3102, %v3101
      %v3108 = vpack.c.b16 %v3104, %v3103
      %v3109 = vpack.c.b16 %v3106, %v3105
      %3113 = vmatprep.subr.bf16.mxu0 0
      %3114 = vmatpush1.bf16.msra.mxu0 0
      %3115 = vmatprep.subr.bf16.mxu0 0
      %3116 = vmatpush1.bf16.msra.mxu0 0
      %3117 = vmatprep.subr.bf16.mxu0 0
      %3118 = vmatpush1.bf16.msra.mxu0 0
      %3119 = vmatprep.subr.bf16.mxu0 0
      %3120 = vmatpush1.bf16.msra.mxu0 0
      %3121 = vmatprep.subr.bf16.mxu0 0
      %3122 = vmatpush1.bf16.msra.mxu0 0
      %3123 = vmatprep.subr.bf16.mxu0 0
      %3124 = vmatpush1.bf16.msra.mxu0 %v3109
      %3125 = vmatprep.subr.bf16.mxu0 0
      %3126 = vmatpush1.bf16.msra.mxu0 %v3108
      %3127 = vmatprep.subr.bf16.mxu0 0
      %3128 = vmatpush1.bf16.msra.mxu0 %v3107
      %3129 = vmatprep.subr.bf16.mxu0 0
      %3130 = vmatpush2.bf16.msra.mxu0 0
      %3131 = vmatprep.subr.bf16.mxu0 0
      %3132 = vmatpush2.bf16.msra.mxu0 0
      %3133 = vmatprep.subr.bf16.mxu0 0
      %3134 = vmatpush2.bf16.msra.mxu0 0
      %3135 = vmatprep.subr.bf16.mxu0 0
      %3136 = vmatpush2.bf16.msra.mxu0 0
      %3137 = vmatprep.subr.bf16.mxu0 0
      %3138 = vmatpush2.bf16.msra.mxu0 0
      %3139 = vmatprep.subr.bf16.mxu0 0
      %3140 = vmatpush2.bf16.msra.mxu0 0
      %3141 = vmatprep.subr.bf16.mxu0 0
      %3142 = vmatpush2.bf16.msra.mxu0 0
      %3143 = vmatprep.subr.bf16.mxu0 0
      %3144 = vmatpush2.bf16.msra.mxu0 0
      %3145 = vmatprep.mubr.bf16.mxu0 0
      %3146 = vmatmul.mubr.bf16.gmra.mxu0 %v415
      %v3147 = vpop.f32.mrf.mxu0
      %v3148 = vadd.f32 %v3093, %v3147
      %v3149 = vpop.f32.mrf.mxu0
      %v3150 = vpop.f32.mrf.mxu0
      %v3151 = vadd.f32 %v3092, %v3150
      %v3152 = vpop.f32.mrf.mxu0
      %3153 = vmatprep.mubr.bf16.mxu0 0
      %3154 = vmatmul.mubr.bf16.gmra.mxu0 %v418
      %v3155 = vpop.f32.mrf.mxu0
      %v3156 = vadd.f32 %v3091, %v3155
      %v3157 = vpop.f32.mrf.mxu0
      %v3158 = vpop.f32.mrf.mxu0
      %v3159 = vadd.f32 %v3090, %v3158
      %v3160 = vpop.f32.mrf.mxu0
      %3161 = vmatprep.mubr.bf16.mxu0 0
      %3162 = vmatmul.mubr.bf16.gmra.mxu0 %v421
      %v3163 = vpop.f32.mrf.mxu0
      %v3164 = vadd.f32 %v3089, %v3163
      %v3165 = vpop.f32.mrf.mxu0
      %v3166 = vpop.f32.mrf.mxu0
      %v3167 = vadd.f32 %v3088, %v3166
      %v3168 = vpop.f32.mrf.mxu0
      %3169 = vmatprep.mubr.bf16.mxu0 0
      %3170 = vmatmul.mubr.bf16.gmra.mxu0 %v424
      %v3171 = vpop.f32.mrf.mxu0
      %v3172 = vadd.f32 %v3087, %v3171
      %v3173 = vpop.f32.mrf.mxu0
      %v3174 = vpop.f32.mrf.mxu0
      %v3175 = vadd.f32 %v3086, %v3174
      %v3176 = vpop.f32.mrf.mxu0
      %3177 = vmatprep.mubr.bf16.mxu0 0
      %3178 = vmatmul.mubr.bf16.gmra.mxu0 %v427
      %v3179 = vpop.f32.mrf.mxu0
      %v3180 = vadd.f32 %v3085, %v3179
      %v3181 = vpop.f32.mrf.mxu0
      %v3182 = vpop.f32.mrf.mxu0
      %v3183 = vadd.f32 %v3084, %v3182
      %v3184 = vpop.f32.mrf.mxu0
      %3185 = vmatprep.mubr.bf16.mxu0 0
      %3186 = vmatmul.mubr.bf16.gmra.mxu0 %v430
      %v3187 = vpop.f32.mrf.mxu0
      %v3188 = vadd.f32 %v3083, %v3187
      %v3189 = vpop.f32.mrf.mxu0
      %v3190 = vpop.f32.mrf.mxu0
      %v3191 = vadd.f32 %v3082, %v3190
      %v3192 = vpop.f32.mrf.mxu0
      %3193 = vmatprep.mubr.bf16.mxu0 0
      %3194 = vmatmul.mubr.bf16.gmra.mxu0 %v433
      %v3195 = vpop.f32.mrf.mxu0
      %v3196 = vadd.f32 %v3081, %v3195
      %v3197 = vpop.f32.mrf.mxu0
      %v3198 = vpop.f32.mrf.mxu0
      %v3199 = vadd.f32 %v3080, %v3198
      %v3200 = vpop.f32.mrf.mxu0
      %3201 = vmatprep.mubr.bf16.mxu0 0
      %3202 = vmatmul.mubr.bf16.gmra.mxu0 %v436
      %v3203 = vpop.f32.mrf.mxu0
      %v3204 = vadd.f32 %v3079, %v3203
      %v3205 = vpop.f32.mrf.mxu0
      %v3206 = vpop.f32.mrf.mxu0
      %v3207 = vadd.f32 %v3078, %v3206
      %v3208 = vpop.f32.mrf.mxu0
      %3209 = vmatprep.mubr.bf16.mxu0 0
      %3210 = vmatmul.mubr.bf16.gmra.mxu0 %v439
      %v3211 = vpop.f32.mrf.mxu0
      %v3212 = vadd.f32 %v3077, %v3211
      %v3213 = vpop.f32.mrf.mxu0
      %v3214 = vpop.f32.mrf.mxu0
      %v3215 = vadd.f32 %v3076, %v3214
      %v3216 = vpop.f32.mrf.mxu0
      %3217 = vmatprep.mubr.bf16.mxu0 0
      %3218 = vmatmul.mubr.bf16.gmra.mxu0 %v442
      %v3219 = vpop.f32.mrf.mxu0
      %v3220 = vadd.f32 %v3075, %v3219
      %v3221 = vpop.f32.mrf.mxu0
      %v3222 = vpop.f32.mrf.mxu0
      %v3223 = vadd.f32 %v3074, %v3222
      %v3224 = vpop.f32.mrf.mxu0
      %3225 = vmatprep.mubr.bf16.mxu0 0
      %3226 = vmatmul.mubr.bf16.gmra.mxu0 %v445
      %v3227 = vpop.f32.mrf.mxu0
      %v3228 = vadd.f32 %v3073, %v3227
      %v3229 = vpop.f32.mrf.mxu0
      %v3230 = vpop.f32.mrf.mxu0
      %v3231 = vadd.f32 %v3072, %v3230
      %v3232 = vpop.f32.mrf.mxu0
      %3233 = vmatprep.mubr.bf16.mxu0 0
      %3234 = vmatmul.mubr.bf16.gmra.mxu0 %v448
      %v3235 = vpop.f32.mrf.mxu0
      %v3236 = vadd.f32 %v3071, %v3235
      %v3237 = vpop.f32.mrf.mxu0
      %v3238 = vpop.f32.mrf.mxu0
      %v3239 = vadd.f32 %v3070, %v3238
      %v3240 = vpop.f32.mrf.mxu0
      %3241 = vmatprep.mubr.bf16.mxu0 0
      %3242 = vmatmul.mubr.bf16.gmra.mxu0 %v451
      %v3243 = vpop.f32.mrf.mxu0
      %v3244 = vadd.f32 %v3069, %v3243
      %v3245 = vpop.f32.mrf.mxu0
      %v3246 = vpop.f32.mrf.mxu0
      %v3247 = vadd.f32 %v3068, %v3246
      %v3248 = vpop.f32.mrf.mxu0
      %3249 = vmatprep.mubr.bf16.mxu0 0
      %3250 = vmatmul.mubr.bf16.gmra.mxu0 %v454
      %v3251 = vpop.f32.mrf.mxu0
      %v3252 = vadd.f32 %v3067, %v3251
      %v3253 = vpop.f32.mrf.mxu0
      %v3254 = vpop.f32.mrf.mxu0
      %v3255 = vadd.f32 %v3066, %v3254
      %v3256 = vpop.f32.mrf.mxu0
      %3257 = vmatprep.mubr.bf16.mxu0 0
      %3258 = vmatmul.mubr.bf16.gmra.mxu0 %v457
      %v3259 = vpop.f32.mrf.mxu0
      %v3260 = vadd.f32 %v3065, %v3259
      %v3261 = vpop.f32.mrf.mxu0
      %v3262 = vpop.f32.mrf.mxu0
      %v3263 = vadd.f32 %v3064, %v3262
      %v3264 = vpop.f32.mrf.mxu0
      %3265 = vmatprep.mubr.bf16.mxu0 0
      %3266 = vmatmul.mubr.bf16.gmra.mxu0 %v460
      %v3267 = vpop.f32.mrf.mxu0
      %v3268 = vadd.f32 %v3063, %v3267
      %v3269 = vpop.f32.mrf.mxu0
      %v3270 = vpop.f32.mrf.mxu0
      %v3271 = vadd.f32 %v3062, %v3270
      %v3272 = vpop.f32.mrf.mxu0
      %3273 = vmatprep.mubr.bf16.mxu0 0
      %3274 = vmatmul.mubr.bf16.gmra.mxu0 %v463
      %v3275 = vpop.f32.mrf.mxu0
      %v3276 = vadd.f32 %v3061, %v3275
      %v3277 = vpop.f32.mrf.mxu0
      %v3278 = vpop.f32.mrf.mxu0
      %v3279 = vadd.f32 %v3060, %v3278
      %v3280 = vpop.f32.mrf.mxu0
      %3281 = vmatprep.mubr.bf16.mxu0 0
      %3282 = vmatmul.mubr.bf16.gmra.mxu0 %v466
      %v3283 = vpop.f32.mrf.mxu0
      %v3284 = vadd.f32 %v3059, %v3283
      %v3285 = vpop.f32.mrf.mxu0
      %v3286 = vpop.f32.mrf.mxu0
      %v3287 = vadd.f32 %v3058, %v3286
      %v3288 = vpop.f32.mrf.mxu0
      %3289 = vmatprep.mubr.bf16.mxu0 0
      %3290 = vmatmul.mubr.bf16.gmra.mxu0 %v469
      %v3291 = vpop.f32.mrf.mxu0
      %v3292 = vadd.f32 %v3057, %v3291
      %v3293 = vpop.f32.mrf.mxu0
      %v3294 = vpop.f32.mrf.mxu0
      %v3295 = vadd.f32 %v3056, %v3294
      %v3296 = vpop.f32.mrf.mxu0
      %3297 = vmatprep.mubr.bf16.mxu0 0
      %3298 = vmatmul.mubr.bf16.gmra.mxu0 %v472
      %v3299 = vpop.f32.mrf.mxu0
      %v3300 = vadd.f32 %v3055, %v3299
      %v3301 = vpop.f32.mrf.mxu0
      %v3302 = vpop.f32.mrf.mxu0
      %v3303 = vadd.f32 %v3054, %v3302
      %v3304 = vpop.f32.mrf.mxu0
      %3305 = vmatprep.mubr.bf16.mxu0 0
      %3306 = vmatmul.mubr.bf16.gmra.mxu0 %v475
      %v3307 = vpop.f32.mrf.mxu0
      %v3308 = vadd.f32 %v3053, %v3307
      %v3309 = vpop.f32.mrf.mxu0
      %v3310 = vpop.f32.mrf.mxu0
      %v3311 = vadd.f32 %v3052, %v3310
      %v3312 = vpop.f32.mrf.mxu0
      %3313 = vmatprep.mubr.bf16.mxu0 0
      %3314 = vmatmul.mubr.bf16.gmra.mxu0 %v2766
      %v3315 = vpop.f32.mrf.mxu0
      %v3316 = vadd.f32 %v3051, %v3315
      %v3317 = vpop.f32.mrf.mxu0
      %v3318 = vpop.f32.mrf.mxu0
      %v3319 = vadd.f32 %v3050, %v3318
      %v3320 = vpop.f32.mrf.mxu0
      %3321 = vmatprep.mubr.bf16.mxu0 0
      %3322 = vmatmul.mubr.bf16.gmra.mxu0 %v2769
      %v3323 = vpop.f32.mrf.mxu0
      %v3324 = vadd.f32 %v3049, %v3323
      %v3325 = vpop.f32.mrf.mxu0
      %v3326 = vpop.f32.mrf.mxu0
      %v3327 = vadd.f32 %v3048, %v3326
      %v3328 = vpop.f32.mrf.mxu0
      %3329 = vmatprep.mubr.bf16.mxu0 0
      %3330 = vmatmul.mubr.bf16.gmra.mxu0 %v2772
      %v3331 = vpop.f32.mrf.mxu0
      %v3332 = vadd.f32 %v3047, %v3331
      %v3333 = vpop.f32.mrf.mxu0
      %v3334 = vpop.f32.mrf.mxu0
      %v3335 = vadd.f32 %v3094, %v3334
      %v3336 = vpop.f32.mrf.mxu0
      %3337 = vdwg.mxu0
      %s3338 = scalar_lea.vmem %s1, 192
      %v3339 = vld [vmem:[%s3338] sm:$0xf]
      %v3340 = vld [vmem:[%s3338 + $0x4] sm:$0xf]
      %v3341 = vld [vmem:[%s3338 + $0x8] sm:$0xf]
      %v3342 = vld [vmem:[%s3338 + $0xc] sm:$0xf]
      %v3343 = vld [vmem:[%s3338 + $0x10] sm:$0xf]
      %v3344 = vld [vmem:[%s3338 + $0x14] sm:$0xf]
      %v3351 = vunpack.c.l.b16 %v3339
      %v3352 = vunpack.c.l.b16 %v3340
      %v3353 = vunpack.c.l.b16 %v3341
      %v3354 = vunpack.c.l.b16 %v3342
      %v3355 = vunpack.c.l.b16 %v3343
      %v3356 = vunpack.c.l.b16 %v3344
      %v3357 = vpack.c.b16 %v3352, %v3351
      %v3358 = vpack.c.b16 %v3354, %v3353
      %v3359 = vpack.c.b16 %v3356, %v3355
      %3363 = vmatprep.subr.bf16.mxu0 0
      %3364 = vmatpush1.bf16.msra.mxu0 0
      %3365 = vmatprep.subr.bf16.mxu0 0
      %3366 = vmatpush1.bf16.msra.mxu0 0
      %3367 = vmatprep.subr.bf16.mxu0 0
      %3368 = vmatpush1.bf16.msra.mxu0 0
      %3369 = vmatprep.subr.bf16.mxu0 0
      %3370 = vmatpush1.bf16.msra.mxu0 0
      %3371 = vmatprep.subr.bf16.mxu0 0
      %3372 = vmatpush1.bf16.msra.mxu0 0
      %3373 = vmatprep.subr.bf16.mxu0 0
      %3374 = vmatpush1.bf16.msra.mxu0 %v3359
      %3375 = vmatprep.subr.bf16.mxu0 0
      %3376 = vmatpush1.bf16.msra.mxu0 %v3358
      %3377 = vmatprep.subr.bf16.mxu0 0
      %3378 = vmatpush1.bf16.msra.mxu0 %v3357
      %3379 = vmatprep.subr.bf16.mxu0 0
      %3380 = vmatpush2.bf16.msra.mxu0 0
      %3381 = vmatprep.subr.bf16.mxu0 0
      %3382 = vmatpush2.bf16.msra.mxu0 0
      %3383 = vmatprep.subr.bf16.mxu0 0
      %3384 = vmatpush2.bf16.msra.mxu0 0
      %3385 = vmatprep.subr.bf16.mxu0 0
      %3386 = vmatpush2.bf16.msra.mxu0 0
      %3387 = vmatprep.subr.bf16.mxu0 0
      %3388 = vmatpush2.bf16.msra.mxu0 0
      %3389 = vmatprep.subr.bf16.mxu0 0
      %3390 = vmatpush2.bf16.msra.mxu0 0
      %3391 = vmatprep.subr.bf16.mxu0 0
      %3392 = vmatpush2.bf16.msra.mxu0 0
      %3393 = vmatprep.subr.bf16.mxu0 0
      %3394 = vmatpush2.bf16.msra.mxu0 0
      %3395 = vmatprep.mubr.bf16.mxu0 0
      %3396 = vmatmul.mubr.bf16.gmra.mxu0 %v415
      %v3397 = vpop.f32.mrf.mxu0
      %v3398 = vadd.f32 0.0, %v3397
      %v3399 = vpop.f32.mrf.mxu0
      %v3400 = vpop.f32.mrf.mxu0
      %v3401 = vadd.f32 0.0, %v3400
      %v3402 = vpop.f32.mrf.mxu0
      %3403 = vmatprep.mubr.bf16.mxu0 0
      %3404 = vmatmul.mubr.bf16.gmra.mxu0 %v418
      %v3405 = vpop.f32.mrf.mxu0
      %v3406 = vadd.f32 0.0, %v3405
      %v3407 = vpop.f32.mrf.mxu0
      %v3408 = vpop.f32.mrf.mxu0
      %v3409 = vadd.f32 0.0, %v3408
      %v3410 = vpop.f32.mrf.mxu0
      %3411 = vmatprep.mubr.bf16.mxu0 0
      %3412 = vmatmul.mubr.bf16.gmra.mxu0 %v421
      %v3413 = vpop.f32.mrf.mxu0
      %v3414 = vadd.f32 0.0, %v3413
      %v3415 = vpop.f32.mrf.mxu0
      %v3416 = vpop.f32.mrf.mxu0
      %v3417 = vadd.f32 0.0, %v3416
      %v3418 = vpop.f32.mrf.mxu0
      %3419 = vmatprep.mubr.bf16.mxu0 0
      %3420 = vmatmul.mubr.bf16.gmra.mxu0 %v424
      %v3421 = vpop.f32.mrf.mxu0
      %v3422 = vadd.f32 0.0, %v3421
      %v3423 = vpop.f32.mrf.mxu0
      %v3424 = vpop.f32.mrf.mxu0
      %v3425 = vadd.f32 0.0, %v3424
      %v3426 = vpop.f32.mrf.mxu0
      %3427 = vmatprep.mubr.bf16.mxu0 0
      %3428 = vmatmul.mubr.bf16.gmra.mxu0 %v427
      %v3429 = vpop.f32.mrf.mxu0
      %v3430 = vadd.f32 0.0, %v3429
      %v3431 = vpop.f32.mrf.mxu0
      %v3432 = vpop.f32.mrf.mxu0
      %v3433 = vadd.f32 0.0, %v3432
      %v3434 = vpop.f32.mrf.mxu0
      %3435 = vmatprep.mubr.bf16.mxu0 0
      %3436 = vmatmul.mubr.bf16.gmra.mxu0 %v430
      %v3437 = vpop.f32.mrf.mxu0
      %v3438 = vadd.f32 0.0, %v3437
      %v3439 = vpop.f32.mrf.mxu0
      %v3440 = vpop.f32.mrf.mxu0
      %v3441 = vadd.f32 0.0, %v3440
      %v3442 = vpop.f32.mrf.mxu0
      %3443 = vmatprep.mubr.bf16.mxu0 0
      %3444 = vmatmul.mubr.bf16.gmra.mxu0 %v433
      %v3445 = vpop.f32.mrf.mxu0
      %v3446 = vadd.f32 0.0, %v3445
      %v3447 = vpop.f32.mrf.mxu0
      %v3448 = vpop.f32.mrf.mxu0
      %v3449 = vadd.f32 0.0, %v3448
      %v3450 = vpop.f32.mrf.mxu0
      %3451 = vmatprep.mubr.bf16.mxu0 0
      %3452 = vmatmul.mubr.bf16.gmra.mxu0 %v436
      %v3453 = vpop.f32.mrf.mxu0
      %v3454 = vadd.f32 0.0, %v3453
      %v3455 = vpop.f32.mrf.mxu0
      %v3456 = vpop.f32.mrf.mxu0
      %v3457 = vadd.f32 0.0, %v3456
      %v3458 = vpop.f32.mrf.mxu0
      %3459 = vmatprep.mubr.bf16.mxu0 0
      %3460 = vmatmul.mubr.bf16.gmra.mxu0 %v439
      %v3461 = vpop.f32.mrf.mxu0
      %v3462 = vadd.f32 0.0, %v3461
      %v3463 = vpop.f32.mrf.mxu0
      %v3464 = vpop.f32.mrf.mxu0
      %v3465 = vadd.f32 0.0, %v3464
      %v3466 = vpop.f32.mrf.mxu0
      %3467 = vmatprep.mubr.bf16.mxu0 0
      %3468 = vmatmul.mubr.bf16.gmra.mxu0 %v442
      %v3469 = vpop.f32.mrf.mxu0
      %v3470 = vadd.f32 0.0, %v3469
      %v3471 = vpop.f32.mrf.mxu0
      %v3472 = vpop.f32.mrf.mxu0
      %v3473 = vadd.f32 0.0, %v3472
      %v3474 = vpop.f32.mrf.mxu0
      %3475 = vmatprep.mubr.bf16.mxu0 0
      %3476 = vmatmul.mubr.bf16.gmra.mxu0 %v445
      %v3477 = vpop.f32.mrf.mxu0
      %v3478 = vadd.f32 0.0, %v3477
      %v3479 = vpop.f32.mrf.mxu0
      %v3480 = vpop.f32.mrf.mxu0
      %v3481 = vadd.f32 0.0, %v3480
      %v3482 = vpop.f32.mrf.mxu0
      %3483 = vmatprep.mubr.bf16.mxu0 0
      %3484 = vmatmul.mubr.bf16.gmra.mxu0 %v448
      %v3485 = vpop.f32.mrf.mxu0
      %v3486 = vadd.f32 0.0, %v3485
      %v3487 = vpop.f32.mrf.mxu0
      %v3488 = vpop.f32.mrf.mxu0
      %v3489 = vadd.f32 0.0, %v3488
      %v3490 = vpop.f32.mrf.mxu0
      %3491 = vmatprep.mubr.bf16.mxu0 0
      %3492 = vmatmul.mubr.bf16.gmra.mxu0 %v451
      %v3493 = vpop.f32.mrf.mxu0
      %v3494 = vadd.f32 0.0, %v3493
      %v3495 = vpop.f32.mrf.mxu0
      %v3496 = vpop.f32.mrf.mxu0
      %v3497 = vadd.f32 0.0, %v3496
      %v3498 = vpop.f32.mrf.mxu0
      %3499 = vmatprep.mubr.bf16.mxu0 0
      %3500 = vmatmul.mubr.bf16.gmra.mxu0 %v454
      %v3501 = vpop.f32.mrf.mxu0
      %v3502 = vadd.f32 0.0, %v3501
      %v3503 = vpop.f32.mrf.mxu0
      %v3504 = vpop.f32.mrf.mxu0
      %v3505 = vadd.f32 0.0, %v3504
      %v3506 = vpop.f32.mrf.mxu0
      %3507 = vmatprep.mubr.bf16.mxu0 0
      %3508 = vmatmul.mubr.bf16.gmra.mxu0 %v457
      %v3509 = vpop.f32.mrf.mxu0
      %v3510 = vadd.f32 0.0, %v3509
      %v3511 = vpop.f32.mrf.mxu0
      %v3512 = vpop.f32.mrf.mxu0
      %v3513 = vadd.f32 0.0, %v3512
      %v3514 = vpop.f32.mrf.mxu0
      %3515 = vmatprep.mubr.bf16.mxu0 0
      %3516 = vmatmul.mubr.bf16.gmra.mxu0 %v460
      %v3517 = vpop.f32.mrf.mxu0
      %v3518 = vadd.f32 0.0, %v3517
      %v3519 = vpop.f32.mrf.mxu0
      %v3520 = vpop.f32.mrf.mxu0
      %v3521 = vadd.f32 0.0, %v3520
      %v3522 = vpop.f32.mrf.mxu0
      %3523 = vmatprep.mubr.bf16.mxu0 0
      %3524 = vmatmul.mubr.bf16.gmra.mxu0 %v463
      %v3525 = vpop.f32.mrf.mxu0
      %v3526 = vadd.f32 0.0, %v3525
      %v3527 = vpop.f32.mrf.mxu0
      %v3528 = vpop.f32.mrf.mxu0
      %v3529 = vadd.f32 0.0, %v3528
      %v3530 = vpop.f32.mrf.mxu0
      %3531 = vmatprep.mubr.bf16.mxu0 0
      %3532 = vmatmul.mubr.bf16.gmra.mxu0 %v466
      %v3533 = vpop.f32.mrf.mxu0
      %v3534 = vadd.f32 0.0, %v3533
      %v3535 = vpop.f32.mrf.mxu0
      %v3536 = vpop.f32.mrf.mxu0
      %v3537 = vadd.f32 0.0, %v3536
      %v3538 = vpop.f32.mrf.mxu0
      %3539 = vmatprep.mubr.bf16.mxu0 0
      %3540 = vmatmul.mubr.bf16.gmra.mxu0 %v469
      %v3541 = vpop.f32.mrf.mxu0
      %v3542 = vadd.f32 0.0, %v3541
      %v3543 = vpop.f32.mrf.mxu0
      %v3544 = vpop.f32.mrf.mxu0
      %v3545 = vadd.f32 0.0, %v3544
      %v3546 = vpop.f32.mrf.mxu0
      %3547 = vmatprep.mubr.bf16.mxu0 0
      %3548 = vmatmul.mubr.bf16.gmra.mxu0 %v472
      %v3549 = vpop.f32.mrf.mxu0
      %v3550 = vadd.f32 0.0, %v3549
      %v3551 = vpop.f32.mrf.mxu0
      %v3552 = vpop.f32.mrf.mxu0
      %v3553 = vadd.f32 0.0, %v3552
      %v3554 = vpop.f32.mrf.mxu0
      %3555 = vmatprep.mubr.bf16.mxu0 0
      %3556 = vmatmul.mubr.bf16.gmra.mxu0 %v475
      %v3557 = vpop.f32.mrf.mxu0
      %v3558 = vadd.f32 0.0, %v3557
      %v3559 = vpop.f32.mrf.mxu0
      %v3560 = vpop.f32.mrf.mxu0
      %v3561 = vadd.f32 0.0, %v3560
      %v3562 = vpop.f32.mrf.mxu0
      %3563 = vmatprep.mubr.bf16.mxu0 0
      %3564 = vmatmul.mubr.bf16.gmra.mxu0 %v2766
      %v3565 = vpop.f32.mrf.mxu0
      %v3566 = vadd.f32 0.0, %v3565
      %v3567 = vpop.f32.mrf.mxu0
      %v3568 = vpop.f32.mrf.mxu0
      %v3569 = vadd.f32 0.0, %v3568
      %v3570 = vpop.f32.mrf.mxu0
      %3571 = vmatprep.mubr.bf16.mxu0 0
      %3572 = vmatmul.mubr.bf16.gmra.mxu0 %v2769
      %v3573 = vpop.f32.mrf.mxu0
      %v3574 = vadd.f32 0.0, %v3573
      %v3575 = vpop.f32.mrf.mxu0
      %v3576 = vpop.f32.mrf.mxu0
      %v3577 = vadd.f32 0.0, %v3576
      %v3578 = vpop.f32.mrf.mxu0
      %3579 = vmatprep.mubr.bf16.mxu0 0
      %3580 = vmatmul.mubr.bf16.gmra.mxu0 %v2772
      %v3581 = vpop.f32.mrf.mxu0
      %v3582 = vadd.f32 0.0, %v3581
      %v3583 = vpop.f32.mrf.mxu0
      %v3584 = vpop.f32.mrf.mxu0
      %v3585 = vadd.f32 0.0, %v3584
      %v3586 = vpop.f32.mrf.mxu0
      %3587 = vdwg.mxu0
      %v3588 = vrot.slane %v3398, 2
      %v3589 = vrot.slane %v3401, 2
      %v3590 = vrot.slane %v3406, 2
      %v3591 = vrot.slane %v3409, 2
      %v3592 = vrot.slane %v3414, 2
      %v3593 = vrot.slane %v3417, 2
      %v3594 = vrot.slane %v3422, 2
      %v3595 = vrot.slane %v3425, 2
      %v3596 = vrot.slane %v3430, 2
      %v3597 = vrot.slane %v3433, 2
      %v3598 = vrot.slane %v3438, 2
      %v3599 = vrot.slane %v3441, 2
      %v3600 = vrot.slane %v3446, 2
      %v3601 = vrot.slane %v3449, 2
      %v3602 = vrot.slane %v3454, 2
      %v3603 = vrot.slane %v3457, 2
      %v3604 = vrot.slane %v3462, 2
      %v3605 = vrot.slane %v3465, 2
      %v3606 = vrot.slane %v3470, 2
      %v3607 = vrot.slane %v3473, 2
      %v3608 = vrot.slane %v3478, 2
      %v3609 = vrot.slane %v3481, 2
      %v3610 = vrot.slane %v3486, 2
      %v3611 = vrot.slane %v3489, 2
      %v3612 = vrot.slane %v3494, 2
      %v3613 = vrot.slane %v3497, 2
      %v3614 = vrot.slane %v3502, 2
      %v3615 = vrot.slane %v3505, 2
      %v3616 = vrot.slane %v3510, 2
      %v3617 = vrot.slane %v3513, 2
      %v3618 = vrot.slane %v3518, 2
      %v3619 = vrot.slane %v3521, 2
      %v3620 = vrot.slane %v3526, 2
      %v3621 = vrot.slane %v3529, 2
      %v3622 = vrot.slane %v3534, 2
      %v3623 = vrot.slane %v3537, 2
      %v3624 = vrot.slane %v3542, 2
      %v3625 = vrot.slane %v3545, 2
      %v3626 = vrot.slane %v3550, 2
      %v3627 = vrot.slane %v3553, 2
      %v3628 = vrot.slane %v3558, 2
      %v3629 = vrot.slane %v3561, 2
      %v3630 = vrot.slane %v3566, 2
      %v3631 = vrot.slane %v3569, 2
      %v3632 = vrot.slane %v3574, 2
      %v3633 = vrot.slane %v3577, 2
      %v3634 = vrot.slane %v3582, 2
      %v3635 = vrot.slane %v3585, 2
      %v3636 = vsel %vm1342, %v3634, %v3635
      %v3637 = vsel %vm1342, %v3633, %v3634
      %v3638 = vsel %vm1342, %v3632, %v3633
      %v3639 = vsel %vm1342, %v3631, %v3632
      %v3640 = vsel %vm1342, %v3630, %v3631
      %v3641 = vsel %vm1342, %v3629, %v3630
      %v3642 = vsel %vm1342, %v3628, %v3629
      %v3643 = vsel %vm1342, %v3627, %v3628
      %v3644 = vsel %vm1342, %v3626, %v3627
      %v3645 = vsel %vm1342, %v3625, %v3626
      %v3646 = vsel %vm1342, %v3624, %v3625
      %v3647 = vsel %vm1342, %v3623, %v3624
      %v3648 = vsel %vm1342, %v3622, %v3623
      %v3649 = vsel %vm1342, %v3621, %v3622
      %v3650 = vsel %vm1342, %v3620, %v3621
      %v3651 = vsel %vm1342, %v3619, %v3620
      %v3652 = vsel %vm1342, %v3618, %v3619
      %v3653 = vsel %vm1342, %v3617, %v3618
      %v3654 = vsel %vm1342, %v3616, %v3617
      %v3655 = vsel %vm1342, %v3615, %v3616
      %v3656 = vsel %vm1342, %v3614, %v3615
      %v3657 = vsel %vm1342, %v3613, %v3614
      %v3658 = vsel %vm1342, %v3612, %v3613
      %v3659 = vsel %vm1342, %v3611, %v3612
      %v3660 = vsel %vm1342, %v3610, %v3611
      %v3661 = vsel %vm1342, %v3609, %v3610
      %v3662 = vsel %vm1342, %v3608, %v3609
      %v3663 = vsel %vm1342, %v3607, %v3608
      %v3664 = vsel %vm1342, %v3606, %v3607
      %v3665 = vsel %vm1342, %v3605, %v3606
      %v3666 = vsel %vm1342, %v3604, %v3605
      %v3667 = vsel %vm1342, %v3603, %v3604
      %v3668 = vsel %vm1342, %v3602, %v3603
      %v3669 = vsel %vm1342, %v3601, %v3602
      %v3670 = vsel %vm1342, %v3600, %v3601
      %v3671 = vsel %vm1342, %v3599, %v3600
      %v3672 = vsel %vm1342, %v3598, %v3599
      %v3673 = vsel %vm1342, %v3597, %v3598
      %v3674 = vsel %vm1342, %v3596, %v3597
      %v3675 = vsel %vm1342, %v3595, %v3596
      %v3676 = vsel %vm1342, %v3594, %v3595
      %v3677 = vsel %vm1342, %v3593, %v3594
      %v3678 = vsel %vm1342, %v3592, %v3593
      %v3679 = vsel %vm1342, %v3591, %v3592
      %v3680 = vsel %vm1342, %v3590, %v3591
      %v3681 = vsel %vm1342, %v3589, %v3590
      %v3682 = vsel %vm1342, %v3588, %v3589
      %v3683 = vsel %vm1342, %v3635, %v3588
      %v3684 = vadd.f32 %v3148, %v3682
      %v3685 = vadd.f32 %v3151, %v3681
      %v3686 = vadd.f32 %v3156, %v3680
      %v3687 = vadd.f32 %v3159, %v3679
      %v3688 = vadd.f32 %v3164, %v3678
      %v3689 = vadd.f32 %v3167, %v3677
      %v3690 = vadd.f32 %v3172, %v3676
      %v3691 = vadd.f32 %v3175, %v3675
      %v3692 = vadd.f32 %v3180, %v3674
      %v3693 = vadd.f32 %v3183, %v3673
      %v3694 = vadd.f32 %v3188, %v3672
      %v3695 = vadd.f32 %v3191, %v3671
      %v3696 = vadd.f32 %v3196, %v3670
      %v3697 = vadd.f32 %v3199, %v3669
      %v3698 = vadd.f32 %v3204, %v3668
      %v3699 = vadd.f32 %v3207, %v3667
      %v3700 = vadd.f32 %v3212, %v3666
      %v3701 = vadd.f32 %v3215, %v3665
      %v3702 = vadd.f32 %v3220, %v3664
      %v3703 = vadd.f32 %v3223, %v3663
      %v3704 = vadd.f32 %v3228, %v3662
      %v3705 = vadd.f32 %v3231, %v3661
      %v3706 = vadd.f32 %v3236, %v3660
      %v3707 = vadd.f32 %v3239, %v3659
      %v3708 = vadd.f32 %v3244, %v3658
      %v3709 = vadd.f32 %v3247, %v3657
      %v3710 = vadd.f32 %v3252, %v3656
      %v3711 = vadd.f32 %v3255, %v3655
      %v3712 = vadd.f32 %v3260, %v3654
      %v3713 = vadd.f32 %v3263, %v3653
      %v3714 = vadd.f32 %v3268, %v3652
      %v3715 = vadd.f32 %v3271, %v3651
      %v3716 = vadd.f32 %v3276, %v3650
      %v3717 = vadd.f32 %v3279, %v3649
      %v3718 = vadd.f32 %v3284, %v3648
      %v3719 = vadd.f32 %v3287, %v3647
      %v3720 = vadd.f32 %v3292, %v3646
      %v3721 = vadd.f32 %v3295, %v3645
      %v3722 = vadd.f32 %v3300, %v3644
      %v3723 = vadd.f32 %v3303, %v3643
      %v3724 = vadd.f32 %v3308, %v3642
      %v3725 = vadd.f32 %v3311, %v3641
      %v3726 = vadd.f32 %v3316, %v3640
      %v3727 = vadd.f32 %v3319, %v3639
      %v3728 = vadd.f32 %v3324, %v3638
      %v3729 = vadd.f32 %v3327, %v3637
      %v3730 = vadd.f32 %v3332, %v3636
      %v3731 = vadd.f32 %v3335, %v3683
      %v3732 = vld [vmem:[#allocation2] sm:$0xff]
      %v3733 = vld [vmem:[#allocation2 + $0x8] sm:$0xff]
      %v3734 = vld [vmem:[#allocation2 + $0x10] sm:$0xff]
      %v3735 = vld [vmem:[#allocation2 + $0x18] sm:$0xff]
      %v3736 = vld [vmem:[#allocation2 + $0x20] sm:$0xff]
      %v3737 = vld [vmem:[#allocation2 + $0x28] sm:$0xff]
      %v3738 = vld [vmem:[#allocation2 + $0x30] sm:$0xff]
      %v3739 = vld [vmem:[#allocation2 + $0x38] sm:$0xff]
      %v3740 = vld [vmem:[#allocation2 + $0x40] sm:$0xff]
      %v3741 = vld [vmem:[#allocation2 + $0x48] sm:$0xff]
      %v3742 = vld [vmem:[#allocation2 + $0x50] sm:$0xff]
      %v3743 = vld [vmem:[#allocation2 + $0x58] sm:$0xff]
      %v3744 = vld [vmem:[#allocation2 + $0x60] sm:$0xff]
      %v3745 = vld [vmem:[#allocation2 + $0x68] sm:$0xff]
      %v3746 = vld [vmem:[#allocation2 + $0x70] sm:$0xff]
      %v3747 = vld [vmem:[#allocation2 + $0x78] sm:$0xff]
      %v3748 = vld [vmem:[#allocation2 + $0x80] sm:$0xff]
      %v3749 = vld [vmem:[#allocation2 + $0x88] sm:$0xff]
      %v3750 = vld [vmem:[#allocation2 + $0x90] sm:$0xff]
      %v3751 = vld [vmem:[#allocation2 + $0x98] sm:$0xff]
      %v3752 = vld [vmem:[#allocation2 + $0xa0] sm:$0xff]
      %v3753 = vld [vmem:[#allocation2 + $0xa8] sm:$0xff]
      %v3754 = vld [vmem:[#allocation2 + $0xb0] sm:$0xff]
      %v3755 = vld [vmem:[#allocation2 + $0xb8] sm:$0xff]
      %v3756 = vld [vmem:[#allocation2 + $0xc0] sm:$0xff]
      %v3757 = vld [vmem:[#allocation2 + $0xc8] sm:$0xff]
      %v3758 = vld [vmem:[#allocation2 + $0xd0] sm:$0xff]
      %v3759 = vld [vmem:[#allocation2 + $0xd8] sm:$0xff]
      %v3760 = vld [vmem:[#allocation2 + $0xe0] sm:$0xff]
      %v3761 = vld [vmem:[#allocation2 + $0xe8] sm:$0xff]
      %v3762 = vld [vmem:[#allocation2 + $0xf0] sm:$0xff]
      %v3763 = vld [vmem:[#allocation2 + $0xf8] sm:$0xff]
      %v3764 = vld [vmem:[#allocation2 + $0x100] sm:$0xff]
      %v3765 = vld [vmem:[#allocation2 + $0x108] sm:$0xff]
      %v3766 = vld [vmem:[#allocation2 + $0x110] sm:$0xff]
      %v3767 = vld [vmem:[#allocation2 + $0x118] sm:$0xff]
      %v3768 = vld [vmem:[#allocation2 + $0x120] sm:$0xff]
      %v3769 = vld [vmem:[#allocation2 + $0x128] sm:$0xff]
      %v3770 = vld [vmem:[#allocation2 + $0x130] sm:$0xff]
      %v3771 = vld [vmem:[#allocation2 + $0x138] sm:$0xff]
      %v3772 = vld [vmem:[#allocation2 + $0x140] sm:$0xff]
      %v3773 = vld [vmem:[#allocation2 + $0x148] sm:$0xff]
      %v3774 = vld [vmem:[#allocation2 + $0x150] sm:$0xff]
      %v3775 = vld [vmem:[#allocation2 + $0x158] sm:$0xff]
      %v3776 = vld [vmem:[#allocation2 + $0x160] sm:$0xff]
      %v3777 = vld [vmem:[#allocation2 + $0x168] sm:$0xff]
      %v3778 = vld [vmem:[#allocation2 + $0x170] sm:$0xff]
      %v3779 = vld [vmem:[#allocation2 + $0x178] sm:$0xff]
      %v3780 = vadd.f32 %v3732, %v3684
      %v3781 = vadd.f32 %v3733, %v3685
      %v3782 = vadd.f32 %v3734, %v3686
      %v3783 = vadd.f32 %v3735, %v3687
      %v3784 = vadd.f32 %v3736, %v3688
      %v3785 = vadd.f32 %v3737, %v3689
      %v3786 = vadd.f32 %v3738, %v3690
      %v3787 = vadd.f32 %v3739, %v3691
      %v3788 = vadd.f32 %v3740, %v3692
      %v3789 = vadd.f32 %v3741, %v3693
      %v3790 = vadd.f32 %v3742, %v3694
      %v3791 = vadd.f32 %v3743, %v3695
      %v3792 = vadd.f32 %v3744, %v3696
      %v3793 = vadd.f32 %v3745, %v3697
      %v3794 = vadd.f32 %v3746, %v3698
      %v3795 = vadd.f32 %v3747, %v3699
      %v3796 = vadd.f32 %v3748, %v3700
      %v3797 = vadd.f32 %v3749, %v3701
      %v3798 = vadd.f32 %v3750, %v3702
      %v3799 = vadd.f32 %v3751, %v3703
      %v3800 = vadd.f32 %v3752, %v3704
      %v3801 = vadd.f32 %v3753, %v3705
      %v3802 = vadd.f32 %v3754, %v3706
      %v3803 = vadd.f32 %v3755, %v3707
      %v3804 = vadd.f32 %v3756, %v3708
      %v3805 = vadd.f32 %v3757, %v3709
      %v3806 = vadd.f32 %v3758, %v3710
      %v3807 = vadd.f32 %v3759, %v3711
      %v3808 = vadd.f32 %v3760, %v3712
      %v3809 = vadd.f32 %v3761, %v3713
      %v3810 = vadd.f32 %v3762, %v3714
      %v3811 = vadd.f32 %v3763, %v3715
      %v3812 = vadd.f32 %v3764, %v3716
      %v3813 = vadd.f32 %v3765, %v3717
      %v3814 = vadd.f32 %v3766, %v3718
      %v3815 = vadd.f32 %v3767, %v3719
      %v3816 = vadd.f32 %v3768, %v3720
      %v3817 = vadd.f32 %v3769, %v3721
      %v3818 = vadd.f32 %v3770, %v3722
      %v3819 = vadd.f32 %v3771, %v3723
      %v3820 = vadd.f32 %v3772, %v3724
      %v3821 = vadd.f32 %v3773, %v3725
      %v3822 = vadd.f32 %v3774, %v3726
      %v3823 = vadd.f32 %v3775, %v3727
      %v3824 = vadd.f32 %v3776, %v3728
      %v3825 = vadd.f32 %v3777, %v3729
      %v3826 = vadd.f32 %v3778, %v3730
      %v3827 = vadd.f32 %v3779, %v3731
      %3828 = vst.msk [vmem:[#allocation2] sm:$0xff] %vm1439, %v3780
      %3829 = vst.msk [vmem:[#allocation2 + $0x8] sm:$0xff] %vm1439, %v3781
      %3830 = vst.msk [vmem:[#allocation2 + $0x10] sm:$0xff] %vm1439, %v3782
      %3831 = vst.msk [vmem:[#allocation2 + $0x18] sm:$0xff] %vm1439, %v3783
      %3832 = vst.msk [vmem:[#allocation2 + $0x20] sm:$0xff] %vm1439, %v3784
      %3833 = vst.msk [vmem:[#allocation2 + $0x28] sm:$0xff] %vm1439, %v3785
      %3834 = vst.msk [vmem:[#allocation2 + $0x30] sm:$0xff] %vm1439, %v3786
      %3835 = vst.msk [vmem:[#allocation2 + $0x38] sm:$0xff] %vm1439, %v3787
      %3836 = vst.msk [vmem:[#allocation2 + $0x40] sm:$0xff] %vm1439, %v3788
      %3837 = vst.msk [vmem:[#allocation2 + $0x48] sm:$0xff] %vm1439, %v3789
      %3838 = vst.msk [vmem:[#allocation2 + $0x50] sm:$0xff] %vm1439, %v3790
      %3839 = vst.msk [vmem:[#allocation2 + $0x58] sm:$0xff] %vm1439, %v3791
      %3840 = vst.msk [vmem:[#allocation2 + $0x60] sm:$0xff] %vm1439, %v3792
      %3841 = vst.msk [vmem:[#allocation2 + $0x68] sm:$0xff] %vm1439, %v3793
      %3842 = vst.msk [vmem:[#allocation2 + $0x70] sm:$0xff] %vm1439, %v3794
      %3843 = vst.msk [vmem:[#allocation2 + $0x78] sm:$0xff] %vm1439, %v3795
      %3844 = vst.msk [vmem:[#allocation2 + $0x80] sm:$0xff] %vm1439, %v3796
      %3845 = vst.msk [vmem:[#allocation2 + $0x88] sm:$0xff] %vm1439, %v3797
      %3846 = vst.msk [vmem:[#allocation2 + $0x90] sm:$0xff] %vm1439, %v3798
      %3847 = vst.msk [vmem:[#allocation2 + $0x98] sm:$0xff] %vm1439, %v3799
      %3848 = vst.msk [vmem:[#allocation2 + $0xa0] sm:$0xff] %vm1439, %v3800
      %3849 = vst.msk [vmem:[#allocation2 + $0xa8] sm:$0xff] %vm1439, %v3801
      %3850 = vst.msk [vmem:[#allocation2 + $0xb0] sm:$0xff] %vm1439, %v3802
      %3851 = vst.msk [vmem:[#allocation2 + $0xb8] sm:$0xff] %vm1439, %v3803
      %3852 = vst.msk [vmem:[#allocation2 + $0xc0] sm:$0xff] %vm1439, %v3804
      %3853 = vst.msk [vmem:[#allocation2 + $0xc8] sm:$0xff] %vm1439, %v3805
      %3854 = vst.msk [vmem:[#allocation2 + $0xd0] sm:$0xff] %vm1439, %v3806
      %3855 = vst.msk [vmem:[#allocation2 + $0xd8] sm:$0xff] %vm1439, %v3807
      %3856 = vst.msk [vmem:[#allocation2 + $0xe0] sm:$0xff] %vm1439, %v3808
      %3857 = vst.msk [vmem:[#allocation2 + $0xe8] sm:$0xff] %vm1439, %v3809
      %3858 = vst.msk [vmem:[#allocation2 + $0xf0] sm:$0xff] %vm1439, %v3810
      %3859 = vst.msk [vmem:[#allocation2 + $0xf8] sm:$0xff] %vm1439, %v3811
      %3860 = vst.msk [vmem:[#allocation2 + $0x100] sm:$0xff] %vm1439, %v3812
      %3861 = vst.msk [vmem:[#allocation2 + $0x108] sm:$0xff] %vm1439, %v3813
      %3862 = vst.msk [vmem:[#allocation2 + $0x110] sm:$0xff] %vm1439, %v3814
      %3863 = vst.msk [vmem:[#allocation2 + $0x118] sm:$0xff] %vm1439, %v3815
      %3864 = vst.msk [vmem:[#allocation2 + $0x120] sm:$0xff] %vm1439, %v3816
      %3865 = vst.msk [vmem:[#allocation2 + $0x128] sm:$0xff] %vm1439, %v3817
      %3866 = vst.msk [vmem:[#allocation2 + $0x130] sm:$0xff] %vm1439, %v3818
      %3867 = vst.msk [vmem:[#allocation2 + $0x138] sm:$0xff] %vm1439, %v3819
      %3868 = vst.msk [vmem:[#allocation2 + $0x140] sm:$0xff] %vm1439, %v3820
      %3869 = vst.msk [vmem:[#allocation2 + $0x148] sm:$0xff] %vm1439, %v3821
      %3870 = vst.msk [vmem:[#allocation2 + $0x150] sm:$0xff] %vm1439, %v3822
      %3871 = vst.msk [vmem:[#allocation2 + $0x158] sm:$0xff] %vm1439, %v3823
      %3872 = vst.msk [vmem:[#allocation2 + $0x160] sm:$0xff] %vm1439, %v3824
      %3873 = vst.msk [vmem:[#allocation2 + $0x168] sm:$0xff] %vm1439, %v3825
      %3874 = vst.msk [vmem:[#allocation2 + $0x170] sm:$0xff] %vm1439, %v3826
      %3875 = vst.msk [vmem:[#allocation2 + $0x178] sm:$0xff] %vm1439, %v3827
      %v3876 = vld [vmem:[#allocation2] sm:$0xff]
      %v3877 = vld [vmem:[#allocation2 + $0x8] sm:$0xff]
      %v3878 = vld [vmem:[#allocation2 + $0x18] sm:$0xff]
      %v3879 = vld [vmem:[#allocation2 + $0x20] sm:$0xff]
      %v3880 = vld [vmem:[#allocation2 + $0x30] sm:$0xff]
      %v3881 = vld [vmem:[#allocation2 + $0x38] sm:$0xff]
      %v3882 = vld [vmem:[#allocation2 + $0x48] sm:$0xff]
      %v3883 = vld [vmem:[#allocation2 + $0x50] sm:$0xff]
      %v3884 = vld [vmem:[#allocation2 + $0x60] sm:$0xff]
      %v3885 = vld [vmem:[#allocation2 + $0x68] sm:$0xff]
      %v3886 = vld [vmem:[#allocation2 + $0x78] sm:$0xff]
      %v3887 = vld [vmem:[#allocation2 + $0x80] sm:$0xff]
      %v3888 = vld [vmem:[#allocation2 + $0x90] sm:$0xff]
      %v3889 = vld [vmem:[#allocation2 + $0x98] sm:$0xff]
      %v3890 = vld [vmem:[#allocation2 + $0xa8] sm:$0xff]
      %v3891 = vld [vmem:[#allocation2 + $0xb0] sm:$0xff]
      %v3892 = vld [vmem:[#allocation2 + $0xc0] sm:$0xff]
      %v3893 = vld [vmem:[#allocation2 + $0xc8] sm:$0xff]
      %v3894 = vld [vmem:[#allocation2 + $0xd8] sm:$0xff]
      %v3895 = vld [vmem:[#allocation2 + $0xe0] sm:$0xff]
      %v3896 = vld [vmem:[#allocation2 + $0xf0] sm:$0xff]
      %v3897 = vld [vmem:[#allocation2 + $0xf8] sm:$0xff]
      %v3898 = vld [vmem:[#allocation2 + $0x108] sm:$0xff]
      %v3899 = vld [vmem:[#allocation2 + $0x110] sm:$0xff]
      %v3900 = vld [vmem:[#allocation2 + $0x120] sm:$0xff]
      %v3901 = vld [vmem:[#allocation2 + $0x128] sm:$0xff]
      %v3902 = vld [vmem:[#allocation2 + $0x138] sm:$0xff]
      %v3903 = vld [vmem:[#allocation2 + $0x140] sm:$0xff]
      %v3904 = vld [vmem:[#allocation2 + $0x150] sm:$0xff]
      %v3905 = vld [vmem:[#allocation2 + $0x158] sm:$0xff]
      %v3906 = vld [vmem:[#allocation2 + $0x168] sm:$0xff]
      %v3907 = vld [vmem:[#allocation2 + $0x170] sm:$0xff]
      %v3908 = vld [vmem:[%s2] sm:$0x1]
      %v3910 = vlaneseq
      %v3911 = vshrl.u32 %v3910, 7
      %v3912 = vsub.s32 0, %v3911
      %v3913 = vrot.slane %v3908, %v3912
      %v3915 = vmul.f32 %v3876, %v3913
      %v3916 = vmul.f32 %v3877, %v3913
      %v3917 = vmul.f32 %v3878, %v3913
      %v3918 = vmul.f32 %v3879, %v3913
      %v3919 = vmul.f32 %v3880, %v3913
      %v3920 = vmul.f32 %v3881, %v3913
      %v3921 = vmul.f32 %v3882, %v3913
      %v3922 = vmul.f32 %v3883, %v3913
      %v3923 = vmul.f32 %v3884, %v3913
      %v3924 = vmul.f32 %v3885, %v3913
      %v3925 = vmul.f32 %v3886, %v3913
      %v3926 = vmul.f32 %v3887, %v3913
      %v3927 = vmul.f32 %v3888, %v3913
      %v3928 = vmul.f32 %v3889, %v3913
      %v3929 = vmul.f32 %v3890, %v3913
      %v3930 = vmul.f32 %v3891, %v3913
      %v3931 = vmul.f32 %v3892, %v3913
      %v3932 = vmul.f32 %v3893, %v3913
      %v3933 = vmul.f32 %v3894, %v3913
      %v3934 = vmul.f32 %v3895, %v3913
      %v3935 = vmul.f32 %v3896, %v3913
      %v3936 = vmul.f32 %v3897, %v3913
      %v3937 = vmul.f32 %v3898, %v3913
      %v3938 = vmul.f32 %v3899, %v3913
      %v3939 = vmul.f32 %v3900, %v3913
      %v3940 = vmul.f32 %v3901, %v3913
      %v3941 = vmul.f32 %v3902, %v3913
      %v3942 = vmul.f32 %v3903, %v3913
      %v3943 = vmul.f32 %v3904, %v3913
      %v3944 = vmul.f32 %v3905, %v3913
      %v3945 = vmul.f32 %v3906, %v3913
      %v3946 = vmul.f32 %v3907, %v3913
      %v3947 = vld [vmem:[%s3] sm:$0x1]
      %v3949 = vlaneseq
      %v3950 = vshrl.u32 %v3949, 7
      %v3951 = vsub.s32 0, %v3950
      %v3952 = vrot.slane %v3947, %v3951
      %v3954 = vadd.f32 %v3915, %v3952
      %v3955 = vadd.f32 %v3916, %v3952
      %v3956 = vadd.f32 %v3917, %v3952
      %v3957 = vadd.f32 %v3918, %v3952
      %v3958 = vadd.f32 %v3919, %v3952
      %v3959 = vadd.f32 %v3920, %v3952
      %v3960 = vadd.f32 %v3921, %v3952
      %v3961 = vadd.f32 %v3922, %v3952
      %v3962 = vadd.f32 %v3923, %v3952
      %v3963 = vadd.f32 %v3924, %v3952
      %v3964 = vadd.f32 %v3925, %v3952
      %v3965 = vadd.f32 %v3926, %v3952
      %v3966 = vadd.f32 %v3927, %v3952
      %v3967 = vadd.f32 %v3928, %v3952
      %v3968 = vadd.f32 %v3929, %v3952
      %v3969 = vadd.f32 %v3930, %v3952
      %v3970 = vadd.f32 %v3931, %v3952
      %v3971 = vadd.f32 %v3932, %v3952
      %v3972 = vadd.f32 %v3933, %v3952
      %v3973 = vadd.f32 %v3934, %v3952
      %v3974 = vadd.f32 %v3935, %v3952
      %v3975 = vadd.f32 %v3936, %v3952
      %v3976 = vadd.f32 %v3937, %v3952
      %v3977 = vadd.f32 %v3938, %v3952
      %v3978 = vadd.f32 %v3939, %v3952
      %v3979 = vadd.f32 %v3940, %v3952
      %v3980 = vadd.f32 %v3941, %v3952
      %v3981 = vadd.f32 %v3942, %v3952
      %v3982 = vadd.f32 %v3943, %v3952
      %v3983 = vadd.f32 %v3944, %v3952
      %v3984 = vadd.f32 %v3945, %v3952
      %v3985 = vadd.f32 %v3946, %v3952
      %v3986 = vmax.f32 %v3954, 0.0
      %v3987 = vmax.f32 %v3955, 0.0
      %v3988 = vmax.f32 %v3956, 0.0
      %v3989 = vmax.f32 %v3957, 0.0
      %v3990 = vmax.f32 %v3958, 0.0
      %v3991 = vmax.f32 %v3959, 0.0
      %v3992 = vmax.f32 %v3960, 0.0
      %v3993 = vmax.f32 %v3961, 0.0
      %v3994 = vmax.f32 %v3962, 0.0
      %v3995 = vmax.f32 %v3963, 0.0
      %v3996 = vmax.f32 %v3964, 0.0
      %v3997 = vmax.f32 %v3965, 0.0
      %v3998 = vmax.f32 %v3966, 0.0
      %v3999 = vmax.f32 %v3967, 0.0
      %v4000 = vmax.f32 %v3968, 0.0
      %v4001 = vmax.f32 %v3969, 0.0
      %v4002 = vmax.f32 %v3970, 0.0
      %v4003 = vmax.f32 %v3971, 0.0
      %v4004 = vmax.f32 %v3972, 0.0
      %v4005 = vmax.f32 %v3973, 0.0
      %v4006 = vmax.f32 %v3974, 0.0
      %v4007 = vmax.f32 %v3975, 0.0
      %v4008 = vmax.f32 %v3976, 0.0
      %v4009 = vmax.f32 %v3977, 0.0
      %v4010 = vmax.f32 %v3978, 0.0
      %v4011 = vmax.f32 %v3979, 0.0
      %v4012 = vmax.f32 %v3980, 0.0
      %v4013 = vmax.f32 %v3981, 0.0
      %v4014 = vmax.f32 %v3982, 0.0
      %v4015 = vmax.f32 %v3983, 0.0
      %v4016 = vmax.f32 %v3984, 0.0
      %v4017 = vmax.f32 %v3985, 0.0
      %v4018 = vpack.c.bf16 %v3987, %v3986
      %v4019 = vpack.c.bf16 %v3989, %v3988
      %v4020 = vpack.c.bf16 %v3991, %v3990
      %v4021 = vpack.c.bf16 %v3993, %v3992
      %v4022 = vpack.c.bf16 %v3995, %v3994
      %v4023 = vpack.c.bf16 %v3997, %v3996
      %v4024 = vpack.c.bf16 %v3999, %v3998
      %v4025 = vpack.c.bf16 %v4001, %v4000
      %v4026 = vpack.c.bf16 %v4003, %v4002
      %v4027 = vpack.c.bf16 %v4005, %v4004
      %v4028 = vpack.c.bf16 %v4007, %v4006
      %v4029 = vpack.c.bf16 %v4009, %v4008
      %v4030 = vpack.c.bf16 %v4011, %v4010
      %v4031 = vpack.c.bf16 %v4013, %v4012
      %v4032 = vpack.c.bf16 %v4015, %v4014
      %v4033 = vpack.c.bf16 %v4017, %v4016
      %v4050 = vunpack.c.l.b16 %v4018
      %v4051 = vunpack.c.h.b16 %v4018
      %v4052 = vunpack.c.l.b16 %v4019
      %v4053 = vunpack.c.h.b16 %v4019
      %v4054 = vunpack.c.l.b16 %v4020
      %v4055 = vunpack.c.h.b16 %v4020
      %v4056 = vunpack.c.l.b16 %v4021
      %v4057 = vunpack.c.h.b16 %v4021
      %v4058 = vunpack.c.l.b16 %v4022
      %v4059 = vunpack.c.h.b16 %v4022
      %v4060 = vunpack.c.l.b16 %v4023
      %v4061 = vunpack.c.h.b16 %v4023
      %v4062 = vunpack.c.l.b16 %v4024
      %v4063 = vunpack.c.h.b16 %v4024
      %v4064 = vunpack.c.l.b16 %v4025
      %v4065 = vunpack.c.h.b16 %v4025
      %v4066 = vunpack.c.l.b16 %v4026
      %v4067 = vunpack.c.h.b16 %v4026
      %v4068 = vunpack.c.l.b16 %v4027
      %v4069 = vunpack.c.h.b16 %v4027
      %v4070 = vunpack.c.l.b16 %v4028
      %v4071 = vunpack.c.h.b16 %v4028
      %v4072 = vunpack.c.l.b16 %v4029
      %v4073 = vunpack.c.h.b16 %v4029
      %v4074 = vunpack.c.l.b16 %v4030
      %v4075 = vunpack.c.h.b16 %v4030
      %v4076 = vunpack.c.l.b16 %v4031
      %v4077 = vunpack.c.h.b16 %v4031
      %v4078 = vunpack.c.l.b16 %v4032
      %v4079 = vunpack.c.h.b16 %v4032
      %v4080 = vunpack.c.l.b16 %v4033
      %v4081 = vunpack.c.h.b16 %v4033
      %v4082 = vpack.c.b16 %v4050, %v4050
      %v4083 = vpack.c.b16 %v4051, %v4051
      %v4084 = vpack.c.b16 %v4052, %v4052
      %v4085 = vpack.c.b16 %v4053, %v4053
      %v4086 = vpack.c.b16 %v4054, %v4054
      %v4087 = vpack.c.b16 %v4055, %v4055
      %v4088 = vpack.c.b16 %v4056, %v4056
      %v4089 = vpack.c.b16 %v4057, %v4057
      %v4090 = vpack.c.b16 %v4058, %v4058
      %v4091 = vpack.c.b16 %v4059, %v4059
      %v4092 = vpack.c.b16 %v4060, %v4060
      %v4093 = vpack.c.b16 %v4061, %v4061
      %v4094 = vpack.c.b16 %v4062, %v4062
      %v4095 = vpack.c.b16 %v4063, %v4063
      %v4096 = vpack.c.b16 %v4064, %v4064
      %v4097 = vpack.c.b16 %v4065, %v4065
      %v4098 = vpack.c.b16 %v4066, %v4066
      %v4099 = vpack.c.b16 %v4067, %v4067
      %v4100 = vpack.c.b16 %v4068, %v4068
      %v4101 = vpack.c.b16 %v4069, %v4069
      %v4102 = vpack.c.b16 %v4070, %v4070
      %v4103 = vpack.c.b16 %v4071, %v4071
      %v4104 = vpack.c.b16 %v4072, %v4072
      %v4105 = vpack.c.b16 %v4073, %v4073
      %v4106 = vpack.c.b16 %v4074, %v4074
      %v4107 = vpack.c.b16 %v4075, %v4075
      %v4108 = vpack.c.b16 %v4076, %v4076
      %v4109 = vpack.c.b16 %v4077, %v4077
      %v4110 = vpack.c.b16 %v4078, %v4078
      %v4111 = vpack.c.b16 %v4079, %v4079
      %v4112 = vpack.c.b16 %v4080, %v4080
      %v4113 = vpack.c.b16 %v4081, %v4081
      %vm4146 = vcmask 257024
      %4147 = vst.msk [vmem:[%s197] sm:$0xf] %vm4146, %v4082
      %4148 = vst.msk [vmem:[%s197 + $0x4] sm:$0xf] %vm4146, %v4083
      %4149 = vst.msk [vmem:[%s197 + $0x8] sm:$0xf] %vm4146, %v4084
      %4150 = vst.msk [vmem:[%s197 + $0xc] sm:$0xf] %vm4146, %v4085
      %4151 = vst.msk [vmem:[%s197 + $0x10] sm:$0xf] %vm4146, %v4086
      %4152 = vst.msk [vmem:[%s197 + $0x14] sm:$0xf] %vm4146, %v4087
      %4153 = vst.msk [vmem:[%s197 + $0x18] sm:$0xf] %vm4146, %v4088
      %4154 = vst.msk [vmem:[%s197 + $0x1c] sm:$0xf] %vm4146, %v4089
      %4155 = vst.msk [vmem:[%s197 + $0x20] sm:$0xf] %vm4146, %v4090
      %4156 = vst.msk [vmem:[%s197 + $0x24] sm:$0xf] %vm4146, %v4091
      %4157 = vst.msk [vmem:[%s197 + $0x28] sm:$0xf] %vm4146, %v4092
      %4158 = vst.msk [vmem:[%s197 + $0x2c] sm:$0xf] %vm4146, %v4093
      %4159 = vst.msk [vmem:[%s197 + $0x30] sm:$0xf] %vm4146, %v4094
      %4160 = vst.msk [vmem:[%s197 + $0x34] sm:$0xf] %vm4146, %v4095
      %4161 = vst.msk [vmem:[%s197 + $0x38] sm:$0xf] %vm4146, %v4096
      %4162 = vst.msk [vmem:[%s197 + $0x3c] sm:$0xf] %vm4146, %v4097
      %4163 = vst.msk [vmem:[%s197 + $0x40] sm:$0xf] %vm4146, %v4098
      %4164 = vst.msk [vmem:[%s197 + $0x44] sm:$0xf] %vm4146, %v4099
      %4165 = vst.msk [vmem:[%s197 + $0x48] sm:$0xf] %vm4146, %v4100
      %4166 = vst.msk [vmem:[%s197 + $0x4c] sm:$0xf] %vm4146, %v4101
      %4167 = vst.msk [vmem:[%s197 + $0x50] sm:$0xf] %vm4146, %v4102
      %4168 = vst.msk [vmem:[%s197 + $0x54] sm:$0xf] %vm4146, %v4103
      %4169 = vst.msk [vmem:[%s197 + $0x58] sm:$0xf] %vm4146, %v4104
      %4170 = vst.msk [vmem:[%s197 + $0x5c] sm:$0xf] %vm4146, %v4105
      %4171 = vst.msk [vmem:[%s197 + $0x60] sm:$0xf] %vm4146, %v4106
      %4172 = vst.msk [vmem:[%s197 + $0x64] sm:$0xf] %vm4146, %v4107
      %4173 = vst.msk [vmem:[%s197 + $0x68] sm:$0xf] %vm4146, %v4108
      %4174 = vst.msk [vmem:[%s197 + $0x6c] sm:$0xf] %vm4146, %v4109
      %4175 = vst.msk [vmem:[%s197 + $0x70] sm:$0xf] %vm4146, %v4110
      %4176 = vst.msk [vmem:[%s197 + $0x74] sm:$0xf] %vm4146, %v4111
      %4177 = vst.msk [vmem:[%s197 + $0x78] sm:$0xf] %vm4146, %v4112
      %4178 = vst.msk [vmem:[%s197 + $0x7c] sm:$0xf] %vm4146, %v4113
      %p4179 = scmp.lt.s32.totalorder %s15, 1
      %s4180 = scalar_select %p4179, %s15, 1
      %s4181 = smul.addr %s4180, 32
      %s4182 = smul.addr %s4181, 4
      %s4183 = scalar_lea.vmem %s4, %s4182
      // Predicated region
      $region37: #{deeplab_forward.4} parent=35 // pred_check
        %p4184 = pneg %p122
      $region38: #{deeplab_forward.4} parent=35 // pred_check_branch
        %4186 = sbr.rel (%p4184) target = $region40
      $region39: #{deeplab_forward.4} parent=35 // pred_region
        _
      $region40: #{deeplab_forward.4} parent=35 // pred_fallthru
        _
    $region36: #{deeplab_forward.4} parent=5 // pred_fallthru
      _
    %p4187 = scmp.le.s32.totalorder 2, %s10
    // Predicated region
    $region41: #{deeplab_forward.4} parent=5 // pred_check
      %p4188 = pneg %p4187
    $region42: #{deeplab_forward.4} parent=5 // pred_check_branch
      %4190 = sbr.rel (%p4188) target = $region44
    $region43: #{deeplab_forward.4} parent=5 // pred_region
      %s4191 = ssub.s32 %s10, 2
      // Predicated region
      $region45: #{deeplab_forward.4} parent=43 // pred_check
        %p4192 = pneg %p128
      $region46: #{deeplab_forward.4} parent=43 // pred_check_branch
        %4194 = sbr.rel (%p4192) target = $region48
      $region47: #{deeplab_forward.4} parent=43 // pred_region
        %p4195 = scmp.lt.s32.totalorder %s16, 1
        %s4196 = scalar_select %p4195, %s16, 1
        %s4197 = smul.addr %s4196, 32
        %s4198 = smul.addr %s4197, 4
        %s4199 = scalar_lea.vmem %s4, %s4198
      $region48: #{deeplab_forward.4} parent=43 // pred_fallthru
        _
    $region44: #{deeplab_forward.4} parent=5 // pred_fallthru
      _
  $region6: #{deeplab_forward.4} parent=0 // loop_footer
    %s14 = sadd.s32 1, %s10
  $region7: #{deeplab_forward.4} parent=0 // loop_footer_branch
    %9 = sbr.rel target = $region3
  $region8: #{deeplab_forward.4} parent=0 // loop_exit
    _

// kernel: deeplab_forward.5
$region0: #{deeplab_forward.5}
  #allocation0 [shape = 'u32[]', space=smem, size = 0x4, offset = 0x4, fixed_abs, tag = 'smem constant byte address 0x4 - core index']
  #allocation1 [shape = 'u32[144,128]{1,0:T(1,128)}', space=vmem, size = 0x12000, scoped, tag = 'internal scratch']
  #allocation2 [shape = 'f32[384,32]{1,0:T(8,128)}', space=vmem, size = 0x30000, scoped, tag = 'scratch operand']
  %s0 = inlined_call_operand.vmem [shape: bf16[2,18,24,32], index: 0, kind: input, shape index: {}]
  %s1 = inlined_call_operand.vmem [shape: bf16[9,32,32], index: 1, kind: input, shape index: {}]
  %s2 = inlined_call_operand.vmem [shape: f32[1,32], index: 2, kind: input, shape index: {}]
  %s3 = inlined_call_operand.vmem [shape: f32[1,32], index: 3, kind: input, shape index: {}]
  %s4 = inlined_call_operand.vmem [shape: bf16[2,16,16,32], index: 4, kind: output, shape index: {}]
  %s5 = sld [smem:[#allocation0]]
  $region49: #{deeplab_forward.5} parent=0
    _
  %s7 = ssub.s32 1, %s5
  %s8 = scalar_select 0, %s7, %s5
  loop: start=0, step=1, limit=4
  $region2: #{deeplab_forward.5} parent=0 // loop_pre_header
    _
  $region3: #{deeplab_forward.5} parent=0 // loop_header
    %s10 = sphi 0, %s14
    %p11 = scmp.ge.s32.totalorder %s10, 4
    %s20 = sphi 0, %s22
    %s23 = sphi 0, %s20
    %s24 = sphi 0, %s23
    %s40 = sphi 0, %s24
    %s44 = sphi 0, %s44
    %s46 = sphi 0, %s44
    %s47 = sphi 0, %s46
    %s61 = sphi 0, %s47
    %s65 = sphi 0, %s65
    %s67 = sphi 0, %s65
    %s68 = sphi 0, %s67
    %s82 = sphi 0, %s68
    %s86 = sphi 0, %s86
    %s88 = sphi 0, %s86
    %s89 = sphi 0, %s88
    %s103 = sphi 0, %s89
    %s109 = sphi 0, %s111
    %s112 = sphi 0, %s109
    %s113 = sphi 0, %s112
    %s129 = sphi 0, %s113
  $region4: #{deeplab_forward.5} parent=0 // loop_header_branch
    %13 = sbr.rel (%p11) target = $region8
  $region5: #{deeplab_forward.5} parent=0 // loop_body
    %s15 = ssub.s32 %s10, 1
    %s16 = ssub.s32 %s10, 2
    %s17 = sadd.s32 %s10, 1
    %s18 = ssub.s32 %s10, %s17
    %p19 = scmp.eq.s32.totalorder %s18, 0
    %s21 = sadd.s32 %s20, 1
    %s22 = scalar_select %p19, %s20, %s21
    %p25 = pneg %p19
    %p26 = scmp.eq.s32.totalorder %s10, 1
    %p27 = por %p25, %p26
    %p28 = scmp.ne.s32.totalorder %s20, %s23
    %p29 = scmp.eq.s32.totalorder %s10, 0
    %p30 = por %p28, %p29
    %p31 = scmp.ne.s32.totalorder %s20, %s23
    %p32 = scmp.eq.s32.totalorder %s15, 1
    %p33 = por %p31, %p32
    %p34 = scmp.ne.s32.totalorder %s23, %s24
    %p35 = scmp.eq.s32.totalorder %s15, 0
    %p36 = por %p34, %p35
    %p37 = scmp.ne.s32.totalorder %s23, %s24
    %p38 = scmp.eq.s32.totalorder %s16, 1
    %p39 = por %p37, %p38
    %p41 = scmp.ne.s32.totalorder %s24, %s40
    %p42 = scmp.eq.s32.totalorder %s16, 0
    %p43 = por %p41, %p42
    %s45 = sadd.s32 %s44, 1
    %p48 = scmp.eq.s32.totalorder %s10, 1
    %p49 = scmp.ne.s32.totalorder %s44, %s46
    %p50 = scmp.eq.s32.totalorder %s10, 0
    %p51 = por %p49, %p50
    %p52 = scmp.ne.s32.totalorder %s44, %s46
    %p53 = scmp.eq.s32.totalorder %s15, 1
    %p54 = por %p52, %p53
    %p55 = scmp.ne.s32.totalorder %s46, %s47
    %p56 = scmp.eq.s32.totalorder %s15, 0
    %p57 = por %p55, %p56
    %p58 = scmp.ne.s32.totalorder %s46, %s47
    %p59 = scmp.eq.s32.totalorder %s16, 1
    %p60 = por %p58, %p59
    %p62 = scmp.ne.s32.totalorder %s47, %s61
    %p63 = scmp.eq.s32.totalorder %s16, 0
    %p64 = por %p62, %p63
    %s66 = sadd.s32 %s65, 1
    %p69 = scmp.eq.s32.totalorder %s10, 1
    %p70 = scmp.ne.s32.totalorder %s65, %s67
    %p71 = scmp.eq.s32.totalorder %s10, 0
    %p72 = por %p70, %p71
    %p73 = scmp.ne.s32.totalorder %s65, %s67
    %p74 = scmp.eq.s32.totalorder %s15, 1
    %p75 = por %p73, %p74
    %p76 = scmp.ne.s32.totalorder %s67, %s68
    %p77 = scmp.eq.s32.totalorder %s15, 0
    %p78 = por %p76, %p77
    %p79 = scmp.ne.s32.totalorder %s67, %s68
    %p80 = scmp.eq.s32.totalorder %s16, 1
    %p81 = por %p79, %p80
    %p83 = scmp.ne.s32.totalorder %s68, %s82
    %p84 = scmp.eq.s32.totalorder %s16, 0
    %p85 = por %p83, %p84
    %s87 = sadd.s32 %s86, 1
    %p90 = scmp.eq.s32.totalorder %s10, 1
    %p91 = scmp.ne.s32.totalorder %s86, %s88
    %p92 = scmp.eq.s32.totalorder %s10, 0
    %p93 = por %p91, %p92
    %p94 = scmp.ne.s32.totalorder %s86, %s88
    %p95 = scmp.eq.s32.totalorder %s15, 1
    %p96 = por %p94, %p95
    %p97 = scmp.ne.s32.totalorder %s88, %s89
    %p98 = scmp.eq.s32.totalorder %s15, 0
    %p99 = por %p97, %p98
    %p100 = scmp.ne.s32.totalorder %s88, %s89
    %p101 = scmp.eq.s32.totalorder %s16, 1
    %p102 = por %p100, %p101
    %p104 = scmp.ne.s32.totalorder %s89, %s103
    %p105 = scmp.eq.s32.totalorder %s16, 0
    %p106 = por %p104, %p105
    %s107 = ssub.s32 %s10, %s17
    %p108 = scmp.eq.s32.totalorder %s107, 0
    %s110 = sadd.s32 %s109, 1
    %s111 = scalar_select %p108, %s109, %s110
    %p114 = pneg %p108
    %p115 = scmp.eq.s32.totalorder %s10, 1
    %p116 = por %p114, %p115
    %p117 = scmp.ne.s32.totalorder %s109, %s112
    %p118 = scmp.eq.s32.totalorder %s10, 0
    %p119 = por %p117, %p118
    %p120 = scmp.ne.s32.totalorder %s109, %s112
    %p121 = scmp.eq.s32.totalorder %s15, 1
    %p122 = por %p120, %p121
    %p123 = scmp.ne.s32.totalorder %s112, %s113
    %p124 = scmp.eq.s32.totalorder %s15, 0
    %p125 = por %p123, %p124
    %p126 = scmp.ne.s32.totalorder %s112, %s113
    %p127 = scmp.eq.s32.totalorder %s16, 1
    %p128 = por %p126, %p127
    %p130 = scmp.ne.s32.totalorder %s113, %s129
    %p131 = scmp.eq.s32.totalorder %s16, 0
    %p132 = por %p130, %p131
    %p133 = scmp.le.s32.totalorder 1, %s10
    %p134 = scmp.lt.s32.totalorder %s10, 3
    %p135 = pnand %p133, %p134
    %p136 = pneg %p135
    // Predicated region
    $region9: #{deeplab_forward.5} parent=5 // pred_check
      _
    $region10: #{deeplab_forward.5} parent=5 // pred_check_branch
      %138 = sbr.rel (%p135) target = $region12
    $region11: #{deeplab_forward.5} parent=5 // pred_region
      %s139 = ssub.s32 %s10, 1
      // Predicated region
      $region13: #{deeplab_forward.5} parent=11 // pred_check
        %p140 = pneg %p57
      $region14: #{deeplab_forward.5} parent=11 // pred_check_branch
        %142 = sbr.rel (%p140) target = $region16
      $region15: #{deeplab_forward.5} parent=11 // pred_region
        _
      $region16: #{deeplab_forward.5} parent=11 // pred_fallthru
        _
      // Predicated region
      $region17: #{deeplab_forward.5} parent=11 // pred_check
        %p143 = pneg %p78
      $region18: #{deeplab_forward.5} parent=11 // pred_check_branch
        %145 = sbr.rel (%p143) target = $region20
      $region19: #{deeplab_forward.5} parent=11 // pred_region
        _
      $region20: #{deeplab_forward.5} parent=11 // pred_fallthru
        _
      // Predicated region
      $region21: #{deeplab_forward.5} parent=11 // pred_check
        %p146 = pneg %p99
      $region22: #{deeplab_forward.5} parent=11 // pred_check_branch
        %148 = sbr.rel (%p146) target = $region24
      $region23: #{deeplab_forward.5} parent=11 // pred_region
        _
      $region24: #{deeplab_forward.5} parent=11 // pred_fallthru
        _
    $region12: #{deeplab_forward.5} parent=5 // pred_fallthru
      _
    %p149 = scmp.lt.s32.totalorder %s10, 2
    // Predicated region
    $region25: #{deeplab_forward.5} parent=5 // pred_check
      %p150 = pneg %p149
    $region26: #{deeplab_forward.5} parent=5 // pred_check_branch
      %152 = sbr.rel (%p150) target = $region28
    $region27: #{deeplab_forward.5} parent=5 // pred_region
      // Predicated region
      $region29: #{deeplab_forward.5} parent=27 // pred_check
        %p153 = pneg %p30
      $region30: #{deeplab_forward.5} parent=27 // pred_check_branch
        %155 = sbr.rel (%p153) target = $region32
      $region31: #{deeplab_forward.5} parent=27 // pred_region
        %p156 = scmp.lt.s32.totalorder %s10, 1
        %s157 = scalar_select %p156, %s10, 1
        %s158 = smul.addr %s157, 54
        %s159 = smul.addr %s158, 4
        %s160 = scalar_lea.vmem %s0, %s159
      $region32: #{deeplab_forward.5} parent=27 // pred_fallthru
        _
    $region28: #{deeplab_forward.5} parent=5 // pred_fallthru
      _
    %p161 = scmp.le.s32.totalorder 1, %s10
    %p162 = scmp.lt.s32.totalorder %s10, 3
    %p163 = pnand %p161, %p162
    %p164 = pneg %p163
    // Predicated region
    $region33: #{deeplab_forward.5} parent=5 // pred_check
      _
    $region34: #{deeplab_forward.5} parent=5 // pred_check_branch
      %166 = sbr.rel (%p163) target = $region36
    $region35: #{deeplab_forward.5} parent=5 // pred_region
      %s167 = ssub.s32 %s10, 1
      %p168 = scmp.lt.s32.totalorder %s15, 1
      %s169 = scalar_select %p168, %s15, 1
      %s170 = smul.addr %s169, 54
      %s171 = smul.addr %s170, 4
      %s172 = scalar_lea.vmem %s0, %s171
      %p173 = pneg %p36
      %p174 = pneg %p33
      %p175 = pneg %p57
      %p176 = pneg %p54
      %p177 = pneg %p78
      %p178 = pneg %p75
      %p179 = pneg %p99
      %p180 = pneg %p96
      %p181 = pneg %p125
      %p182 = pneg %p122
      %p183 = scmp.lt.s32.totalorder %s15, 1
      %s184 = scalar_select %p183, %s15, 1
      %s185 = smul.addr %s184, 32
      %s186 = smul.addr %s185, 4
      %s187 = scalar_lea.vmem %s4, %s186
      %p188 = scmp.lt.s32.totalorder %s15, 1
      %s189 = scalar_select %p188, %s15, 1
      %s190 = smul.addr %s189, 54
      %s191 = smul.addr %s190, 4
      %s192 = scalar_lea.vmem %s0, %s191
      %p193 = scmp.lt.s32.totalorder %s15, 1
      %s194 = scalar_select %p193, %s15, 1
      %s195 = smul.addr %s194, 32
      %s196 = smul.addr %s195, 4
      %s197 = scalar_lea.vmem %s4, %s196
      %v199 = vld [vmem:[%s192] sm:$0xf]
      %v200 = vld [vmem:[%s192 + $0x4] sm:$0xf]
      %v201 = vld [vmem:[%s192 + $0x8] sm:$0xf]
      %v202 = vld [vmem:[%s192 + $0xc] sm:$0xf]
      %v203 = vld [vmem:[%s192 + $0x10] sm:$0xf]
      %v204 = vld [vmem:[%s192 + $0x14] sm:$0xf]
      %v205 = vld [vmem:[%s192 + $0x18] sm:$0xf]
      %v206 = vld [vmem:[%s192 + $0x1c] sm:$0xf]
      %v207 = vld [vmem:[%s192 + $0x20] sm:$0xf]
      %v208 = vld [vmem:[%s192 + $0x24] sm:$0xf]
      %v209 = vld [vmem:[%s192 + $0x28] sm:$0xf]
      %v210 = vld [vmem:[%s192 + $0x2c] sm:$0xf]
      %v211 = vld [vmem:[%s192 + $0x30] sm:$0xf]
      %v212 = vld [vmem:[%s192 + $0x34] sm:$0xf]
      %v213 = vld [vmem:[%s192 + $0x38] sm:$0xf]
      %v214 = vld [vmem:[%s192 + $0x3c] sm:$0xf]
      %v215 = vld [vmem:[%s192 + $0x40] sm:$0xf]
      %v216 = vld [vmem:[%s192 + $0x44] sm:$0xf]
      %v217 = vld [vmem:[%s192 + $0x48] sm:$0xf]
      %v218 = vld [vmem:[%s192 + $0x4c] sm:$0xf]
      %v219 = vld [vmem:[%s192 + $0x50] sm:$0xf]
      %v220 = vld [vmem:[%s192 + $0x54] sm:$0xf]
      %v221 = vld [vmem:[%s192 + $0x58] sm:$0xf]
      %v222 = vld [vmem:[%s192 + $0x5c] sm:$0xf]
      %v223 = vld [vmem:[%s192 + $0x60] sm:$0xf]
      %v224 = vld [vmem:[%s192 + $0x64] sm:$0xf]
      %v225 = vld [vmem:[%s192 + $0x68] sm:$0xf]
      %v226 = vld [vmem:[%s192 + $0x6c] sm:$0xf]
      %v227 = vld [vmem:[%s192 + $0x70] sm:$0xf]
      %v228 = vld [vmem:[%s192 + $0x74] sm:$0xf]
      %v229 = vld [vmem:[%s192 + $0x78] sm:$0xf]
      %v230 = vld [vmem:[%s192 + $0x7c] sm:$0xf]
      %v231 = vld [vmem:[%s192 + $0x80] sm:$0xf]
      %v232 = vld [vmem:[%s192 + $0x84] sm:$0xf]
      %v233 = vld [vmem:[%s192 + $0x88] sm:$0xf]
      %v234 = vld [vmem:[%s192 + $0x8c] sm:$0xf]
      %v235 = vld [vmem:[%s192 + $0x90] sm:$0xf]
      %v236 = vld [vmem:[%s192 + $0x94] sm:$0xf]
      %v237 = vld [vmem:[%s192 + $0x98] sm:$0xf]
      %v238 = vld [vmem:[%s192 + $0x9c] sm:$0xf]
      %v239 = vld [vmem:[%s192 + $0xa0] sm:$0xf]
      %v240 = vld [vmem:[%s192 + $0xa4] sm:$0xf]
      %v241 = vld [vmem:[%s192 + $0xa8] sm:$0xf]
      %v242 = vld [vmem:[%s192 + $0xac] sm:$0xf]
      %v243 = vld [vmem:[%s192 + $0xb0] sm:$0xf]
      %v244 = vld [vmem:[%s192 + $0xb4] sm:$0xf]
      %v245 = vld [vmem:[%s192 + $0xb8] sm:$0xf]
      %v246 = vld [vmem:[%s192 + $0xbc] sm:$0xf]
      %v247 = vld [vmem:[%s192 + $0xc0] sm:$0xf]
      %v248 = vld [vmem:[%s192 + $0xc4] sm:$0xf]
      %v249 = vld [vmem:[%s192 + $0xc8] sm:$0xf]
      %v250 = vld [vmem:[%s192 + $0xcc] sm:$0xf]
      %v251 = vld [vmem:[%s192 + $0xd0] sm:$0xf]
      %v252 = vld [vmem:[%s192 + $0xd4] sm:$0xf]
      %v253 = vld [vmem:[%s1] sm:$0xf]
      %v254 = vld [vmem:[%s1 + $0x4] sm:$0xf]
      %v255 = vld [vmem:[%s1 + $0x8] sm:$0xf]
      %v256 = vld [vmem:[%s1 + $0xc] sm:$0xf]
      %s257 = scalar_lea.vmem %s1, 16
      %v258 = vld [vmem:[%s257] sm:$0xf]
      %v259 = vld [vmem:[%s257 + $0x4] sm:$0xf]
      %v260 = vld [vmem:[%s257 + $0x8] sm:$0xf]
      %v261 = vld [vmem:[%s257 + $0xc] sm:$0xf]
      %v310 = vunpack.c.l.b16 %v199
      %v311 = vunpack.c.l.b16 %v200
      %v312 = vunpack.c.l.b16 %v201
      %v313 = vunpack.c.l.b16 %v202
      %v314 = vunpack.c.l.b16 %v203
      %v315 = vunpack.c.l.b16 %v204
      %v316 = vunpack.c.l.b16 %v205
      %v317 = vunpack.c.l.b16 %v206
      %v318 = vunpack.c.l.b16 %v207
      %v319 = vunpack.c.l.b16 %v208
      %v320 = vunpack.c.l.b16 %v209
      %v321 = vunpack.c.l.b16 %v210
      %v322 = vunpack.c.l.b16 %v211
      %v323 = vunpack.c.l.b16 %v212
      %v324 = vunpack.c.l.b16 %v213
      %v325 = vunpack.c.l.b16 %v214
      %v326 = vunpack.c.l.b16 %v215
      %v327 = vunpack.c.l.b16 %v216
      %v328 = vunpack.c.l.b16 %v217
      %v329 = vunpack.c.l.b16 %v218
      %v330 = vunpack.c.l.b16 %v219
      %v331 = vunpack.c.l.b16 %v220
      %v332 = vunpack.c.l.b16 %v221
      %v333 = vunpack.c.l.b16 %v222
      %v334 = vunpack.c.l.b16 %v223
      %v335 = vunpack.c.l.b16 %v224
      %v336 = vunpack.c.l.b16 %v225
      %v337 = vunpack.c.l.b16 %v226
      %v338 = vunpack.c.l.b16 %v227
      %v339 = vunpack.c.l.b16 %v228
      %v340 = vunpack.c.l.b16 %v229
      %v341 = vunpack.c.l.b16 %v230
      %v342 = vunpack.c.l.b16 %v231
      %v343 = vunpack.c.l.b16 %v232
      %v344 = vunpack.c.l.b16 %v233
      %v345 = vunpack.c.l.b16 %v234
      %v346 = vunpack.c.l.b16 %v235
      %v347 = vunpack.c.l.b16 %v236
      %v348 = vunpack.c.l.b16 %v237
      %v349 = vunpack.c.l.b16 %v238
      %v350 = vunpack.c.l.b16 %v239
      %v351 = vunpack.c.l.b16 %v240
      %v352 = vunpack.c.l.b16 %v241
      %v353 = vunpack.c.l.b16 %v242
      %v354 = vunpack.c.l.b16 %v243
      %v355 = vunpack.c.l.b16 %v244
      %v356 = vunpack.c.l.b16 %v245
      %v357 = vunpack.c.l.b16 %v246
      %v358 = vpack.c.b16 %v311, %v310
      %v359 = vpack.c.b16 %v313, %v312
      %v360 = vpack.c.b16 %v315, %v314
      %v361 = vpack.c.b16 %v317, %v316
      %v362 = vpack.c.b16 %v319, %v318
      %v363 = vpack.c.b16 %v321, %v320
      %v364 = vpack.c.b16 %v323, %v322
      %v365 = vpack.c.b16 %v325, %v324
      %v366 = vpack.c.b16 %v327, %v326
      %v367 = vpack.c.b16 %v329, %v328
      %v368 = vpack.c.b16 %v331, %v330
      %v369 = vpack.c.b16 %v333, %v332
      %v370 = vpack.c.b16 %v335, %v334
      %v371 = vpack.c.b16 %v337, %v336
      %v372 = vpack.c.b16 %v339, %v338
      %v373 = vpack.c.b16 %v341, %v340
      %v374 = vpack.c.b16 %v343, %v342
      %v375 = vpack.c.b16 %v345, %v344
      %v376 = vpack.c.b16 %v347, %v346
      %v377 = vpack.c.b16 %v349, %v348
      %v378 = vpack.c.b16 %v351, %v350
      %v379 = vpack.c.b16 %v353, %v352
      %v380 = vpack.c.b16 %v355, %v354
      %v381 = vpack.c.b16 %v357, %v356
      %v386 = vunpack.c.l.b16 %v258
      %v387 = vunpack.c.l.b16 %v259
      %v388 = vunpack.c.l.b16 %v260
      %v389 = vunpack.c.l.b16 %v261
      %v390 = vpack.c.b16 %v387, %v386
      %v391 = vpack.c.b16 %v389, %v388
      %vm394 = vcmask 261120
      %v396 = vsel %vm394, %v358, 0
      %v399 = vsel %vm394, %v359, 0
      %v402 = vsel %vm394, %v360, 0
      %v405 = vsel %vm394, %v361, 0
      %v408 = vsel %vm394, %v362, 0
      %v411 = vsel %vm394, %v363, 0
      %v414 = vsel %vm394, %v364, 0
      %v417 = vsel %vm394, %v365, 0
      %v420 = vsel %vm394, %v366, 0
      %v423 = vsel %vm394, %v367, 0
      %v426 = vsel %vm394, %v368, 0
      %v429 = vsel %vm394, %v369, 0
      %v432 = vsel %vm394, %v370, 0
      %v435 = vsel %vm394, %v371, 0
      %v438 = vsel %vm394, %v372, 0
      %v441 = vsel %vm394, %v373, 0
      %v444 = vsel %vm394, %v374, 0
      %v447 = vsel %vm394, %v375, 0
      %v450 = vsel %vm394, %v376, 0
      %v453 = vsel %vm394, %v377, 0
      %v456 = vsel %vm394, %v378, 0
      %v459 = vsel %vm394, %v379, 0
      %v462 = vsel %vm394, %v380, 0
      %v465 = vsel %vm394, %v381, 0
      %467 = vmatprep.subr.bf16.mxu0 0
      %468 = vmatpush1.bf16.msra.mxu0 0
      %469 = vmatprep.subr.bf16.mxu0 0
      %470 = vmatpush1.bf16.msra.mxu0 0
      %471 = vmatprep.subr.bf16.mxu0 0
      %472 = vmatpush1.bf16.msra.mxu0 0
      %473 = vmatprep.subr.bf16.mxu0 0
      %474 = vmatpush1.bf16.msra.mxu0 0
      %475 = vmatprep.subr.bf16.mxu0 0
      %476 = vmatpush1.bf16.msra.mxu0 0
      %477 = vmatprep.subr.bf16.mxu0 0
      %478 = vmatpush1.bf16.msra.mxu0 0
      %479 = vmatprep.subr.bf16.mxu0 0
      %480 = vmatpush1.bf16.msra.mxu0 %v391
      %481 = vmatprep.subr.bf16.mxu0 0
      %482 = vmatpush1.bf16.msra.mxu0 %v390
      %483 = vmatprep.subr.bf16.mxu0 0
      %484 = vmatpush2.bf16.msra.mxu0 0
      %485 = vmatprep.subr.bf16.mxu0 0
      %486 = vmatpush2.bf16.msra.mxu0 0
      %487 = vmatprep.subr.bf16.mxu0 0
      %488 = vmatpush2.bf16.msra.mxu0 0
      %489 = vmatprep.subr.bf16.mxu0 0
      %490 = vmatpush2.bf16.msra.mxu0 0
      %491 = vmatprep.subr.bf16.mxu0 0
      %492 = vmatpush2.bf16.msra.mxu0 0
      %493 = vmatprep.subr.bf16.mxu0 0
      %494 = vmatpush2.bf16.msra.mxu0 0
      %495 = vmatprep.subr.bf16.mxu0 0
      %496 = vmatpush2.bf16.msra.mxu0 0
      %497 = vmatprep.subr.bf16.mxu0 0
      %498 = vmatpush2.bf16.msra.mxu0 0
      %499 = vmatprep.mubr.bf16.mxu0 0
      %500 = vmatmul.mubr.bf16.gmra.mxu0 %v396
      %v501 = vpop.f32.mrf.mxu0
      %v502 = vadd.f32 0.0, %v501
      %v503 = vpop.f32.mrf.mxu0
      %v504 = vpop.f32.mrf.mxu0
      %v505 = vadd.f32 0.0, %v504
      %v506 = vpop.f32.mrf.mxu0
      %507 = vmatprep.mubr.bf16.mxu0 0
      %508 = vmatmul.mubr.bf16.gmra.mxu0 %v399
      %v509 = vpop.f32.mrf.mxu0
      %v510 = vadd.f32 0.0, %v509
      %v511 = vpop.f32.mrf.mxu0
      %v512 = vpop.f32.mrf.mxu0
      %v513 = vadd.f32 0.0, %v512
      %v514 = vpop.f32.mrf.mxu0
      %515 = vmatprep.mubr.bf16.mxu0 0
      %516 = vmatmul.mubr.bf16.gmra.mxu0 %v402
      %v517 = vpop.f32.mrf.mxu0
      %v518 = vadd.f32 0.0, %v517
      %v519 = vpop.f32.mrf.mxu0
      %v520 = vpop.f32.mrf.mxu0
      %v521 = vadd.f32 0.0, %v520
      %v522 = vpop.f32.mrf.mxu0
      %523 = vmatprep.mubr.bf16.mxu0 0
      %524 = vmatmul.mubr.bf16.gmra.mxu0 %v405
      %v525 = vpop.f32.mrf.mxu0
      %v526 = vadd.f32 0.0, %v525
      %v527 = vpop.f32.mrf.mxu0
      %v528 = vpop.f32.mrf.mxu0
      %v529 = vadd.f32 0.0, %v528
      %v530 = vpop.f32.mrf.mxu0
      %531 = vmatprep.mubr.bf16.mxu0 0
      %532 = vmatmul.mubr.bf16.gmra.mxu0 %v408
      %v533 = vpop.f32.mrf.mxu0
      %v534 = vadd.f32 0.0, %v533
      %v535 = vpop.f32.mrf.mxu0
      %v536 = vpop.f32.mrf.mxu0
      %v537 = vadd.f32 0.0, %v536
      %v538 = vpop.f32.mrf.mxu0
      %539 = vmatprep.mubr.bf16.mxu0 0
      %540 = vmatmul.mubr.bf16.gmra.mxu0 %v411
      %v541 = vpop.f32.mrf.mxu0
      %v542 = vadd.f32 0.0, %v541
      %v543 = vpop.f32.mrf.mxu0
      %v544 = vpop.f32.mrf.mxu0
      %v545 = vadd.f32 0.0, %v544
      %v546 = vpop.f32.mrf.mxu0
      %547 = vmatprep.mubr.bf16.mxu0 0
      %548 = vmatmul.mubr.bf16.gmra.mxu0 %v414
      %v549 = vpop.f32.mrf.mxu0
      %v550 = vadd.f32 0.0, %v549
      %v551 = vpop.f32.mrf.mxu0
      %v552 = vpop.f32.mrf.mxu0
      %v553 = vadd.f32 0.0, %v552
      %v554 = vpop.f32.mrf.mxu0
      %555 = vmatprep.mubr.bf16.mxu0 0
      %556 = vmatmul.mubr.bf16.gmra.mxu0 %v417
      %v557 = vpop.f32.mrf.mxu0
      %v558 = vadd.f32 0.0, %v557
      %v559 = vpop.f32.mrf.mxu0
      %v560 = vpop.f32.mrf.mxu0
      %v561 = vadd.f32 0.0, %v560
      %v562 = vpop.f32.mrf.mxu0
      %563 = vmatprep.mubr.bf16.mxu0 0
      %564 = vmatmul.mubr.bf16.gmra.mxu0 %v420
      %v565 = vpop.f32.mrf.mxu0
      %v566 = vadd.f32 0.0, %v565
      %v567 = vpop.f32.mrf.mxu0
      %v568 = vpop.f32.mrf.mxu0
      %v569 = vadd.f32 0.0, %v568
      %v570 = vpop.f32.mrf.mxu0
      %571 = vmatprep.mubr.bf16.mxu0 0
      %572 = vmatmul.mubr.bf16.gmra.mxu0 %v423
      %v573 = vpop.f32.mrf.mxu0
      %v574 = vadd.f32 0.0, %v573
      %v575 = vpop.f32.mrf.mxu0
      %v576 = vpop.f32.mrf.mxu0
      %v577 = vadd.f32 0.0, %v576
      %v578 = vpop.f32.mrf.mxu0
      %579 = vmatprep.mubr.bf16.mxu0 0
      %580 = vmatmul.mubr.bf16.gmra.mxu0 %v426
      %v581 = vpop.f32.mrf.mxu0
      %v582 = vadd.f32 0.0, %v581
      %v583 = vpop.f32.mrf.mxu0
      %v584 = vpop.f32.mrf.mxu0
      %v585 = vadd.f32 0.0, %v584
      %v586 = vpop.f32.mrf.mxu0
      %587 = vmatprep.mubr.bf16.mxu0 0
      %588 = vmatmul.mubr.bf16.gmra.mxu0 %v429
      %v589 = vpop.f32.mrf.mxu0
      %v590 = vadd.f32 0.0, %v589
      %v591 = vpop.f32.mrf.mxu0
      %v592 = vpop.f32.mrf.mxu0
      %v593 = vadd.f32 0.0, %v592
      %v594 = vpop.f32.mrf.mxu0
      %595 = vmatprep.mubr.bf16.mxu0 0
      %596 = vmatmul.mubr.bf16.gmra.mxu0 %v432
      %v597 = vpop.f32.mrf.mxu0
      %v598 = vadd.f32 0.0, %v597
      %v599 = vpop.f32.mrf.mxu0
      %v600 = vpop.f32.mrf.mxu0
      %v601 = vadd.f32 0.0, %v600
      %v602 = vpop.f32.mrf.mxu0
      %603 = vmatprep.mubr.bf16.mxu0 0
      %604 = vmatmul.mubr.bf16.gmra.mxu0 %v435
      %v605 = vpop.f32.mrf.mxu0
      %v606 = vadd.f32 0.0, %v605
      %v607 = vpop.f32.mrf.mxu0
      %v608 = vpop.f32.mrf.mxu0
      %v609 = vadd.f32 0.0, %v608
      %v610 = vpop.f32.mrf.mxu0
      %611 = vmatprep.mubr.bf16.mxu0 0
      %612 = vmatmul.mubr.bf16.gmra.mxu0 %v438
      %v613 = vpop.f32.mrf.mxu0
      %v614 = vadd.f32 0.0, %v613
      %v615 = vpop.f32.mrf.mxu0
      %v616 = vpop.f32.mrf.mxu0
      %v617 = vadd.f32 0.0, %v616
      %v618 = vpop.f32.mrf.mxu0
      %619 = vmatprep.mubr.bf16.mxu0 0
      %620 = vmatmul.mubr.bf16.gmra.mxu0 %v441
      %v621 = vpop.f32.mrf.mxu0
      %v622 = vadd.f32 0.0, %v621
      %v623 = vpop.f32.mrf.mxu0
      %v624 = vpop.f32.mrf.mxu0
      %v625 = vadd.f32 0.0, %v624
      %v626 = vpop.f32.mrf.mxu0
      %627 = vmatprep.mubr.bf16.mxu0 0
      %628 = vmatmul.mubr.bf16.gmra.mxu0 %v444
      %v629 = vpop.f32.mrf.mxu0
      %v630 = vadd.f32 0.0, %v629
      %v631 = vpop.f32.mrf.mxu0
      %v632 = vpop.f32.mrf.mxu0
      %v633 = vadd.f32 0.0, %v632
      %v634 = vpop.f32.mrf.mxu0
      %635 = vmatprep.mubr.bf16.mxu0 0
      %636 = vmatmul.mubr.bf16.gmra.mxu0 %v447
      %v637 = vpop.f32.mrf.mxu0
      %v638 = vadd.f32 0.0, %v637
      %v639 = vpop.f32.mrf.mxu0
      %v640 = vpop.f32.mrf.mxu0
      %v641 = vadd.f32 0.0, %v640
      %v642 = vpop.f32.mrf.mxu0
      %643 = vmatprep.mubr.bf16.mxu0 0
      %644 = vmatmul.mubr.bf16.gmra.mxu0 %v450
      %v645 = vpop.f32.mrf.mxu0
      %v646 = vadd.f32 0.0, %v645
      %v647 = vpop.f32.mrf.mxu0
      %v648 = vpop.f32.mrf.mxu0
      %v649 = vadd.f32 0.0, %v648
      %v650 = vpop.f32.mrf.mxu0
      %651 = vmatprep.mubr.bf16.mxu0 0
      %652 = vmatmul.mubr.bf16.gmra.mxu0 %v453
      %v653 = vpop.f32.mrf.mxu0
      %v654 = vadd.f32 0.0, %v653
      %v655 = vpop.f32.mrf.mxu0
      %v656 = vpop.f32.mrf.mxu0
      %v657 = vadd.f32 0.0, %v656
      %v658 = vpop.f32.mrf.mxu0
      %659 = vmatprep.mubr.bf16.mxu0 0
      %660 = vmatmul.mubr.bf16.gmra.mxu0 %v456
      %v661 = vpop.f32.mrf.mxu0
      %v662 = vadd.f32 0.0, %v661
      %v663 = vpop.f32.mrf.mxu0
      %v664 = vpop.f32.mrf.mxu0
      %v665 = vadd.f32 0.0, %v664
      %v666 = vpop.f32.mrf.mxu0
      %667 = vmatprep.mubr.bf16.mxu0 0
      %668 = vmatmul.mubr.bf16.gmra.mxu0 %v459
      %v669 = vpop.f32.mrf.mxu0
      %v670 = vadd.f32 0.0, %v669
      %v671 = vpop.f32.mrf.mxu0
      %v672 = vpop.f32.mrf.mxu0
      %v673 = vadd.f32 0.0, %v672
      %v674 = vpop.f32.mrf.mxu0
      %675 = vmatprep.mubr.bf16.mxu0 0
      %676 = vmatmul.mubr.bf16.gmra.mxu0 %v462
      %v677 = vpop.f32.mrf.mxu0
      %v678 = vadd.f32 0.0, %v677
      %v679 = vpop.f32.mrf.mxu0
      %v680 = vpop.f32.mrf.mxu0
      %v681 = vadd.f32 0.0, %v680
      %v682 = vpop.f32.mrf.mxu0
      %683 = vmatprep.mubr.bf16.mxu0 0
      %684 = vmatmul.mubr.bf16.gmra.mxu0 %v465
      %v685 = vpop.f32.mrf.mxu0
      %v686 = vadd.f32 0.0, %v685
      %v687 = vpop.f32.mrf.mxu0
      %v688 = vpop.f32.mrf.mxu0
      %v689 = vadd.f32 0.0, %v688
      %v690 = vpop.f32.mrf.mxu0
      %691 = vdwg.mxu0
      %v692 = vrot.slane %v502, 1
      %v693 = vrot.slane %v505, 1
      %v694 = vrot.slane %v510, 1
      %v695 = vrot.slane %v513, 1
      %v696 = vrot.slane %v518, 1
      %v697 = vrot.slane %v521, 1
      %v698 = vrot.slane %v526, 1
      %v699 = vrot.slane %v529, 1
      %v700 = vrot.slane %v534, 1
      %v701 = vrot.slane %v537, 1
      %v702 = vrot.slane %v542, 1
      %v703 = vrot.slane %v545, 1
      %v704 = vrot.slane %v550, 1
      %v705 = vrot.slane %v553, 1
      %v706 = vrot.slane %v558, 1
      %v707 = vrot.slane %v561, 1
      %v708 = vrot.slane %v566, 1
      %v709 = vrot.slane %v569, 1
      %v710 = vrot.slane %v574, 1
      %v711 = vrot.slane %v577, 1
      %v712 = vrot.slane %v582, 1
      %v713 = vrot.slane %v585, 1
      %v714 = vrot.slane %v590, 1
      %v715 = vrot.slane %v593, 1
      %v716 = vrot.slane %v598, 1
      %v717 = vrot.slane %v601, 1
      %v718 = vrot.slane %v606, 1
      %v719 = vrot.slane %v609, 1
      %v720 = vrot.slane %v614, 1
      %v721 = vrot.slane %v617, 1
      %v722 = vrot.slane %v622, 1
      %v723 = vrot.slane %v625, 1
      %v724 = vrot.slane %v630, 1
      %v725 = vrot.slane %v633, 1
      %v726 = vrot.slane %v638, 1
      %v727 = vrot.slane %v641, 1
      %v728 = vrot.slane %v646, 1
      %v729 = vrot.slane %v649, 1
      %v730 = vrot.slane %v654, 1
      %v731 = vrot.slane %v657, 1
      %v732 = vrot.slane %v662, 1
      %v733 = vrot.slane %v665, 1
      %v734 = vrot.slane %v670, 1
      %v735 = vrot.slane %v673, 1
      %v736 = vrot.slane %v678, 1
      %v737 = vrot.slane %v681, 1
      %v738 = vrot.slane %v686, 1
      %v739 = vrot.slane %v689, 1
      %v740 = vlaneseq
      %v741 = vshrl.u32 %v740, 7
      %vm742 = vcmp.lt.s32.totalorder %v741, 7
      %v743 = vsel %vm742, %v738, %v739
      %v744 = vsel %vm742, %v737, %v738
      %v745 = vsel %vm742, %v736, %v737
      %v746 = vsel %vm742, %v735, %v736
      %v747 = vsel %vm742, %v734, %v735
      %v748 = vsel %vm742, %v733, %v734
      %v749 = vsel %vm742, %v732, %v733
      %v750 = vsel %vm742, %v731, %v732
      %v751 = vsel %vm742, %v730, %v731
      %v752 = vsel %vm742, %v729, %v730
      %v753 = vsel %vm742, %v728, %v729
      %v754 = vsel %vm742, %v727, %v728
      %v755 = vsel %vm742, %v726, %v727
      %v756 = vsel %vm742, %v725, %v726
      %v757 = vsel %vm742, %v724, %v725
      %v758 = vsel %vm742, %v723, %v724
      %v759 = vsel %vm742, %v722, %v723
      %v760 = vsel %vm742, %v721, %v722
      %v761 = vsel %vm742, %v720, %v721
      %v762 = vsel %vm742, %v719, %v720
      %v763 = vsel %vm742, %v718, %v719
      %v764 = vsel %vm742, %v717, %v718
      %v765 = vsel %vm742, %v716, %v717
      %v766 = vsel %vm742, %v715, %v716
      %v767 = vsel %vm742, %v714, %v715
      %v768 = vsel %vm742, %v713, %v714
      %v769 = vsel %vm742, %v712, %v713
      %v770 = vsel %vm742, %v711, %v712
      %v771 = vsel %vm742, %v710, %v711
      %v772 = vsel %vm742, %v709, %v710
      %v773 = vsel %vm742, %v708, %v709
      %v774 = vsel %vm742, %v707, %v708
      %v775 = vsel %vm742, %v706, %v707
      %v776 = vsel %vm742, %v705, %v706
      %v777 = vsel %vm742, %v704, %v705
      %v778 = vsel %vm742, %v703, %v704
      %v779 = vsel %vm742, %v702, %v703
      %v780 = vsel %vm742, %v701, %v702
      %v781 = vsel %vm742, %v700, %v701
      %v782 = vsel %vm742, %v699, %v700
      %v783 = vsel %vm742, %v698, %v699
      %v784 = vsel %vm742, %v697, %v698
      %v785 = vsel %vm742, %v696, %v697
      %v786 = vsel %vm742, %v695, %v696
      %v787 = vsel %vm742, %v694, %v695
      %v788 = vsel %vm742, %v693, %v694
      %v789 = vsel %vm742, %v692, %v693
      %v790 = vsel %vm742, %v739, %v692
      %v795 = vunpack.c.l.b16 %v253
      %v796 = vunpack.c.l.b16 %v254
      %v797 = vunpack.c.l.b16 %v255
      %v798 = vunpack.c.l.b16 %v256
      %v799 = vpack.c.b16 %v796, %v795
      %v800 = vpack.c.b16 %v798, %v797
      %803 = vmatprep.subr.bf16.mxu0 0
      %804 = vmatpush1.bf16.msra.mxu0 0
      %805 = vmatprep.subr.bf16.mxu0 0
      %806 = vmatpush1.bf16.msra.mxu0 0
      %807 = vmatprep.subr.bf16.mxu0 0
      %808 = vmatpush1.bf16.msra.mxu0 0
      %809 = vmatprep.subr.bf16.mxu0 0
      %810 = vmatpush1.bf16.msra.mxu0 0
      %811 = vmatprep.subr.bf16.mxu0 0
      %812 = vmatpush1.bf16.msra.mxu0 0
      %813 = vmatprep.subr.bf16.mxu0 0
      %814 = vmatpush1.bf16.msra.mxu0 0
      %815 = vmatprep.subr.bf16.mxu0 0
      %816 = vmatpush1.bf16.msra.mxu0 %v800
      %817 = vmatprep.subr.bf16.mxu0 0
      %818 = vmatpush1.bf16.msra.mxu0 %v799
      %819 = vmatprep.subr.bf16.mxu0 0
      %820 = vmatpush2.bf16.msra.mxu0 0
      %821 = vmatprep.subr.bf16.mxu0 0
      %822 = vmatpush2.bf16.msra.mxu0 0
      %823 = vmatprep.subr.bf16.mxu0 0
      %824 = vmatpush2.bf16.msra.mxu0 0
      %825 = vmatprep.subr.bf16.mxu0 0
      %826 = vmatpush2.bf16.msra.mxu0 0
      %827 = vmatprep.subr.bf16.mxu0 0
      %828 = vmatpush2.bf16.msra.mxu0 0
      %829 = vmatprep.subr.bf16.mxu0 0
      %830 = vmatpush2.bf16.msra.mxu0 0
      %831 = vmatprep.subr.bf16.mxu0 0
      %832 = vmatpush2.bf16.msra.mxu0 0
      %833 = vmatprep.subr.bf16.mxu0 0
      %834 = vmatpush2.bf16.msra.mxu0 0
      %835 = vmatprep.mubr.bf16.mxu0 0
      %836 = vmatmul.mubr.bf16.gmra.mxu0 %v396
      %v837 = vpop.f32.mrf.mxu0
      %v838 = vadd.f32 %v789, %v837
      %v839 = vpop.f32.mrf.mxu0
      %v840 = vpop.f32.mrf.mxu0
      %v841 = vadd.f32 %v788, %v840
      %v842 = vpop.f32.mrf.mxu0
      %843 = vmatprep.mubr.bf16.mxu0 0
      %844 = vmatmul.mubr.bf16.gmra.mxu0 %v399
      %v845 = vpop.f32.mrf.mxu0
      %v846 = vadd.f32 %v787, %v845
      %v847 = vpop.f32.mrf.mxu0
      %v848 = vpop.f32.mrf.mxu0
      %v849 = vadd.f32 %v786, %v848
      %v850 = vpop.f32.mrf.mxu0
      %851 = vmatprep.mubr.bf16.mxu0 0
      %852 = vmatmul.mubr.bf16.gmra.mxu0 %v402
      %v853 = vpop.f32.mrf.mxu0
      %v854 = vadd.f32 %v785, %v853
      %v855 = vpop.f32.mrf.mxu0
      %v856 = vpop.f32.mrf.mxu0
      %v857 = vadd.f32 %v784, %v856
      %v858 = vpop.f32.mrf.mxu0
      %859 = vmatprep.mubr.bf16.mxu0 0
      %860 = vmatmul.mubr.bf16.gmra.mxu0 %v405
      %v861 = vpop.f32.mrf.mxu0
      %v862 = vadd.f32 %v783, %v861
      %v863 = vpop.f32.mrf.mxu0
      %v864 = vpop.f32.mrf.mxu0
      %v865 = vadd.f32 %v782, %v864
      %v866 = vpop.f32.mrf.mxu0
      %867 = vmatprep.mubr.bf16.mxu0 0
      %868 = vmatmul.mubr.bf16.gmra.mxu0 %v408
      %v869 = vpop.f32.mrf.mxu0
      %v870 = vadd.f32 %v781, %v869
      %v871 = vpop.f32.mrf.mxu0
      %v872 = vpop.f32.mrf.mxu0
      %v873 = vadd.f32 %v780, %v872
      %v874 = vpop.f32.mrf.mxu0
      %875 = vmatprep.mubr.bf16.mxu0 0
      %876 = vmatmul.mubr.bf16.gmra.mxu0 %v411
      %v877 = vpop.f32.mrf.mxu0
      %v878 = vadd.f32 %v779, %v877
      %v879 = vpop.f32.mrf.mxu0
      %v880 = vpop.f32.mrf.mxu0
      %v881 = vadd.f32 %v778, %v880
      %v882 = vpop.f32.mrf.mxu0
      %883 = vmatprep.mubr.bf16.mxu0 0
      %884 = vmatmul.mubr.bf16.gmra.mxu0 %v414
      %v885 = vpop.f32.mrf.mxu0
      %v886 = vadd.f32 %v777, %v885
      %v887 = vpop.f32.mrf.mxu0
      %v888 = vpop.f32.mrf.mxu0
      %v889 = vadd.f32 %v776, %v888
      %v890 = vpop.f32.mrf.mxu0
      %891 = vmatprep.mubr.bf16.mxu0 0
      %892 = vmatmul.mubr.bf16.gmra.mxu0 %v417
      %v893 = vpop.f32.mrf.mxu0
      %v894 = vadd.f32 %v775, %v893
      %v895 = vpop.f32.mrf.mxu0
      %v896 = vpop.f32.mrf.mxu0
      %v897 = vadd.f32 %v774, %v896
      %v898 = vpop.f32.mrf.mxu0
      %899 = vmatprep.mubr.bf16.mxu0 0
      %900 = vmatmul.mubr.bf16.gmra.mxu0 %v420
      %v901 = vpop.f32.mrf.mxu0
      %v902 = vadd.f32 %v773, %v901
      %v903 = vpop.f32.mrf.mxu0
      %v904 = vpop.f32.mrf.mxu0
      %v905 = vadd.f32 %v772, %v904
      %v906 = vpop.f32.mrf.mxu0
      %907 = vmatprep.mubr.bf16.mxu0 0
      %908 = vmatmul.mubr.bf16.gmra.mxu0 %v423
      %v909 = vpop.f32.mrf.mxu0
      %v910 = vadd.f32 %v771, %v909
      %v911 = vpop.f32.mrf.mxu0
      %v912 = vpop.f32.mrf.mxu0
      %v913 = vadd.f32 %v770, %v912
      %v914 = vpop.f32.mrf.mxu0
      %915 = vmatprep.mubr.bf16.mxu0 0
      %916 = vmatmul.mubr.bf16.gmra.mxu0 %v426
      %v917 = vpop.f32.mrf.mxu0
      %v918 = vadd.f32 %v769, %v917
      %v919 = vpop.f32.mrf.mxu0
      %v920 = vpop.f32.mrf.mxu0
      %v921 = vadd.f32 %v768, %v920
      %v922 = vpop.f32.mrf.mxu0
      %923 = vmatprep.mubr.bf16.mxu0 0
      %924 = vmatmul.mubr.bf16.gmra.mxu0 %v429
      %v925 = vpop.f32.mrf.mxu0
      %v926 = vadd.f32 %v767, %v925
      %v927 = vpop.f32.mrf.mxu0
      %v928 = vpop.f32.mrf.mxu0
      %v929 = vadd.f32 %v766, %v928
      %v930 = vpop.f32.mrf.mxu0
      %931 = vmatprep.mubr.bf16.mxu0 0
      %932 = vmatmul.mubr.bf16.gmra.mxu0 %v432
      %v933 = vpop.f32.mrf.mxu0
      %v934 = vadd.f32 %v765, %v933
      %v935 = vpop.f32.mrf.mxu0
      %v936 = vpop.f32.mrf.mxu0
      %v937 = vadd.f32 %v764, %v936
      %v938 = vpop.f32.mrf.mxu0
      %939 = vmatprep.mubr.bf16.mxu0 0
      %940 = vmatmul.mubr.bf16.gmra.mxu0 %v435
      %v941 = vpop.f32.mrf.mxu0
      %v942 = vadd.f32 %v763, %v941
      %v943 = vpop.f32.mrf.mxu0
      %v944 = vpop.f32.mrf.mxu0
      %v945 = vadd.f32 %v762, %v944
      %v946 = vpop.f32.mrf.mxu0
      %947 = vmatprep.mubr.bf16.mxu0 0
      %948 = vmatmul.mubr.bf16.gmra.mxu0 %v438
      %v949 = vpop.f32.mrf.mxu0
      %v950 = vadd.f32 %v761, %v949
      %v951 = vpop.f32.mrf.mxu0
      %v952 = vpop.f32.mrf.mxu0
      %v953 = vadd.f32 %v760, %v952
      %v954 = vpop.f32.mrf.mxu0
      %955 = vmatprep.mubr.bf16.mxu0 0
      %956 = vmatmul.mubr.bf16.gmra.mxu0 %v441
      %v957 = vpop.f32.mrf.mxu0
      %v958 = vadd.f32 %v759, %v957
      %v959 = vpop.f32.mrf.mxu0
      %v960 = vpop.f32.mrf.mxu0
      %v961 = vadd.f32 %v758, %v960
      %v962 = vpop.f32.mrf.mxu0
      %963 = vmatprep.mubr.bf16.mxu0 0
      %964 = vmatmul.mubr.bf16.gmra.mxu0 %v444
      %v965 = vpop.f32.mrf.mxu0
      %v966 = vadd.f32 %v757, %v965
      %v967 = vpop.f32.mrf.mxu0
      %v968 = vpop.f32.mrf.mxu0
      %v969 = vadd.f32 %v756, %v968
      %v970 = vpop.f32.mrf.mxu0
      %971 = vmatprep.mubr.bf16.mxu0 0
      %972 = vmatmul.mubr.bf16.gmra.mxu0 %v447
      %v973 = vpop.f32.mrf.mxu0
      %v974 = vadd.f32 %v755, %v973
      %v975 = vpop.f32.mrf.mxu0
      %v976 = vpop.f32.mrf.mxu0
      %v977 = vadd.f32 %v754, %v976
      %v978 = vpop.f32.mrf.mxu0
      %979 = vmatprep.mubr.bf16.mxu0 0
      %980 = vmatmul.mubr.bf16.gmra.mxu0 %v450
      %v981 = vpop.f32.mrf.mxu0
      %v982 = vadd.f32 %v753, %v981
      %v983 = vpop.f32.mrf.mxu0
      %v984 = vpop.f32.mrf.mxu0
      %v985 = vadd.f32 %v752, %v984
      %v986 = vpop.f32.mrf.mxu0
      %987 = vmatprep.mubr.bf16.mxu0 0
      %988 = vmatmul.mubr.bf16.gmra.mxu0 %v453
      %v989 = vpop.f32.mrf.mxu0
      %v990 = vadd.f32 %v751, %v989
      %v991 = vpop.f32.mrf.mxu0
      %v992 = vpop.f32.mrf.mxu0
      %v993 = vadd.f32 %v750, %v992
      %v994 = vpop.f32.mrf.mxu0
      %995 = vmatprep.mubr.bf16.mxu0 0
      %996 = vmatmul.mubr.bf16.gmra.mxu0 %v456
      %v997 = vpop.f32.mrf.mxu0
      %v998 = vadd.f32 %v749, %v997
      %v999 = vpop.f32.mrf.mxu0
      %v1000 = vpop.f32.mrf.mxu0
      %v1001 = vadd.f32 %v748, %v1000
      %v1002 = vpop.f32.mrf.mxu0
      %1003 = vmatprep.mubr.bf16.mxu0 0
      %1004 = vmatmul.mubr.bf16.gmra.mxu0 %v459
      %v1005 = vpop.f32.mrf.mxu0
      %v1006 = vadd.f32 %v747, %v1005
      %v1007 = vpop.f32.mrf.mxu0
      %v1008 = vpop.f32.mrf.mxu0
      %v1009 = vadd.f32 %v746, %v1008
      %v1010 = vpop.f32.mrf.mxu0
      %1011 = vmatprep.mubr.bf16.mxu0 0
      %1012 = vmatmul.mubr.bf16.gmra.mxu0 %v462
      %v1013 = vpop.f32.mrf.mxu0
      %v1014 = vadd.f32 %v745, %v1013
      %v1015 = vpop.f32.mrf.mxu0
      %v1016 = vpop.f32.mrf.mxu0
      %v1017 = vadd.f32 %v744, %v1016
      %v1018 = vpop.f32.mrf.mxu0
      %1019 = vmatprep.mubr.bf16.mxu0 0
      %1020 = vmatmul.mubr.bf16.gmra.mxu0 %v465
      %v1021 = vpop.f32.mrf.mxu0
      %v1022 = vadd.f32 %v743, %v1021
      %v1023 = vpop.f32.mrf.mxu0
      %v1024 = vpop.f32.mrf.mxu0
      %v1025 = vadd.f32 %v790, %v1024
      %v1026 = vpop.f32.mrf.mxu0
      %1027 = vdwg.mxu0
      %s1028 = scalar_lea.vmem %s1, 32
      %v1029 = vld [vmem:[%s1028] sm:$0xf]
      %v1030 = vld [vmem:[%s1028 + $0x4] sm:$0xf]
      %v1031 = vld [vmem:[%s1028 + $0x8] sm:$0xf]
      %v1032 = vld [vmem:[%s1028 + $0xc] sm:$0xf]
      %v1037 = vunpack.c.l.b16 %v1029
      %v1038 = vunpack.c.l.b16 %v1030
      %v1039 = vunpack.c.l.b16 %v1031
      %v1040 = vunpack.c.l.b16 %v1032
      %v1041 = vpack.c.b16 %v1038, %v1037
      %v1042 = vpack.c.b16 %v1040, %v1039
      %1045 = vmatprep.subr.bf16.mxu0 0
      %1046 = vmatpush1.bf16.msra.mxu0 0
      %1047 = vmatprep.subr.bf16.mxu0 0
      %1048 = vmatpush1.bf16.msra.mxu0 0
      %1049 = vmatprep.subr.bf16.mxu0 0
      %1050 = vmatpush1.bf16.msra.mxu0 0
      %1051 = vmatprep.subr.bf16.mxu0 0
      %1052 = vmatpush1.bf16.msra.mxu0 0
      %1053 = vmatprep.subr.bf16.mxu0 0
      %1054 = vmatpush1.bf16.msra.mxu0 0
      %1055 = vmatprep.subr.bf16.mxu0 0
      %1056 = vmatpush1.bf16.msra.mxu0 0
      %1057 = vmatprep.subr.bf16.mxu0 0
      %1058 = vmatpush1.bf16.msra.mxu0 %v1042
      %1059 = vmatprep.subr.bf16.mxu0 0
      %1060 = vmatpush1.bf16.msra.mxu0 %v1041
      %1061 = vmatprep.subr.bf16.mxu0 0
      %1062 = vmatpush2.bf16.msra.mxu0 0
      %1063 = vmatprep.subr.bf16.mxu0 0
      %1064 = vmatpush2.bf16.msra.mxu0 0
      %1065 = vmatprep.subr.bf16.mxu0 0
      %1066 = vmatpush2.bf16.msra.mxu0 0
      %1067 = vmatprep.subr.bf16.mxu0 0
      %1068 = vmatpush2.bf16.msra.mxu0 0
      %1069 = vmatprep.subr.bf16.mxu0 0
      %1070 = vmatpush2.bf16.msra.mxu0 0
      %1071 = vmatprep.subr.bf16.mxu0 0
      %1072 = vmatpush2.bf16.msra.mxu0 0
      %1073 = vmatprep.subr.bf16.mxu0 0
      %1074 = vmatpush2.bf16.msra.mxu0 0
      %1075 = vmatprep.subr.bf16.mxu0 0
      %1076 = vmatpush2.bf16.msra.mxu0 0
      %1077 = vmatprep.mubr.bf16.mxu0 0
      %1078 = vmatmul.mubr.bf16.gmra.mxu0 %v396
      %v1079 = vpop.f32.mrf.mxu0
      %v1080 = vadd.f32 0.0, %v1079
      %v1081 = vpop.f32.mrf.mxu0
      %v1082 = vpop.f32.mrf.mxu0
      %v1083 = vadd.f32 0.0, %v1082
      %v1084 = vpop.f32.mrf.mxu0
      %1085 = vmatprep.mubr.bf16.mxu0 0
      %1086 = vmatmul.mubr.bf16.gmra.mxu0 %v399
      %v1087 = vpop.f32.mrf.mxu0
      %v1088 = vadd.f32 0.0, %v1087
      %v1089 = vpop.f32.mrf.mxu0
      %v1090 = vpop.f32.mrf.mxu0
      %v1091 = vadd.f32 0.0, %v1090
      %v1092 = vpop.f32.mrf.mxu0
      %1093 = vmatprep.mubr.bf16.mxu0 0
      %1094 = vmatmul.mubr.bf16.gmra.mxu0 %v402
      %v1095 = vpop.f32.mrf.mxu0
      %v1096 = vadd.f32 0.0, %v1095
      %v1097 = vpop.f32.mrf.mxu0
      %v1098 = vpop.f32.mrf.mxu0
      %v1099 = vadd.f32 0.0, %v1098
      %v1100 = vpop.f32.mrf.mxu0
      %1101 = vmatprep.mubr.bf16.mxu0 0
      %1102 = vmatmul.mubr.bf16.gmra.mxu0 %v405
      %v1103 = vpop.f32.mrf.mxu0
      %v1104 = vadd.f32 0.0, %v1103
      %v1105 = vpop.f32.mrf.mxu0
      %v1106 = vpop.f32.mrf.mxu0
      %v1107 = vadd.f32 0.0, %v1106
      %v1108 = vpop.f32.mrf.mxu0
      %1109 = vmatprep.mubr.bf16.mxu0 0
      %1110 = vmatmul.mubr.bf16.gmra.mxu0 %v408
      %v1111 = vpop.f32.mrf.mxu0
      %v1112 = vadd.f32 0.0, %v1111
      %v1113 = vpop.f32.mrf.mxu0
      %v1114 = vpop.f32.mrf.mxu0
      %v1115 = vadd.f32 0.0, %v1114
      %v1116 = vpop.f32.mrf.mxu0
      %1117 = vmatprep.mubr.bf16.mxu0 0
      %1118 = vmatmul.mubr.bf16.gmra.mxu0 %v411
      %v1119 = vpop.f32.mrf.mxu0
      %v1120 = vadd.f32 0.0, %v1119
      %v1121 = vpop.f32.mrf.mxu0
      %v1122 = vpop.f32.mrf.mxu0
      %v1123 = vadd.f32 0.0, %v1122
      %v1124 = vpop.f32.mrf.mxu0
      %1125 = vmatprep.mubr.bf16.mxu0 0
      %1126 = vmatmul.mubr.bf16.gmra.mxu0 %v414
      %v1127 = vpop.f32.mrf.mxu0
      %v1128 = vadd.f32 0.0, %v1127
      %v1129 = vpop.f32.mrf.mxu0
      %v1130 = vpop.f32.mrf.mxu0
      %v1131 = vadd.f32 0.0, %v1130
      %v1132 = vpop.f32.mrf.mxu0
      %1133 = vmatprep.mubr.bf16.mxu0 0
      %1134 = vmatmul.mubr.bf16.gmra.mxu0 %v417
      %v1135 = vpop.f32.mrf.mxu0
      %v1136 = vadd.f32 0.0, %v1135
      %v1137 = vpop.f32.mrf.mxu0
      %v1138 = vpop.f32.mrf.mxu0
      %v1139 = vadd.f32 0.0, %v1138
      %v1140 = vpop.f32.mrf.mxu0
      %1141 = vmatprep.mubr.bf16.mxu0 0
      %1142 = vmatmul.mubr.bf16.gmra.mxu0 %v420
      %v1143 = vpop.f32.mrf.mxu0
      %v1144 = vadd.f32 0.0, %v1143
      %v1145 = vpop.f32.mrf.mxu0
      %v1146 = vpop.f32.mrf.mxu0
      %v1147 = vadd.f32 0.0, %v1146
      %v1148 = vpop.f32.mrf.mxu0
      %1149 = vmatprep.mubr.bf16.mxu0 0
      %1150 = vmatmul.mubr.bf16.gmra.mxu0 %v423
      %v1151 = vpop.f32.mrf.mxu0
      %v1152 = vadd.f32 0.0, %v1151
      %v1153 = vpop.f32.mrf.mxu0
      %v1154 = vpop.f32.mrf.mxu0
      %v1155 = vadd.f32 0.0, %v1154
      %v1156 = vpop.f32.mrf.mxu0
      %1157 = vmatprep.mubr.bf16.mxu0 0
      %1158 = vmatmul.mubr.bf16.gmra.mxu0 %v426
      %v1159 = vpop.f32.mrf.mxu0
      %v1160 = vadd.f32 0.0, %v1159
      %v1161 = vpop.f32.mrf.mxu0
      %v1162 = vpop.f32.mrf.mxu0
      %v1163 = vadd.f32 0.0, %v1162
      %v1164 = vpop.f32.mrf.mxu0
      %1165 = vmatprep.mubr.bf16.mxu0 0
      %1166 = vmatmul.mubr.bf16.gmra.mxu0 %v429
      %v1167 = vpop.f32.mrf.mxu0
      %v1168 = vadd.f32 0.0, %v1167
      %v1169 = vpop.f32.mrf.mxu0
      %v1170 = vpop.f32.mrf.mxu0
      %v1171 = vadd.f32 0.0, %v1170
      %v1172 = vpop.f32.mrf.mxu0
      %1173 = vmatprep.mubr.bf16.mxu0 0
      %1174 = vmatmul.mubr.bf16.gmra.mxu0 %v432
      %v1175 = vpop.f32.mrf.mxu0
      %v1176 = vadd.f32 0.0, %v1175
      %v1177 = vpop.f32.mrf.mxu0
      %v1178 = vpop.f32.mrf.mxu0
      %v1179 = vadd.f32 0.0, %v1178
      %v1180 = vpop.f32.mrf.mxu0
      %1181 = vmatprep.mubr.bf16.mxu0 0
      %1182 = vmatmul.mubr.bf16.gmra.mxu0 %v435
      %v1183 = vpop.f32.mrf.mxu0
      %v1184 = vadd.f32 0.0, %v1183
      %v1185 = vpop.f32.mrf.mxu0
      %v1186 = vpop.f32.mrf.mxu0
      %v1187 = vadd.f32 0.0, %v1186
      %v1188 = vpop.f32.mrf.mxu0
      %1189 = vmatprep.mubr.bf16.mxu0 0
      %1190 = vmatmul.mubr.bf16.gmra.mxu0 %v438
      %v1191 = vpop.f32.mrf.mxu0
      %v1192 = vadd.f32 0.0, %v1191
      %v1193 = vpop.f32.mrf.mxu0
      %v1194 = vpop.f32.mrf.mxu0
      %v1195 = vadd.f32 0.0, %v1194
      %v1196 = vpop.f32.mrf.mxu0
      %1197 = vmatprep.mubr.bf16.mxu0 0
      %1198 = vmatmul.mubr.bf16.gmra.mxu0 %v441
      %v1199 = vpop.f32.mrf.mxu0
      %v1200 = vadd.f32 0.0, %v1199
      %v1201 = vpop.f32.mrf.mxu0
      %v1202 = vpop.f32.mrf.mxu0
      %v1203 = vadd.f32 0.0, %v1202
      %v1204 = vpop.f32.mrf.mxu0
      %1205 = vmatprep.mubr.bf16.mxu0 0
      %1206 = vmatmul.mubr.bf16.gmra.mxu0 %v444
      %v1207 = vpop.f32.mrf.mxu0
      %v1208 = vadd.f32 0.0, %v1207
      %v1209 = vpop.f32.mrf.mxu0
      %v1210 = vpop.f32.mrf.mxu0
      %v1211 = vadd.f32 0.0, %v1210
      %v1212 = vpop.f32.mrf.mxu0
      %1213 = vmatprep.mubr.bf16.mxu0 0
      %1214 = vmatmul.mubr.bf16.gmra.mxu0 %v447
      %v1215 = vpop.f32.mrf.mxu0
      %v1216 = vadd.f32 0.0, %v1215
      %v1217 = vpop.f32.mrf.mxu0
      %v1218 = vpop.f32.mrf.mxu0
      %v1219 = vadd.f32 0.0, %v1218
      %v1220 = vpop.f32.mrf.mxu0
      %1221 = vmatprep.mubr.bf16.mxu0 0
      %1222 = vmatmul.mubr.bf16.gmra.mxu0 %v450
      %v1223 = vpop.f32.mrf.mxu0
      %v1224 = vadd.f32 0.0, %v1223
      %v1225 = vpop.f32.mrf.mxu0
      %v1226 = vpop.f32.mrf.mxu0
      %v1227 = vadd.f32 0.0, %v1226
      %v1228 = vpop.f32.mrf.mxu0
      %1229 = vmatprep.mubr.bf16.mxu0 0
      %1230 = vmatmul.mubr.bf16.gmra.mxu0 %v453
      %v1231 = vpop.f32.mrf.mxu0
      %v1232 = vadd.f32 0.0, %v1231
      %v1233 = vpop.f32.mrf.mxu0
      %v1234 = vpop.f32.mrf.mxu0
      %v1235 = vadd.f32 0.0, %v1234
      %v1236 = vpop.f32.mrf.mxu0
      %1237 = vmatprep.mubr.bf16.mxu0 0
      %1238 = vmatmul.mubr.bf16.gmra.mxu0 %v456
      %v1239 = vpop.f32.mrf.mxu0
      %v1240 = vadd.f32 0.0, %v1239
      %v1241 = vpop.f32.mrf.mxu0
      %v1242 = vpop.f32.mrf.mxu0
      %v1243 = vadd.f32 0.0, %v1242
      %v1244 = vpop.f32.mrf.mxu0
      %1245 = vmatprep.mubr.bf16.mxu0 0
      %1246 = vmatmul.mubr.bf16.gmra.mxu0 %v459
      %v1247 = vpop.f32.mrf.mxu0
      %v1248 = vadd.f32 0.0, %v1247
      %v1249 = vpop.f32.mrf.mxu0
      %v1250 = vpop.f32.mrf.mxu0
      %v1251 = vadd.f32 0.0, %v1250
      %v1252 = vpop.f32.mrf.mxu0
      %1253 = vmatprep.mubr.bf16.mxu0 0
      %1254 = vmatmul.mubr.bf16.gmra.mxu0 %v462
      %v1255 = vpop.f32.mrf.mxu0
      %v1256 = vadd.f32 0.0, %v1255
      %v1257 = vpop.f32.mrf.mxu0
      %v1258 = vpop.f32.mrf.mxu0
      %v1259 = vadd.f32 0.0, %v1258
      %v1260 = vpop.f32.mrf.mxu0
      %1261 = vmatprep.mubr.bf16.mxu0 0
      %1262 = vmatmul.mubr.bf16.gmra.mxu0 %v465
      %v1263 = vpop.f32.mrf.mxu0
      %v1264 = vadd.f32 0.0, %v1263
      %v1265 = vpop.f32.mrf.mxu0
      %v1266 = vpop.f32.mrf.mxu0
      %v1267 = vadd.f32 0.0, %v1266
      %v1268 = vpop.f32.mrf.mxu0
      %1269 = vdwg.mxu0
      %v1270 = vrot.slane %v1080, 2
      %v1271 = vrot.slane %v1083, 2
      %v1272 = vrot.slane %v1088, 2
      %v1273 = vrot.slane %v1091, 2
      %v1274 = vrot.slane %v1096, 2
      %v1275 = vrot.slane %v1099, 2
      %v1276 = vrot.slane %v1104, 2
      %v1277 = vrot.slane %v1107, 2
      %v1278 = vrot.slane %v1112, 2
      %v1279 = vrot.slane %v1115, 2
      %v1280 = vrot.slane %v1120, 2
      %v1281 = vrot.slane %v1123, 2
      %v1282 = vrot.slane %v1128, 2
      %v1283 = vrot.slane %v1131, 2
      %v1284 = vrot.slane %v1136, 2
      %v1285 = vrot.slane %v1139, 2
      %v1286 = vrot.slane %v1144, 2
      %v1287 = vrot.slane %v1147, 2
      %v1288 = vrot.slane %v1152, 2
      %v1289 = vrot.slane %v1155, 2
      %v1290 = vrot.slane %v1160, 2
      %v1291 = vrot.slane %v1163, 2
      %v1292 = vrot.slane %v1168, 2
      %v1293 = vrot.slane %v1171, 2
      %v1294 = vrot.slane %v1176, 2
      %v1295 = vrot.slane %v1179, 2
      %v1296 = vrot.slane %v1184, 2
      %v1297 = vrot.slane %v1187, 2
      %v1298 = vrot.slane %v1192, 2
      %v1299 = vrot.slane %v1195, 2
      %v1300 = vrot.slane %v1200, 2
      %v1301 = vrot.slane %v1203, 2
      %v1302 = vrot.slane %v1208, 2
      %v1303 = vrot.slane %v1211, 2
      %v1304 = vrot.slane %v1216, 2
      %v1305 = vrot.slane %v1219, 2
      %v1306 = vrot.slane %v1224, 2
      %v1307 = vrot.slane %v1227, 2
      %v1308 = vrot.slane %v1232, 2
      %v1309 = vrot.slane %v1235, 2
      %v1310 = vrot.slane %v1240, 2
      %v1311 = vrot.slane %v1243, 2
      %v1312 = vrot.slane %v1248, 2
      %v1313 = vrot.slane %v1251, 2
      %v1314 = vrot.slane %v1256, 2
      %v1315 = vrot.slane %v1259, 2
      %v1316 = vrot.slane %v1264, 2
      %v1317 = vrot.slane %v1267, 2
      %vm1318 = vcmp.lt.s32.totalorder %v741, 6
      %v1319 = vsel %vm1318, %v1316, %v1317
      %v1320 = vsel %vm1318, %v1315, %v1316
      %v1321 = vsel %vm1318, %v1314, %v1315
      %v1322 = vsel %vm1318, %v1313, %v1314
      %v1323 = vsel %vm1318, %v1312, %v1313
      %v1324 = vsel %vm1318, %v1311, %v1312
      %v1325 = vsel %vm1318, %v1310, %v1311
      %v1326 = vsel %vm1318, %v1309, %v1310
      %v1327 = vsel %vm1318, %v1308, %v1309
      %v1328 = vsel %vm1318, %v1307, %v1308
      %v1329 = vsel %vm1318, %v1306, %v1307
      %v1330 = vsel %vm1318, %v1305, %v1306
      %v1331 = vsel %vm1318, %v1304, %v1305
      %v1332 = vsel %vm1318, %v1303, %v1304
      %v1333 = vsel %vm1318, %v1302, %v1303
      %v1334 = vsel %vm1318, %v1301, %v1302
      %v1335 = vsel %vm1318, %v1300, %v1301
      %v1336 = vsel %vm1318, %v1299, %v1300
      %v1337 = vsel %vm1318, %v1298, %v1299
      %v1338 = vsel %vm1318, %v1297, %v1298
      %v1339 = vsel %vm1318, %v1296, %v1297
      %v1340 = vsel %vm1318, %v1295, %v1296
      %v1341 = vsel %vm1318, %v1294, %v1295
      %v1342 = vsel %vm1318, %v1293, %v1294
      %v1343 = vsel %vm1318, %v1292, %v1293
      %v1344 = vsel %vm1318, %v1291, %v1292
      %v1345 = vsel %vm1318, %v1290, %v1291
      %v1346 = vsel %vm1318, %v1289, %v1290
      %v1347 = vsel %vm1318, %v1288, %v1289
      %v1348 = vsel %vm1318, %v1287, %v1288
      %v1349 = vsel %vm1318, %v1286, %v1287
      %v1350 = vsel %vm1318, %v1285, %v1286
      %v1351 = vsel %vm1318, %v1284, %v1285
      %v1352 = vsel %vm1318, %v1283, %v1284
      %v1353 = vsel %vm1318, %v1282, %v1283
      %v1354 = vsel %vm1318, %v1281, %v1282
      %v1355 = vsel %vm1318, %v1280, %v1281
      %v1356 = vsel %vm1318, %v1279, %v1280
      %v1357 = vsel %vm1318, %v1278, %v1279
      %v1358 = vsel %vm1318, %v1277, %v1278
      %v1359 = vsel %vm1318, %v1276, %v1277
      %v1360 = vsel %vm1318, %v1275, %v1276
      %v1361 = vsel %vm1318, %v1274, %v1275
      %v1362 = vsel %vm1318, %v1273, %v1274
      %v1363 = vsel %vm1318, %v1272, %v1273
      %v1364 = vsel %vm1318, %v1271, %v1272
      %v1365 = vsel %vm1318, %v1270, %v1271
      %v1366 = vsel %vm1318, %v1317, %v1270
      %v1367 = vadd.f32 %v838, %v1365
      %v1368 = vadd.f32 %v841, %v1364
      %v1369 = vadd.f32 %v846, %v1363
      %v1370 = vadd.f32 %v849, %v1362
      %v1371 = vadd.f32 %v854, %v1361
      %v1372 = vadd.f32 %v857, %v1360
      %v1373 = vadd.f32 %v862, %v1359
      %v1374 = vadd.f32 %v865, %v1358
      %v1375 = vadd.f32 %v870, %v1357
      %v1376 = vadd.f32 %v873, %v1356
      %v1377 = vadd.f32 %v878, %v1355
      %v1378 = vadd.f32 %v881, %v1354
      %v1379 = vadd.f32 %v886, %v1353
      %v1380 = vadd.f32 %v889, %v1352
      %v1381 = vadd.f32 %v894, %v1351
      %v1382 = vadd.f32 %v897, %v1350
      %v1383 = vadd.f32 %v902, %v1349
      %v1384 = vadd.f32 %v905, %v1348
      %v1385 = vadd.f32 %v910, %v1347
      %v1386 = vadd.f32 %v913, %v1346
      %v1387 = vadd.f32 %v918, %v1345
      %v1388 = vadd.f32 %v921, %v1344
      %v1389 = vadd.f32 %v926, %v1343
      %v1390 = vadd.f32 %v929, %v1342
      %v1391 = vadd.f32 %v934, %v1341
      %v1392 = vadd.f32 %v937, %v1340
      %v1393 = vadd.f32 %v942, %v1339
      %v1394 = vadd.f32 %v945, %v1338
      %v1395 = vadd.f32 %v950, %v1337
      %v1396 = vadd.f32 %v953, %v1336
      %v1397 = vadd.f32 %v958, %v1335
      %v1398 = vadd.f32 %v961, %v1334
      %v1399 = vadd.f32 %v966, %v1333
      %v1400 = vadd.f32 %v969, %v1332
      %v1401 = vadd.f32 %v974, %v1331
      %v1402 = vadd.f32 %v977, %v1330
      %v1403 = vadd.f32 %v982, %v1329
      %v1404 = vadd.f32 %v985, %v1328
      %v1405 = vadd.f32 %v990, %v1327
      %v1406 = vadd.f32 %v993, %v1326
      %v1407 = vadd.f32 %v998, %v1325
      %v1408 = vadd.f32 %v1001, %v1324
      %v1409 = vadd.f32 %v1006, %v1323
      %v1410 = vadd.f32 %v1009, %v1322
      %v1411 = vadd.f32 %v1014, %v1321
      %v1412 = vadd.f32 %v1017, %v1320
      %v1413 = vadd.f32 %v1022, %v1319
      %v1414 = vadd.f32 %v1025, %v1366
      %1415 = vst.msk [vmem:[#allocation2] sm:$0xff] %vm394, %v1367
      %1416 = vst.msk [vmem:[#allocation2 + $0x8] sm:$0xff] %vm394, %v1368
      %1417 = vst.msk [vmem:[#allocation2 + $0x10] sm:$0xff] %vm394, %v1369
      %1418 = vst.msk [vmem:[#allocation2 + $0x18] sm:$0xff] %vm394, %v1370
      %1419 = vst.msk [vmem:[#allocation2 + $0x20] sm:$0xff] %vm394, %v1371
      %1420 = vst.msk [vmem:[#allocation2 + $0x28] sm:$0xff] %vm394, %v1372
      %1421 = vst.msk [vmem:[#allocation2 + $0x30] sm:$0xff] %vm394, %v1373
      %1422 = vst.msk [vmem:[#allocation2 + $0x38] sm:$0xff] %vm394, %v1374
      %1423 = vst.msk [vmem:[#allocation2 + $0x40] sm:$0xff] %vm394, %v1375
      %1424 = vst.msk [vmem:[#allocation2 + $0x48] sm:$0xff] %vm394, %v1376
      %1425 = vst.msk [vmem:[#allocation2 + $0x50] sm:$0xff] %vm394, %v1377
      %1426 = vst.msk [vmem:[#allocation2 + $0x58] sm:$0xff] %vm394, %v1378
      %1427 = vst.msk [vmem:[#allocation2 + $0x60] sm:$0xff] %vm394, %v1379
      %1428 = vst.msk [vmem:[#allocation2 + $0x68] sm:$0xff] %vm394, %v1380
      %1429 = vst.msk [vmem:[#allocation2 + $0x70] sm:$0xff] %vm394, %v1381
      %1430 = vst.msk [vmem:[#allocation2 + $0x78] sm:$0xff] %vm394, %v1382
      %1431 = vst.msk [vmem:[#allocation2 + $0x80] sm:$0xff] %vm394, %v1383
      %1432 = vst.msk [vmem:[#allocation2 + $0x88] sm:$0xff] %vm394, %v1384
      %1433 = vst.msk [vmem:[#allocation2 + $0x90] sm:$0xff] %vm394, %v1385
      %1434 = vst.msk [vmem:[#allocation2 + $0x98] sm:$0xff] %vm394, %v1386
      %1435 = vst.msk [vmem:[#allocation2 + $0xa0] sm:$0xff] %vm394, %v1387
      %1436 = vst.msk [vmem:[#allocation2 + $0xa8] sm:$0xff] %vm394, %v1388
      %1437 = vst.msk [vmem:[#allocation2 + $0xb0] sm:$0xff] %vm394, %v1389
      %1438 = vst.msk [vmem:[#allocation2 + $0xb8] sm:$0xff] %vm394, %v1390
      %1439 = vst.msk [vmem:[#allocation2 + $0xc0] sm:$0xff] %vm394, %v1391
      %1440 = vst.msk [vmem:[#allocation2 + $0xc8] sm:$0xff] %vm394, %v1392
      %1441 = vst.msk [vmem:[#allocation2 + $0xd0] sm:$0xff] %vm394, %v1393
      %1442 = vst.msk [vmem:[#allocation2 + $0xd8] sm:$0xff] %vm394, %v1394
      %1443 = vst.msk [vmem:[#allocation2 + $0xe0] sm:$0xff] %vm394, %v1395
      %1444 = vst.msk [vmem:[#allocation2 + $0xe8] sm:$0xff] %vm394, %v1396
      %1445 = vst.msk [vmem:[#allocation2 + $0xf0] sm:$0xff] %vm394, %v1397
      %1446 = vst.msk [vmem:[#allocation2 + $0xf8] sm:$0xff] %vm394, %v1398
      %1447 = vst.msk [vmem:[#allocation2 + $0x100] sm:$0xff] %vm394, %v1399
      %1448 = vst.msk [vmem:[#allocation2 + $0x108] sm:$0xff] %vm394, %v1400
      %1449 = vst.msk [vmem:[#allocation2 + $0x110] sm:$0xff] %vm394, %v1401
      %1450 = vst.msk [vmem:[#allocation2 + $0x118] sm:$0xff] %vm394, %v1402
      %1451 = vst.msk [vmem:[#allocation2 + $0x120] sm:$0xff] %vm394, %v1403
      %1452 = vst.msk [vmem:[#allocation2 + $0x128] sm:$0xff] %vm394, %v1404
      %1453 = vst.msk [vmem:[#allocation2 + $0x130] sm:$0xff] %vm394, %v1405
      %1454 = vst.msk [vmem:[#allocation2 + $0x138] sm:$0xff] %vm394, %v1406
      %1455 = vst.msk [vmem:[#allocation2 + $0x140] sm:$0xff] %vm394, %v1407
      %1456 = vst.msk [vmem:[#allocation2 + $0x148] sm:$0xff] %vm394, %v1408
      %1457 = vst.msk [vmem:[#allocation2 + $0x150] sm:$0xff] %vm394, %v1409
      %1458 = vst.msk [vmem:[#allocation2 + $0x158] sm:$0xff] %vm394, %v1410
      %1459 = vst.msk [vmem:[#allocation2 + $0x160] sm:$0xff] %vm394, %v1411
      %1460 = vst.msk [vmem:[#allocation2 + $0x168] sm:$0xff] %vm394, %v1412
      %1461 = vst.msk [vmem:[#allocation2 + $0x170] sm:$0xff] %vm394, %v1413
      %1462 = vst.msk [vmem:[#allocation2 + $0x178] sm:$0xff] %vm394, %v1414
      %s1463 = scalar_lea.vmem %s1, 48
      %v1464 = vld [vmem:[%s1463] sm:$0xf]
      %v1465 = vld [vmem:[%s1463 + $0x4] sm:$0xf]
      %v1466 = vld [vmem:[%s1463 + $0x8] sm:$0xf]
      %v1467 = vld [vmem:[%s1463 + $0xc] sm:$0xf]
      %s1468 = scalar_lea.vmem %s1, 64
      %v1469 = vld [vmem:[%s1468] sm:$0xf]
      %v1470 = vld [vmem:[%s1468 + $0x4] sm:$0xf]
      %v1471 = vld [vmem:[%s1468 + $0x8] sm:$0xf]
      %v1472 = vld [vmem:[%s1468 + $0xc] sm:$0xf]
      %v1476 = vunpack.c.l.b16 %v247
      %v1477 = vunpack.c.l.b16 %v248
      %v1478 = vunpack.c.l.b16 %v249
      %v1479 = vpack.c.b16 %v314, %v313
      %v1480 = vpack.c.b16 %v316, %v315
      %v1481 = vpack.c.b16 %v318, %v317
      %v1482 = vpack.c.b16 %v320, %v319
      %v1483 = vpack.c.b16 %v322, %v321
      %v1484 = vpack.c.b16 %v324, %v323
      %v1485 = vpack.c.b16 %v326, %v325
      %v1486 = vpack.c.b16 %v328, %v327
      %v1487 = vpack.c.b16 %v330, %v329
      %v1488 = vpack.c.b16 %v332, %v331
      %v1489 = vpack.c.b16 %v334, %v333
      %v1490 = vpack.c.b16 %v336, %v335
      %v1491 = vpack.c.b16 %v338, %v337
      %v1492 = vpack.c.b16 %v340, %v339
      %v1493 = vpack.c.b16 %v342, %v341
      %v1494 = vpack.c.b16 %v344, %v343
      %v1495 = vpack.c.b16 %v346, %v345
      %v1496 = vpack.c.b16 %v348, %v347
      %v1497 = vpack.c.b16 %v350, %v349
      %v1498 = vpack.c.b16 %v352, %v351
      %v1499 = vpack.c.b16 %v354, %v353
      %v1500 = vpack.c.b16 %v356, %v355
      %v1501 = vpack.c.b16 %v1476, %v357
      %v1502 = vpack.c.b16 %v1478, %v1477
      %v1507 = vunpack.c.l.b16 %v1469
      %v1508 = vunpack.c.l.b16 %v1470
      %v1509 = vunpack.c.l.b16 %v1471
      %v1510 = vunpack.c.l.b16 %v1472
      %v1511 = vpack.c.b16 %v1508, %v1507
      %v1512 = vpack.c.b16 %v1510, %v1509
      %v1516 = vsel %vm394, %v1479, 0
      %v1519 = vsel %vm394, %v1480, 0
      %v1522 = vsel %vm394, %v1481, 0
      %v1525 = vsel %vm394, %v1482, 0
      %v1528 = vsel %vm394, %v1483, 0
      %v1531 = vsel %vm394, %v1484, 0
      %v1534 = vsel %vm394, %v1485, 0
      %v1537 = vsel %vm394, %v1486, 0
      %v1540 = vsel %vm394, %v1487, 0
      %v1543 = vsel %vm394, %v1488, 0
      %v1546 = vsel %vm394, %v1489, 0
      %v1549 = vsel %vm394, %v1490, 0
      %v1552 = vsel %vm394, %v1491, 0
      %v1555 = vsel %vm394, %v1492, 0
      %v1558 = vsel %vm394, %v1493, 0
      %v1561 = vsel %vm394, %v1494, 0
      %v1564 = vsel %vm394, %v1495, 0
      %v1567 = vsel %vm394, %v1496, 0
      %v1570 = vsel %vm394, %v1497, 0
      %v1573 = vsel %vm394, %v1498, 0
      %v1576 = vsel %vm394, %v1499, 0
      %v1579 = vsel %vm394, %v1500, 0
      %v1582 = vsel %vm394, %v1501, 0
      %v1585 = vsel %vm394, %v1502, 0
      %1587 = vmatprep.subr.bf16.mxu0 0
      %1588 = vmatpush1.bf16.msra.mxu0 0
      %1589 = vmatprep.subr.bf16.mxu0 0
      %1590 = vmatpush1.bf16.msra.mxu0 0
      %1591 = vmatprep.subr.bf16.mxu0 0
      %1592 = vmatpush1.bf16.msra.mxu0 0
      %1593 = vmatprep.subr.bf16.mxu0 0
      %1594 = vmatpush1.bf16.msra.mxu0 0
      %1595 = vmatprep.subr.bf16.mxu0 0
      %1596 = vmatpush1.bf16.msra.mxu0 0
      %1597 = vmatprep.subr.bf16.mxu0 0
      %1598 = vmatpush1.bf16.msra.mxu0 0
      %1599 = vmatprep.subr.bf16.mxu0 0
      %1600 = vmatpush1.bf16.msra.mxu0 %v1512
      %1601 = vmatprep.subr.bf16.mxu0 0
      %1602 = vmatpush1.bf16.msra.mxu0 %v1511
      %1603 = vmatprep.subr.bf16.mxu0 0
      %1604 = vmatpush2.bf16.msra.mxu0 0
      %1605 = vmatprep.subr.bf16.mxu0 0
      %1606 = vmatpush2.bf16.msra.mxu0 0
      %1607 = vmatprep.subr.bf16.mxu0 0
      %1608 = vmatpush2.bf16.msra.mxu0 0
      %1609 = vmatprep.subr.bf16.mxu0 0
      %1610 = vmatpush2.bf16.msra.mxu0 0
      %1611 = vmatprep.subr.bf16.mxu0 0
      %1612 = vmatpush2.bf16.msra.mxu0 0
      %1613 = vmatprep.subr.bf16.mxu0 0
      %1614 = vmatpush2.bf16.msra.mxu0 0
      %1615 = vmatprep.subr.bf16.mxu0 0
      %1616 = vmatpush2.bf16.msra.mxu0 0
      %1617 = vmatprep.subr.bf16.mxu0 0
      %1618 = vmatpush2.bf16.msra.mxu0 0
      %1619 = vmatprep.mubr.bf16.mxu0 0
      %1620 = vmatmul.mubr.bf16.gmra.mxu0 %v1516
      %v1621 = vpop.f32.mrf.mxu0
      %v1622 = vadd.f32 0.0, %v1621
      %v1623 = vpop.f32.mrf.mxu0
      %v1624 = vpop.f32.mrf.mxu0
      %v1625 = vadd.f32 0.0, %v1624
      %v1626 = vpop.f32.mrf.mxu0
      %1627 = vmatprep.mubr.bf16.mxu0 0
      %1628 = vmatmul.mubr.bf16.gmra.mxu0 %v1519
      %v1629 = vpop.f32.mrf.mxu0
      %v1630 = vadd.f32 0.0, %v1629
      %v1631 = vpop.f32.mrf.mxu0
      %v1632 = vpop.f32.mrf.mxu0
      %v1633 = vadd.f32 0.0, %v1632
      %v1634 = vpop.f32.mrf.mxu0
      %1635 = vmatprep.mubr.bf16.mxu0 0
      %1636 = vmatmul.mubr.bf16.gmra.mxu0 %v1522
      %v1637 = vpop.f32.mrf.mxu0
      %v1638 = vadd.f32 0.0, %v1637
      %v1639 = vpop.f32.mrf.mxu0
      %v1640 = vpop.f32.mrf.mxu0
      %v1641 = vadd.f32 0.0, %v1640
      %v1642 = vpop.f32.mrf.mxu0
      %1643 = vmatprep.mubr.bf16.mxu0 0
      %1644 = vmatmul.mubr.bf16.gmra.mxu0 %v1525
      %v1645 = vpop.f32.mrf.mxu0
      %v1646 = vadd.f32 0.0, %v1645
      %v1647 = vpop.f32.mrf.mxu0
      %v1648 = vpop.f32.mrf.mxu0
      %v1649 = vadd.f32 0.0, %v1648
      %v1650 = vpop.f32.mrf.mxu0
      %1651 = vmatprep.mubr.bf16.mxu0 0
      %1652 = vmatmul.mubr.bf16.gmra.mxu0 %v1528
      %v1653 = vpop.f32.mrf.mxu0
      %v1654 = vadd.f32 0.0, %v1653
      %v1655 = vpop.f32.mrf.mxu0
      %v1656 = vpop.f32.mrf.mxu0
      %v1657 = vadd.f32 0.0, %v1656
      %v1658 = vpop.f32.mrf.mxu0
      %1659 = vmatprep.mubr.bf16.mxu0 0
      %1660 = vmatmul.mubr.bf16.gmra.mxu0 %v1531
      %v1661 = vpop.f32.mrf.mxu0
      %v1662 = vadd.f32 0.0, %v1661
      %v1663 = vpop.f32.mrf.mxu0
      %v1664 = vpop.f32.mrf.mxu0
      %v1665 = vadd.f32 0.0, %v1664
      %v1666 = vpop.f32.mrf.mxu0
      %1667 = vmatprep.mubr.bf16.mxu0 0
      %1668 = vmatmul.mubr.bf16.gmra.mxu0 %v1534
      %v1669 = vpop.f32.mrf.mxu0
      %v1670 = vadd.f32 0.0, %v1669
      %v1671 = vpop.f32.mrf.mxu0
      %v1672 = vpop.f32.mrf.mxu0
      %v1673 = vadd.f32 0.0, %v1672
      %v1674 = vpop.f32.mrf.mxu0
      %1675 = vmatprep.mubr.bf16.mxu0 0
      %1676 = vmatmul.mubr.bf16.gmra.mxu0 %v1537
      %v1677 = vpop.f32.mrf.mxu0
      %v1678 = vadd.f32 0.0, %v1677
      %v1679 = vpop.f32.mrf.mxu0
      %v1680 = vpop.f32.mrf.mxu0
      %v1681 = vadd.f32 0.0, %v1680
      %v1682 = vpop.f32.mrf.mxu0
      %1683 = vmatprep.mubr.bf16.mxu0 0
      %1684 = vmatmul.mubr.bf16.gmra.mxu0 %v1540
      %v1685 = vpop.f32.mrf.mxu0
      %v1686 = vadd.f32 0.0, %v1685
      %v1687 = vpop.f32.mrf.mxu0
      %v1688 = vpop.f32.mrf.mxu0
      %v1689 = vadd.f32 0.0, %v1688
      %v1690 = vpop.f32.mrf.mxu0
      %1691 = vmatprep.mubr.bf16.mxu0 0
      %1692 = vmatmul.mubr.bf16.gmra.mxu0 %v1543
      %v1693 = vpop.f32.mrf.mxu0
      %v1694 = vadd.f32 0.0, %v1693
      %v1695 = vpop.f32.mrf.mxu0
      %v1696 = vpop.f32.mrf.mxu0
      %v1697 = vadd.f32 0.0, %v1696
      %v1698 = vpop.f32.mrf.mxu0
      %1699 = vmatprep.mubr.bf16.mxu0 0
      %1700 = vmatmul.mubr.bf16.gmra.mxu0 %v1546
      %v1701 = vpop.f32.mrf.mxu0
      %v1702 = vadd.f32 0.0, %v1701
      %v1703 = vpop.f32.mrf.mxu0
      %v1704 = vpop.f32.mrf.mxu0
      %v1705 = vadd.f32 0.0, %v1704
      %v1706 = vpop.f32.mrf.mxu0
      %1707 = vmatprep.mubr.bf16.mxu0 0
      %1708 = vmatmul.mubr.bf16.gmra.mxu0 %v1549
      %v1709 = vpop.f32.mrf.mxu0
      %v1710 = vadd.f32 0.0, %v1709
      %v1711 = vpop.f32.mrf.mxu0
      %v1712 = vpop.f32.mrf.mxu0
      %v1713 = vadd.f32 0.0, %v1712
      %v1714 = vpop.f32.mrf.mxu0
      %1715 = vmatprep.mubr.bf16.mxu0 0
      %1716 = vmatmul.mubr.bf16.gmra.mxu0 %v1552
      %v1717 = vpop.f32.mrf.mxu0
      %v1718 = vadd.f32 0.0, %v1717
      %v1719 = vpop.f32.mrf.mxu0
      %v1720 = vpop.f32.mrf.mxu0
      %v1721 = vadd.f32 0.0, %v1720
      %v1722 = vpop.f32.mrf.mxu0
      %1723 = vmatprep.mubr.bf16.mxu0 0
      %1724 = vmatmul.mubr.bf16.gmra.mxu0 %v1555
      %v1725 = vpop.f32.mrf.mxu0
      %v1726 = vadd.f32 0.0, %v1725
      %v1727 = vpop.f32.mrf.mxu0
      %v1728 = vpop.f32.mrf.mxu0
      %v1729 = vadd.f32 0.0, %v1728
      %v1730 = vpop.f32.mrf.mxu0
      %1731 = vmatprep.mubr.bf16.mxu0 0
      %1732 = vmatmul.mubr.bf16.gmra.mxu0 %v1558
      %v1733 = vpop.f32.mrf.mxu0
      %v1734 = vadd.f32 0.0, %v1733
      %v1735 = vpop.f32.mrf.mxu0
      %v1736 = vpop.f32.mrf.mxu0
      %v1737 = vadd.f32 0.0, %v1736
      %v1738 = vpop.f32.mrf.mxu0
      %1739 = vmatprep.mubr.bf16.mxu0 0
      %1740 = vmatmul.mubr.bf16.gmra.mxu0 %v1561
      %v1741 = vpop.f32.mrf.mxu0
      %v1742 = vadd.f32 0.0, %v1741
      %v1743 = vpop.f32.mrf.mxu0
      %v1744 = vpop.f32.mrf.mxu0
      %v1745 = vadd.f32 0.0, %v1744
      %v1746 = vpop.f32.mrf.mxu0
      %1747 = vmatprep.mubr.bf16.mxu0 0
      %1748 = vmatmul.mubr.bf16.gmra.mxu0 %v1564
      %v1749 = vpop.f32.mrf.mxu0
      %v1750 = vadd.f32 0.0, %v1749
      %v1751 = vpop.f32.mrf.mxu0
      %v1752 = vpop.f32.mrf.mxu0
      %v1753 = vadd.f32 0.0, %v1752
      %v1754 = vpop.f32.mrf.mxu0
      %1755 = vmatprep.mubr.bf16.mxu0 0
      %1756 = vmatmul.mubr.bf16.gmra.mxu0 %v1567
      %v1757 = vpop.f32.mrf.mxu0
      %v1758 = vadd.f32 0.0, %v1757
      %v1759 = vpop.f32.mrf.mxu0
      %v1760 = vpop.f32.mrf.mxu0
      %v1761 = vadd.f32 0.0, %v1760
      %v1762 = vpop.f32.mrf.mxu0
      %1763 = vmatprep.mubr.bf16.mxu0 0
      %1764 = vmatmul.mubr.bf16.gmra.mxu0 %v1570
      %v1765 = vpop.f32.mrf.mxu0
      %v1766 = vadd.f32 0.0, %v1765
      %v1767 = vpop.f32.mrf.mxu0
      %v1768 = vpop.f32.mrf.mxu0
      %v1769 = vadd.f32 0.0, %v1768
      %v1770 = vpop.f32.mrf.mxu0
      %1771 = vmatprep.mubr.bf16.mxu0 0
      %1772 = vmatmul.mubr.bf16.gmra.mxu0 %v1573
      %v1773 = vpop.f32.mrf.mxu0
      %v1774 = vadd.f32 0.0, %v1773
      %v1775 = vpop.f32.mrf.mxu0
      %v1776 = vpop.f32.mrf.mxu0
      %v1777 = vadd.f32 0.0, %v1776
      %v1778 = vpop.f32.mrf.mxu0
      %1779 = vmatprep.mubr.bf16.mxu0 0
      %1780 = vmatmul.mubr.bf16.gmra.mxu0 %v1576
      %v1781 = vpop.f32.mrf.mxu0
      %v1782 = vadd.f32 0.0, %v1781
      %v1783 = vpop.f32.mrf.mxu0
      %v1784 = vpop.f32.mrf.mxu0
      %v1785 = vadd.f32 0.0, %v1784
      %v1786 = vpop.f32.mrf.mxu0
      %1787 = vmatprep.mubr.bf16.mxu0 0
      %1788 = vmatmul.mubr.bf16.gmra.mxu0 %v1579
      %v1789 = vpop.f32.mrf.mxu0
      %v1790 = vadd.f32 0.0, %v1789
      %v1791 = vpop.f32.mrf.mxu0
      %v1792 = vpop.f32.mrf.mxu0
      %v1793 = vadd.f32 0.0, %v1792
      %v1794 = vpop.f32.mrf.mxu0
      %1795 = vmatprep.mubr.bf16.mxu0 0
      %1796 = vmatmul.mubr.bf16.gmra.mxu0 %v1582
      %v1797 = vpop.f32.mrf.mxu0
      %v1798 = vadd.f32 0.0, %v1797
      %v1799 = vpop.f32.mrf.mxu0
      %v1800 = vpop.f32.mrf.mxu0
      %v1801 = vadd.f32 0.0, %v1800
      %v1802 = vpop.f32.mrf.mxu0
      %1803 = vmatprep.mubr.bf16.mxu0 0
      %1804 = vmatmul.mubr.bf16.gmra.mxu0 %v1585
      %v1805 = vpop.f32.mrf.mxu0
      %v1806 = vadd.f32 0.0, %v1805
      %v1807 = vpop.f32.mrf.mxu0
      %v1808 = vpop.f32.mrf.mxu0
      %v1809 = vadd.f32 0.0, %v1808
      %v1810 = vpop.f32.mrf.mxu0
      %1811 = vdwg.mxu0
      %v1812 = vrot.slane %v1622, 1
      %v1813 = vrot.slane %v1625, 1
      %v1814 = vrot.slane %v1630, 1
      %v1815 = vrot.slane %v1633, 1
      %v1816 = vrot.slane %v1638, 1
      %v1817 = vrot.slane %v1641, 1
      %v1818 = vrot.slane %v1646, 1
      %v1819 = vrot.slane %v1649, 1
      %v1820 = vrot.slane %v1654, 1
      %v1821 = vrot.slane %v1657, 1
      %v1822 = vrot.slane %v1662, 1
      %v1823 = vrot.slane %v1665, 1
      %v1824 = vrot.slane %v1670, 1
      %v1825 = vrot.slane %v1673, 1
      %v1826 = vrot.slane %v1678, 1
      %v1827 = vrot.slane %v1681, 1
      %v1828 = vrot.slane %v1686, 1
      %v1829 = vrot.slane %v1689, 1
      %v1830 = vrot.slane %v1694, 1
      %v1831 = vrot.slane %v1697, 1
      %v1832 = vrot.slane %v1702, 1
      %v1833 = vrot.slane %v1705, 1
      %v1834 = vrot.slane %v1710, 1
      %v1835 = vrot.slane %v1713, 1
      %v1836 = vrot.slane %v1718, 1
      %v1837 = vrot.slane %v1721, 1
      %v1838 = vrot.slane %v1726, 1
      %v1839 = vrot.slane %v1729, 1
      %v1840 = vrot.slane %v1734, 1
      %v1841 = vrot.slane %v1737, 1
      %v1842 = vrot.slane %v1742, 1
      %v1843 = vrot.slane %v1745, 1
      %v1844 = vrot.slane %v1750, 1
      %v1845 = vrot.slane %v1753, 1
      %v1846 = vrot.slane %v1758, 1
      %v1847 = vrot.slane %v1761, 1
      %v1848 = vrot.slane %v1766, 1
      %v1849 = vrot.slane %v1769, 1
      %v1850 = vrot.slane %v1774, 1
      %v1851 = vrot.slane %v1777, 1
      %v1852 = vrot.slane %v1782, 1
      %v1853 = vrot.slane %v1785, 1
      %v1854 = vrot.slane %v1790, 1
      %v1855 = vrot.slane %v1793, 1
      %v1856 = vrot.slane %v1798, 1
      %v1857 = vrot.slane %v1801, 1
      %v1858 = vrot.slane %v1806, 1
      %v1859 = vrot.slane %v1809, 1
      %v1860 = vsel %vm742, %v1858, %v1859
      %v1861 = vsel %vm742, %v1857, %v1858
      %v1862 = vsel %vm742, %v1856, %v1857
      %v1863 = vsel %vm742, %v1855, %v1856
      %v1864 = vsel %vm742, %v1854, %v1855
      %v1865 = vsel %vm742, %v1853, %v1854
      %v1866 = vsel %vm742, %v1852, %v1853
      %v1867 = vsel %vm742, %v1851, %v1852
      %v1868 = vsel %vm742, %v1850, %v1851
      %v1869 = vsel %vm742, %v1849, %v1850
      %v1870 = vsel %vm742, %v1848, %v1849
      %v1871 = vsel %vm742, %v1847, %v1848
      %v1872 = vsel %vm742, %v1846, %v1847
      %v1873 = vsel %vm742, %v1845, %v1846
      %v1874 = vsel %vm742, %v1844, %v1845
      %v1875 = vsel %vm742, %v1843, %v1844
      %v1876 = vsel %vm742, %v1842, %v1843
      %v1877 = vsel %vm742, %v1841, %v1842
      %v1878 = vsel %vm742, %v1840, %v1841
      %v1879 = vsel %vm742, %v1839, %v1840
      %v1880 = vsel %vm742, %v1838, %v1839
      %v1881 = vsel %vm742, %v1837, %v1838
      %v1882 = vsel %vm742, %v1836, %v1837
      %v1883 = vsel %vm742, %v1835, %v1836
      %v1884 = vsel %vm742, %v1834, %v1835
      %v1885 = vsel %vm742, %v1833, %v1834
      %v1886 = vsel %vm742, %v1832, %v1833
      %v1887 = vsel %vm742, %v1831, %v1832
      %v1888 = vsel %vm742, %v1830, %v1831
      %v1889 = vsel %vm742, %v1829, %v1830
      %v1890 = vsel %vm742, %v1828, %v1829
      %v1891 = vsel %vm742, %v1827, %v1828
      %v1892 = vsel %vm742, %v1826, %v1827
      %v1893 = vsel %vm742, %v1825, %v1826
      %v1894 = vsel %vm742, %v1824, %v1825
      %v1895 = vsel %vm742, %v1823, %v1824
      %v1896 = vsel %vm742, %v1822, %v1823
      %v1897 = vsel %vm742, %v1821, %v1822
      %v1898 = vsel %vm742, %v1820, %v1821
      %v1899 = vsel %vm742, %v1819, %v1820
      %v1900 = vsel %vm742, %v1818, %v1819
      %v1901 = vsel %vm742, %v1817, %v1818
      %v1902 = vsel %vm742, %v1816, %v1817
      %v1903 = vsel %vm742, %v1815, %v1816
      %v1904 = vsel %vm742, %v1814, %v1815
      %v1905 = vsel %vm742, %v1813, %v1814
      %v1906 = vsel %vm742, %v1812, %v1813
      %v1907 = vsel %vm742, %v1859, %v1812
      %v1912 = vunpack.c.l.b16 %v1464
      %v1913 = vunpack.c.l.b16 %v1465
      %v1914 = vunpack.c.l.b16 %v1466
      %v1915 = vunpack.c.l.b16 %v1467
      %v1916 = vpack.c.b16 %v1913, %v1912
      %v1917 = vpack.c.b16 %v1915, %v1914
      %1920 = vmatprep.subr.bf16.mxu0 0
      %1921 = vmatpush1.bf16.msra.mxu0 0
      %1922 = vmatprep.subr.bf16.mxu0 0
      %1923 = vmatpush1.bf16.msra.mxu0 0
      %1924 = vmatprep.subr.bf16.mxu0 0
      %1925 = vmatpush1.bf16.msra.mxu0 0
      %1926 = vmatprep.subr.bf16.mxu0 0
      %1927 = vmatpush1.bf16.msra.mxu0 0
      %1928 = vmatprep.subr.bf16.mxu0 0
      %1929 = vmatpush1.bf16.msra.mxu0 0
      %1930 = vmatprep.subr.bf16.mxu0 0
      %1931 = vmatpush1.bf16.msra.mxu0 0
      %1932 = vmatprep.subr.bf16.mxu0 0
      %1933 = vmatpush1.bf16.msra.mxu0 %v1917
      %1934 = vmatprep.subr.bf16.mxu0 0
      %1935 = vmatpush1.bf16.msra.mxu0 %v1916
      %1936 = vmatprep.subr.bf16.mxu0 0
      %1937 = vmatpush2.bf16.msra.mxu0 0
      %1938 = vmatprep.subr.bf16.mxu0 0
      %1939 = vmatpush2.bf16.msra.mxu0 0
      %1940 = vmatprep.subr.bf16.mxu0 0
      %1941 = vmatpush2.bf16.msra.mxu0 0
      %1942 = vmatprep.subr.bf16.mxu0 0
      %1943 = vmatpush2.bf16.msra.mxu0 0
      %1944 = vmatprep.subr.bf16.mxu0 0
      %1945 = vmatpush2.bf16.msra.mxu0 0
      %1946 = vmatprep.subr.bf16.mxu0 0
      %1947 = vmatpush2.bf16.msra.mxu0 0
      %1948 = vmatprep.subr.bf16.mxu0 0
      %1949 = vmatpush2.bf16.msra.mxu0 0
      %1950 = vmatprep.subr.bf16.mxu0 0
      %1951 = vmatpush2.bf16.msra.mxu0 0
      %1952 = vmatprep.mubr.bf16.mxu0 0
      %1953 = vmatmul.mubr.bf16.gmra.mxu0 %v1516
      %v1954 = vpop.f32.mrf.mxu0
      %v1955 = vadd.f32 %v1906, %v1954
      %v1956 = vpop.f32.mrf.mxu0
      %v1957 = vpop.f32.mrf.mxu0
      %v1958 = vadd.f32 %v1905, %v1957
      %v1959 = vpop.f32.mrf.mxu0
      %1960 = vmatprep.mubr.bf16.mxu0 0
      %1961 = vmatmul.mubr.bf16.gmra.mxu0 %v1519
      %v1962 = vpop.f32.mrf.mxu0
      %v1963 = vadd.f32 %v1904, %v1962
      %v1964 = vpop.f32.mrf.mxu0
      %v1965 = vpop.f32.mrf.mxu0
      %v1966 = vadd.f32 %v1903, %v1965
      %v1967 = vpop.f32.mrf.mxu0
      %1968 = vmatprep.mubr.bf16.mxu0 0
      %1969 = vmatmul.mubr.bf16.gmra.mxu0 %v1522
      %v1970 = vpop.f32.mrf.mxu0
      %v1971 = vadd.f32 %v1902, %v1970
      %v1972 = vpop.f32.mrf.mxu0
      %v1973 = vpop.f32.mrf.mxu0
      %v1974 = vadd.f32 %v1901, %v1973
      %v1975 = vpop.f32.mrf.mxu0
      %1976 = vmatprep.mubr.bf16.mxu0 0
      %1977 = vmatmul.mubr.bf16.gmra.mxu0 %v1525
      %v1978 = vpop.f32.mrf.mxu0
      %v1979 = vadd.f32 %v1900, %v1978
      %v1980 = vpop.f32.mrf.mxu0
      %v1981 = vpop.f32.mrf.mxu0
      %v1982 = vadd.f32 %v1899, %v1981
      %v1983 = vpop.f32.mrf.mxu0
      %1984 = vmatprep.mubr.bf16.mxu0 0
      %1985 = vmatmul.mubr.bf16.gmra.mxu0 %v1528
      %v1986 = vpop.f32.mrf.mxu0
      %v1987 = vadd.f32 %v1898, %v1986
      %v1988 = vpop.f32.mrf.mxu0
      %v1989 = vpop.f32.mrf.mxu0
      %v1990 = vadd.f32 %v1897, %v1989
      %v1991 = vpop.f32.mrf.mxu0
      %1992 = vmatprep.mubr.bf16.mxu0 0
      %1993 = vmatmul.mubr.bf16.gmra.mxu0 %v1531
      %v1994 = vpop.f32.mrf.mxu0
      %v1995 = vadd.f32 %v1896, %v1994
      %v1996 = vpop.f32.mrf.mxu0
      %v1997 = vpop.f32.mrf.mxu0
      %v1998 = vadd.f32 %v1895, %v1997
      %v1999 = vpop.f32.mrf.mxu0
      %2000 = vmatprep.mubr.bf16.mxu0 0
      %2001 = vmatmul.mubr.bf16.gmra.mxu0 %v1534
      %v2002 = vpop.f32.mrf.mxu0
      %v2003 = vadd.f32 %v1894, %v2002
      %v2004 = vpop.f32.mrf.mxu0
      %v2005 = vpop.f32.mrf.mxu0
      %v2006 = vadd.f32 %v1893, %v2005
      %v2007 = vpop.f32.mrf.mxu0
      %2008 = vmatprep.mubr.bf16.mxu0 0
      %2009 = vmatmul.mubr.bf16.gmra.mxu0 %v1537
      %v2010 = vpop.f32.mrf.mxu0
      %v2011 = vadd.f32 %v1892, %v2010
      %v2012 = vpop.f32.mrf.mxu0
      %v2013 = vpop.f32.mrf.mxu0
      %v2014 = vadd.f32 %v1891, %v2013
      %v2015 = vpop.f32.mrf.mxu0
      %2016 = vmatprep.mubr.bf16.mxu0 0
      %2017 = vmatmul.mubr.bf16.gmra.mxu0 %v1540
      %v2018 = vpop.f32.mrf.mxu0
      %v2019 = vadd.f32 %v1890, %v2018
      %v2020 = vpop.f32.mrf.mxu0
      %v2021 = vpop.f32.mrf.mxu0
      %v2022 = vadd.f32 %v1889, %v2021
      %v2023 = vpop.f32.mrf.mxu0
      %2024 = vmatprep.mubr.bf16.mxu0 0
      %2025 = vmatmul.mubr.bf16.gmra.mxu0 %v1543
      %v2026 = vpop.f32.mrf.mxu0
      %v2027 = vadd.f32 %v1888, %v2026
      %v2028 = vpop.f32.mrf.mxu0
      %v2029 = vpop.f32.mrf.mxu0
      %v2030 = vadd.f32 %v1887, %v2029
      %v2031 = vpop.f32.mrf.mxu0
      %2032 = vmatprep.mubr.bf16.mxu0 0
      %2033 = vmatmul.mubr.bf16.gmra.mxu0 %v1546
      %v2034 = vpop.f32.mrf.mxu0
      %v2035 = vadd.f32 %v1886, %v2034
      %v2036 = vpop.f32.mrf.mxu0
      %v2037 = vpop.f32.mrf.mxu0
      %v2038 = vadd.f32 %v1885, %v2037
      %v2039 = vpop.f32.mrf.mxu0
      %2040 = vmatprep.mubr.bf16.mxu0 0
      %2041 = vmatmul.mubr.bf16.gmra.mxu0 %v1549
      %v2042 = vpop.f32.mrf.mxu0
      %v2043 = vadd.f32 %v1884, %v2042
      %v2044 = vpop.f32.mrf.mxu0
      %v2045 = vpop.f32.mrf.mxu0
      %v2046 = vadd.f32 %v1883, %v2045
      %v2047 = vpop.f32.mrf.mxu0
      %2048 = vmatprep.mubr.bf16.mxu0 0
      %2049 = vmatmul.mubr.bf16.gmra.mxu0 %v1552
      %v2050 = vpop.f32.mrf.mxu0
      %v2051 = vadd.f32 %v1882, %v2050
      %v2052 = vpop.f32.mrf.mxu0
      %v2053 = vpop.f32.mrf.mxu0
      %v2054 = vadd.f32 %v1881, %v2053
      %v2055 = vpop.f32.mrf.mxu0
      %2056 = vmatprep.mubr.bf16.mxu0 0
      %2057 = vmatmul.mubr.bf16.gmra.mxu0 %v1555
      %v2058 = vpop.f32.mrf.mxu0
      %v2059 = vadd.f32 %v1880, %v2058
      %v2060 = vpop.f32.mrf.mxu0
      %v2061 = vpop.f32.mrf.mxu0
      %v2062 = vadd.f32 %v1879, %v2061
      %v2063 = vpop.f32.mrf.mxu0
      %2064 = vmatprep.mubr.bf16.mxu0 0
      %2065 = vmatmul.mubr.bf16.gmra.mxu0 %v1558
      %v2066 = vpop.f32.mrf.mxu0
      %v2067 = vadd.f32 %v1878, %v2066
      %v2068 = vpop.f32.mrf.mxu0
      %v2069 = vpop.f32.mrf.mxu0
      %v2070 = vadd.f32 %v1877, %v2069
      %v2071 = vpop.f32.mrf.mxu0
      %2072 = vmatprep.mubr.bf16.mxu0 0
      %2073 = vmatmul.mubr.bf16.gmra.mxu0 %v1561
      %v2074 = vpop.f32.mrf.mxu0
      %v2075 = vadd.f32 %v1876, %v2074
      %v2076 = vpop.f32.mrf.mxu0
      %v2077 = vpop.f32.mrf.mxu0
      %v2078 = vadd.f32 %v1875, %v2077
      %v2079 = vpop.f32.mrf.mxu0
      %2080 = vmatprep.mubr.bf16.mxu0 0
      %2081 = vmatmul.mubr.bf16.gmra.mxu0 %v1564
      %v2082 = vpop.f32.mrf.mxu0
      %v2083 = vadd.f32 %v1874, %v2082
      %v2084 = vpop.f32.mrf.mxu0
      %v2085 = vpop.f32.mrf.mxu0
      %v2086 = vadd.f32 %v1873, %v2085
      %v2087 = vpop.f32.mrf.mxu0
      %2088 = vmatprep.mubr.bf16.mxu0 0
      %2089 = vmatmul.mubr.bf16.gmra.mxu0 %v1567
      %v2090 = vpop.f32.mrf.mxu0
      %v2091 = vadd.f32 %v1872, %v2090
      %v2092 = vpop.f32.mrf.mxu0
      %v2093 = vpop.f32.mrf.mxu0
      %v2094 = vadd.f32 %v1871, %v2093
      %v2095 = vpop.f32.mrf.mxu0
      %2096 = vmatprep.mubr.bf16.mxu0 0
      %2097 = vmatmul.mubr.bf16.gmra.mxu0 %v1570
      %v2098 = vpop.f32.mrf.mxu0
      %v2099 = vadd.f32 %v1870, %v2098
      %v2100 = vpop.f32.mrf.mxu0
      %v2101 = vpop.f32.mrf.mxu0
      %v2102 = vadd.f32 %v1869, %v2101
      %v2103 = vpop.f32.mrf.mxu0
      %2104 = vmatprep.mubr.bf16.mxu0 0
      %2105 = vmatmul.mubr.bf16.gmra.mxu0 %v1573
      %v2106 = vpop.f32.mrf.mxu0
      %v2107 = vadd.f32 %v1868, %v2106
      %v2108 = vpop.f32.mrf.mxu0
      %v2109 = vpop.f32.mrf.mxu0
      %v2110 = vadd.f32 %v1867, %v2109
      %v2111 = vpop.f32.mrf.mxu0
      %2112 = vmatprep.mubr.bf16.mxu0 0
      %2113 = vmatmul.mubr.bf16.gmra.mxu0 %v1576
      %v2114 = vpop.f32.mrf.mxu0
      %v2115 = vadd.f32 %v1866, %v2114
      %v2116 = vpop.f32.mrf.mxu0
      %v2117 = vpop.f32.mrf.mxu0
      %v2118 = vadd.f32 %v1865, %v2117
      %v2119 = vpop.f32.mrf.mxu0
      %2120 = vmatprep.mubr.bf16.mxu0 0
      %2121 = vmatmul.mubr.bf16.gmra.mxu0 %v1579
      %v2122 = vpop.f32.mrf.mxu0
      %v2123 = vadd.f32 %v1864, %v2122
      %v2124 = vpop.f32.mrf.mxu0
      %v2125 = vpop.f32.mrf.mxu0
      %v2126 = vadd.f32 %v1863, %v2125
      %v2127 = vpop.f32.mrf.mxu0
      %2128 = vmatprep.mubr.bf16.mxu0 0
      %2129 = vmatmul.mubr.bf16.gmra.mxu0 %v1582
      %v2130 = vpop.f32.mrf.mxu0
      %v2131 = vadd.f32 %v1862, %v2130
      %v2132 = vpop.f32.mrf.mxu0
      %v2133 = vpop.f32.mrf.mxu0
      %v2134 = vadd.f32 %v1861, %v2133
      %v2135 = vpop.f32.mrf.mxu0
      %2136 = vmatprep.mubr.bf16.mxu0 0
      %2137 = vmatmul.mubr.bf16.gmra.mxu0 %v1585
      %v2138 = vpop.f32.mrf.mxu0
      %v2139 = vadd.f32 %v1860, %v2138
      %v2140 = vpop.f32.mrf.mxu0
      %v2141 = vpop.f32.mrf.mxu0
      %v2142 = vadd.f32 %v1907, %v2141
      %v2143 = vpop.f32.mrf.mxu0
      %2144 = vdwg.mxu0
      %s2145 = scalar_lea.vmem %s1, 80
      %v2146 = vld [vmem:[%s2145] sm:$0xf]
      %v2147 = vld [vmem:[%s2145 + $0x4] sm:$0xf]
      %v2148 = vld [vmem:[%s2145 + $0x8] sm:$0xf]
      %v2149 = vld [vmem:[%s2145 + $0xc] sm:$0xf]
      %v2154 = vunpack.c.l.b16 %v2146
      %v2155 = vunpack.c.l.b16 %v2147
      %v2156 = vunpack.c.l.b16 %v2148
      %v2157 = vunpack.c.l.b16 %v2149
      %v2158 = vpack.c.b16 %v2155, %v2154
      %v2159 = vpack.c.b16 %v2157, %v2156
      %2162 = vmatprep.subr.bf16.mxu0 0
      %2163 = vmatpush1.bf16.msra.mxu0 0
      %2164 = vmatprep.subr.bf16.mxu0 0
      %2165 = vmatpush1.bf16.msra.mxu0 0
      %2166 = vmatprep.subr.bf16.mxu0 0
      %2167 = vmatpush1.bf16.msra.mxu0 0
      %2168 = vmatprep.subr.bf16.mxu0 0
      %2169 = vmatpush1.bf16.msra.mxu0 0
      %2170 = vmatprep.subr.bf16.mxu0 0
      %2171 = vmatpush1.bf16.msra.mxu0 0
      %2172 = vmatprep.subr.bf16.mxu0 0
      %2173 = vmatpush1.bf16.msra.mxu0 0
      %2174 = vmatprep.subr.bf16.mxu0 0
      %2175 = vmatpush1.bf16.msra.mxu0 %v2159
      %2176 = vmatprep.subr.bf16.mxu0 0
      %2177 = vmatpush1.bf16.msra.mxu0 %v2158
      %2178 = vmatprep.subr.bf16.mxu0 0
      %2179 = vmatpush2.bf16.msra.mxu0 0
      %2180 = vmatprep.subr.bf16.mxu0 0
      %2181 = vmatpush2.bf16.msra.mxu0 0
      %2182 = vmatprep.subr.bf16.mxu0 0
      %2183 = vmatpush2.bf16.msra.mxu0 0
      %2184 = vmatprep.subr.bf16.mxu0 0
      %2185 = vmatpush2.bf16.msra.mxu0 0
      %2186 = vmatprep.subr.bf16.mxu0 0
      %2187 = vmatpush2.bf16.msra.mxu0 0
      %2188 = vmatprep.subr.bf16.mxu0 0
      %2189 = vmatpush2.bf16.msra.mxu0 0
      %2190 = vmatprep.subr.bf16.mxu0 0
      %2191 = vmatpush2.bf16.msra.mxu0 0
      %2192 = vmatprep.subr.bf16.mxu0 0
      %2193 = vmatpush2.bf16.msra.mxu0 0
      %2194 = vmatprep.mubr.bf16.mxu0 0
      %2195 = vmatmul.mubr.bf16.gmra.mxu0 %v1516
      %v2196 = vpop.f32.mrf.mxu0
      %v2197 = vadd.f32 0.0, %v2196
      %v2198 = vpop.f32.mrf.mxu0
      %v2199 = vpop.f32.mrf.mxu0
      %v2200 = vadd.f32 0.0, %v2199
      %v2201 = vpop.f32.mrf.mxu0
      %2202 = vmatprep.mubr.bf16.mxu0 0
      %2203 = vmatmul.mubr.bf16.gmra.mxu0 %v1519
      %v2204 = vpop.f32.mrf.mxu0
      %v2205 = vadd.f32 0.0, %v2204
      %v2206 = vpop.f32.mrf.mxu0
      %v2207 = vpop.f32.mrf.mxu0
      %v2208 = vadd.f32 0.0, %v2207
      %v2209 = vpop.f32.mrf.mxu0
      %2210 = vmatprep.mubr.bf16.mxu0 0
      %2211 = vmatmul.mubr.bf16.gmra.mxu0 %v1522
      %v2212 = vpop.f32.mrf.mxu0
      %v2213 = vadd.f32 0.0, %v2212
      %v2214 = vpop.f32.mrf.mxu0
      %v2215 = vpop.f32.mrf.mxu0
      %v2216 = vadd.f32 0.0, %v2215
      %v2217 = vpop.f32.mrf.mxu0
      %2218 = vmatprep.mubr.bf16.mxu0 0
      %2219 = vmatmul.mubr.bf16.gmra.mxu0 %v1525
      %v2220 = vpop.f32.mrf.mxu0
      %v2221 = vadd.f32 0.0, %v2220
      %v2222 = vpop.f32.mrf.mxu0
      %v2223 = vpop.f32.mrf.mxu0
      %v2224 = vadd.f32 0.0, %v2223
      %v2225 = vpop.f32.mrf.mxu0
      %2226 = vmatprep.mubr.bf16.mxu0 0
      %2227 = vmatmul.mubr.bf16.gmra.mxu0 %v1528
      %v2228 = vpop.f32.mrf.mxu0
      %v2229 = vadd.f32 0.0, %v2228
      %v2230 = vpop.f32.mrf.mxu0
      %v2231 = vpop.f32.mrf.mxu0
      %v2232 = vadd.f32 0.0, %v2231
      %v2233 = vpop.f32.mrf.mxu0
      %2234 = vmatprep.mubr.bf16.mxu0 0
      %2235 = vmatmul.mubr.bf16.gmra.mxu0 %v1531
      %v2236 = vpop.f32.mrf.mxu0
      %v2237 = vadd.f32 0.0, %v2236
      %v2238 = vpop.f32.mrf.mxu0
      %v2239 = vpop.f32.mrf.mxu0
      %v2240 = vadd.f32 0.0, %v2239
      %v2241 = vpop.f32.mrf.mxu0
      %2242 = vmatprep.mubr.bf16.mxu0 0
      %2243 = vmatmul.mubr.bf16.gmra.mxu0 %v1534
      %v2244 = vpop.f32.mrf.mxu0
      %v2245 = vadd.f32 0.0, %v2244
      %v2246 = vpop.f32.mrf.mxu0
      %v2247 = vpop.f32.mrf.mxu0
      %v2248 = vadd.f32 0.0, %v2247
      %v2249 = vpop.f32.mrf.mxu0
      %2250 = vmatprep.mubr.bf16.mxu0 0
      %2251 = vmatmul.mubr.bf16.gmra.mxu0 %v1537
      %v2252 = vpop.f32.mrf.mxu0
      %v2253 = vadd.f32 0.0, %v2252
      %v2254 = vpop.f32.mrf.mxu0
      %v2255 = vpop.f32.mrf.mxu0
      %v2256 = vadd.f32 0.0, %v2255
      %v2257 = vpop.f32.mrf.mxu0
      %2258 = vmatprep.mubr.bf16.mxu0 0
      %2259 = vmatmul.mubr.bf16.gmra.mxu0 %v1540
      %v2260 = vpop.f32.mrf.mxu0
      %v2261 = vadd.f32 0.0, %v2260
      %v2262 = vpop.f32.mrf.mxu0
      %v2263 = vpop.f32.mrf.mxu0
      %v2264 = vadd.f32 0.0, %v2263
      %v2265 = vpop.f32.mrf.mxu0
      %2266 = vmatprep.mubr.bf16.mxu0 0
      %2267 = vmatmul.mubr.bf16.gmra.mxu0 %v1543
      %v2268 = vpop.f32.mrf.mxu0
      %v2269 = vadd.f32 0.0, %v2268
      %v2270 = vpop.f32.mrf.mxu0
      %v2271 = vpop.f32.mrf.mxu0
      %v2272 = vadd.f32 0.0, %v2271
      %v2273 = vpop.f32.mrf.mxu0
      %2274 = vmatprep.mubr.bf16.mxu0 0
      %2275 = vmatmul.mubr.bf16.gmra.mxu0 %v1546
      %v2276 = vpop.f32.mrf.mxu0
      %v2277 = vadd.f32 0.0, %v2276
      %v2278 = vpop.f32.mrf.mxu0
      %v2279 = vpop.f32.mrf.mxu0
      %v2280 = vadd.f32 0.0, %v2279
      %v2281 = vpop.f32.mrf.mxu0
      %2282 = vmatprep.mubr.bf16.mxu0 0
      %2283 = vmatmul.mubr.bf16.gmra.mxu0 %v1549
      %v2284 = vpop.f32.mrf.mxu0
      %v2285 = vadd.f32 0.0, %v2284
      %v2286 = vpop.f32.mrf.mxu0
      %v2287 = vpop.f32.mrf.mxu0
      %v2288 = vadd.f32 0.0, %v2287
      %v2289 = vpop.f32.mrf.mxu0
      %2290 = vmatprep.mubr.bf16.mxu0 0
      %2291 = vmatmul.mubr.bf16.gmra.mxu0 %v1552
      %v2292 = vpop.f32.mrf.mxu0
      %v2293 = vadd.f32 0.0, %v2292
      %v2294 = vpop.f32.mrf.mxu0
      %v2295 = vpop.f32.mrf.mxu0
      %v2296 = vadd.f32 0.0, %v2295
      %v2297 = vpop.f32.mrf.mxu0
      %2298 = vmatprep.mubr.bf16.mxu0 0
      %2299 = vmatmul.mubr.bf16.gmra.mxu0 %v1555
      %v2300 = vpop.f32.mrf.mxu0
      %v2301 = vadd.f32 0.0, %v2300
      %v2302 = vpop.f32.mrf.mxu0
      %v2303 = vpop.f32.mrf.mxu0
      %v2304 = vadd.f32 0.0, %v2303
      %v2305 = vpop.f32.mrf.mxu0
      %2306 = vmatprep.mubr.bf16.mxu0 0
      %2307 = vmatmul.mubr.bf16.gmra.mxu0 %v1558
      %v2308 = vpop.f32.mrf.mxu0
      %v2309 = vadd.f32 0.0, %v2308
      %v2310 = vpop.f32.mrf.mxu0
      %v2311 = vpop.f32.mrf.mxu0
      %v2312 = vadd.f32 0.0, %v2311
      %v2313 = vpop.f32.mrf.mxu0
      %2314 = vmatprep.mubr.bf16.mxu0 0
      %2315 = vmatmul.mubr.bf16.gmra.mxu0 %v1561
      %v2316 = vpop.f32.mrf.mxu0
      %v2317 = vadd.f32 0.0, %v2316
      %v2318 = vpop.f32.mrf.mxu0
      %v2319 = vpop.f32.mrf.mxu0
      %v2320 = vadd.f32 0.0, %v2319
      %v2321 = vpop.f32.mrf.mxu0
      %2322 = vmatprep.mubr.bf16.mxu0 0
      %2323 = vmatmul.mubr.bf16.gmra.mxu0 %v1564
      %v2324 = vpop.f32.mrf.mxu0
      %v2325 = vadd.f32 0.0, %v2324
      %v2326 = vpop.f32.mrf.mxu0
      %v2327 = vpop.f32.mrf.mxu0
      %v2328 = vadd.f32 0.0, %v2327
      %v2329 = vpop.f32.mrf.mxu0
      %2330 = vmatprep.mubr.bf16.mxu0 0
      %2331 = vmatmul.mubr.bf16.gmra.mxu0 %v1567
      %v2332 = vpop.f32.mrf.mxu0
      %v2333 = vadd.f32 0.0, %v2332
      %v2334 = vpop.f32.mrf.mxu0
      %v2335 = vpop.f32.mrf.mxu0
      %v2336 = vadd.f32 0.0, %v2335
      %v2337 = vpop.f32.mrf.mxu0
      %2338 = vmatprep.mubr.bf16.mxu0 0
      %2339 = vmatmul.mubr.bf16.gmra.mxu0 %v1570
      %v2340 = vpop.f32.mrf.mxu0
      %v2341 = vadd.f32 0.0, %v2340
      %v2342 = vpop.f32.mrf.mxu0
      %v2343 = vpop.f32.mrf.mxu0
      %v2344 = vadd.f32 0.0, %v2343
      %v2345 = vpop.f32.mrf.mxu0
      %2346 = vmatprep.mubr.bf16.mxu0 0
      %2347 = vmatmul.mubr.bf16.gmra.mxu0 %v1573
      %v2348 = vpop.f32.mrf.mxu0
      %v2349 = vadd.f32 0.0, %v2348
      %v2350 = vpop.f32.mrf.mxu0
      %v2351 = vpop.f32.mrf.mxu0
      %v2352 = vadd.f32 0.0, %v2351
      %v2353 = vpop.f32.mrf.mxu0
      %2354 = vmatprep.mubr.bf16.mxu0 0
      %2355 = vmatmul.mubr.bf16.gmra.mxu0 %v1576
      %v2356 = vpop.f32.mrf.mxu0
      %v2357 = vadd.f32 0.0, %v2356
      %v2358 = vpop.f32.mrf.mxu0
      %v2359 = vpop.f32.mrf.mxu0
      %v2360 = vadd.f32 0.0, %v2359
      %v2361 = vpop.f32.mrf.mxu0
      %2362 = vmatprep.mubr.bf16.mxu0 0
      %2363 = vmatmul.mubr.bf16.gmra.mxu0 %v1579
      %v2364 = vpop.f32.mrf.mxu0
      %v2365 = vadd.f32 0.0, %v2364
      %v2366 = vpop.f32.mrf.mxu0
      %v2367 = vpop.f32.mrf.mxu0
      %v2368 = vadd.f32 0.0, %v2367
      %v2369 = vpop.f32.mrf.mxu0
      %2370 = vmatprep.mubr.bf16.mxu0 0
      %2371 = vmatmul.mubr.bf16.gmra.mxu0 %v1582
      %v2372 = vpop.f32.mrf.mxu0
      %v2373 = vadd.f32 0.0, %v2372
      %v2374 = vpop.f32.mrf.mxu0
      %v2375 = vpop.f32.mrf.mxu0
      %v2376 = vadd.f32 0.0, %v2375
      %v2377 = vpop.f32.mrf.mxu0
      %2378 = vmatprep.mubr.bf16.mxu0 0
      %2379 = vmatmul.mubr.bf16.gmra.mxu0 %v1585
      %v2380 = vpop.f32.mrf.mxu0
      %v2381 = vadd.f32 0.0, %v2380
      %v2382 = vpop.f32.mrf.mxu0
      %v2383 = vpop.f32.mrf.mxu0
      %v2384 = vadd.f32 0.0, %v2383
      %v2385 = vpop.f32.mrf.mxu0
      %2386 = vdwg.mxu0
      %v2387 = vrot.slane %v2197, 2
      %v2388 = vrot.slane %v2200, 2
      %v2389 = vrot.slane %v2205, 2
      %v2390 = vrot.slane %v2208, 2
      %v2391 = vrot.slane %v2213, 2
      %v2392 = vrot.slane %v2216, 2
      %v2393 = vrot.slane %v2221, 2
      %v2394 = vrot.slane %v2224, 2
      %v2395 = vrot.slane %v2229, 2
      %v2396 = vrot.slane %v2232, 2
      %v2397 = vrot.slane %v2237, 2
      %v2398 = vrot.slane %v2240, 2
      %v2399 = vrot.slane %v2245, 2
      %v2400 = vrot.slane %v2248, 2
      %v2401 = vrot.slane %v2253, 2
      %v2402 = vrot.slane %v2256, 2
      %v2403 = vrot.slane %v2261, 2
      %v2404 = vrot.slane %v2264, 2
      %v2405 = vrot.slane %v2269, 2
      %v2406 = vrot.slane %v2272, 2
      %v2407 = vrot.slane %v2277, 2
      %v2408 = vrot.slane %v2280, 2
      %v2409 = vrot.slane %v2285, 2
      %v2410 = vrot.slane %v2288, 2
      %v2411 = vrot.slane %v2293, 2
      %v2412 = vrot.slane %v2296, 2
      %v2413 = vrot.slane %v2301, 2
      %v2414 = vrot.slane %v2304, 2
      %v2415 = vrot.slane %v2309, 2
      %v2416 = vrot.slane %v2312, 2
      %v2417 = vrot.slane %v2317, 2
      %v2418 = vrot.slane %v2320, 2
      %v2419 = vrot.slane %v2325, 2
      %v2420 = vrot.slane %v2328, 2
      %v2421 = vrot.slane %v2333, 2
      %v2422 = vrot.slane %v2336, 2
      %v2423 = vrot.slane %v2341, 2
      %v2424 = vrot.slane %v2344, 2
      %v2425 = vrot.slane %v2349, 2
      %v2426 = vrot.slane %v2352, 2
      %v2427 = vrot.slane %v2357, 2
      %v2428 = vrot.slane %v2360, 2
      %v2429 = vrot.slane %v2365, 2
      %v2430 = vrot.slane %v2368, 2
      %v2431 = vrot.slane %v2373, 2
      %v2432 = vrot.slane %v2376, 2
      %v2433 = vrot.slane %v2381, 2
      %v2434 = vrot.slane %v2384, 2
      %v2435 = vsel %vm1318, %v2433, %v2434
      %v2436 = vsel %vm1318, %v2432, %v2433
      %v2437 = vsel %vm1318, %v2431, %v2432
      %v2438 = vsel %vm1318, %v2430, %v2431
      %v2439 = vsel %vm1318, %v2429, %v2430
      %v2440 = vsel %vm1318, %v2428, %v2429
      %v2441 = vsel %vm1318, %v2427, %v2428
      %v2442 = vsel %vm1318, %v2426, %v2427
      %v2443 = vsel %vm1318, %v2425, %v2426
      %v2444 = vsel %vm1318, %v2424, %v2425
      %v2445 = vsel %vm1318, %v2423, %v2424
      %v2446 = vsel %vm1318, %v2422, %v2423
      %v2447 = vsel %vm1318, %v2421, %v2422
      %v2448 = vsel %vm1318, %v2420, %v2421
      %v2449 = vsel %vm1318, %v2419, %v2420
      %v2450 = vsel %vm1318, %v2418, %v2419
      %v2451 = vsel %vm1318, %v2417, %v2418
      %v2452 = vsel %vm1318, %v2416, %v2417
      %v2453 = vsel %vm1318, %v2415, %v2416
      %v2454 = vsel %vm1318, %v2414, %v2415
      %v2455 = vsel %vm1318, %v2413, %v2414
      %v2456 = vsel %vm1318, %v2412, %v2413
      %v2457 = vsel %vm1318, %v2411, %v2412
      %v2458 = vsel %vm1318, %v2410, %v2411
      %v2459 = vsel %vm1318, %v2409, %v2410
      %v2460 = vsel %vm1318, %v2408, %v2409
      %v2461 = vsel %vm1318, %v2407, %v2408
      %v2462 = vsel %vm1318, %v2406, %v2407
      %v2463 = vsel %vm1318, %v2405, %v2406
      %v2464 = vsel %vm1318, %v2404, %v2405
      %v2465 = vsel %vm1318, %v2403, %v2404
      %v2466 = vsel %vm1318, %v2402, %v2403
      %v2467 = vsel %vm1318, %v2401, %v2402
      %v2468 = vsel %vm1318, %v2400, %v2401
      %v2469 = vsel %vm1318, %v2399, %v2400
      %v2470 = vsel %vm1318, %v2398, %v2399
      %v2471 = vsel %vm1318, %v2397, %v2398
      %v2472 = vsel %vm1318, %v2396, %v2397
      %v2473 = vsel %vm1318, %v2395, %v2396
      %v2474 = vsel %vm1318, %v2394, %v2395
      %v2475 = vsel %vm1318, %v2393, %v2394
      %v2476 = vsel %vm1318, %v2392, %v2393
      %v2477 = vsel %vm1318, %v2391, %v2392
      %v2478 = vsel %vm1318, %v2390, %v2391
      %v2479 = vsel %vm1318, %v2389, %v2390
      %v2480 = vsel %vm1318, %v2388, %v2389
      %v2481 = vsel %vm1318, %v2387, %v2388
      %v2482 = vsel %vm1318, %v2434, %v2387
      %v2483 = vadd.f32 %v1955, %v2481
      %v2484 = vadd.f32 %v1958, %v2480
      %v2485 = vadd.f32 %v1963, %v2479
      %v2486 = vadd.f32 %v1966, %v2478
      %v2487 = vadd.f32 %v1971, %v2477
      %v2488 = vadd.f32 %v1974, %v2476
      %v2489 = vadd.f32 %v1979, %v2475
      %v2490 = vadd.f32 %v1982, %v2474
      %v2491 = vadd.f32 %v1987, %v2473
      %v2492 = vadd.f32 %v1990, %v2472
      %v2493 = vadd.f32 %v1995, %v2471
      %v2494 = vadd.f32 %v1998, %v2470
      %v2495 = vadd.f32 %v2003, %v2469
      %v2496 = vadd.f32 %v2006, %v2468
      %v2497 = vadd.f32 %v2011, %v2467
      %v2498 = vadd.f32 %v2014, %v2466
      %v2499 = vadd.f32 %v2019, %v2465
      %v2500 = vadd.f32 %v2022, %v2464
      %v2501 = vadd.f32 %v2027, %v2463
      %v2502 = vadd.f32 %v2030, %v2462
      %v2503 = vadd.f32 %v2035, %v2461
      %v2504 = vadd.f32 %v2038, %v2460
      %v2505 = vadd.f32 %v2043, %v2459
      %v2506 = vadd.f32 %v2046, %v2458
      %v2507 = vadd.f32 %v2051, %v2457
      %v2508 = vadd.f32 %v2054, %v2456
      %v2509 = vadd.f32 %v2059, %v2455
      %v2510 = vadd.f32 %v2062, %v2454
      %v2511 = vadd.f32 %v2067, %v2453
      %v2512 = vadd.f32 %v2070, %v2452
      %v2513 = vadd.f32 %v2075, %v2451
      %v2514 = vadd.f32 %v2078, %v2450
      %v2515 = vadd.f32 %v2083, %v2449
      %v2516 = vadd.f32 %v2086, %v2448
      %v2517 = vadd.f32 %v2091, %v2447
      %v2518 = vadd.f32 %v2094, %v2446
      %v2519 = vadd.f32 %v2099, %v2445
      %v2520 = vadd.f32 %v2102, %v2444
      %v2521 = vadd.f32 %v2107, %v2443
      %v2522 = vadd.f32 %v2110, %v2442
      %v2523 = vadd.f32 %v2115, %v2441
      %v2524 = vadd.f32 %v2118, %v2440
      %v2525 = vadd.f32 %v2123, %v2439
      %v2526 = vadd.f32 %v2126, %v2438
      %v2527 = vadd.f32 %v2131, %v2437
      %v2528 = vadd.f32 %v2134, %v2436
      %v2529 = vadd.f32 %v2139, %v2435
      %v2530 = vadd.f32 %v2142, %v2482
      %v2531 = vld [vmem:[#allocation2] sm:$0xff]
      %v2532 = vld [vmem:[#allocation2 + $0x8] sm:$0xff]
      %v2533 = vld [vmem:[#allocation2 + $0x10] sm:$0xff]
      %v2534 = vld [vmem:[#allocation2 + $0x18] sm:$0xff]
      %v2535 = vld [vmem:[#allocation2 + $0x20] sm:$0xff]
      %v2536 = vld [vmem:[#allocation2 + $0x28] sm:$0xff]
      %v2537 = vld [vmem:[#allocation2 + $0x30] sm:$0xff]
      %v2538 = vld [vmem:[#allocation2 + $0x38] sm:$0xff]
      %v2539 = vld [vmem:[#allocation2 + $0x40] sm:$0xff]
      %v2540 = vld [vmem:[#allocation2 + $0x48] sm:$0xff]
      %v2541 = vld [vmem:[#allocation2 + $0x50] sm:$0xff]
      %v2542 = vld [vmem:[#allocation2 + $0x58] sm:$0xff]
      %v2543 = vld [vmem:[#allocation2 + $0x60] sm:$0xff]
      %v2544 = vld [vmem:[#allocation2 + $0x68] sm:$0xff]
      %v2545 = vld [vmem:[#allocation2 + $0x70] sm:$0xff]
      %v2546 = vld [vmem:[#allocation2 + $0x78] sm:$0xff]
      %v2547 = vld [vmem:[#allocation2 + $0x80] sm:$0xff]
      %v2548 = vld [vmem:[#allocation2 + $0x88] sm:$0xff]
      %v2549 = vld [vmem:[#allocation2 + $0x90] sm:$0xff]
      %v2550 = vld [vmem:[#allocation2 + $0x98] sm:$0xff]
      %v2551 = vld [vmem:[#allocation2 + $0xa0] sm:$0xff]
      %v2552 = vld [vmem:[#allocation2 + $0xa8] sm:$0xff]
      %v2553 = vld [vmem:[#allocation2 + $0xb0] sm:$0xff]
      %v2554 = vld [vmem:[#allocation2 + $0xb8] sm:$0xff]
      %v2555 = vld [vmem:[#allocation2 + $0xc0] sm:$0xff]
      %v2556 = vld [vmem:[#allocation2 + $0xc8] sm:$0xff]
      %v2557 = vld [vmem:[#allocation2 + $0xd0] sm:$0xff]
      %v2558 = vld [vmem:[#allocation2 + $0xd8] sm:$0xff]
      %v2559 = vld [vmem:[#allocation2 + $0xe0] sm:$0xff]
      %v2560 = vld [vmem:[#allocation2 + $0xe8] sm:$0xff]
      %v2561 = vld [vmem:[#allocation2 + $0xf0] sm:$0xff]
      %v2562 = vld [vmem:[#allocation2 + $0xf8] sm:$0xff]
      %v2563 = vld [vmem:[#allocation2 + $0x100] sm:$0xff]
      %v2564 = vld [vmem:[#allocation2 + $0x108] sm:$0xff]
      %v2565 = vld [vmem:[#allocation2 + $0x110] sm:$0xff]
      %v2566 = vld [vmem:[#allocation2 + $0x118] sm:$0xff]
      %v2567 = vld [vmem:[#allocation2 + $0x120] sm:$0xff]
      %v2568 = vld [vmem:[#allocation2 + $0x128] sm:$0xff]
      %v2569 = vld [vmem:[#allocation2 + $0x130] sm:$0xff]
      %v2570 = vld [vmem:[#allocation2 + $0x138] sm:$0xff]
      %v2571 = vld [vmem:[#allocation2 + $0x140] sm:$0xff]
      %v2572 = vld [vmem:[#allocation2 + $0x148] sm:$0xff]
      %v2573 = vld [vmem:[#allocation2 + $0x150] sm:$0xff]
      %v2574 = vld [vmem:[#allocation2 + $0x158] sm:$0xff]
      %v2575 = vld [vmem:[#allocation2 + $0x160] sm:$0xff]
      %v2576 = vld [vmem:[#allocation2 + $0x168] sm:$0xff]
      %v2577 = vld [vmem:[#allocation2 + $0x170] sm:$0xff]
      %v2578 = vld [vmem:[#allocation2 + $0x178] sm:$0xff]
      %v2579 = vadd.f32 %v2531, %v2483
      %v2580 = vadd.f32 %v2532, %v2484
      %v2581 = vadd.f32 %v2533, %v2485
      %v2582 = vadd.f32 %v2534, %v2486
      %v2583 = vadd.f32 %v2535, %v2487
      %v2584 = vadd.f32 %v2536, %v2488
      %v2585 = vadd.f32 %v2537, %v2489
      %v2586 = vadd.f32 %v2538, %v2490
      %v2587 = vadd.f32 %v2539, %v2491
      %v2588 = vadd.f32 %v2540, %v2492
      %v2589 = vadd.f32 %v2541, %v2493
      %v2590 = vadd.f32 %v2542, %v2494
      %v2591 = vadd.f32 %v2543, %v2495
      %v2592 = vadd.f32 %v2544, %v2496
      %v2593 = vadd.f32 %v2545, %v2497
      %v2594 = vadd.f32 %v2546, %v2498
      %v2595 = vadd.f32 %v2547, %v2499
      %v2596 = vadd.f32 %v2548, %v2500
      %v2597 = vadd.f32 %v2549, %v2501
      %v2598 = vadd.f32 %v2550, %v2502
      %v2599 = vadd.f32 %v2551, %v2503
      %v2600 = vadd.f32 %v2552, %v2504
      %v2601 = vadd.f32 %v2553, %v2505
      %v2602 = vadd.f32 %v2554, %v2506
      %v2603 = vadd.f32 %v2555, %v2507
      %v2604 = vadd.f32 %v2556, %v2508
      %v2605 = vadd.f32 %v2557, %v2509
      %v2606 = vadd.f32 %v2558, %v2510
      %v2607 = vadd.f32 %v2559, %v2511
      %v2608 = vadd.f32 %v2560, %v2512
      %v2609 = vadd.f32 %v2561, %v2513
      %v2610 = vadd.f32 %v2562, %v2514
      %v2611 = vadd.f32 %v2563, %v2515
      %v2612 = vadd.f32 %v2564, %v2516
      %v2613 = vadd.f32 %v2565, %v2517
      %v2614 = vadd.f32 %v2566, %v2518
      %v2615 = vadd.f32 %v2567, %v2519
      %v2616 = vadd.f32 %v2568, %v2520
      %v2617 = vadd.f32 %v2569, %v2521
      %v2618 = vadd.f32 %v2570, %v2522
      %v2619 = vadd.f32 %v2571, %v2523
      %v2620 = vadd.f32 %v2572, %v2524
      %v2621 = vadd.f32 %v2573, %v2525
      %v2622 = vadd.f32 %v2574, %v2526
      %v2623 = vadd.f32 %v2575, %v2527
      %v2624 = vadd.f32 %v2576, %v2528
      %v2625 = vadd.f32 %v2577, %v2529
      %v2626 = vadd.f32 %v2578, %v2530
      %2627 = vst.msk [vmem:[#allocation2] sm:$0xff] %vm394, %v2579
      %2628 = vst.msk [vmem:[#allocation2 + $0x8] sm:$0xff] %vm394, %v2580
      %2629 = vst.msk [vmem:[#allocation2 + $0x10] sm:$0xff] %vm394, %v2581
      %2630 = vst.msk [vmem:[#allocation2 + $0x18] sm:$0xff] %vm394, %v2582
      %2631 = vst.msk [vmem:[#allocation2 + $0x20] sm:$0xff] %vm394, %v2583
      %2632 = vst.msk [vmem:[#allocation2 + $0x28] sm:$0xff] %vm394, %v2584
      %2633 = vst.msk [vmem:[#allocation2 + $0x30] sm:$0xff] %vm394, %v2585
      %2634 = vst.msk [vmem:[#allocation2 + $0x38] sm:$0xff] %vm394, %v2586
      %2635 = vst.msk [vmem:[#allocation2 + $0x40] sm:$0xff] %vm394, %v2587
      %2636 = vst.msk [vmem:[#allocation2 + $0x48] sm:$0xff] %vm394, %v2588
      %2637 = vst.msk [vmem:[#allocation2 + $0x50] sm:$0xff] %vm394, %v2589
      %2638 = vst.msk [vmem:[#allocation2 + $0x58] sm:$0xff] %vm394, %v2590
      %2639 = vst.msk [vmem:[#allocation2 + $0x60] sm:$0xff] %vm394, %v2591
      %2640 = vst.msk [vmem:[#allocation2 + $0x68] sm:$0xff] %vm394, %v2592
      %2641 = vst.msk [vmem:[#allocation2 + $0x70] sm:$0xff] %vm394, %v2593
      %2642 = vst.msk [vmem:[#allocation2 + $0x78] sm:$0xff] %vm394, %v2594
      %2643 = vst.msk [vmem:[#allocation2 + $0x80] sm:$0xff] %vm394, %v2595
      %2644 = vst.msk [vmem:[#allocation2 + $0x88] sm:$0xff] %vm394, %v2596
      %2645 = vst.msk [vmem:[#allocation2 + $0x90] sm:$0xff] %vm394, %v2597
      %2646 = vst.msk [vmem:[#allocation2 + $0x98] sm:$0xff] %vm394, %v2598
      %2647 = vst.msk [vmem:[#allocation2 + $0xa0] sm:$0xff] %vm394, %v2599
      %2648 = vst.msk [vmem:[#allocation2 + $0xa8] sm:$0xff] %vm394, %v2600
      %2649 = vst.msk [vmem:[#allocation2 + $0xb0] sm:$0xff] %vm394, %v2601
      %2650 = vst.msk [vmem:[#allocation2 + $0xb8] sm:$0xff] %vm394, %v2602
      %2651 = vst.msk [vmem:[#allocation2 + $0xc0] sm:$0xff] %vm394, %v2603
      %2652 = vst.msk [vmem:[#allocation2 + $0xc8] sm:$0xff] %vm394, %v2604
      %2653 = vst.msk [vmem:[#allocation2 + $0xd0] sm:$0xff] %vm394, %v2605
      %2654 = vst.msk [vmem:[#allocation2 + $0xd8] sm:$0xff] %vm394, %v2606
      %2655 = vst.msk [vmem:[#allocation2 + $0xe0] sm:$0xff] %vm394, %v2607
      %2656 = vst.msk [vmem:[#allocation2 + $0xe8] sm:$0xff] %vm394, %v2608
      %2657 = vst.msk [vmem:[#allocation2 + $0xf0] sm:$0xff] %vm394, %v2609
      %2658 = vst.msk [vmem:[#allocation2 + $0xf8] sm:$0xff] %vm394, %v2610
      %2659 = vst.msk [vmem:[#allocation2 + $0x100] sm:$0xff] %vm394, %v2611
      %2660 = vst.msk [vmem:[#allocation2 + $0x108] sm:$0xff] %vm394, %v2612
      %2661 = vst.msk [vmem:[#allocation2 + $0x110] sm:$0xff] %vm394, %v2613
      %2662 = vst.msk [vmem:[#allocation2 + $0x118] sm:$0xff] %vm394, %v2614
      %2663 = vst.msk [vmem:[#allocation2 + $0x120] sm:$0xff] %vm394, %v2615
      %2664 = vst.msk [vmem:[#allocation2 + $0x128] sm:$0xff] %vm394, %v2616
      %2665 = vst.msk [vmem:[#allocation2 + $0x130] sm:$0xff] %vm394, %v2617
      %2666 = vst.msk [vmem:[#allocation2 + $0x138] sm:$0xff] %vm394, %v2618
      %2667 = vst.msk [vmem:[#allocation2 + $0x140] sm:$0xff] %vm394, %v2619
      %2668 = vst.msk [vmem:[#allocation2 + $0x148] sm:$0xff] %vm394, %v2620
      %2669 = vst.msk [vmem:[#allocation2 + $0x150] sm:$0xff] %vm394, %v2621
      %2670 = vst.msk [vmem:[#allocation2 + $0x158] sm:$0xff] %vm394, %v2622
      %2671 = vst.msk [vmem:[#allocation2 + $0x160] sm:$0xff] %vm394, %v2623
      %2672 = vst.msk [vmem:[#allocation2 + $0x168] sm:$0xff] %vm394, %v2624
      %2673 = vst.msk [vmem:[#allocation2 + $0x170] sm:$0xff] %vm394, %v2625
      %2674 = vst.msk [vmem:[#allocation2 + $0x178] sm:$0xff] %vm394, %v2626
      %s2675 = scalar_lea.vmem %s1, 96
      %v2676 = vld [vmem:[%s2675] sm:$0xf]
      %v2677 = vld [vmem:[%s2675 + $0x4] sm:$0xf]
      %v2678 = vld [vmem:[%s2675 + $0x8] sm:$0xf]
      %v2679 = vld [vmem:[%s2675 + $0xc] sm:$0xf]
      %s2680 = scalar_lea.vmem %s1, 112
      %v2681 = vld [vmem:[%s2680] sm:$0xf]
      %v2682 = vld [vmem:[%s2680 + $0x4] sm:$0xf]
      %v2683 = vld [vmem:[%s2680 + $0x8] sm:$0xf]
      %v2684 = vld [vmem:[%s2680 + $0xc] sm:$0xf]
      %v2688 = vunpack.c.l.b16 %v250
      %v2689 = vunpack.c.l.b16 %v251
      %v2690 = vunpack.c.l.b16 %v252
      %v2691 = vpack.c.b16 %v1477, %v1476
      %v2692 = vpack.c.b16 %v2688, %v1478
      %v2693 = vpack.c.b16 %v2690, %v2689
      %v2698 = vunpack.c.l.b16 %v2681
      %v2699 = vunpack.c.l.b16 %v2682
      %v2700 = vunpack.c.l.b16 %v2683
      %v2701 = vunpack.c.l.b16 %v2684
      %v2702 = vpack.c.b16 %v2699, %v2698
      %v2703 = vpack.c.b16 %v2701, %v2700
      %v2707 = vsel %vm394, %v2691, 0
      %v2710 = vsel %vm394, %v2692, 0
      %v2713 = vsel %vm394, %v2693, 0
      %2715 = vmatprep.subr.bf16.mxu0 0
      %2716 = vmatpush1.bf16.msra.mxu0 0
      %2717 = vmatprep.subr.bf16.mxu0 0
      %2718 = vmatpush1.bf16.msra.mxu0 0
      %2719 = vmatprep.subr.bf16.mxu0 0
      %2720 = vmatpush1.bf16.msra.mxu0 0
      %2721 = vmatprep.subr.bf16.mxu0 0
      %2722 = vmatpush1.bf16.msra.mxu0 0
      %2723 = vmatprep.subr.bf16.mxu0 0
      %2724 = vmatpush1.bf16.msra.mxu0 0
      %2725 = vmatprep.subr.bf16.mxu0 0
      %2726 = vmatpush1.bf16.msra.mxu0 0
      %2727 = vmatprep.subr.bf16.mxu0 0
      %2728 = vmatpush1.bf16.msra.mxu0 %v2703
      %2729 = vmatprep.subr.bf16.mxu0 0
      %2730 = vmatpush1.bf16.msra.mxu0 %v2702
      %2731 = vmatprep.subr.bf16.mxu0 0
      %2732 = vmatpush2.bf16.msra.mxu0 0
      %2733 = vmatprep.subr.bf16.mxu0 0
      %2734 = vmatpush2.bf16.msra.mxu0 0
      %2735 = vmatprep.subr.bf16.mxu0 0
      %2736 = vmatpush2.bf16.msra.mxu0 0
      %2737 = vmatprep.subr.bf16.mxu0 0
      %2738 = vmatpush2.bf16.msra.mxu0 0
      %2739 = vmatprep.subr.bf16.mxu0 0
      %2740 = vmatpush2.bf16.msra.mxu0 0
      %2741 = vmatprep.subr.bf16.mxu0 0
      %2742 = vmatpush2.bf16.msra.mxu0 0
      %2743 = vmatprep.subr.bf16.mxu0 0
      %2744 = vmatpush2.bf16.msra.mxu0 0
      %2745 = vmatprep.subr.bf16.mxu0 0
      %2746 = vmatpush2.bf16.msra.mxu0 0
      %2747 = vmatprep.mubr.bf16.mxu0 0
      %2748 = vmatmul.mubr.bf16.gmra.mxu0 %v405
      %v2749 = vpop.f32.mrf.mxu0
      %v2750 = vadd.f32 0.0, %v2749
      %v2751 = vpop.f32.mrf.mxu0
      %v2752 = vpop.f32.mrf.mxu0
      %v2753 = vadd.f32 0.0, %v2752
      %v2754 = vpop.f32.mrf.mxu0
      %2755 = vmatprep.mubr.bf16.mxu0 0
      %2756 = vmatmul.mubr.bf16.gmra.mxu0 %v408
      %v2757 = vpop.f32.mrf.mxu0
      %v2758 = vadd.f32 0.0, %v2757
      %v2759 = vpop.f32.mrf.mxu0
      %v2760 = vpop.f32.mrf.mxu0
      %v2761 = vadd.f32 0.0, %v2760
      %v2762 = vpop.f32.mrf.mxu0
      %2763 = vmatprep.mubr.bf16.mxu0 0
      %2764 = vmatmul.mubr.bf16.gmra.mxu0 %v411
      %v2765 = vpop.f32.mrf.mxu0
      %v2766 = vadd.f32 0.0, %v2765
      %v2767 = vpop.f32.mrf.mxu0
      %v2768 = vpop.f32.mrf.mxu0
      %v2769 = vadd.f32 0.0, %v2768
      %v2770 = vpop.f32.mrf.mxu0
      %2771 = vmatprep.mubr.bf16.mxu0 0
      %2772 = vmatmul.mubr.bf16.gmra.mxu0 %v414
      %v2773 = vpop.f32.mrf.mxu0
      %v2774 = vadd.f32 0.0, %v2773
      %v2775 = vpop.f32.mrf.mxu0
      %v2776 = vpop.f32.mrf.mxu0
      %v2777 = vadd.f32 0.0, %v2776
      %v2778 = vpop.f32.mrf.mxu0
      %2779 = vmatprep.mubr.bf16.mxu0 0
      %2780 = vmatmul.mubr.bf16.gmra.mxu0 %v417
      %v2781 = vpop.f32.mrf.mxu0
      %v2782 = vadd.f32 0.0, %v2781
      %v2783 = vpop.f32.mrf.mxu0
      %v2784 = vpop.f32.mrf.mxu0
      %v2785 = vadd.f32 0.0, %v2784
      %v2786 = vpop.f32.mrf.mxu0
      %2787 = vmatprep.mubr.bf16.mxu0 0
      %2788 = vmatmul.mubr.bf16.gmra.mxu0 %v420
      %v2789 = vpop.f32.mrf.mxu0
      %v2790 = vadd.f32 0.0, %v2789
      %v2791 = vpop.f32.mrf.mxu0
      %v2792 = vpop.f32.mrf.mxu0
      %v2793 = vadd.f32 0.0, %v2792
      %v2794 = vpop.f32.mrf.mxu0
      %2795 = vmatprep.mubr.bf16.mxu0 0
      %2796 = vmatmul.mubr.bf16.gmra.mxu0 %v423
      %v2797 = vpop.f32.mrf.mxu0
      %v2798 = vadd.f32 0.0, %v2797
      %v2799 = vpop.f32.mrf.mxu0
      %v2800 = vpop.f32.mrf.mxu0
      %v2801 = vadd.f32 0.0, %v2800
      %v2802 = vpop.f32.mrf.mxu0
      %2803 = vmatprep.mubr.bf16.mxu0 0
      %2804 = vmatmul.mubr.bf16.gmra.mxu0 %v426
      %v2805 = vpop.f32.mrf.mxu0
      %v2806 = vadd.f32 0.0, %v2805
      %v2807 = vpop.f32.mrf.mxu0
      %v2808 = vpop.f32.mrf.mxu0
      %v2809 = vadd.f32 0.0, %v2808
      %v2810 = vpop.f32.mrf.mxu0
      %2811 = vmatprep.mubr.bf16.mxu0 0
      %2812 = vmatmul.mubr.bf16.gmra.mxu0 %v429
      %v2813 = vpop.f32.mrf.mxu0
      %v2814 = vadd.f32 0.0, %v2813
      %v2815 = vpop.f32.mrf.mxu0
      %v2816 = vpop.f32.mrf.mxu0
      %v2817 = vadd.f32 0.0, %v2816
      %v2818 = vpop.f32.mrf.mxu0
      %2819 = vmatprep.mubr.bf16.mxu0 0
      %2820 = vmatmul.mubr.bf16.gmra.mxu0 %v432
      %v2821 = vpop.f32.mrf.mxu0
      %v2822 = vadd.f32 0.0, %v2821
      %v2823 = vpop.f32.mrf.mxu0
      %v2824 = vpop.f32.mrf.mxu0
      %v2825 = vadd.f32 0.0, %v2824
      %v2826 = vpop.f32.mrf.mxu0
      %2827 = vmatprep.mubr.bf16.mxu0 0
      %2828 = vmatmul.mubr.bf16.gmra.mxu0 %v435
      %v2829 = vpop.f32.mrf.mxu0
      %v2830 = vadd.f32 0.0, %v2829
      %v2831 = vpop.f32.mrf.mxu0
      %v2832 = vpop.f32.mrf.mxu0
      %v2833 = vadd.f32 0.0, %v2832
      %v2834 = vpop.f32.mrf.mxu0
      %2835 = vmatprep.mubr.bf16.mxu0 0
      %2836 = vmatmul.mubr.bf16.gmra.mxu0 %v438
      %v2837 = vpop.f32.mrf.mxu0
      %v2838 = vadd.f32 0.0, %v2837
      %v2839 = vpop.f32.mrf.mxu0
      %v2840 = vpop.f32.mrf.mxu0
      %v2841 = vadd.f32 0.0, %v2840
      %v2842 = vpop.f32.mrf.mxu0
      %2843 = vmatprep.mubr.bf16.mxu0 0
      %2844 = vmatmul.mubr.bf16.gmra.mxu0 %v441
      %v2845 = vpop.f32.mrf.mxu0
      %v2846 = vadd.f32 0.0, %v2845
      %v2847 = vpop.f32.mrf.mxu0
      %v2848 = vpop.f32.mrf.mxu0
      %v2849 = vadd.f32 0.0, %v2848
      %v2850 = vpop.f32.mrf.mxu0
      %2851 = vmatprep.mubr.bf16.mxu0 0
      %2852 = vmatmul.mubr.bf16.gmra.mxu0 %v444
      %v2853 = vpop.f32.mrf.mxu0
      %v2854 = vadd.f32 0.0, %v2853
      %v2855 = vpop.f32.mrf.mxu0
      %v2856 = vpop.f32.mrf.mxu0
      %v2857 = vadd.f32 0.0, %v2856
      %v2858 = vpop.f32.mrf.mxu0
      %2859 = vmatprep.mubr.bf16.mxu0 0
      %2860 = vmatmul.mubr.bf16.gmra.mxu0 %v447
      %v2861 = vpop.f32.mrf.mxu0
      %v2862 = vadd.f32 0.0, %v2861
      %v2863 = vpop.f32.mrf.mxu0
      %v2864 = vpop.f32.mrf.mxu0
      %v2865 = vadd.f32 0.0, %v2864
      %v2866 = vpop.f32.mrf.mxu0
      %2867 = vmatprep.mubr.bf16.mxu0 0
      %2868 = vmatmul.mubr.bf16.gmra.mxu0 %v450
      %v2869 = vpop.f32.mrf.mxu0
      %v2870 = vadd.f32 0.0, %v2869
      %v2871 = vpop.f32.mrf.mxu0
      %v2872 = vpop.f32.mrf.mxu0
      %v2873 = vadd.f32 0.0, %v2872
      %v2874 = vpop.f32.mrf.mxu0
      %2875 = vmatprep.mubr.bf16.mxu0 0
      %2876 = vmatmul.mubr.bf16.gmra.mxu0 %v453
      %v2877 = vpop.f32.mrf.mxu0
      %v2878 = vadd.f32 0.0, %v2877
      %v2879 = vpop.f32.mrf.mxu0
      %v2880 = vpop.f32.mrf.mxu0
      %v2881 = vadd.f32 0.0, %v2880
      %v2882 = vpop.f32.mrf.mxu0
      %2883 = vmatprep.mubr.bf16.mxu0 0
      %2884 = vmatmul.mubr.bf16.gmra.mxu0 %v456
      %v2885 = vpop.f32.mrf.mxu0
      %v2886 = vadd.f32 0.0, %v2885
      %v2887 = vpop.f32.mrf.mxu0
      %v2888 = vpop.f32.mrf.mxu0
      %v2889 = vadd.f32 0.0, %v2888
      %v2890 = vpop.f32.mrf.mxu0
      %2891 = vmatprep.mubr.bf16.mxu0 0
      %2892 = vmatmul.mubr.bf16.gmra.mxu0 %v459
      %v2893 = vpop.f32.mrf.mxu0
      %v2894 = vadd.f32 0.0, %v2893
      %v2895 = vpop.f32.mrf.mxu0
      %v2896 = vpop.f32.mrf.mxu0
      %v2897 = vadd.f32 0.0, %v2896
      %v2898 = vpop.f32.mrf.mxu0
      %2899 = vmatprep.mubr.bf16.mxu0 0
      %2900 = vmatmul.mubr.bf16.gmra.mxu0 %v462
      %v2901 = vpop.f32.mrf.mxu0
      %v2902 = vadd.f32 0.0, %v2901
      %v2903 = vpop.f32.mrf.mxu0
      %v2904 = vpop.f32.mrf.mxu0
      %v2905 = vadd.f32 0.0, %v2904
      %v2906 = vpop.f32.mrf.mxu0
      %2907 = vmatprep.mubr.bf16.mxu0 0
      %2908 = vmatmul.mubr.bf16.gmra.mxu0 %v465
      %v2909 = vpop.f32.mrf.mxu0
      %v2910 = vadd.f32 0.0, %v2909
      %v2911 = vpop.f32.mrf.mxu0
      %v2912 = vpop.f32.mrf.mxu0
      %v2913 = vadd.f32 0.0, %v2912
      %v2914 = vpop.f32.mrf.mxu0
      %2915 = vmatprep.mubr.bf16.mxu0 0
      %2916 = vmatmul.mubr.bf16.gmra.mxu0 %v2707
      %v2917 = vpop.f32.mrf.mxu0
      %v2918 = vadd.f32 0.0, %v2917
      %v2919 = vpop.f32.mrf.mxu0
      %v2920 = vpop.f32.mrf.mxu0
      %v2921 = vadd.f32 0.0, %v2920
      %v2922 = vpop.f32.mrf.mxu0
      %2923 = vmatprep.mubr.bf16.mxu0 0
      %2924 = vmatmul.mubr.bf16.gmra.mxu0 %v2710
      %v2925 = vpop.f32.mrf.mxu0
      %v2926 = vadd.f32 0.0, %v2925
      %v2927 = vpop.f32.mrf.mxu0
      %v2928 = vpop.f32.mrf.mxu0
      %v2929 = vadd.f32 0.0, %v2928
      %v2930 = vpop.f32.mrf.mxu0
      %2931 = vmatprep.mubr.bf16.mxu0 0
      %2932 = vmatmul.mubr.bf16.gmra.mxu0 %v2713
      %v2933 = vpop.f32.mrf.mxu0
      %v2934 = vadd.f32 0.0, %v2933
      %v2935 = vpop.f32.mrf.mxu0
      %v2936 = vpop.f32.mrf.mxu0
      %v2937 = vadd.f32 0.0, %v2936
      %v2938 = vpop.f32.mrf.mxu0
      %2939 = vdwg.mxu0
      %v2940 = vrot.slane %v2750, 1
      %v2941 = vrot.slane %v2753, 1
      %v2942 = vrot.slane %v2758, 1
      %v2943 = vrot.slane %v2761, 1
      %v2944 = vrot.slane %v2766, 1
      %v2945 = vrot.slane %v2769, 1
      %v2946 = vrot.slane %v2774, 1
      %v2947 = vrot.slane %v2777, 1
      %v2948 = vrot.slane %v2782, 1
      %v2949 = vrot.slane %v2785, 1
      %v2950 = vrot.slane %v2790, 1
      %v2951 = vrot.slane %v2793, 1
      %v2952 = vrot.slane %v2798, 1
      %v2953 = vrot.slane %v2801, 1
      %v2954 = vrot.slane %v2806, 1
      %v2955 = vrot.slane %v2809, 1
      %v2956 = vrot.slane %v2814, 1
      %v2957 = vrot.slane %v2817, 1
      %v2958 = vrot.slane %v2822, 1
      %v2959 = vrot.slane %v2825, 1
      %v2960 = vrot.slane %v2830, 1
      %v2961 = vrot.slane %v2833, 1
      %v2962 = vrot.slane %v2838, 1
      %v2963 = vrot.slane %v2841, 1
      %v2964 = vrot.slane %v2846, 1
      %v2965 = vrot.slane %v2849, 1
      %v2966 = vrot.slane %v2854, 1
      %v2967 = vrot.slane %v2857, 1
      %v2968 = vrot.slane %v2862, 1
      %v2969 = vrot.slane %v2865, 1
      %v2970 = vrot.slane %v2870, 1
      %v2971 = vrot.slane %v2873, 1
      %v2972 = vrot.slane %v2878, 1
      %v2973 = vrot.slane %v2881, 1
      %v2974 = vrot.slane %v2886, 1
      %v2975 = vrot.slane %v2889, 1
      %v2976 = vrot.slane %v2894, 1
      %v2977 = vrot.slane %v2897, 1
      %v2978 = vrot.slane %v2902, 1
      %v2979 = vrot.slane %v2905, 1
      %v2980 = vrot.slane %v2910, 1
      %v2981 = vrot.slane %v2913, 1
      %v2982 = vrot.slane %v2918, 1
      %v2983 = vrot.slane %v2921, 1
      %v2984 = vrot.slane %v2926, 1
      %v2985 = vrot.slane %v2929, 1
      %v2986 = vrot.slane %v2934, 1
      %v2987 = vrot.slane %v2937, 1
      %v2988 = vsel %vm742, %v2986, %v2987
      %v2989 = vsel %vm742, %v2985, %v2986
      %v2990 = vsel %vm742, %v2984, %v2985
      %v2991 = vsel %vm742, %v2983, %v2984
      %v2992 = vsel %vm742, %v2982, %v2983
      %v2993 = vsel %vm742, %v2981, %v2982
      %v2994 = vsel %vm742, %v2980, %v2981
      %v2995 = vsel %vm742, %v2979, %v2980
      %v2996 = vsel %vm742, %v2978, %v2979
      %v2997 = vsel %vm742, %v2977, %v2978
      %v2998 = vsel %vm742, %v2976, %v2977
      %v2999 = vsel %vm742, %v2975, %v2976
      %v3000 = vsel %vm742, %v2974, %v2975
      %v3001 = vsel %vm742, %v2973, %v2974
      %v3002 = vsel %vm742, %v2972, %v2973
      %v3003 = vsel %vm742, %v2971, %v2972
      %v3004 = vsel %vm742, %v2970, %v2971
      %v3005 = vsel %vm742, %v2969, %v2970
      %v3006 = vsel %vm742, %v2968, %v2969
      %v3007 = vsel %vm742, %v2967, %v2968
      %v3008 = vsel %vm742, %v2966, %v2967
      %v3009 = vsel %vm742, %v2965, %v2966
      %v3010 = vsel %vm742, %v2964, %v2965
      %v3011 = vsel %vm742, %v2963, %v2964
      %v3012 = vsel %vm742, %v2962, %v2963
      %v3013 = vsel %vm742, %v2961, %v2962
      %v3014 = vsel %vm742, %v2960, %v2961
      %v3015 = vsel %vm742, %v2959, %v2960
      %v3016 = vsel %vm742, %v2958, %v2959
      %v3017 = vsel %vm742, %v2957, %v2958
      %v3018 = vsel %vm742, %v2956, %v2957
      %v3019 = vsel %vm742, %v2955, %v2956
      %v3020 = vsel %vm742, %v2954, %v2955
      %v3021 = vsel %vm742, %v2953, %v2954
      %v3022 = vsel %vm742, %v2952, %v2953
      %v3023 = vsel %vm742, %v2951, %v2952
      %v3024 = vsel %vm742, %v2950, %v2951
      %v3025 = vsel %vm742, %v2949, %v2950
      %v3026 = vsel %vm742, %v2948, %v2949
      %v3027 = vsel %vm742, %v2947, %v2948
      %v3028 = vsel %vm742, %v2946, %v2947
      %v3029 = vsel %vm742, %v2945, %v2946
      %v3030 = vsel %vm742, %v2944, %v2945
      %v3031 = vsel %vm742, %v2943, %v2944
      %v3032 = vsel %vm742, %v2942, %v2943
      %v3033 = vsel %vm742, %v2941, %v2942
      %v3034 = vsel %vm742, %v2940, %v2941
      %v3035 = vsel %vm742, %v2987, %v2940
      %v3040 = vunpack.c.l.b16 %v2676
      %v3041 = vunpack.c.l.b16 %v2677
      %v3042 = vunpack.c.l.b16 %v2678
      %v3043 = vunpack.c.l.b16 %v2679
      %v3044 = vpack.c.b16 %v3041, %v3040
      %v3045 = vpack.c.b16 %v3043, %v3042
      %3048 = vmatprep.subr.bf16.mxu0 0
      %3049 = vmatpush1.bf16.msra.mxu0 0
      %3050 = vmatprep.subr.bf16.mxu0 0
      %3051 = vmatpush1.bf16.msra.mxu0 0
      %3052 = vmatprep.subr.bf16.mxu0 0
      %3053 = vmatpush1.bf16.msra.mxu0 0
      %3054 = vmatprep.subr.bf16.mxu0 0
      %3055 = vmatpush1.bf16.msra.mxu0 0
      %3056 = vmatprep.subr.bf16.mxu0 0
      %3057 = vmatpush1.bf16.msra.mxu0 0
      %3058 = vmatprep.subr.bf16.mxu0 0
      %3059 = vmatpush1.bf16.msra.mxu0 0
      %3060 = vmatprep.subr.bf16.mxu0 0
      %3061 = vmatpush1.bf16.msra.mxu0 %v3045
      %3062 = vmatprep.subr.bf16.mxu0 0
      %3063 = vmatpush1.bf16.msra.mxu0 %v3044
      %3064 = vmatprep.subr.bf16.mxu0 0
      %3065 = vmatpush2.bf16.msra.mxu0 0
      %3066 = vmatprep.subr.bf16.mxu0 0
      %3067 = vmatpush2.bf16.msra.mxu0 0
      %3068 = vmatprep.subr.bf16.mxu0 0
      %3069 = vmatpush2.bf16.msra.mxu0 0
      %3070 = vmatprep.subr.bf16.mxu0 0
      %3071 = vmatpush2.bf16.msra.mxu0 0
      %3072 = vmatprep.subr.bf16.mxu0 0
      %3073 = vmatpush2.bf16.msra.mxu0 0
      %3074 = vmatprep.subr.bf16.mxu0 0
      %3075 = vmatpush2.bf16.msra.mxu0 0
      %3076 = vmatprep.subr.bf16.mxu0 0
      %3077 = vmatpush2.bf16.msra.mxu0 0
      %3078 = vmatprep.subr.bf16.mxu0 0
      %3079 = vmatpush2.bf16.msra.mxu0 0
      %3080 = vmatprep.mubr.bf16.mxu0 0
      %3081 = vmatmul.mubr.bf16.gmra.mxu0 %v405
      %v3082 = vpop.f32.mrf.mxu0
      %v3083 = vadd.f32 %v3034, %v3082
      %v3084 = vpop.f32.mrf.mxu0
      %v3085 = vpop.f32.mrf.mxu0
      %v3086 = vadd.f32 %v3033, %v3085
      %v3087 = vpop.f32.mrf.mxu0
      %3088 = vmatprep.mubr.bf16.mxu0 0
      %3089 = vmatmul.mubr.bf16.gmra.mxu0 %v408
      %v3090 = vpop.f32.mrf.mxu0
      %v3091 = vadd.f32 %v3032, %v3090
      %v3092 = vpop.f32.mrf.mxu0
      %v3093 = vpop.f32.mrf.mxu0
      %v3094 = vadd.f32 %v3031, %v3093
      %v3095 = vpop.f32.mrf.mxu0
      %3096 = vmatprep.mubr.bf16.mxu0 0
      %3097 = vmatmul.mubr.bf16.gmra.mxu0 %v411
      %v3098 = vpop.f32.mrf.mxu0
      %v3099 = vadd.f32 %v3030, %v3098
      %v3100 = vpop.f32.mrf.mxu0
      %v3101 = vpop.f32.mrf.mxu0
      %v3102 = vadd.f32 %v3029, %v3101
      %v3103 = vpop.f32.mrf.mxu0
      %3104 = vmatprep.mubr.bf16.mxu0 0
      %3105 = vmatmul.mubr.bf16.gmra.mxu0 %v414
      %v3106 = vpop.f32.mrf.mxu0
      %v3107 = vadd.f32 %v3028, %v3106
      %v3108 = vpop.f32.mrf.mxu0
      %v3109 = vpop.f32.mrf.mxu0
      %v3110 = vadd.f32 %v3027, %v3109
      %v3111 = vpop.f32.mrf.mxu0
      %3112 = vmatprep.mubr.bf16.mxu0 0
      %3113 = vmatmul.mubr.bf16.gmra.mxu0 %v417
      %v3114 = vpop.f32.mrf.mxu0
      %v3115 = vadd.f32 %v3026, %v3114
      %v3116 = vpop.f32.mrf.mxu0
      %v3117 = vpop.f32.mrf.mxu0
      %v3118 = vadd.f32 %v3025, %v3117
      %v3119 = vpop.f32.mrf.mxu0
      %3120 = vmatprep.mubr.bf16.mxu0 0
      %3121 = vmatmul.mubr.bf16.gmra.mxu0 %v420
      %v3122 = vpop.f32.mrf.mxu0
      %v3123 = vadd.f32 %v3024, %v3122
      %v3124 = vpop.f32.mrf.mxu0
      %v3125 = vpop.f32.mrf.mxu0
      %v3126 = vadd.f32 %v3023, %v3125
      %v3127 = vpop.f32.mrf.mxu0
      %3128 = vmatprep.mubr.bf16.mxu0 0
      %3129 = vmatmul.mubr.bf16.gmra.mxu0 %v423
      %v3130 = vpop.f32.mrf.mxu0
      %v3131 = vadd.f32 %v3022, %v3130
      %v3132 = vpop.f32.mrf.mxu0
      %v3133 = vpop.f32.mrf.mxu0
      %v3134 = vadd.f32 %v3021, %v3133
      %v3135 = vpop.f32.mrf.mxu0
      %3136 = vmatprep.mubr.bf16.mxu0 0
      %3137 = vmatmul.mubr.bf16.gmra.mxu0 %v426
      %v3138 = vpop.f32.mrf.mxu0
      %v3139 = vadd.f32 %v3020, %v3138
      %v3140 = vpop.f32.mrf.mxu0
      %v3141 = vpop.f32.mrf.mxu0
      %v3142 = vadd.f32 %v3019, %v3141
      %v3143 = vpop.f32.mrf.mxu0
      %3144 = vmatprep.mubr.bf16.mxu0 0
      %3145 = vmatmul.mubr.bf16.gmra.mxu0 %v429
      %v3146 = vpop.f32.mrf.mxu0
      %v3147 = vadd.f32 %v3018, %v3146
      %v3148 = vpop.f32.mrf.mxu0
      %v3149 = vpop.f32.mrf.mxu0
      %v3150 = vadd.f32 %v3017, %v3149
      %v3151 = vpop.f32.mrf.mxu0
      %3152 = vmatprep.mubr.bf16.mxu0 0
      %3153 = vmatmul.mubr.bf16.gmra.mxu0 %v432
      %v3154 = vpop.f32.mrf.mxu0
      %v3155 = vadd.f32 %v3016, %v3154
      %v3156 = vpop.f32.mrf.mxu0
      %v3157 = vpop.f32.mrf.mxu0
      %v3158 = vadd.f32 %v3015, %v3157
      %v3159 = vpop.f32.mrf.mxu0
      %3160 = vmatprep.mubr.bf16.mxu0 0
      %3161 = vmatmul.mubr.bf16.gmra.mxu0 %v435
      %v3162 = vpop.f32.mrf.mxu0
      %v3163 = vadd.f32 %v3014, %v3162
      %v3164 = vpop.f32.mrf.mxu0
      %v3165 = vpop.f32.mrf.mxu0
      %v3166 = vadd.f32 %v3013, %v3165
      %v3167 = vpop.f32.mrf.mxu0
      %3168 = vmatprep.mubr.bf16.mxu0 0
      %3169 = vmatmul.mubr.bf16.gmra.mxu0 %v438
      %v3170 = vpop.f32.mrf.mxu0
      %v3171 = vadd.f32 %v3012, %v3170
      %v3172 = vpop.f32.mrf.mxu0
      %v3173 = vpop.f32.mrf.mxu0
      %v3174 = vadd.f32 %v3011, %v3173
      %v3175 = vpop.f32.mrf.mxu0
      %3176 = vmatprep.mubr.bf16.mxu0 0
      %3177 = vmatmul.mubr.bf16.gmra.mxu0 %v441
      %v3178 = vpop.f32.mrf.mxu0
      %v3179 = vadd.f32 %v3010, %v3178
      %v3180 = vpop.f32.mrf.mxu0
      %v3181 = vpop.f32.mrf.mxu0
      %v3182 = vadd.f32 %v3009, %v3181
      %v3183 = vpop.f32.mrf.mxu0
      %3184 = vmatprep.mubr.bf16.mxu0 0
      %3185 = vmatmul.mubr.bf16.gmra.mxu0 %v444
      %v3186 = vpop.f32.mrf.mxu0
      %v3187 = vadd.f32 %v3008, %v3186
      %v3188 = vpop.f32.mrf.mxu0
      %v3189 = vpop.f32.mrf.mxu0
      %v3190 = vadd.f32 %v3007, %v3189
      %v3191 = vpop.f32.mrf.mxu0
      %3192 = vmatprep.mubr.bf16.mxu0 0
      %3193 = vmatmul.mubr.bf16.gmra.mxu0 %v447
      %v3194 = vpop.f32.mrf.mxu0
      %v3195 = vadd.f32 %v3006, %v3194
      %v3196 = vpop.f32.mrf.mxu0
      %v3197 = vpop.f32.mrf.mxu0
      %v3198 = vadd.f32 %v3005, %v3197
      %v3199 = vpop.f32.mrf.mxu0
      %3200 = vmatprep.mubr.bf16.mxu0 0
      %3201 = vmatmul.mubr.bf16.gmra.mxu0 %v450
      %v3202 = vpop.f32.mrf.mxu0
      %v3203 = vadd.f32 %v3004, %v3202
      %v3204 = vpop.f32.mrf.mxu0
      %v3205 = vpop.f32.mrf.mxu0
      %v3206 = vadd.f32 %v3003, %v3205
      %v3207 = vpop.f32.mrf.mxu0
      %3208 = vmatprep.mubr.bf16.mxu0 0
      %3209 = vmatmul.mubr.bf16.gmra.mxu0 %v453
      %v3210 = vpop.f32.mrf.mxu0
      %v3211 = vadd.f32 %v3002, %v3210
      %v3212 = vpop.f32.mrf.mxu0
      %v3213 = vpop.f32.mrf.mxu0
      %v3214 = vadd.f32 %v3001, %v3213
      %v3215 = vpop.f32.mrf.mxu0
      %3216 = vmatprep.mubr.bf16.mxu0 0
      %3217 = vmatmul.mubr.bf16.gmra.mxu0 %v456
      %v3218 = vpop.f32.mrf.mxu0
      %v3219 = vadd.f32 %v3000, %v3218
      %v3220 = vpop.f32.mrf.mxu0
      %v3221 = vpop.f32.mrf.mxu0
      %v3222 = vadd.f32 %v2999, %v3221
      %v3223 = vpop.f32.mrf.mxu0
      %3224 = vmatprep.mubr.bf16.mxu0 0
      %3225 = vmatmul.mubr.bf16.gmra.mxu0 %v459
      %v3226 = vpop.f32.mrf.mxu0
      %v3227 = vadd.f32 %v2998, %v3226
      %v3228 = vpop.f32.mrf.mxu0
      %v3229 = vpop.f32.mrf.mxu0
      %v3230 = vadd.f32 %v2997, %v3229
      %v3231 = vpop.f32.mrf.mxu0
      %3232 = vmatprep.mubr.bf16.mxu0 0
      %3233 = vmatmul.mubr.bf16.gmra.mxu0 %v462
      %v3234 = vpop.f32.mrf.mxu0
      %v3235 = vadd.f32 %v2996, %v3234
      %v3236 = vpop.f32.mrf.mxu0
      %v3237 = vpop.f32.mrf.mxu0
      %v3238 = vadd.f32 %v2995, %v3237
      %v3239 = vpop.f32.mrf.mxu0
      %3240 = vmatprep.mubr.bf16.mxu0 0
      %3241 = vmatmul.mubr.bf16.gmra.mxu0 %v465
      %v3242 = vpop.f32.mrf.mxu0
      %v3243 = vadd.f32 %v2994, %v3242
      %v3244 = vpop.f32.mrf.mxu0
      %v3245 = vpop.f32.mrf.mxu0
      %v3246 = vadd.f32 %v2993, %v3245
      %v3247 = vpop.f32.mrf.mxu0
      %3248 = vmatprep.mubr.bf16.mxu0 0
      %3249 = vmatmul.mubr.bf16.gmra.mxu0 %v2707
      %v3250 = vpop.f32.mrf.mxu0
      %v3251 = vadd.f32 %v2992, %v3250
      %v3252 = vpop.f32.mrf.mxu0
      %v3253 = vpop.f32.mrf.mxu0
      %v3254 = vadd.f32 %v2991, %v3253
      %v3255 = vpop.f32.mrf.mxu0
      %3256 = vmatprep.mubr.bf16.mxu0 0
      %3257 = vmatmul.mubr.bf16.gmra.mxu0 %v2710
      %v3258 = vpop.f32.mrf.mxu0
      %v3259 = vadd.f32 %v2990, %v3258
      %v3260 = vpop.f32.mrf.mxu0
      %v3261 = vpop.f32.mrf.mxu0
      %v3262 = vadd.f32 %v2989, %v3261
      %v3263 = vpop.f32.mrf.mxu0
      %3264 = vmatprep.mubr.bf16.mxu0 0
      %3265 = vmatmul.mubr.bf16.gmra.mxu0 %v2713
      %v3266 = vpop.f32.mrf.mxu0
      %v3267 = vadd.f32 %v2988, %v3266
      %v3268 = vpop.f32.mrf.mxu0
      %v3269 = vpop.f32.mrf.mxu0
      %v3270 = vadd.f32 %v3035, %v3269
      %v3271 = vpop.f32.mrf.mxu0
      %3272 = vdwg.mxu0
      %s3273 = scalar_lea.vmem %s1, 128
      %v3274 = vld [vmem:[%s3273] sm:$0xf]
      %v3275 = vld [vmem:[%s3273 + $0x4] sm:$0xf]
      %v3276 = vld [vmem:[%s3273 + $0x8] sm:$0xf]
      %v3277 = vld [vmem:[%s3273 + $0xc] sm:$0xf]
      %v3282 = vunpack.c.l.b16 %v3274
      %v3283 = vunpack.c.l.b16 %v3275
      %v3284 = vunpack.c.l.b16 %v3276
      %v3285 = vunpack.c.l.b16 %v3277
      %v3286 = vpack.c.b16 %v3283, %v3282
      %v3287 = vpack.c.b16 %v3285, %v3284
      %3290 = vmatprep.subr.bf16.mxu0 0
      %3291 = vmatpush1.bf16.msra.mxu0 0
      %3292 = vmatprep.subr.bf16.mxu0 0
      %3293 = vmatpush1.bf16.msra.mxu0 0
      %3294 = vmatprep.subr.bf16.mxu0 0
      %3295 = vmatpush1.bf16.msra.mxu0 0
      %3296 = vmatprep.subr.bf16.mxu0 0
      %3297 = vmatpush1.bf16.msra.mxu0 0
      %3298 = vmatprep.subr.bf16.mxu0 0
      %3299 = vmatpush1.bf16.msra.mxu0 0
      %3300 = vmatprep.subr.bf16.mxu0 0
      %3301 = vmatpush1.bf16.msra.mxu0 0
      %3302 = vmatprep.subr.bf16.mxu0 0
      %3303 = vmatpush1.bf16.msra.mxu0 %v3287
      %3304 = vmatprep.subr.bf16.mxu0 0
      %3305 = vmatpush1.bf16.msra.mxu0 %v3286
      %3306 = vmatprep.subr.bf16.mxu0 0
      %3307 = vmatpush2.bf16.msra.mxu0 0
      %3308 = vmatprep.subr.bf16.mxu0 0
      %3309 = vmatpush2.bf16.msra.mxu0 0
      %3310 = vmatprep.subr.bf16.mxu0 0
      %3311 = vmatpush2.bf16.msra.mxu0 0
      %3312 = vmatprep.subr.bf16.mxu0 0
      %3313 = vmatpush2.bf16.msra.mxu0 0
      %3314 = vmatprep.subr.bf16.mxu0 0
      %3315 = vmatpush2.bf16.msra.mxu0 0
      %3316 = vmatprep.subr.bf16.mxu0 0
      %3317 = vmatpush2.bf16.msra.mxu0 0
      %3318 = vmatprep.subr.bf16.mxu0 0
      %3319 = vmatpush2.bf16.msra.mxu0 0
      %3320 = vmatprep.subr.bf16.mxu0 0
      %3321 = vmatpush2.bf16.msra.mxu0 0
      %3322 = vmatprep.mubr.bf16.mxu0 0
      %3323 = vmatmul.mubr.bf16.gmra.mxu0 %v405
      %v3324 = vpop.f32.mrf.mxu0
      %v3325 = vadd.f32 0.0, %v3324
      %v3326 = vpop.f32.mrf.mxu0
      %v3327 = vpop.f32.mrf.mxu0
      %v3328 = vadd.f32 0.0, %v3327
      %v3329 = vpop.f32.mrf.mxu0
      %3330 = vmatprep.mubr.bf16.mxu0 0
      %3331 = vmatmul.mubr.bf16.gmra.mxu0 %v408
      %v3332 = vpop.f32.mrf.mxu0
      %v3333 = vadd.f32 0.0, %v3332
      %v3334 = vpop.f32.mrf.mxu0
      %v3335 = vpop.f32.mrf.mxu0
      %v3336 = vadd.f32 0.0, %v3335
      %v3337 = vpop.f32.mrf.mxu0
      %3338 = vmatprep.mubr.bf16.mxu0 0
      %3339 = vmatmul.mubr.bf16.gmra.mxu0 %v411
      %v3340 = vpop.f32.mrf.mxu0
      %v3341 = vadd.f32 0.0, %v3340
      %v3342 = vpop.f32.mrf.mxu0
      %v3343 = vpop.f32.mrf.mxu0
      %v3344 = vadd.f32 0.0, %v3343
      %v3345 = vpop.f32.mrf.mxu0
      %3346 = vmatprep.mubr.bf16.mxu0 0
      %3347 = vmatmul.mubr.bf16.gmra.mxu0 %v414
      %v3348 = vpop.f32.mrf.mxu0
      %v3349 = vadd.f32 0.0, %v3348
      %v3350 = vpop.f32.mrf.mxu0
      %v3351 = vpop.f32.mrf.mxu0
      %v3352 = vadd.f32 0.0, %v3351
      %v3353 = vpop.f32.mrf.mxu0
      %3354 = vmatprep.mubr.bf16.mxu0 0
      %3355 = vmatmul.mubr.bf16.gmra.mxu0 %v417
      %v3356 = vpop.f32.mrf.mxu0
      %v3357 = vadd.f32 0.0, %v3356
      %v3358 = vpop.f32.mrf.mxu0
      %v3359 = vpop.f32.mrf.mxu0
      %v3360 = vadd.f32 0.0, %v3359
      %v3361 = vpop.f32.mrf.mxu0
      %3362 = vmatprep.mubr.bf16.mxu0 0
      %3363 = vmatmul.mubr.bf16.gmra.mxu0 %v420
      %v3364 = vpop.f32.mrf.mxu0
      %v3365 = vadd.f32 0.0, %v3364
      %v3366 = vpop.f32.mrf.mxu0
      %v3367 = vpop.f32.mrf.mxu0
      %v3368 = vadd.f32 0.0, %v3367
      %v3369 = vpop.f32.mrf.mxu0
      %3370 = vmatprep.mubr.bf16.mxu0 0
      %3371 = vmatmul.mubr.bf16.gmra.mxu0 %v423
      %v3372 = vpop.f32.mrf.mxu0
      %v3373 = vadd.f32 0.0, %v3372
      %v3374 = vpop.f32.mrf.mxu0
      %v3375 = vpop.f32.mrf.mxu0
      %v3376 = vadd.f32 0.0, %v3375
      %v3377 = vpop.f32.mrf.mxu0
      %3378 = vmatprep.mubr.bf16.mxu0 0
      %3379 = vmatmul.mubr.bf16.gmra.mxu0 %v426
      %v3380 = vpop.f32.mrf.mxu0
      %v3381 = vadd.f32 0.0, %v3380
      %v3382 = vpop.f32.mrf.mxu0
      %v3383 = vpop.f32.mrf.mxu0
      %v3384 = vadd.f32 0.0, %v3383
      %v3385 = vpop.f32.mrf.mxu0
      %3386 = vmatprep.mubr.bf16.mxu0 0
      %3387 = vmatmul.mubr.bf16.gmra.mxu0 %v429
      %v3388 = vpop.f32.mrf.mxu0
      %v3389 = vadd.f32 0.0, %v3388
      %v3390 = vpop.f32.mrf.mxu0
      %v3391 = vpop.f32.mrf.mxu0
      %v3392 = vadd.f32 0.0, %v3391
      %v3393 = vpop.f32.mrf.mxu0
      %3394 = vmatprep.mubr.bf16.mxu0 0
      %3395 = vmatmul.mubr.bf16.gmra.mxu0 %v432
      %v3396 = vpop.f32.mrf.mxu0
      %v3397 = vadd.f32 0.0, %v3396
      %v3398 = vpop.f32.mrf.mxu0
      %v3399 = vpop.f32.mrf.mxu0
      %v3400 = vadd.f32 0.0, %v3399
      %v3401 = vpop.f32.mrf.mxu0
      %3402 = vmatprep.mubr.bf16.mxu0 0
      %3403 = vmatmul.mubr.bf16.gmra.mxu0 %v435
      %v3404 = vpop.f32.mrf.mxu0
      %v3405 = vadd.f32 0.0, %v3404
      %v3406 = vpop.f32.mrf.mxu0
      %v3407 = vpop.f32.mrf.mxu0
      %v3408 = vadd.f32 0.0, %v3407
      %v3409 = vpop.f32.mrf.mxu0
      %3410 = vmatprep.mubr.bf16.mxu0 0
      %3411 = vmatmul.mubr.bf16.gmra.mxu0 %v438
      %v3412 = vpop.f32.mrf.mxu0
      %v3413 = vadd.f32 0.0, %v3412
      %v3414 = vpop.f32.mrf.mxu0
      %v3415 = vpop.f32.mrf.mxu0
      %v3416 = vadd.f32 0.0, %v3415
      %v3417 = vpop.f32.mrf.mxu0
      %3418 = vmatprep.mubr.bf16.mxu0 0
      %3419 = vmatmul.mubr.bf16.gmra.mxu0 %v441
      %v3420 = vpop.f32.mrf.mxu0
      %v3421 = vadd.f32 0.0, %v3420
      %v3422 = vpop.f32.mrf.mxu0
      %v3423 = vpop.f32.mrf.mxu0
      %v3424 = vadd.f32 0.0, %v3423
      %v3425 = vpop.f32.mrf.mxu0
      %3426 = vmatprep.mubr.bf16.mxu0 0
      %3427 = vmatmul.mubr.bf16.gmra.mxu0 %v444
      %v3428 = vpop.f32.mrf.mxu0
      %v3429 = vadd.f32 0.0, %v3428
      %v3430 = vpop.f32.mrf.mxu0
      %v3431 = vpop.f32.mrf.mxu0
      %v3432 = vadd.f32 0.0, %v3431
      %v3433 = vpop.f32.mrf.mxu0
      %3434 = vmatprep.mubr.bf16.mxu0 0
      %3435 = vmatmul.mubr.bf16.gmra.mxu0 %v447
      %v3436 = vpop.f32.mrf.mxu0
      %v3437 = vadd.f32 0.0, %v3436
      %v3438 = vpop.f32.mrf.mxu0
      %v3439 = vpop.f32.mrf.mxu0
      %v3440 = vadd.f32 0.0, %v3439
      %v3441 = vpop.f32.mrf.mxu0
      %3442 = vmatprep.mubr.bf16.mxu0 0
      %3443 = vmatmul.mubr.bf16.gmra.mxu0 %v450
      %v3444 = vpop.f32.mrf.mxu0
      %v3445 = vadd.f32 0.0, %v3444
      %v3446 = vpop.f32.mrf.mxu0
      %v3447 = vpop.f32.mrf.mxu0
      %v3448 = vadd.f32 0.0, %v3447
      %v3449 = vpop.f32.mrf.mxu0
      %3450 = vmatprep.mubr.bf16.mxu0 0
      %3451 = vmatmul.mubr.bf16.gmra.mxu0 %v453
      %v3452 = vpop.f32.mrf.mxu0
      %v3453 = vadd.f32 0.0, %v3452
      %v3454 = vpop.f32.mrf.mxu0
      %v3455 = vpop.f32.mrf.mxu0
      %v3456 = vadd.f32 0.0, %v3455
      %v3457 = vpop.f32.mrf.mxu0
      %3458 = vmatprep.mubr.bf16.mxu0 0
      %3459 = vmatmul.mubr.bf16.gmra.mxu0 %v456
      %v3460 = vpop.f32.mrf.mxu0
      %v3461 = vadd.f32 0.0, %v3460
      %v3462 = vpop.f32.mrf.mxu0
      %v3463 = vpop.f32.mrf.mxu0
      %v3464 = vadd.f32 0.0, %v3463
      %v3465 = vpop.f32.mrf.mxu0
      %3466 = vmatprep.mubr.bf16.mxu0 0
      %3467 = vmatmul.mubr.bf16.gmra.mxu0 %v459
      %v3468 = vpop.f32.mrf.mxu0
      %v3469 = vadd.f32 0.0, %v3468
      %v3470 = vpop.f32.mrf.mxu0
      %v3471 = vpop.f32.mrf.mxu0
      %v3472 = vadd.f32 0.0, %v3471
      %v3473 = vpop.f32.mrf.mxu0
      %3474 = vmatprep.mubr.bf16.mxu0 0
      %3475 = vmatmul.mubr.bf16.gmra.mxu0 %v462
      %v3476 = vpop.f32.mrf.mxu0
      %v3477 = vadd.f32 0.0, %v3476
      %v3478 = vpop.f32.mrf.mxu0
      %v3479 = vpop.f32.mrf.mxu0
      %v3480 = vadd.f32 0.0, %v3479
      %v3481 = vpop.f32.mrf.mxu0
      %3482 = vmatprep.mubr.bf16.mxu0 0
      %3483 = vmatmul.mubr.bf16.gmra.mxu0 %v465
      %v3484 = vpop.f32.mrf.mxu0
      %v3485 = vadd.f32 0.0, %v3484
      %v3486 = vpop.f32.mrf.mxu0
      %v3487 = vpop.f32.mrf.mxu0
      %v3488 = vadd.f32 0.0, %v3487
      %v3489 = vpop.f32.mrf.mxu0
      %3490 = vmatprep.mubr.bf16.mxu0 0
      %3491 = vmatmul.mubr.bf16.gmra.mxu0 %v2707
      %v3492 = vpop.f32.mrf.mxu0
      %v3493 = vadd.f32 0.0, %v3492
      %v3494 = vpop.f32.mrf.mxu0
      %v3495 = vpop.f32.mrf.mxu0
      %v3496 = vadd.f32 0.0, %v3495
      %v3497 = vpop.f32.mrf.mxu0
      %3498 = vmatprep.mubr.bf16.mxu0 0
      %3499 = vmatmul.mubr.bf16.gmra.mxu0 %v2710
      %v3500 = vpop.f32.mrf.mxu0
      %v3501 = vadd.f32 0.0, %v3500
      %v3502 = vpop.f32.mrf.mxu0
      %v3503 = vpop.f32.mrf.mxu0
      %v3504 = vadd.f32 0.0, %v3503
      %v3505 = vpop.f32.mrf.mxu0
      %3506 = vmatprep.mubr.bf16.mxu0 0
      %3507 = vmatmul.mubr.bf16.gmra.mxu0 %v2713
      %v3508 = vpop.f32.mrf.mxu0
      %v3509 = vadd.f32 0.0, %v3508
      %v3510 = vpop.f32.mrf.mxu0
      %v3511 = vpop.f32.mrf.mxu0
      %v3512 = vadd.f32 0.0, %v3511
      %v3513 = vpop.f32.mrf.mxu0
      %3514 = vdwg.mxu0
      %v3515 = vrot.slane %v3325, 2
      %v3516 = vrot.slane %v3328, 2
      %v3517 = vrot.slane %v3333, 2
      %v3518 = vrot.slane %v3336, 2
      %v3519 = vrot.slane %v3341, 2
      %v3520 = vrot.slane %v3344, 2
      %v3521 = vrot.slane %v3349, 2
      %v3522 = vrot.slane %v3352, 2
      %v3523 = vrot.slane %v3357, 2
      %v3524 = vrot.slane %v3360, 2
      %v3525 = vrot.slane %v3365, 2
      %v3526 = vrot.slane %v3368, 2
      %v3527 = vrot.slane %v3373, 2
      %v3528 = vrot.slane %v3376, 2
      %v3529 = vrot.slane %v3381, 2
      %v3530 = vrot.slane %v3384, 2
      %v3531 = vrot.slane %v3389, 2
      %v3532 = vrot.slane %v3392, 2
      %v3533 = vrot.slane %v3397, 2
      %v3534 = vrot.slane %v3400, 2
      %v3535 = vrot.slane %v3405, 2
      %v3536 = vrot.slane %v3408, 2
      %v3537 = vrot.slane %v3413, 2
      %v3538 = vrot.slane %v3416, 2
      %v3539 = vrot.slane %v3421, 2
      %v3540 = vrot.slane %v3424, 2
      %v3541 = vrot.slane %v3429, 2
      %v3542 = vrot.slane %v3432, 2
      %v3543 = vrot.slane %v3437, 2
      %v3544 = vrot.slane %v3440, 2
      %v3545 = vrot.slane %v3445, 2
      %v3546 = vrot.slane %v3448, 2
      %v3547 = vrot.slane %v3453, 2
      %v3548 = vrot.slane %v3456, 2
      %v3549 = vrot.slane %v3461, 2
      %v3550 = vrot.slane %v3464, 2
      %v3551 = vrot.slane %v3469, 2
      %v3552 = vrot.slane %v3472, 2
      %v3553 = vrot.slane %v3477, 2
      %v3554 = vrot.slane %v3480, 2
      %v3555 = vrot.slane %v3485, 2
      %v3556 = vrot.slane %v3488, 2
      %v3557 = vrot.slane %v3493, 2
      %v3558 = vrot.slane %v3496, 2
      %v3559 = vrot.slane %v3501, 2
      %v3560 = vrot.slane %v3504, 2
      %v3561 = vrot.slane %v3509, 2
      %v3562 = vrot.slane %v3512, 2
      %v3563 = vsel %vm1318, %v3561, %v3562
      %v3564 = vsel %vm1318, %v3560, %v3561
      %v3565 = vsel %vm1318, %v3559, %v3560
      %v3566 = vsel %vm1318, %v3558, %v3559
      %v3567 = vsel %vm1318, %v3557, %v3558
      %v3568 = vsel %vm1318, %v3556, %v3557
      %v3569 = vsel %vm1318, %v3555, %v3556
      %v3570 = vsel %vm1318, %v3554, %v3555
      %v3571 = vsel %vm1318, %v3553, %v3554
      %v3572 = vsel %vm1318, %v3552, %v3553
      %v3573 = vsel %vm1318, %v3551, %v3552
      %v3574 = vsel %vm1318, %v3550, %v3551
      %v3575 = vsel %vm1318, %v3549, %v3550
      %v3576 = vsel %vm1318, %v3548, %v3549
      %v3577 = vsel %vm1318, %v3547, %v3548
      %v3578 = vsel %vm1318, %v3546, %v3547
      %v3579 = vsel %vm1318, %v3545, %v3546
      %v3580 = vsel %vm1318, %v3544, %v3545
      %v3581 = vsel %vm1318, %v3543, %v3544
      %v3582 = vsel %vm1318, %v3542, %v3543
      %v3583 = vsel %vm1318, %v3541, %v3542
      %v3584 = vsel %vm1318, %v3540, %v3541
      %v3585 = vsel %vm1318, %v3539, %v3540
      %v3586 = vsel %vm1318, %v3538, %v3539
      %v3587 = vsel %vm1318, %v3537, %v3538
      %v3588 = vsel %vm1318, %v3536, %v3537
      %v3589 = vsel %vm1318, %v3535, %v3536
      %v3590 = vsel %vm1318, %v3534, %v3535
      %v3591 = vsel %vm1318, %v3533, %v3534
      %v3592 = vsel %vm1318, %v3532, %v3533
      %v3593 = vsel %vm1318, %v3531, %v3532
      %v3594 = vsel %vm1318, %v3530, %v3531
      %v3595 = vsel %vm1318, %v3529, %v3530
      %v3596 = vsel %vm1318, %v3528, %v3529
      %v3597 = vsel %vm1318, %v3527, %v3528
      %v3598 = vsel %vm1318, %v3526, %v3527
      %v3599 = vsel %vm1318, %v3525, %v3526
      %v3600 = vsel %vm1318, %v3524, %v3525
      %v3601 = vsel %vm1318, %v3523, %v3524
      %v3602 = vsel %vm1318, %v3522, %v3523
      %v3603 = vsel %vm1318, %v3521, %v3522
      %v3604 = vsel %vm1318, %v3520, %v3521
      %v3605 = vsel %vm1318, %v3519, %v3520
      %v3606 = vsel %vm1318, %v3518, %v3519
      %v3607 = vsel %vm1318, %v3517, %v3518
      %v3608 = vsel %vm1318, %v3516, %v3517
      %v3609 = vsel %vm1318, %v3515, %v3516
      %v3610 = vsel %vm1318, %v3562, %v3515
      %v3611 = vadd.f32 %v3083, %v3609
      %v3612 = vadd.f32 %v3086, %v3608
      %v3613 = vadd.f32 %v3091, %v3607
      %v3614 = vadd.f32 %v3094, %v3606
      %v3615 = vadd.f32 %v3099, %v3605
      %v3616 = vadd.f32 %v3102, %v3604
      %v3617 = vadd.f32 %v3107, %v3603
      %v3618 = vadd.f32 %v3110, %v3602
      %v3619 = vadd.f32 %v3115, %v3601
      %v3620 = vadd.f32 %v3118, %v3600
      %v3621 = vadd.f32 %v3123, %v3599
      %v3622 = vadd.f32 %v3126, %v3598
      %v3623 = vadd.f32 %v3131, %v3597
      %v3624 = vadd.f32 %v3134, %v3596
      %v3625 = vadd.f32 %v3139, %v3595
      %v3626 = vadd.f32 %v3142, %v3594
      %v3627 = vadd.f32 %v3147, %v3593
      %v3628 = vadd.f32 %v3150, %v3592
      %v3629 = vadd.f32 %v3155, %v3591
      %v3630 = vadd.f32 %v3158, %v3590
      %v3631 = vadd.f32 %v3163, %v3589
      %v3632 = vadd.f32 %v3166, %v3588
      %v3633 = vadd.f32 %v3171, %v3587
      %v3634 = vadd.f32 %v3174, %v3586
      %v3635 = vadd.f32 %v3179, %v3585
      %v3636 = vadd.f32 %v3182, %v3584
      %v3637 = vadd.f32 %v3187, %v3583
      %v3638 = vadd.f32 %v3190, %v3582
      %v3639 = vadd.f32 %v3195, %v3581
      %v3640 = vadd.f32 %v3198, %v3580
      %v3641 = vadd.f32 %v3203, %v3579
      %v3642 = vadd.f32 %v3206, %v3578
      %v3643 = vadd.f32 %v3211, %v3577
      %v3644 = vadd.f32 %v3214, %v3576
      %v3645 = vadd.f32 %v3219, %v3575
      %v3646 = vadd.f32 %v3222, %v3574
      %v3647 = vadd.f32 %v3227, %v3573
      %v3648 = vadd.f32 %v3230, %v3572
      %v3649 = vadd.f32 %v3235, %v3571
      %v3650 = vadd.f32 %v3238, %v3570
      %v3651 = vadd.f32 %v3243, %v3569
      %v3652 = vadd.f32 %v3246, %v3568
      %v3653 = vadd.f32 %v3251, %v3567
      %v3654 = vadd.f32 %v3254, %v3566
      %v3655 = vadd.f32 %v3259, %v3565
      %v3656 = vadd.f32 %v3262, %v3564
      %v3657 = vadd.f32 %v3267, %v3563
      %v3658 = vadd.f32 %v3270, %v3610
      %v3659 = vld [vmem:[#allocation2] sm:$0xff]
      %v3660 = vld [vmem:[#allocation2 + $0x8] sm:$0xff]
      %v3661 = vld [vmem:[#allocation2 + $0x10] sm:$0xff]
      %v3662 = vld [vmem:[#allocation2 + $0x18] sm:$0xff]
      %v3663 = vld [vmem:[#allocation2 + $0x20] sm:$0xff]
      %v3664 = vld [vmem:[#allocation2 + $0x28] sm:$0xff]
      %v3665 = vld [vmem:[#allocation2 + $0x30] sm:$0xff]
      %v3666 = vld [vmem:[#allocation2 + $0x38] sm:$0xff]
      %v3667 = vld [vmem:[#allocation2 + $0x40] sm:$0xff]
      %v3668 = vld [vmem:[#allocation2 + $0x48] sm:$0xff]
      %v3669 = vld [vmem:[#allocation2 + $0x50] sm:$0xff]
      %v3670 = vld [vmem:[#allocation2 + $0x58] sm:$0xff]
      %v3671 = vld [vmem:[#allocation2 + $0x60] sm:$0xff]
      %v3672 = vld [vmem:[#allocation2 + $0x68] sm:$0xff]
      %v3673 = vld [vmem:[#allocation2 + $0x70] sm:$0xff]
      %v3674 = vld [vmem:[#allocation2 + $0x78] sm:$0xff]
      %v3675 = vld [vmem:[#allocation2 + $0x80] sm:$0xff]
      %v3676 = vld [vmem:[#allocation2 + $0x88] sm:$0xff]
      %v3677 = vld [vmem:[#allocation2 + $0x90] sm:$0xff]
      %v3678 = vld [vmem:[#allocation2 + $0x98] sm:$0xff]
      %v3679 = vld [vmem:[#allocation2 + $0xa0] sm:$0xff]
      %v3680 = vld [vmem:[#allocation2 + $0xa8] sm:$0xff]
      %v3681 = vld [vmem:[#allocation2 + $0xb0] sm:$0xff]
      %v3682 = vld [vmem:[#allocation2 + $0xb8] sm:$0xff]
      %v3683 = vld [vmem:[#allocation2 + $0xc0] sm:$0xff]
      %v3684 = vld [vmem:[#allocation2 + $0xc8] sm:$0xff]
      %v3685 = vld [vmem:[#allocation2 + $0xd0] sm:$0xff]
      %v3686 = vld [vmem:[#allocation2 + $0xd8] sm:$0xff]
      %v3687 = vld [vmem:[#allocation2 + $0xe0] sm:$0xff]
      %v3688 = vld [vmem:[#allocation2 + $0xe8] sm:$0xff]
      %v3689 = vld [vmem:[#allocation2 + $0xf0] sm:$0xff]
      %v3690 = vld [vmem:[#allocation2 + $0xf8] sm:$0xff]
      %v3691 = vld [vmem:[#allocation2 + $0x100] sm:$0xff]
      %v3692 = vld [vmem:[#allocation2 + $0x108] sm:$0xff]
      %v3693 = vld [vmem:[#allocation2 + $0x110] sm:$0xff]
      %v3694 = vld [vmem:[#allocation2 + $0x118] sm:$0xff]
      %v3695 = vld [vmem:[#allocation2 + $0x120] sm:$0xff]
      %v3696 = vld [vmem:[#allocation2 + $0x128] sm:$0xff]
      %v3697 = vld [vmem:[#allocation2 + $0x130] sm:$0xff]
      %v3698 = vld [vmem:[#allocation2 + $0x138] sm:$0xff]
      %v3699 = vld [vmem:[#allocation2 + $0x140] sm:$0xff]
      %v3700 = vld [vmem:[#allocation2 + $0x148] sm:$0xff]
      %v3701 = vld [vmem:[#allocation2 + $0x150] sm:$0xff]
      %v3702 = vld [vmem:[#allocation2 + $0x158] sm:$0xff]
      %v3703 = vld [vmem:[#allocation2 + $0x160] sm:$0xff]
      %v3704 = vld [vmem:[#allocation2 + $0x168] sm:$0xff]
      %v3705 = vld [vmem:[#allocation2 + $0x170] sm:$0xff]
      %v3706 = vld [vmem:[#allocation2 + $0x178] sm:$0xff]
      %v3707 = vadd.f32 %v3659, %v3611
      %v3708 = vadd.f32 %v3660, %v3612
      %v3709 = vadd.f32 %v3661, %v3613
      %v3710 = vadd.f32 %v3662, %v3614
      %v3711 = vadd.f32 %v3663, %v3615
      %v3712 = vadd.f32 %v3664, %v3616
      %v3713 = vadd.f32 %v3665, %v3617
      %v3714 = vadd.f32 %v3666, %v3618
      %v3715 = vadd.f32 %v3667, %v3619
      %v3716 = vadd.f32 %v3668, %v3620
      %v3717 = vadd.f32 %v3669, %v3621
      %v3718 = vadd.f32 %v3670, %v3622
      %v3719 = vadd.f32 %v3671, %v3623
      %v3720 = vadd.f32 %v3672, %v3624
      %v3721 = vadd.f32 %v3673, %v3625
      %v3722 = vadd.f32 %v3674, %v3626
      %v3723 = vadd.f32 %v3675, %v3627
      %v3724 = vadd.f32 %v3676, %v3628
      %v3725 = vadd.f32 %v3677, %v3629
      %v3726 = vadd.f32 %v3678, %v3630
      %v3727 = vadd.f32 %v3679, %v3631
      %v3728 = vadd.f32 %v3680, %v3632
      %v3729 = vadd.f32 %v3681, %v3633
      %v3730 = vadd.f32 %v3682, %v3634
      %v3731 = vadd.f32 %v3683, %v3635
      %v3732 = vadd.f32 %v3684, %v3636
      %v3733 = vadd.f32 %v3685, %v3637
      %v3734 = vadd.f32 %v3686, %v3638
      %v3735 = vadd.f32 %v3687, %v3639
      %v3736 = vadd.f32 %v3688, %v3640
      %v3737 = vadd.f32 %v3689, %v3641
      %v3738 = vadd.f32 %v3690, %v3642
      %v3739 = vadd.f32 %v3691, %v3643
      %v3740 = vadd.f32 %v3692, %v3644
      %v3741 = vadd.f32 %v3693, %v3645
      %v3742 = vadd.f32 %v3694, %v3646
      %v3743 = vadd.f32 %v3695, %v3647
      %v3744 = vadd.f32 %v3696, %v3648
      %v3745 = vadd.f32 %v3697, %v3649
      %v3746 = vadd.f32 %v3698, %v3650
      %v3747 = vadd.f32 %v3699, %v3651
      %v3748 = vadd.f32 %v3700, %v3652
      %v3749 = vadd.f32 %v3701, %v3653
      %v3750 = vadd.f32 %v3702, %v3654
      %v3751 = vadd.f32 %v3703, %v3655
      %v3752 = vadd.f32 %v3704, %v3656
      %v3753 = vadd.f32 %v3705, %v3657
      %v3754 = vadd.f32 %v3706, %v3658
      %3755 = vst.msk [vmem:[#allocation2] sm:$0xff] %vm394, %v3707
      %3756 = vst.msk [vmem:[#allocation2 + $0x8] sm:$0xff] %vm394, %v3708
      %3757 = vst.msk [vmem:[#allocation2 + $0x10] sm:$0xff] %vm394, %v3709
      %3758 = vst.msk [vmem:[#allocation2 + $0x18] sm:$0xff] %vm394, %v3710
      %3759 = vst.msk [vmem:[#allocation2 + $0x20] sm:$0xff] %vm394, %v3711
      %3760 = vst.msk [vmem:[#allocation2 + $0x28] sm:$0xff] %vm394, %v3712
      %3761 = vst.msk [vmem:[#allocation2 + $0x30] sm:$0xff] %vm394, %v3713
      %3762 = vst.msk [vmem:[#allocation2 + $0x38] sm:$0xff] %vm394, %v3714
      %3763 = vst.msk [vmem:[#allocation2 + $0x40] sm:$0xff] %vm394, %v3715
      %3764 = vst.msk [vmem:[#allocation2 + $0x48] sm:$0xff] %vm394, %v3716
      %3765 = vst.msk [vmem:[#allocation2 + $0x50] sm:$0xff] %vm394, %v3717
      %3766 = vst.msk [vmem:[#allocation2 + $0x58] sm:$0xff] %vm394, %v3718
      %3767 = vst.msk [vmem:[#allocation2 + $0x60] sm:$0xff] %vm394, %v3719
      %3768 = vst.msk [vmem:[#allocation2 + $0x68] sm:$0xff] %vm394, %v3720
      %3769 = vst.msk [vmem:[#allocation2 + $0x70] sm:$0xff] %vm394, %v3721
      %3770 = vst.msk [vmem:[#allocation2 + $0x78] sm:$0xff] %vm394, %v3722
      %3771 = vst.msk [vmem:[#allocation2 + $0x80] sm:$0xff] %vm394, %v3723
      %3772 = vst.msk [vmem:[#allocation2 + $0x88] sm:$0xff] %vm394, %v3724
      %3773 = vst.msk [vmem:[#allocation2 + $0x90] sm:$0xff] %vm394, %v3725
      %3774 = vst.msk [vmem:[#allocation2 + $0x98] sm:$0xff] %vm394, %v3726
      %3775 = vst.msk [vmem:[#allocation2 + $0xa0] sm:$0xff] %vm394, %v3727
      %3776 = vst.msk [vmem:[#allocation2 + $0xa8] sm:$0xff] %vm394, %v3728
      %3777 = vst.msk [vmem:[#allocation2 + $0xb0] sm:$0xff] %vm394, %v3729
      %3778 = vst.msk [vmem:[#allocation2 + $0xb8] sm:$0xff] %vm394, %v3730
      %3779 = vst.msk [vmem:[#allocation2 + $0xc0] sm:$0xff] %vm394, %v3731
      %3780 = vst.msk [vmem:[#allocation2 + $0xc8] sm:$0xff] %vm394, %v3732
      %3781 = vst.msk [vmem:[#allocation2 + $0xd0] sm:$0xff] %vm394, %v3733
      %3782 = vst.msk [vmem:[#allocation2 + $0xd8] sm:$0xff] %vm394, %v3734
      %3783 = vst.msk [vmem:[#allocation2 + $0xe0] sm:$0xff] %vm394, %v3735
      %3784 = vst.msk [vmem:[#allocation2 + $0xe8] sm:$0xff] %vm394, %v3736
      %3785 = vst.msk [vmem:[#allocation2 + $0xf0] sm:$0xff] %vm394, %v3737
      %3786 = vst.msk [vmem:[#allocation2 + $0xf8] sm:$0xff] %vm394, %v3738
      %3787 = vst.msk [vmem:[#allocation2 + $0x100] sm:$0xff] %vm394, %v3739
      %3788 = vst.msk [vmem:[#allocation2 + $0x108] sm:$0xff] %vm394, %v3740
      %3789 = vst.msk [vmem:[#allocation2 + $0x110] sm:$0xff] %vm394, %v3741
      %3790 = vst.msk [vmem:[#allocation2 + $0x118] sm:$0xff] %vm394, %v3742
      %3791 = vst.msk [vmem:[#allocation2 + $0x120] sm:$0xff] %vm394, %v3743
      %3792 = vst.msk [vmem:[#allocation2 + $0x128] sm:$0xff] %vm394, %v3744
      %3793 = vst.msk [vmem:[#allocation2 + $0x130] sm:$0xff] %vm394, %v3745
      %3794 = vst.msk [vmem:[#allocation2 + $0x138] sm:$0xff] %vm394, %v3746
      %3795 = vst.msk [vmem:[#allocation2 + $0x140] sm:$0xff] %vm394, %v3747
      %3796 = vst.msk [vmem:[#allocation2 + $0x148] sm:$0xff] %vm394, %v3748
      %3797 = vst.msk [vmem:[#allocation2 + $0x150] sm:$0xff] %vm394, %v3749
      %3798 = vst.msk [vmem:[#allocation2 + $0x158] sm:$0xff] %vm394, %v3750
      %3799 = vst.msk [vmem:[#allocation2 + $0x160] sm:$0xff] %vm394, %v3751
      %3800 = vst.msk [vmem:[#allocation2 + $0x168] sm:$0xff] %vm394, %v3752
      %3801 = vst.msk [vmem:[#allocation2 + $0x170] sm:$0xff] %vm394, %v3753
      %3802 = vst.msk [vmem:[#allocation2 + $0x178] sm:$0xff] %vm394, %v3754
      %v3803 = vld [vmem:[#allocation2] sm:$0xff]
      %v3804 = vld [vmem:[#allocation2 + $0x8] sm:$0xff]
      %v3805 = vld [vmem:[#allocation2 + $0x18] sm:$0xff]
      %v3806 = vld [vmem:[#allocation2 + $0x20] sm:$0xff]
      %v3807 = vld [vmem:[#allocation2 + $0x30] sm:$0xff]
      %v3808 = vld [vmem:[#allocation2 + $0x38] sm:$0xff]
      %v3809 = vld [vmem:[#allocation2 + $0x48] sm:$0xff]
      %v3810 = vld [vmem:[#allocation2 + $0x50] sm:$0xff]
      %v3811 = vld [vmem:[#allocation2 + $0x60] sm:$0xff]
      %v3812 = vld [vmem:[#allocation2 + $0x68] sm:$0xff]
      %v3813 = vld [vmem:[#allocation2 + $0x78] sm:$0xff]
      %v3814 = vld [vmem:[#allocation2 + $0x80] sm:$0xff]
      %v3815 = vld [vmem:[#allocation2 + $0x90] sm:$0xff]
      %v3816 = vld [vmem:[#allocation2 + $0x98] sm:$0xff]
      %v3817 = vld [vmem:[#allocation2 + $0xa8] sm:$0xff]
      %v3818 = vld [vmem:[#allocation2 + $0xb0] sm:$0xff]
      %v3819 = vld [vmem:[#allocation2 + $0xc0] sm:$0xff]
      %v3820 = vld [vmem:[#allocation2 + $0xc8] sm:$0xff]
      %v3821 = vld [vmem:[#allocation2 + $0xd8] sm:$0xff]
      %v3822 = vld [vmem:[#allocation2 + $0xe0] sm:$0xff]
      %v3823 = vld [vmem:[#allocation2 + $0xf0] sm:$0xff]
      %v3824 = vld [vmem:[#allocation2 + $0xf8] sm:$0xff]
      %v3825 = vld [vmem:[#allocation2 + $0x108] sm:$0xff]
      %v3826 = vld [vmem:[#allocation2 + $0x110] sm:$0xff]
      %v3827 = vld [vmem:[#allocation2 + $0x120] sm:$0xff]
      %v3828 = vld [vmem:[#allocation2 + $0x128] sm:$0xff]
      %v3829 = vld [vmem:[#allocation2 + $0x138] sm:$0xff]
      %v3830 = vld [vmem:[#allocation2 + $0x140] sm:$0xff]
      %v3831 = vld [vmem:[#allocation2 + $0x150] sm:$0xff]
      %v3832 = vld [vmem:[#allocation2 + $0x158] sm:$0xff]
      %v3833 = vld [vmem:[#allocation2 + $0x168] sm:$0xff]
      %v3834 = vld [vmem:[#allocation2 + $0x170] sm:$0xff]
      %v3835 = vld [vmem:[%s2] sm:$0x1]
      %v3837 = vlaneseq
      %v3838 = vshrl.u32 %v3837, 7
      %v3839 = vsub.s32 0, %v3838
      %v3840 = vrot.slane %v3835, %v3839
      %v3842 = vmul.f32 %v3803, %v3840
      %v3843 = vmul.f32 %v3804, %v3840
      %v3844 = vmul.f32 %v3805, %v3840
      %v3845 = vmul.f32 %v3806, %v3840
      %v3846 = vmul.f32 %v3807, %v3840
      %v3847 = vmul.f32 %v3808, %v3840
      %v3848 = vmul.f32 %v3809, %v3840
      %v3849 = vmul.f32 %v3810, %v3840
      %v3850 = vmul.f32 %v3811, %v3840
      %v3851 = vmul.f32 %v3812, %v3840
      %v3852 = vmul.f32 %v3813, %v3840
      %v3853 = vmul.f32 %v3814, %v3840
      %v3854 = vmul.f32 %v3815, %v3840
      %v3855 = vmul.f32 %v3816, %v3840
      %v3856 = vmul.f32 %v3817, %v3840
      %v3857 = vmul.f32 %v3818, %v3840
      %v3858 = vmul.f32 %v3819, %v3840
      %v3859 = vmul.f32 %v3820, %v3840
      %v3860 = vmul.f32 %v3821, %v3840
      %v3861 = vmul.f32 %v3822, %v3840
      %v3862 = vmul.f32 %v3823, %v3840
      %v3863 = vmul.f32 %v3824, %v3840
      %v3864 = vmul.f32 %v3825, %v3840
      %v3865 = vmul.f32 %v3826, %v3840
      %v3866 = vmul.f32 %v3827, %v3840
      %v3867 = vmul.f32 %v3828, %v3840
      %v3868 = vmul.f32 %v3829, %v3840
      %v3869 = vmul.f32 %v3830, %v3840
      %v3870 = vmul.f32 %v3831, %v3840
      %v3871 = vmul.f32 %v3832, %v3840
      %v3872 = vmul.f32 %v3833, %v3840
      %v3873 = vmul.f32 %v3834, %v3840
      %v3874 = vld [vmem:[%s3] sm:$0x1]
      %v3876 = vlaneseq
      %v3877 = vshrl.u32 %v3876, 7
      %v3878 = vsub.s32 0, %v3877
      %v3879 = vrot.slane %v3874, %v3878
      %v3881 = vadd.f32 %v3842, %v3879
      %v3882 = vadd.f32 %v3843, %v3879
      %v3883 = vadd.f32 %v3844, %v3879
      %v3884 = vadd.f32 %v3845, %v3879
      %v3885 = vadd.f32 %v3846, %v3879
      %v3886 = vadd.f32 %v3847, %v3879
      %v3887 = vadd.f32 %v3848, %v3879
      %v3888 = vadd.f32 %v3849, %v3879
      %v3889 = vadd.f32 %v3850, %v3879
      %v3890 = vadd.f32 %v3851, %v3879
      %v3891 = vadd.f32 %v3852, %v3879
      %v3892 = vadd.f32 %v3853, %v3879
      %v3893 = vadd.f32 %v3854, %v3879
      %v3894 = vadd.f32 %v3855, %v3879
      %v3895 = vadd.f32 %v3856, %v3879
      %v3896 = vadd.f32 %v3857, %v3879
      %v3897 = vadd.f32 %v3858, %v3879
      %v3898 = vadd.f32 %v3859, %v3879
      %v3899 = vadd.f32 %v3860, %v3879
      %v3900 = vadd.f32 %v3861, %v3879
      %v3901 = vadd.f32 %v3862, %v3879
      %v3902 = vadd.f32 %v3863, %v3879
      %v3903 = vadd.f32 %v3864, %v3879
      %v3904 = vadd.f32 %v3865, %v3879
      %v3905 = vadd.f32 %v3866, %v3879
      %v3906 = vadd.f32 %v3867, %v3879
      %v3907 = vadd.f32 %v3868, %v3879
      %v3908 = vadd.f32 %v3869, %v3879
      %v3909 = vadd.f32 %v3870, %v3879
      %v3910 = vadd.f32 %v3871, %v3879
      %v3911 = vadd.f32 %v3872, %v3879
      %v3912 = vadd.f32 %v3873, %v3879
      %v3913 = vmax.f32 %v3881, 0.0
      %v3914 = vmax.f32 %v3882, 0.0
      %v3915 = vmax.f32 %v3883, 0.0
      %v3916 = vmax.f32 %v3884, 0.0
      %v3917 = vmax.f32 %v3885, 0.0
      %v3918 = vmax.f32 %v3886, 0.0
      %v3919 = vmax.f32 %v3887, 0.0
      %v3920 = vmax.f32 %v3888, 0.0
      %v3921 = vmax.f32 %v3889, 0.0
      %v3922 = vmax.f32 %v3890, 0.0
      %v3923 = vmax.f32 %v3891, 0.0
      %v3924 = vmax.f32 %v3892, 0.0
      %v3925 = vmax.f32 %v3893, 0.0
      %v3926 = vmax.f32 %v3894, 0.0
      %v3927 = vmax.f32 %v3895, 0.0
      %v3928 = vmax.f32 %v3896, 0.0
      %v3929 = vmax.f32 %v3897, 0.0
      %v3930 = vmax.f32 %v3898, 0.0
      %v3931 = vmax.f32 %v3899, 0.0
      %v3932 = vmax.f32 %v3900, 0.0
      %v3933 = vmax.f32 %v3901, 0.0
      %v3934 = vmax.f32 %v3902, 0.0
      %v3935 = vmax.f32 %v3903, 0.0
      %v3936 = vmax.f32 %v3904, 0.0
      %v3937 = vmax.f32 %v3905, 0.0
      %v3938 = vmax.f32 %v3906, 0.0
      %v3939 = vmax.f32 %v3907, 0.0
      %v3940 = vmax.f32 %v3908, 0.0
      %v3941 = vmax.f32 %v3909, 0.0
      %v3942 = vmax.f32 %v3910, 0.0
      %v3943 = vmax.f32 %v3911, 0.0
      %v3944 = vmax.f32 %v3912, 0.0
      %v3945 = vpack.c.bf16 %v3914, %v3913
      %v3946 = vpack.c.bf16 %v3916, %v3915
      %v3947 = vpack.c.bf16 %v3918, %v3917
      %v3948 = vpack.c.bf16 %v3920, %v3919
      %v3949 = vpack.c.bf16 %v3922, %v3921
      %v3950 = vpack.c.bf16 %v3924, %v3923
      %v3951 = vpack.c.bf16 %v3926, %v3925
      %v3952 = vpack.c.bf16 %v3928, %v3927
      %v3953 = vpack.c.bf16 %v3930, %v3929
      %v3954 = vpack.c.bf16 %v3932, %v3931
      %v3955 = vpack.c.bf16 %v3934, %v3933
      %v3956 = vpack.c.bf16 %v3936, %v3935
      %v3957 = vpack.c.bf16 %v3938, %v3937
      %v3958 = vpack.c.bf16 %v3940, %v3939
      %v3959 = vpack.c.bf16 %v3942, %v3941
      %v3960 = vpack.c.bf16 %v3944, %v3943
      %v3977 = vunpack.c.l.b16 %v3945
      %v3978 = vunpack.c.h.b16 %v3945
      %v3979 = vunpack.c.l.b16 %v3946
      %v3980 = vunpack.c.h.b16 %v3946
      %v3981 = vunpack.c.l.b16 %v3947
      %v3982 = vunpack.c.h.b16 %v3947
      %v3983 = vunpack.c.l.b16 %v3948
      %v3984 = vunpack.c.h.b16 %v3948
      %v3985 = vunpack.c.l.b16 %v3949
      %v3986 = vunpack.c.h.b16 %v3949
      %v3987 = vunpack.c.l.b16 %v3950
      %v3988 = vunpack.c.h.b16 %v3950
      %v3989 = vunpack.c.l.b16 %v3951
      %v3990 = vunpack.c.h.b16 %v3951
      %v3991 = vunpack.c.l.b16 %v3952
      %v3992 = vunpack.c.h.b16 %v3952
      %v3993 = vunpack.c.l.b16 %v3953
      %v3994 = vunpack.c.h.b16 %v3953
      %v3995 = vunpack.c.l.b16 %v3954
      %v3996 = vunpack.c.h.b16 %v3954
      %v3997 = vunpack.c.l.b16 %v3955
      %v3998 = vunpack.c.h.b16 %v3955
      %v3999 = vunpack.c.l.b16 %v3956
      %v4000 = vunpack.c.h.b16 %v3956
      %v4001 = vunpack.c.l.b16 %v3957
      %v4002 = vunpack.c.h.b16 %v3957
      %v4003 = vunpack.c.l.b16 %v3958
      %v4004 = vunpack.c.h.b16 %v3958
      %v4005 = vunpack.c.l.b16 %v3959
      %v4006 = vunpack.c.h.b16 %v3959
      %v4007 = vunpack.c.l.b16 %v3960
      %v4008 = vunpack.c.h.b16 %v3960
      %v4009 = vpack.c.b16 %v3977, %v3977
      %v4010 = vpack.c.b16 %v3978, %v3978
      %v4011 = vpack.c.b16 %v3979, %v3979
      %v4012 = vpack.c.b16 %v3980, %v3980
      %v4013 = vpack.c.b16 %v3981, %v3981
      %v4014 = vpack.c.b16 %v3982, %v3982
      %v4015 = vpack.c.b16 %v3983, %v3983
      %v4016 = vpack.c.b16 %v3984, %v3984
      %v4017 = vpack.c.b16 %v3985, %v3985
      %v4018 = vpack.c.b16 %v3986, %v3986
      %v4019 = vpack.c.b16 %v3987, %v3987
      %v4020 = vpack.c.b16 %v3988, %v3988
      %v4021 = vpack.c.b16 %v3989, %v3989
      %v4022 = vpack.c.b16 %v3990, %v3990
      %v4023 = vpack.c.b16 %v3991, %v3991
      %v4024 = vpack.c.b16 %v3992, %v3992
      %v4025 = vpack.c.b16 %v3993, %v3993
      %v4026 = vpack.c.b16 %v3994, %v3994
      %v4027 = vpack.c.b16 %v3995, %v3995
      %v4028 = vpack.c.b16 %v3996, %v3996
      %v4029 = vpack.c.b16 %v3997, %v3997
      %v4030 = vpack.c.b16 %v3998, %v3998
      %v4031 = vpack.c.b16 %v3999, %v3999
      %v4032 = vpack.c.b16 %v4000, %v4000
      %v4033 = vpack.c.b16 %v4001, %v4001
      %v4034 = vpack.c.b16 %v4002, %v4002
      %v4035 = vpack.c.b16 %v4003, %v4003
      %v4036 = vpack.c.b16 %v4004, %v4004
      %v4037 = vpack.c.b16 %v4005, %v4005
      %v4038 = vpack.c.b16 %v4006, %v4006
      %v4039 = vpack.c.b16 %v4007, %v4007
      %v4040 = vpack.c.b16 %v4008, %v4008
      %vm4073 = vcmask 257024
      %4074 = vst.msk [vmem:[%s197] sm:$0xf] %vm4073, %v4009
      %4075 = vst.msk [vmem:[%s197 + $0x4] sm:$0xf] %vm4073, %v4010
      %4076 = vst.msk [vmem:[%s197 + $0x8] sm:$0xf] %vm4073, %v4011
      %4077 = vst.msk [vmem:[%s197 + $0xc] sm:$0xf] %vm4073, %v4012
      %4078 = vst.msk [vmem:[%s197 + $0x10] sm:$0xf] %vm4073, %v4013
      %4079 = vst.msk [vmem:[%s197 + $0x14] sm:$0xf] %vm4073, %v4014
      %4080 = vst.msk [vmem:[%s197 + $0x18] sm:$0xf] %vm4073, %v4015
      %4081 = vst.msk [vmem:[%s197 + $0x1c] sm:$0xf] %vm4073, %v4016
      %4082 = vst.msk [vmem:[%s197 + $0x20] sm:$0xf] %vm4073, %v4017
      %4083 = vst.msk [vmem:[%s197 + $0x24] sm:$0xf] %vm4073, %v4018
      %4084 = vst.msk [vmem:[%s197 + $0x28] sm:$0xf] %vm4073, %v4019
      %4085 = vst.msk [vmem:[%s197 + $0x2c] sm:$0xf] %vm4073, %v4020
      %4086 = vst.msk [vmem:[%s197 + $0x30] sm:$0xf] %vm4073, %v4021
      %4087 = vst.msk [vmem:[%s197 + $0x34] sm:$0xf] %vm4073, %v4022
      %4088 = vst.msk [vmem:[%s197 + $0x38] sm:$0xf] %vm4073, %v4023
      %4089 = vst.msk [vmem:[%s197 + $0x3c] sm:$0xf] %vm4073, %v4024
      %4090 = vst.msk [vmem:[%s197 + $0x40] sm:$0xf] %vm4073, %v4025
      %4091 = vst.msk [vmem:[%s197 + $0x44] sm:$0xf] %vm4073, %v4026
      %4092 = vst.msk [vmem:[%s197 + $0x48] sm:$0xf] %vm4073, %v4027
      %4093 = vst.msk [vmem:[%s197 + $0x4c] sm:$0xf] %vm4073, %v4028
      %4094 = vst.msk [vmem:[%s197 + $0x50] sm:$0xf] %vm4073, %v4029
      %4095 = vst.msk [vmem:[%s197 + $0x54] sm:$0xf] %vm4073, %v4030
      %4096 = vst.msk [vmem:[%s197 + $0x58] sm:$0xf] %vm4073, %v4031
      %4097 = vst.msk [vmem:[%s197 + $0x5c] sm:$0xf] %vm4073, %v4032
      %4098 = vst.msk [vmem:[%s197 + $0x60] sm:$0xf] %vm4073, %v4033
      %4099 = vst.msk [vmem:[%s197 + $0x64] sm:$0xf] %vm4073, %v4034
      %4100 = vst.msk [vmem:[%s197 + $0x68] sm:$0xf] %vm4073, %v4035
      %4101 = vst.msk [vmem:[%s197 + $0x6c] sm:$0xf] %vm4073, %v4036
      %4102 = vst.msk [vmem:[%s197 + $0x70] sm:$0xf] %vm4073, %v4037
      %4103 = vst.msk [vmem:[%s197 + $0x74] sm:$0xf] %vm4073, %v4038
      %4104 = vst.msk [vmem:[%s197 + $0x78] sm:$0xf] %vm4073, %v4039
      %4105 = vst.msk [vmem:[%s197 + $0x7c] sm:$0xf] %vm4073, %v4040
      %p4106 = scmp.lt.s32.totalorder %s15, 1
      %s4107 = scalar_select %p4106, %s15, 1
      %s4108 = smul.addr %s4107, 32
      %s4109 = smul.addr %s4108, 4
      %s4110 = scalar_lea.vmem %s4, %s4109
      // Predicated region
      $region37: #{deeplab_forward.5} parent=35 // pred_check
        %p4111 = pneg %p122
      $region38: #{deeplab_forward.5} parent=35 // pred_check_branch
        %4113 = sbr.rel (%p4111) target = $region40
      $region39: #{deeplab_forward.5} parent=35 // pred_region
        _
      $region40: #{deeplab_forward.5} parent=35 // pred_fallthru
        _
    $region36: #{deeplab_forward.5} parent=5 // pred_fallthru
      _
    %p4114 = scmp.le.s32.totalorder 2, %s10
    // Predicated region
    $region41: #{deeplab_forward.5} parent=5 // pred_check
      %p4115 = pneg %p4114
    $region42: #{deeplab_forward.5} parent=5 // pred_check_branch
      %4117 = sbr.rel (%p4115) target = $region44
    $region43: #{deeplab_forward.5} parent=5 // pred_region
      %s4118 = ssub.s32 %s10, 2
      // Predicated region
      $region45: #{deeplab_forward.5} parent=43 // pred_check
        %p4119 = pneg %p128
      $region46: #{deeplab_forward.5} parent=43 // pred_check_branch
        %4121 = sbr.rel (%p4119) target = $region48
      $region47: #{deeplab_forward.5} parent=43 // pred_region
        %p4122 = scmp.lt.s32.totalorder %s16, 1
        %s4123 = scalar_select %p4122, %s16, 1
        %s4124 = smul.addr %s4123, 32
        %s4125 = smul.addr %s4124, 4
        %s4126 = scalar_lea.vmem %s4, %s4125
      $region48: #{deeplab_forward.5} parent=43 // pred_fallthru
        _
    $region44: #{deeplab_forward.5} parent=5 // pred_fallthru
      _
  $region6: #{deeplab_forward.5} parent=0 // loop_footer
    %s14 = sadd.s32 1, %s10
  $region7: #{deeplab_forward.5} parent=0 // loop_footer_branch
    %9 = sbr.rel target = $region3
  $region8: #{deeplab_forward.5} parent=0 // loop_exit
    _

</llo_original>
